<compile_context>
chip_gen: v6e
topology: v6e:2x2x1
jax: 0.10.0
libtpu: 0.0.40
codegen_flags: <defaults>
</compile_context>

<pallas_src>
import functools

import jax
import jax.numpy as jnp
from jax.experimental import pallas as pl
from jax.experimental.pallas import tpu as pltpu

C = 64  # channel width of every internal layer


# ---------------------------------------------------------------------------
# Fused kernel: one grid step == one batch element, all layers in VMEM.
#
# Packed activation layout (scratch buffers buf2..buf6), per layer input of
# spatial size H x W with C channels:
#     buf[(1+h), (1+q), s*C + c] = act[h, 2*q + s, c]        (q = column pair)
# with one zero "pad" line on every border (rows 0 / H+1, column blocks
# 0 / W/2+1).  In this layout the 4x4 / stride-2 / pad-1 conv needs only
# contiguous slabs:
#     slab A = buf[r, 0:OW ]   -> lane-half s=1 is the kw=0 tap
#     slab B = buf[r, 1:OW+1]  -> s=0 is kw=1, s=1 is kw=2
#     slab C = buf[r, 2:OW+2]  -> s=0 is kw=3
# A and C are merged with a lane select into a single K=128 operand.
# ---------------------------------------------------------------------------
def _enc_conv_kernel(patches_ref, w1_ref, wq_ref, w6_ref, b_ref, o_ref,
                     buf2, buf3, buf4, buf5, buf6):
    f32 = jnp.float32

    # ---- zero the padded borders of the inter-layer scratch buffers -------
    for buf in (buf2, buf3, buf4, buf5):
        hp, qp, _ = buf.shape
        zrow = jnp.zeros((1, qp, 2 * C), f32)
        zcol = jnp.zeros((hp, 1, 2 * C), f32)
        buf[0:1, :, :] = zrow
        buf[hp - 1:hp, :, :] = zrow
        buf[:, 0:1, :] = zcol
        buf[:, qp - 1:qp, :] = zcol

    # ---- layer 1: K=96 packed patches -> one dot per output-row pair ------
    oq1 = patches_ref.shape[2]            # 64  (output width / 2)
    npair = patches_ref.shape[1] // 2     # 64  (output rows / 2)
    w1 = w1_ref[...]                      # (96, 128) block-diagonal weights
    b1 = b_ref[0:1, :]                    # (1, 64)
    b1p = jnp.concatenate([b1, b1], axis=-1)   # (1, 128)

    def l1_body(i, carry):
        p = patches_ref[0, pl.ds(2 * i, 2), :, :]            # (2, oq1, 96)
        y = jnp.dot(p.reshape(2 * oq1, 96), w1,
                    preferred_element_type=f32)              # (2*oq1, 128)
        y = jnp.maximum(y + b1p, 0.0)
        buf2[pl.ds(2 * i + 1, 2), 1:oq1 + 1, :] = y.reshape(2, oq1, 2 * C)
        return carry

    jax.lax.fori_loop(0, npair, l1_body, 0)

    # ---- layers 2..5: 4x4/s2/p1 conv on packed VMEM buffers ----------------
    def conv_s2(in_buf, out_buf, layer_idx):
        hp, qp, _ = in_buf.shape
        ow = qp - 2                 # output width  (= input_width // 2)
        oh = (hp - 2) // 2          # output height
        oq = ow // 2                # output column pairs
        wl = layer_idx - 1          # index into stacked weights (layers 2..5)
        bias = b_ref[layer_idx:layer_idx + 1, :]             # (1, 64)

        lane = jax.lax.broadcasted_iota(jnp.int32, (ow, 2 * C), 1)
        edge_lo = lane < C
        rq = jax.lax.broadcasted_iota(jnp.int32, (oq, ow), 0)
        cq = jax.lax.broadcasted_iota(jnp.int32, (oq, ow), 1)
        pe = (cq == 2 * rq).astype(f32)        # exact even-column selector
        po = (cq == 2 * rq + 1).astype(f32)    # exact odd-column selector

        def body(oh_i, carry):
            acc = jnp.zeros((ow, C), f32)
            for kh in range(4):
                r = 2 * oh_i + kh
                sa = in_buf[pl.ds(r, 1), 0:ow, :].reshape(ow, 2 * C)
                sb = in_buf[pl.ds(r, 1), 1:ow + 1, :].reshape(ow, 2 * C)
                sc = in_buf[pl.ds(r, 1), 2:ow + 2, :].reshape(ow, 2 * C)
                edge = jnp.where(edge_lo, sc, sa)    # [kw=3 | kw=0] operand
                acc = acc + jnp.dot(sb, wq_ref[wl, kh, 0],
                                    preferred_element_type=f32)
                acc = acc + jnp.dot(edge, wq_ref[wl, kh, 1],
                                    preferred_element_type=f32)
            acc = jnp.maximum(acc + bias, 0.0)
            ev = jnp.dot(pe, acc, preferred_element_type=f32)   # (oq, 64)
            od = jnp.dot(po, acc, preferred_element_type=f32)   # (oq, 64)
            packed = jnp.concatenate([ev, od], axis=-1)         # (oq, 128)
            out_buf[pl.ds(oh_i + 1, 1), 1:oq + 1, :] = packed.reshape(1, oq, 2 * C)
            return carry

        jax.lax.fori_loop(0, oh, body, 0)

    conv_s2(buf2, buf3, 1)
    conv_s2(buf3, buf4, 2)
    conv_s2(buf4, buf5, 3)
    conv_s2(buf5, buf6, 4)

    # ---- layer 6: 8x8 valid conv == one K=4096 contraction (8 x K=512) ----
    acc6 = jnp.zeros((1, C), f32)
    for hh in range(8):
        pieces = [buf6[hh + 1, pl.ds(qq + 1, 1), :] for qq in range(4)]
        v = jnp.concatenate(pieces, axis=-1)                 # (1, 512)
        acc6 = acc6 + jnp.dot(v, w6_ref[hh], preferred_element_type=f32)
    o_ref[...] = (acc6 + b_ref[5:6, :]).reshape(1, 1, C)


# ---------------------------------------------------------------------------
# Host-side weight / input re-grouping (tiny, done once inside jit).
# ---------------------------------------------------------------------------
def _regroup_conv_w(w_oihw):
    """(64,64,4,4) -> (4 kh, 2 slabs, 128, 64); no zero padding / waste."""
    wt = jnp.transpose(w_oihw, (2, 3, 1, 0))                    # (kh, kw, ci, co)
    center = jnp.concatenate([wt[:, 1], wt[:, 2]], axis=1)      # (4, 128, 64)
    edge = jnp.concatenate([wt[:, 3], wt[:, 0]], axis=1)        # (4, 128, 64)
    return jnp.stack([center, edge], axis=1)                    # (4, 2, 128, 64)


def _layer1_patches(x_nhwc, oh1):
    """(N,256,256,3) -> (N, 128, 64, 96): column-pair packed 4x4 patches."""
    xp = jnp.pad(x_nhwc, ((0, 0), (1, 1), (1, 1), (0, 0)))
    taps = []
    for kh in range(4):
        for kw in range(4):
            taps.append(xp[:, kh:kh + 2 * oh1 - 1:2, kw:kw + 2 * oh1 - 1:2, :])
    patches = jnp.concatenate(taps, axis=-1)                    # (N,128,128,48)
    return patches.reshape(x_nhwc.shape[0], oh1, oh1 // 2, 96)


def enc_conv_forward(x_nchw, params):
    x = jnp.transpose(x_nchw, (0, 2, 3, 1)).astype(jnp.float32)   # NHWC
    n, h, w, cin = x.shape
    assert (h, w, cin) == (256, 256, 3), "EncConv expects 256x256x3 input"
    oh1 = h // 2                       # 128
    oq1 = oh1 // 2                     # 64

    patches = _layer1_patches(x, oh1)

    # layer-1 block-diagonal weights: [even-patch | odd-patch] -> [ev | od]
    w48 = jnp.transpose(params[0][0], (2, 3, 1, 0)).reshape(48, C)
    w1b = jnp.zeros((96, 2 * C), jnp.float32)
    w1b = w1b.at[0:48, 0:C].set(w48).at[48:96, C:2 * C].set(w48)

    wq_all = jnp.stack([_regroup_conv_w(params[i][0]) for i in range(1, 5)],
                       axis=0)                                  # (4,4,2,128,64)
    w6r = jnp.transpose(params[5][0], (2, 3, 1, 0)).reshape(8, 8 * C, C)
    biases = jnp.stack([p[1] for p in params], axis=0).astype(jnp.float32)

    def packed_buf(hh):   # padded packed scratch for an hh x hh x 64 input
        return pltpu.VMEM((hh + 2, hh // 2 + 2, 2 * C), jnp.float32)

    out = pl.pallas_call(
        _enc_conv_kernel,
        out_shape=jax.ShapeDtypeStruct((n, 1, C), jnp.float32),
        grid_spec=pltpu.PrefetchScalarGridSpec(
            num_scalar_prefetch=0,
            grid=(n,),
            in_specs=[
                pl.BlockSpec((1, oh1, oq1, 96), lambda i: (i, 0, 0, 0)),
                pl.BlockSpec((96, 2 * C), lambda i: (0, 0)),
                pl.BlockSpec((4, 4, 2, 2 * C, C), lambda i: (0, 0, 0, 0, 0)),
                pl.BlockSpec((8, 8 * C, C), lambda i: (0, 0, 0)),
                pl.BlockSpec((6, C), lambda i: (0, 0)),
            ],
            out_specs=pl.BlockSpec((1, 1, C), lambda i: (i, 0, 0)),
            scratch_shapes=[packed_buf(128), packed_buf(64), packed_buf(32),
                            packed_buf(16), packed_buf(8)],
        ),
        compiler_params=pltpu.CompilerParams(
            dimension_semantics=("parallel",),
            vmem_limit_bytes=48 * 1024 * 1024),
    )(patches, w1b, wq_all, w6r, biases)

    out = out.reshape(n, 1, 1, C)
    return jnp.transpose(out, (0, 3, 1, 2))     # NCHW (N, 64, 1, 1)


# ---- EncConv module definition (deterministic synthetic params) -----------

_LAYER_SPECS = [  # (cin, cout, k, stride, pad, relu)
    (3, 64, 4, 2, 1, True),
    (64, 64, 4, 2, 1, True),
    (64, 64, 4, 2, 1, True),
    (64, 64, 4, 2, 1, True),
    (64, 64, 4, 2, 1, True),
    (64, 64, 8, 1, 0, False),
]


def init_params(key):
    params = []
    for idx, (cin, cout, k, _, _, _) in enumerate(_LAYER_SPECS):
        kw_key, kb_key = jax.random.split(jax.random.fold_in(key, idx))
        fan_in = cin * k * k
        bound = 1.0 / (fan_in ** 0.5)  # PyTorch default Conv2d init range
        wgt = jax.random.uniform(kw_key, (cout, cin, k, k), jnp.float32, -bound, bound)
        bia = jax.random.uniform(kb_key, (cout,), jnp.float32, -bound, bound)
        params.append((wgt, bia))
    return params


def enc_conv_reference(x_nchw, params):
    """Pure-XLA reference for correctness checking."""
    x = x_nchw
    for (wgt, bia), (_, _, _, s, p, r) in zip(params, _LAYER_SPECS):
        x = jax.lax.conv_general_dilated(
            x, wgt, (s, s), [(p, p), (p, p)],
            dimension_numbers=("NCHW", "OIHW", "NCHW"))
        x = x + bia.reshape(1, -1, 1, 1)
        if r:
            x = jax.nn.relu(x)
    return x


if __name__ == "__main__":
    key = jax.random.PRNGKey(0)
    params = init_params(jax.random.fold_in(key, 1))
    # Smallest spatial size consistent with the module: 5 stride-2 convs then
    # an 8x8 valid conv requires input 8 * 2**5 = 256.
    x = jax.random.normal(jax.random.fold_in(key, 2), (2, 3, 256, 256), jnp.float32)

    fwd = jax.jit(enc_conv_forward)
    out = jax.block_until_ready(fwd(x, params))            # (2, 64, 1, 1)
    ref = jax.block_until_ready(enc_conv_reference(x, params))

    assert out.shape == (2, 64, 1, 1), out.shape
    assert jnp.allclose(out, ref, rtol=1e-4, atol=1e-4), "mismatch vs XLA reference"
    print("KERNEL_OK")
</pallas_src>

<mosaic_0001>
module attributes {stable_mosaic.version = 11 : i64} {
  func.func @_enc_conv_kernel(%arg0: i32, %arg1: memref<1x128x64x96xf32, #tpu.memory_space<vmem>>, %arg2: memref<96x128xf32, #tpu.memory_space<vmem>>, %arg3: memref<4x4x2x128x64xf32, #tpu.memory_space<vmem>>, %arg4: memref<8x512x64xf32, #tpu.memory_space<vmem>>, %arg5: memref<6x64xf32, #tpu.memory_space<vmem>>, %arg6: memref<1x1x64xf32, #tpu.memory_space<vmem>>, %arg7: memref<130x66x128xf32, #tpu.memory_space<vmem>>, %arg8: memref<66x34x128xf32, #tpu.memory_space<vmem>>, %arg9: memref<34x18x128xf32, #tpu.memory_space<vmem>>, %arg10: memref<18x10x128xf32, #tpu.memory_space<vmem>>, %arg11: memref<10x6x128xf32, #tpu.memory_space<vmem>>) attributes {dimension_semantics = [#tpu.dimension_semantics<parallel>], iteration_bounds = array<i64: 2>, scalar_prefetch = 0 : i64, scratch_operands = 5 : i64, tpu.core_type = #tpu.core_type<tc>, window_params = [{transform_indices = @transform_0, window_bounds = array<i64: 1, 128, 64, 96>}, {pipeline_mode = #tpu.pipeline_mode<synchronous>, transform_indices = @transform_1, window_bounds = array<i64: 96, 128>}, {pipeline_mode = #tpu.pipeline_mode<synchronous>, transform_indices = @transform_2, window_bounds = array<i64: 4, 4, 2, 128, 64>}, {pipeline_mode = #tpu.pipeline_mode<synchronous>, transform_indices = @transform_3, window_bounds = array<i64: 8, 512, 64>}, {pipeline_mode = #tpu.pipeline_mode<synchronous>, transform_indices = @transform_4, window_bounds = array<i64: 6, 64>}, {transform_indices = @transform_5, window_bounds = array<i64: 1, 1, 64>}]} {
    %cst = arith.constant 0.000000e+00 : f32
    %0 = vector.broadcast %cst : f32 to vector<1x66x128xf32>
    %cst_0 = arith.constant 0.000000e+00 : f32
    %1 = vector.broadcast %cst_0 : f32 to vector<130x1x128xf32>
    %c0 = arith.constant 0 : index
    %c0_1 = arith.constant 0 : index
    %c0_2 = arith.constant 0 : index
    %2 = vector.load %arg7[%c0, %c0_1, %c0_2] : memref<130x66x128xf32, #tpu.memory_space<vmem>>, vector<1x66x128xf32>
    tpu.vector_store %arg7[%c0, %c0_1, %c0_2], %0 {strides = array<i32>} : memref<130x66x128xf32, #tpu.memory_space<vmem>>, vector<1x66x128xf32>,
    %c129 = arith.constant 129 : index
    %c0_3 = arith.constant 0 : index
    %c0_4 = arith.constant 0 : index
    %3 = vector.load %arg7[%c129, %c0_3, %c0_4] : memref<130x66x128xf32, #tpu.memory_space<vmem>>, vector<1x66x128xf32>
    tpu.vector_store %arg7[%c129, %c0_3, %c0_4], %0 {strides = array<i32>} : memref<130x66x128xf32, #tpu.memory_space<vmem>>, vector<1x66x128xf32>,
    %c0_5 = arith.constant 0 : index
    %c0_6 = arith.constant 0 : index
    %c0_7 = arith.constant 0 : index
    %4 = vector.load %arg7[%c0_5, %c0_6, %c0_7] : memref<130x66x128xf32, #tpu.memory_space<vmem>>, vector<130x1x128xf32>
    tpu.vector_store %arg7[%c0_5, %c0_6, %c0_7], %1 {strides = array<i32>} : memref<130x66x128xf32, #tpu.memory_space<vmem>>, vector<130x1x128xf32>,
    %c0_8 = arith.constant 0 : index
    %c65 = arith.constant 65 : index
    %c0_9 = arith.constant 0 : index
    %5 = vector.load %arg7[%c0_8, %c65, %c0_9] : memref<130x66x128xf32, #tpu.memory_space<vmem>>, vector<130x1x128xf32>
    tpu.vector_store %arg7[%c0_8, %c65, %c0_9], %1 {strides = array<i32>} : memref<130x66x128xf32, #tpu.memory_space<vmem>>, vector<130x1x128xf32>,
    %cst_10 = arith.constant 0.000000e+00 : f32
    %6 = vector.broadcast %cst_10 : f32 to vector<1x34x128xf32>
    %cst_11 = arith.constant 0.000000e+00 : f32
    %7 = vector.broadcast %cst_11 : f32 to vector<66x1x128xf32>
    %c0_12 = arith.constant 0 : index
    %c0_13 = arith.constant 0 : index
    %c0_14 = arith.constant 0 : index
    %8 = vector.load %arg8[%c0_12, %c0_13, %c0_14] : memref<66x34x128xf32, #tpu.memory_space<vmem>>, vector<1x34x128xf32>
    tpu.vector_store %arg8[%c0_12, %c0_13, %c0_14], %6 {strides = array<i32>} : memref<66x34x128xf32, #tpu.memory_space<vmem>>, vector<1x34x128xf32>,
    %c65_15 = arith.constant 65 : index
    %c0_16 = arith.constant 0 : index
    %c0_17 = arith.constant 0 : index
    %9 = vector.load %arg8[%c65_15, %c0_16, %c0_17] : memref<66x34x128xf32, #tpu.memory_space<vmem>>, vector<1x34x128xf32>
    tpu.vector_store %arg8[%c65_15, %c0_16, %c0_17], %6 {strides = array<i32>} : memref<66x34x128xf32, #tpu.memory_space<vmem>>, vector<1x34x128xf32>,
    %c0_18 = arith.constant 0 : index
    %c0_19 = arith.constant 0 : index
    %c0_20 = arith.constant 0 : index
    %10 = vector.load %arg8[%c0_18, %c0_19, %c0_20] : memref<66x34x128xf32, #tpu.memory_space<vmem>>, vector<66x1x128xf32>
    tpu.vector_store %arg8[%c0_18, %c0_19, %c0_20], %7 {strides = array<i32>} : memref<66x34x128xf32, #tpu.memory_space<vmem>>, vector<66x1x128xf32>,
    %c0_21 = arith.constant 0 : index
    %c33 = arith.constant 33 : index
    %c0_22 = arith.constant 0 : index
    %11 = vector.load %arg8[%c0_21, %c33, %c0_22] : memref<66x34x128xf32, #tpu.memory_space<vmem>>, vector<66x1x128xf32>
    tpu.vector_store %arg8[%c0_21, %c33, %c0_22], %7 {strides = array<i32>} : memref<66x34x128xf32, #tpu.memory_space<vmem>>, vector<66x1x128xf32>,
    %cst_23 = arith.constant 0.000000e+00 : f32
    %12 = vector.broadcast %cst_23 : f32 to vector<1x18x128xf32>
    %cst_24 = arith.constant 0.000000e+00 : f32
    %13 = vector.broadcast %cst_24 : f32 to vector<34x1x128xf32>
    %c0_25 = arith.constant 0 : index
    %c0_26 = arith.constant 0 : index
    %c0_27 = arith.constant 0 : index
    %14 = vector.load %arg9[%c0_25, %c0_26, %c0_27] : memref<34x18x128xf32, #tpu.memory_space<vmem>>, vector<1x18x128xf32>
    tpu.vector_store %arg9[%c0_25, %c0_26, %c0_27], %12 {strides = array<i32>} : memref<34x18x128xf32, #tpu.memory_space<vmem>>, vector<1x18x128xf32>,
    %c33_28 = arith.constant 33 : index
    %c0_29 = arith.constant 0 : index
    %c0_30 = arith.constant 0 : index
    %15 = vector.load %arg9[%c33_28, %c0_29, %c0_30] : memref<34x18x128xf32, #tpu.memory_space<vmem>>, vector<1x18x128xf32>
    tpu.vector_store %arg9[%c33_28, %c0_29, %c0_30], %12 {strides = array<i32>} : memref<34x18x128xf32, #tpu.memory_space<vmem>>, vector<1x18x128xf32>,
    %c0_31 = arith.constant 0 : index
    %c0_32 = arith.constant 0 : index
    %c0_33 = arith.constant 0 : index
    %16 = vector.load %arg9[%c0_31, %c0_32, %c0_33] : memref<34x18x128xf32, #tpu.memory_space<vmem>>, vector<34x1x128xf32>
    tpu.vector_store %arg9[%c0_31, %c0_32, %c0_33], %13 {strides = array<i32>} : memref<34x18x128xf32, #tpu.memory_space<vmem>>, vector<34x1x128xf32>,
    %c0_34 = arith.constant 0 : index
    %c17 = arith.constant 17 : index
    %c0_35 = arith.constant 0 : index
    %17 = vector.load %arg9[%c0_34, %c17, %c0_35] : memref<34x18x128xf32, #tpu.memory_space<vmem>>, vector<34x1x128xf32>
    tpu.vector_store %arg9[%c0_34, %c17, %c0_35], %13 {strides = array<i32>} : memref<34x18x128xf32, #tpu.memory_space<vmem>>, vector<34x1x128xf32>,
    %cst_36 = arith.constant 0.000000e+00 : f32
    %18 = vector.broadcast %cst_36 : f32 to vector<1x10x128xf32>
    %cst_37 = arith.constant 0.000000e+00 : f32
    %19 = vector.broadcast %cst_37 : f32 to vector<18x1x128xf32>
    %c0_38 = arith.constant 0 : index
    %c0_39 = arith.constant 0 : index
    %c0_40 = arith.constant 0 : index
    %20 = vector.load %arg10[%c0_38, %c0_39, %c0_40] : memref<18x10x128xf32, #tpu.memory_space<vmem>>, vector<1x10x128xf32>
    tpu.vector_store %arg10[%c0_38, %c0_39, %c0_40], %18 {strides = array<i32>} : memref<18x10x128xf32, #tpu.memory_space<vmem>>, vector<1x10x128xf32>,
    %c17_41 = arith.constant 17 : index
    %c0_42 = arith.constant 0 : index
    %c0_43 = arith.constant 0 : index
    %21 = vector.load %arg10[%c17_41, %c0_42, %c0_43] : memref<18x10x128xf32, #tpu.memory_space<vmem>>, vector<1x10x128xf32>
    tpu.vector_store %arg10[%c17_41, %c0_42, %c0_43], %18 {strides = array<i32>} : memref<18x10x128xf32, #tpu.memory_space<vmem>>, vector<1x10x128xf32>,
    %c0_44 = arith.constant 0 : index
    %c0_45 = arith.constant 0 : index
    %c0_46 = arith.constant 0 : index
    %22 = vector.load %arg10[%c0_44, %c0_45, %c0_46] : memref<18x10x128xf32, #tpu.memory_space<vmem>>, vector<18x1x128xf32>
    tpu.vector_store %arg10[%c0_44, %c0_45, %c0_46], %19 {strides = array<i32>} : memref<18x10x128xf32, #tpu.memory_space<vmem>>, vector<18x1x128xf32>,
    %c0_47 = arith.constant 0 : index
    %c9 = arith.constant 9 : index
    %c0_48 = arith.constant 0 : index
    %23 = vector.load %arg10[%c0_47, %c9, %c0_48] : memref<18x10x128xf32, #tpu.memory_space<vmem>>, vector<18x1x128xf32>
    tpu.vector_store %arg10[%c0_47, %c9, %c0_48], %19 {strides = array<i32>} : memref<18x10x128xf32, #tpu.memory_space<vmem>>, vector<18x1x128xf32>,
    %c0_49 = arith.constant 0 : index
    %c0_50 = arith.constant 0 : index
    %24 = vector.load %arg2[%c0_49, %c0_50] : memref<96x128xf32, #tpu.memory_space<vmem>>, vector<96x128xf32>
    %c0_51 = arith.constant 0 : index
    %c0_52 = arith.constant 0 : index
    %25 = vector.load %arg5[%c0_51, %c0_52] : memref<6x64xf32, #tpu.memory_space<vmem>>, vector<1x64xf32>
    %26 = tpu.concatenate %25, %25 in 1 : vector<1x64xf32>, vector<1x64xf32> -> vector<1x128xf32>
    %c0_i32 = arith.constant 0 : i32
    %c64_i32 = arith.constant 64 : i32
    %27 = arith.addi %c0_i32, %c64_i32 : i32
    %c1_i32 = arith.constant 1 : i32
    scf.for %arg12 = %c0_i32 to %27 step %c1_i32  : i32 {
      %c2_i32_216 = arith.constant 2 : i32
      %213 = arith.muli %c2_i32_216, %arg12 : i32
      %c0_217 = arith.constant 0 : index
      %214 = arith.index_cast %213 : i32 to index
      %c0_218 = arith.constant 0 : index
      %c0_219 = arith.constant 0 : index
      %215 = vector.load %arg1[%c0_217, %214, %c0_218, %c0_219] : memref<1x128x64x96xf32, #tpu.memory_space<vmem>>, vector<1x2x64x96xf32>
      %216 = vector.shape_cast %215 : vector<1x2x64x96xf32> to vector<2x64x96xf32>
      %217 = vector.shape_cast %216 : vector<2x64x96xf32> to vector<128x96xf32>
      %cst_220 = arith.constant dense<0.000000e+00> : vector<128x128xf32>
      %218 = tpu.matmul %217, %24, %cst_220 {dimension_numbers = #tpu.dot_dimension_numbers<[1], [0], [0], [1], [0, 0, 1, 1], [], []>} : vector<128x96xf32>, vector<96x128xf32>, vector<128x128xf32> -> vector<128x128xf32>
      %219 = vector.broadcast %26 : vector<1x128xf32> to vector<128x128xf32>
      %220 = arith.addf %218, %219 : vector<128x128xf32>
      %cst_221 = arith.constant 0.000000e+00 : f32
      %221 = vector.broadcast %cst_221 : f32 to vector<128x128xf32>
      %222 = arith.maximumf %220, %221 : vector<128x128xf32>
      %223 = vector.shape_cast %222 : vector<128x128xf32> to vector<2x64x128xf32>
      %c2_i32_222 = arith.constant 2 : i32
      %224 = arith.muli %c2_i32_222, %arg12 : i32
      %c1_i32_223 = arith.constant 1 : i32
      %225 = arith.addi %224, %c1_i32_223 : i32
      %226 = arith.index_cast %225 : i32 to index
      %c1_224 = arith.constant 1 : index
      %c0_225 = arith.constant 0 : index
      %227 = vector.load %arg7[%226, %c1_224, %c0_225] : memref<130x66x128xf32, #tpu.memory_space<vmem>>, vector<2x64x128xf32>
      tpu.vector_store %arg7[%226, %c1_224, %c0_225], %223 {strides = array<i32>} : memref<130x66x128xf32, #tpu.memory_space<vmem>>, vector<2x64x128xf32>,
    }
    %c64_i32_53 = arith.constant 64 : i32
    %c1 = arith.constant 1 : index
    %c0_54 = arith.constant 0 : index
    %28 = vector.load %arg5[%c1, %c0_54] : memref<6x64xf32, #tpu.memory_space<vmem>>, vector<1x64xf32>
    %29 = tpu.iota {dimensions = array<i32: 1>} : vector<64x128xi32>
    %c64_i32_55 = arith.constant 64 : i32
    %30 = vector.broadcast %c64_i32_55 : i32 to vector<64x128xi32>
    %31 = arith.cmpi slt, %29, %30 : vector<64x128xi32>
    %32 = tpu.iota {dimensions = array<i32: 0>} : vector<32x64xi32>
    %33 = tpu.iota {dimensions = array<i32: 1>} : vector<32x64xi32>
    %c2_i32 = arith.constant 2 : i32
    %34 = vector.broadcast %c2_i32 : i32 to vector<32x64xi32>
    %35 = arith.muli %34, %32 : vector<32x64xi32>
    %36 = arith.cmpi eq, %33, %35 : vector<32x64xi32>
    %37 = arith.extui %36 : vector<32x64xi1> to vector<32x64xi32>
    %38 = arith.sitofp %37 : vector<32x64xi32> to vector<32x64xf32>
    %c2_i32_56 = arith.constant 2 : i32
    %39 = vector.broadcast %c2_i32_56 : i32 to vector<32x64xi32>
    %40 = arith.muli %39, %32 : vector<32x64xi32>
    %c1_i32_57 = arith.constant 1 : i32
    %41 = vector.broadcast %c1_i32_57 : i32 to vector<32x64xi32>
    %42 = arith.addi %40, %41 : vector<32x64xi32>
    %43 = arith.cmpi eq, %33, %42 : vector<32x64xi32>
    %44 = arith.extui %43 : vector<32x64xi1> to vector<32x64xi32>
    %45 = arith.sitofp %44 : vector<32x64xi32> to vector<32x64xf32>
    %c0_i32_58 = arith.constant 0 : i32
    %c64_i32_59 = arith.constant 64 : i32
    %46 = arith.addi %c0_i32_58, %c64_i32_59 : i32
    %c1_i32_60 = arith.constant 1 : i32
    scf.for %arg12 = %c0_i32_58 to %46 step %c1_i32_60  : i32 {
      %cst_216 = arith.constant 0.000000e+00 : f32
      %213 = vector.broadcast %cst_216 : f32 to vector<64x64xf32>
      %c2_i32_217 = arith.constant 2 : i32
      %214 = arith.muli %c2_i32_217, %arg12 : i32
      %c0_i32_218 = arith.constant 0 : i32
      %215 = arith.addi %214, %c0_i32_218 : i32
      %216 = arith.index_cast %215 : i32 to index
      %c0_219 = arith.constant 0 : index
      %c0_220 = arith.constant 0 : index
      %217 = vector.load %arg7[%216, %c0_219, %c0_220] : memref<130x66x128xf32, #tpu.memory_space<vmem>>, vector<1x64x128xf32>
      %218 = vector.shape_cast %217 : vector<1x64x128xf32> to vector<64x128xf32>
      %219 = arith.index_cast %215 : i32 to index
      %c1_221 = arith.constant 1 : index
      %c0_222 = arith.constant 0 : index
      %220 = vector.load %arg7[%219, %c1_221, %c0_222] : memref<130x66x128xf32, #tpu.memory_space<vmem>>, vector<1x64x128xf32>
      %221 = vector.shape_cast %220 : vector<1x64x128xf32> to vector<64x128xf32>
      %222 = arith.index_cast %215 : i32 to index
      %c2_223 = arith.constant 2 : index
      %c0_224 = arith.constant 0 : index
      %223 = vector.load %arg7[%222, %c2_223, %c0_224] : memref<130x66x128xf32, #tpu.memory_space<vmem>>, vector<1x64x128xf32>
      %224 = vector.shape_cast %223 : vector<1x64x128xf32> to vector<64x128xf32>
      %225 = arith.select %31, %224, %218 : vector<64x128xi1>, vector<64x128xf32>
      %c0_225 = arith.constant 0 : index
      %c0_226 = arith.constant 0 : index
      %c0_227 = arith.constant 0 : index
      %c0_228 = arith.constant 0 : index
      %c0_229 = arith.constant 0 : index
      %226 = vector.load %arg3[%c0_225, %c0_226, %c0_227, %c0_228, %c0_229] : memref<4x4x2x128x64xf32, #tpu.memory_space<vmem>>, vector<1x1x1x128x64xf32>
      %227 = vector.shape_cast %226 : vector<1x1x1x128x64xf32> to vector<128x64xf32>
      %cst_230 = arith.constant dense<0.000000e+00> : vector<64x64xf32>
      %228 = tpu.matmul %221, %227, %cst_230 {dimension_numbers = #tpu.dot_dimension_numbers<[1], [0], [0], [1], [0, 0, 1, 1], [], []>} : vector<64x128xf32>, vector<128x64xf32>, vector<64x64xf32> -> vector<64x64xf32>
      %229 = arith.addf %213, %228 : vector<64x64xf32>
      %c0_231 = arith.constant 0 : index
      %c0_232 = arith.constant 0 : index
      %c1_233 = arith.constant 1 : index
      %c0_234 = arith.constant 0 : index
      %c0_235 = arith.constant 0 : index
      %230 = vector.load %arg3[%c0_231, %c0_232, %c1_233, %c0_234, %c0_235] : memref<4x4x2x128x64xf32, #tpu.memory_space<vmem>>, vector<1x1x1x128x64xf32>
      %231 = vector.shape_cast %230 : vector<1x1x1x128x64xf32> to vector<128x64xf32>
      %cst_236 = arith.constant dense<0.000000e+00> : vector<64x64xf32>
      %232 = tpu.matmul %225, %231, %cst_236 {dimension_numbers = #tpu.dot_dimension_numbers<[1], [0], [0], [1], [0, 0, 1, 1], [], []>} : vector<64x128xf32>, vector<128x64xf32>, vector<64x64xf32> -> vector<64x64xf32>
      %233 = arith.addf %229, %232 : vector<64x64xf32>
      %c2_i32_237 = arith.constant 2 : i32
      %234 = arith.muli %c2_i32_237, %arg12 : i32
      %c1_i32_238 = arith.constant 1 : i32
      %235 = arith.addi %234, %c1_i32_238 : i32
      %236 = arith.index_cast %235 : i32 to index
      %c0_239 = arith.constant 0 : index
      %c0_240 = arith.constant 0 : index
      %237 = vector.load %arg7[%236, %c0_239, %c0_240] : memref<130x66x128xf32, #tpu.memory_space<vmem>>, vector<1x64x128xf32>
      %238 = vector.shape_cast %237 : vector<1x64x128xf32> to vector<64x128xf32>
      %239 = arith.index_cast %235 : i32 to index
      %c1_241 = arith.constant 1 : index
      %c0_242 = arith.constant 0 : index
      %240 = vector.load %arg7[%239, %c1_241, %c0_242] : memref<130x66x128xf32, #tpu.memory_space<vmem>>, vector<1x64x128xf32>
      %241 = vector.shape_cast %240 : vector<1x64x128xf32> to vector<64x128xf32>
      %242 = arith.index_cast %235 : i32 to index
      %c2_243 = arith.constant 2 : index
      %c0_244 = arith.constant 0 : index
      %243 = vector.load %arg7[%242, %c2_243, %c0_244] : memref<130x66x128xf32, #tpu.memory_space<vmem>>, vector<1x64x128xf32>
      %244 = vector.shape_cast %243 : vector<1x64x128xf32> to vector<64x128xf32>
      %245 = arith.select %31, %244, %238 : vector<64x128xi1>, vector<64x128xf32>
      %c0_245 = arith.constant 0 : index
      %c1_246 = arith.constant 1 : index
      %c0_247 = arith.constant 0 : index
      %c0_248 = arith.constant 0 : index
      %c0_249 = arith.constant 0 : index
      %246 = vector.load %arg3[%c0_245, %c1_246, %c0_247, %c0_248, %c0_249] : memref<4x4x2x128x64xf32, #tpu.memory_space<vmem>>, vector<1x1x1x128x64xf32>
      %247 = vector.shape_cast %246 : vector<1x1x1x128x64xf32> to vector<128x64xf32>
      %cst_250 = arith.constant dense<0.000000e+00> : vector<64x64xf32>
      %248 = tpu.matmul %241, %247, %cst_250 {dimension_numbers = #tpu.dot_dimension_numbers<[1], [0], [0], [1], [0, 0, 1, 1], [], []>} : vector<64x128xf32>, vector<128x64xf32>, vector<64x64xf32> -> vector<64x64xf32>
      %249 = arith.addf %233, %248 : vector<64x64xf32>
      %c0_251 = arith.constant 0 : index
      %c1_252 = arith.constant 1 : index
      %c1_253 = arith.constant 1 : index
      %c0_254 = arith.constant 0 : index
      %c0_255 = arith.constant 0 : index
      %250 = vector.load %arg3[%c0_251, %c1_252, %c1_253, %c0_254, %c0_255] : memref<4x4x2x128x64xf32, #tpu.memory_space<vmem>>, vector<1x1x1x128x64xf32>
      %251 = vector.shape_cast %250 : vector<1x1x1x128x64xf32> to vector<128x64xf32>
      %cst_256 = arith.constant dense<0.000000e+00> : vector<64x64xf32>
      %252 = tpu.matmul %245, %251, %cst_256 {dimension_numbers = #tpu.dot_dimension_numbers<[1], [0], [0], [1], [0, 0, 1, 1], [], []>} : vector<64x128xf32>, vector<128x64xf32>, vector<64x64xf32> -> vector<64x64xf32>
      %253 = arith.addf %249, %252 : vector<64x64xf32>
      %c2_i32_257 = arith.constant 2 : i32
      %254 = arith.muli %c2_i32_257, %arg12 : i32
      %c2_i32_258 = arith.constant 2 : i32
      %255 = arith.addi %254, %c2_i32_258 : i32
      %256 = arith.index_cast %255 : i32 to index
      %c0_259 = arith.constant 0 : index
      %c0_260 = arith.constant 0 : index
      %257 = vector.load %arg7[%256, %c0_259, %c0_260] : memref<130x66x128xf32, #tpu.memory_space<vmem>>, vector<1x64x128xf32>
      %258 = vector.shape_cast %257 : vector<1x64x128xf32> to vector<64x128xf32>
      %259 = arith.index_cast %255 : i32 to index
      %c1_261 = arith.constant 1 : index
      %c0_262 = arith.constant 0 : index
      %260 = vector.load %arg7[%259, %c1_261, %c0_262] : memref<130x66x128xf32, #tpu.memory_space<vmem>>, vector<1x64x128xf32>
      %261 = vector.shape_cast %260 : vector<1x64x128xf32> to vector<64x128xf32>
      %262 = arith.index_cast %255 : i32 to index
      %c2_263 = arith.constant 2 : index
      %c0_264 = arith.constant 0 : index
      %263 = vector.load %arg7[%262, %c2_263, %c0_264] : memref<130x66x128xf32, #tpu.memory_space<vmem>>, vector<1x64x128xf32>
      %264 = vector.shape_cast %263 : vector<1x64x128xf32> to vector<64x128xf32>
      %265 = arith.select %31, %264, %258 : vector<64x128xi1>, vector<64x128xf32>
      %c0_265 = arith.constant 0 : index
      %c2_266 = arith.constant 2 : index
      %c0_267 = arith.constant 0 : index
      %c0_268 = arith.constant 0 : index
      %c0_269 = arith.constant 0 : index
      %266 = vector.load %arg3[%c0_265, %c2_266, %c0_267, %c0_268, %c0_269] : memref<4x4x2x128x64xf32, #tpu.memory_space<vmem>>, vector<1x1x1x128x64xf32>
      %267 = vector.shape_cast %266 : vector<1x1x1x128x64xf32> to vector<128x64xf32>
      %cst_270 = arith.constant dense<0.000000e+00> : vector<64x64xf32>
      %268 = tpu.matmul %261, %267, %cst_270 {dimension_numbers = #tpu.dot_dimension_numbers<[1], [0], [0], [1], [0, 0, 1, 1], [], []>} : vector<64x128xf32>, vector<128x64xf32>, vector<64x64xf32> -> vector<64x64xf32>
      %269 = arith.addf %253, %268 : vector<64x64xf32>
      %c0_271 = arith.constant 0 : index
      %c2_272 = arith.constant 2 : index
      %c1_273 = arith.constant 1 : index
      %c0_274 = arith.constant 0 : index
      %c0_275 = arith.constant 0 : index
      %270 = vector.load %arg3[%c0_271, %c2_272, %c1_273, %c0_274, %c0_275] : memref<4x4x2x128x64xf32, #tpu.memory_space<vmem>>, vector<1x1x1x128x64xf32>
      %271 = vector.shape_cast %270 : vector<1x1x1x128x64xf32> to vector<128x64xf32>
      %cst_276 = arith.constant dense<0.000000e+00> : vector<64x64xf32>
      %272 = tpu.matmul %265, %271, %cst_276 {dimension_numbers = #tpu.dot_dimension_numbers<[1], [0], [0], [1], [0, 0, 1, 1], [], []>} : vector<64x128xf32>, vector<128x64xf32>, vector<64x64xf32> -> vector<64x64xf32>
      %273 = arith.addf %269, %272 : vector<64x64xf32>
      %c2_i32_277 = arith.constant 2 : i32
      %274 = arith.muli %c2_i32_277, %arg12 : i32
      %c3_i32 = arith.constant 3 : i32
      %275 = arith.addi %274, %c3_i32 : i32
      %276 = arith.index_cast %275 : i32 to index
      %c0_278 = arith.constant 0 : index
      %c0_279 = arith.constant 0 : index
      %277 = vector.load %arg7[%276, %c0_278, %c0_279] : memref<130x66x128xf32, #tpu.memory_space<vmem>>, vector<1x64x128xf32>
      %278 = vector.shape_cast %277 : vector<1x64x128xf32> to vector<64x128xf32>
      %279 = arith.index_cast %275 : i32 to index
      %c1_280 = arith.constant 1 : index
      %c0_281 = arith.constant 0 : index
      %280 = vector.load %arg7[%279, %c1_280, %c0_281] : memref<130x66x128xf32, #tpu.memory_space<vmem>>, vector<1x64x128xf32>
      %281 = vector.shape_cast %280 : vector<1x64x128xf32> to vector<64x128xf32>
      %282 = arith.index_cast %275 : i32 to index
      %c2_282 = arith.constant 2 : index
      %c0_283 = arith.constant 0 : index
      %283 = vector.load %arg7[%282, %c2_282, %c0_283] : memref<130x66x128xf32, #tpu.memory_space<vmem>>, vector<1x64x128xf32>
      %284 = vector.shape_cast %283 : vector<1x64x128xf32> to vector<64x128xf32>
      %285 = arith.select %31, %284, %278 : vector<64x128xi1>, vector<64x128xf32>
      %c0_284 = arith.constant 0 : index
      %c3_285 = arith.constant 3 : index
      %c0_286 = arith.constant 0 : index
      %c0_287 = arith.constant 0 : index
      %c0_288 = arith.constant 0 : index
      %286 = vector.load %arg3[%c0_284, %c3_285, %c0_286, %c0_287, %c0_288] : memref<4x4x2x128x64xf32, #tpu.memory_space<vmem>>, vector<1x1x1x128x64xf32>
      %287 = vector.shape_cast %286 : vector<1x1x1x128x64xf32> to vector<128x64xf32>
      %cst_289 = arith.constant dense<0.000000e+00> : vector<64x64xf32>
      %288 = tpu.matmul %281, %287, %cst_289 {dimension_numbers = #tpu.dot_dimension_numbers<[1], [0], [0], [1], [0, 0, 1, 1], [], []>} : vector<64x128xf32>, vector<128x64xf32>, vector<64x64xf32> -> vector<64x64xf32>
      %289 = arith.addf %273, %288 : vector<64x64xf32>
      %c0_290 = arith.constant 0 : index
      %c3_291 = arith.constant 3 : index
      %c1_292 = arith.constant 1 : index
      %c0_293 = arith.constant 0 : index
      %c0_294 = arith.constant 0 : index
      %290 = vector.load %arg3[%c0_290, %c3_291, %c1_292, %c0_293, %c0_294] : memref<4x4x2x128x64xf32, #tpu.memory_space<vmem>>, vector<1x1x1x128x64xf32>
      %291 = vector.shape_cast %290 : vector<1x1x1x128x64xf32> to vector<128x64xf32>
      %cst_295 = arith.constant dense<0.000000e+00> : vector<64x64xf32>
      %292 = tpu.matmul %285, %291, %cst_295 {dimension_numbers = #tpu.dot_dimension_numbers<[1], [0], [0], [1], [0, 0, 1, 1], [], []>} : vector<64x128xf32>, vector<128x64xf32>, vector<64x64xf32> -> vector<64x64xf32>
      %293 = arith.addf %289, %292 : vector<64x64xf32>
      %294 = vector.broadcast %28 : vector<1x64xf32> to vector<64x64xf32>
      %295 = arith.addf %293, %294 : vector<64x64xf32>
      %cst_296 = arith.constant 0.000000e+00 : f32
      %296 = vector.broadcast %cst_296 : f32 to vector<64x64xf32>
      %297 = arith.maximumf %295, %296 : vector<64x64xf32>
      %cst_297 = arith.constant dense<0.000000e+00> : vector<32x64xf32>
      %298 = tpu.matmul %38, %297, %cst_297 {dimension_numbers = #tpu.dot_dimension_numbers<[1], [0], [0], [1], [0, 0, 1, 1], [], []>} : vector<32x64xf32>, vector<64x64xf32>, vector<32x64xf32> -> vector<32x64xf32>
      %cst_298 = arith.constant dense<0.000000e+00> : vector<32x64xf32>
      %299 = tpu.matmul %45, %297, %cst_298 {dimension_numbers = #tpu.dot_dimension_numbers<[1], [0], [0], [1], [0, 0, 1, 1], [], []>} : vector<32x64xf32>, vector<64x64xf32>, vector<32x64xf32> -> vector<32x64xf32>
      %300 = tpu.concatenate %298, %299 in 1 : vector<32x64xf32>, vector<32x64xf32> -> vector<32x128xf32>
      %301 = vector.shape_cast %300 : vector<32x128xf32> to vector<1x32x128xf32>
      %c1_i32_299 = arith.constant 1 : i32
      %302 = arith.addi %arg12, %c1_i32_299 : i32
      %303 = arith.index_cast %302 : i32 to index
      %c1_300 = arith.constant 1 : index
      %c0_301 = arith.constant 0 : index
      %304 = vector.load %arg8[%303, %c1_300, %c0_301] : memref<66x34x128xf32, #tpu.memory_space<vmem>>, vector<1x32x128xf32>
      tpu.vector_store %arg8[%303, %c1_300, %c0_301], %301 {strides = array<i32>} : memref<66x34x128xf32, #tpu.memory_space<vmem>>, vector<1x32x128xf32>,
    }
    %c64_i32_61 = arith.constant 64 : i32
    %c2 = arith.constant 2 : index
    %c0_62 = arith.constant 0 : index
    %47 = vector.load %arg5[%c2, %c0_62] : memref<6x64xf32, #tpu.memory_space<vmem>>, vector<1x64xf32>
    %48 = tpu.iota {dimensions = array<i32: 1>} : vector<32x128xi32>
    %c64_i32_63 = arith.constant 64 : i32
    %49 = vector.broadcast %c64_i32_63 : i32 to vector<32x128xi32>
    %50 = arith.cmpi slt, %48, %49 : vector<32x128xi32>
    %51 = tpu.iota {dimensions = array<i32: 0>} : vector<16x32xi32>
    %52 = tpu.iota {dimensions = array<i32: 1>} : vector<16x32xi32>
    %c2_i32_64 = arith.constant 2 : i32
    %53 = vector.broadcast %c2_i32_64 : i32 to vector<16x32xi32>
    %54 = arith.muli %53, %51 : vector<16x32xi32>
    %55 = arith.cmpi eq, %52, %54 : vector<16x32xi32>
    %56 = arith.extui %55 : vector<16x32xi1> to vector<16x32xi32>
    %57 = arith.sitofp %56 : vector<16x32xi32> to vector<16x32xf32>
    %c2_i32_65 = arith.constant 2 : i32
    %58 = vector.broadcast %c2_i32_65 : i32 to vector<16x32xi32>
    %59 = arith.muli %58, %51 : vector<16x32xi32>
    %c1_i32_66 = arith.constant 1 : i32
    %60 = vector.broadcast %c1_i32_66 : i32 to vector<16x32xi32>
    %61 = arith.addi %59, %60 : vector<16x32xi32>
    %62 = arith.cmpi eq, %52, %61 : vector<16x32xi32>
    %63 = arith.extui %62 : vector<16x32xi1> to vector<16x32xi32>
    %64 = arith.sitofp %63 : vector<16x32xi32> to vector<16x32xf32>
    %c0_i32_67 = arith.constant 0 : i32
    %c32_i32 = arith.constant 32 : i32
    %65 = arith.addi %c0_i32_67, %c32_i32 : i32
    %c1_i32_68 = arith.constant 1 : i32
    scf.for %arg12 = %c0_i32_67 to %65 step %c1_i32_68  : i32 {
      %cst_216 = arith.constant 0.000000e+00 : f32
      %213 = vector.broadcast %cst_216 : f32 to vector<32x64xf32>
      %c2_i32_217 = arith.constant 2 : i32
      %214 = arith.muli %c2_i32_217, %arg12 : i32
      %c0_i32_218 = arith.constant 0 : i32
      %215 = arith.addi %214, %c0_i32_218 : i32
      %216 = arith.index_cast %215 : i32 to index
      %c0_219 = arith.constant 0 : index
      %c0_220 = arith.constant 0 : index
      %217 = vector.load %arg8[%216, %c0_219, %c0_220] : memref<66x34x128xf32, #tpu.memory_space<vmem>>, vector<1x32x128xf32>
      %218 = vector.shape_cast %217 : vector<1x32x128xf32> to vector<32x128xf32>
      %219 = arith.index_cast %215 : i32 to index
      %c1_221 = arith.constant 1 : index
      %c0_222 = arith.constant 0 : index
      %220 = vector.load %arg8[%219, %c1_221, %c0_222] : memref<66x34x128xf32, #tpu.memory_space<vmem>>, vector<1x32x128xf32>
      %221 = vector.shape_cast %220 : vector<1x32x128xf32> to vector<32x128xf32>
      %222 = arith.index_cast %215 : i32 to index
      %c2_223 = arith.constant 2 : index
      %c0_224 = arith.constant 0 : index
      %223 = vector.load %arg8[%222, %c2_223, %c0_224] : memref<66x34x128xf32, #tpu.memory_space<vmem>>, vector<1x32x128xf32>
      %224 = vector.shape_cast %223 : vector<1x32x128xf32> to vector<32x128xf32>
      %225 = arith.select %50, %224, %218 : vector<32x128xi1>, vector<32x128xf32>
      %c1_225 = arith.constant 1 : index
      %c0_226 = arith.constant 0 : index
      %c0_227 = arith.constant 0 : index
      %c0_228 = arith.constant 0 : index
      %c0_229 = arith.constant 0 : index
      %226 = vector.load %arg3[%c1_225, %c0_226, %c0_227, %c0_228, %c0_229] : memref<4x4x2x128x64xf32, #tpu.memory_space<vmem>>, vector<1x1x1x128x64xf32>
      %227 = vector.shape_cast %226 : vector<1x1x1x128x64xf32> to vector<128x64xf32>
      %cst_230 = arith.constant dense<0.000000e+00> : vector<32x64xf32>
      %228 = tpu.matmul %221, %227, %cst_230 {dimension_numbers = #tpu.dot_dimension_numbers<[1], [0], [0], [1], [0, 0, 1, 1], [], []>} : vector<32x128xf32>, vector<128x64xf32>, vector<32x64xf32> -> vector<32x64xf32>
      %229 = arith.addf %213, %228 : vector<32x64xf32>
      %c1_231 = arith.constant 1 : index
      %c0_232 = arith.constant 0 : index
      %c1_233 = arith.constant 1 : index
      %c0_234 = arith.constant 0 : index
      %c0_235 = arith.constant 0 : index
      %230 = vector.load %arg3[%c1_231, %c0_232, %c1_233, %c0_234, %c0_235] : memref<4x4x2x128x64xf32, #tpu.memory_space<vmem>>, vector<1x1x1x128x64xf32>
      %231 = vector.shape_cast %230 : vector<1x1x1x128x64xf32> to vector<128x64xf32>
      %cst_236 = arith.constant dense<0.000000e+00> : vector<32x64xf32>
      %232 = tpu.matmul %225, %231, %cst_236 {dimension_numbers = #tpu.dot_dimension_numbers<[1], [0], [0], [1], [0, 0, 1, 1], [], []>} : vector<32x128xf32>, vector<128x64xf32>, vector<32x64xf32> -> vector<32x64xf32>
      %233 = arith.addf %229, %232 : vector<32x64xf32>
      %c2_i32_237 = arith.constant 2 : i32
      %234 = arith.muli %c2_i32_237, %arg12 : i32
      %c1_i32_238 = arith.constant 1 : i32
      %235 = arith.addi %234, %c1_i32_238 : i32
      %236 = arith.index_cast %235 : i32 to index
      %c0_239 = arith.constant 0 : index
      %c0_240 = arith.constant 0 : index
      %237 = vector.load %arg8[%236, %c0_239, %c0_240] : memref<66x34x128xf32, #tpu.memory_space<vmem>>, vector<1x32x128xf32>
      %238 = vector.shape_cast %237 : vector<1x32x128xf32> to vector<32x128xf32>
      %239 = arith.index_cast %235 : i32 to index
      %c1_241 = arith.constant 1 : index
      %c0_242 = arith.constant 0 : index
      %240 = vector.load %arg8[%239, %c1_241, %c0_242] : memref<66x34x128xf32, #tpu.memory_space<vmem>>, vector<1x32x128xf32>
      %241 = vector.shape_cast %240 : vector<1x32x128xf32> to vector<32x128xf32>
      %242 = arith.index_cast %235 : i32 to index
      %c2_243 = arith.constant 2 : index
      %c0_244 = arith.constant 0 : index
      %243 = vector.load %arg8[%242, %c2_243, %c0_244] : memref<66x34x128xf32, #tpu.memory_space<vmem>>, vector<1x32x128xf32>
      %244 = vector.shape_cast %243 : vector<1x32x128xf32> to vector<32x128xf32>
      %245 = arith.select %50, %244, %238 : vector<32x128xi1>, vector<32x128xf32>
      %c1_245 = arith.constant 1 : index
      %c1_246 = arith.constant 1 : index
      %c0_247 = arith.constant 0 : index
      %c0_248 = arith.constant 0 : index
      %c0_249 = arith.constant 0 : index
      %246 = vector.load %arg3[%c1_245, %c1_246, %c0_247, %c0_248, %c0_249] : memref<4x4x2x128x64xf32, #tpu.memory_space<vmem>>, vector<1x1x1x128x64xf32>
      %247 = vector.shape_cast %246 : vector<1x1x1x128x64xf32> to vector<128x64xf32>
      %cst_250 = arith.constant dense<0.000000e+00> : vector<32x64xf32>
      %248 = tpu.matmul %241, %247, %cst_250 {dimension_numbers = #tpu.dot_dimension_numbers<[1], [0], [0], [1], [0, 0, 1, 1], [], []>} : vector<32x128xf32>, vector<128x64xf32>, vector<32x64xf32> -> vector<32x64xf32>
      %249 = arith.addf %233, %248 : vector<32x64xf32>
      %c1_251 = arith.constant 1 : index
      %c1_252 = arith.constant 1 : index
      %c1_253 = arith.constant 1 : index
      %c0_254 = arith.constant 0 : index
      %c0_255 = arith.constant 0 : index
      %250 = vector.load %arg3[%c1_251, %c1_252, %c1_253, %c0_254, %c0_255] : memref<4x4x2x128x64xf32, #tpu.memory_space<vmem>>, vector<1x1x1x128x64xf32>
      %251 = vector.shape_cast %250 : vector<1x1x1x128x64xf32> to vector<128x64xf32>
      %cst_256 = arith.constant dense<0.000000e+00> : vector<32x64xf32>
      %252 = tpu.matmul %245, %251, %cst_256 {dimension_numbers = #tpu.dot_dimension_numbers<[1], [0], [0], [1], [0, 0, 1, 1], [], []>} : vector<32x128xf32>, vector<128x64xf32>, vector<32x64xf32> -> vector<32x64xf32>
      %253 = arith.addf %249, %252 : vector<32x64xf32>
      %c2_i32_257 = arith.constant 2 : i32
      %254 = arith.muli %c2_i32_257, %arg12 : i32
      %c2_i32_258 = arith.constant 2 : i32
      %255 = arith.addi %254, %c2_i32_258 : i32
      %256 = arith.index_cast %255 : i32 to index
      %c0_259 = arith.constant 0 : index
      %c0_260 = arith.constant 0 : index
      %257 = vector.load %arg8[%256, %c0_259, %c0_260] : memref<66x34x128xf32, #tpu.memory_space<vmem>>, vector<1x32x128xf32>
      %258 = vector.shape_cast %257 : vector<1x32x128xf32> to vector<32x128xf32>
      %259 = arith.index_cast %255 : i32 to index
      %c1_261 = arith.constant 1 : index
      %c0_262 = arith.constant 0 : index
      %260 = vector.load %arg8[%259, %c1_261, %c0_262] : memref<66x34x128xf32, #tpu.memory_space<vmem>>, vector<1x32x128xf32>
      %261 = vector.shape_cast %260 : vector<1x32x128xf32> to vector<32x128xf32>
      %262 = arith.index_cast %255 : i32 to index
      %c2_263 = arith.constant 2 : index
      %c0_264 = arith.constant 0 : index
      %263 = vector.load %arg8[%262, %c2_263, %c0_264] : memref<66x34x128xf32, #tpu.memory_space<vmem>>, vector<1x32x128xf32>
      %264 = vector.shape_cast %263 : vector<1x32x128xf32> to vector<32x128xf32>
      %265 = arith.select %50, %264, %258 : vector<32x128xi1>, vector<32x128xf32>
      %c1_265 = arith.constant 1 : index
      %c2_266 = arith.constant 2 : index
      %c0_267 = arith.constant 0 : index
      %c0_268 = arith.constant 0 : index
      %c0_269 = arith.constant 0 : index
      %266 = vector.load %arg3[%c1_265, %c2_266, %c0_267, %c0_268, %c0_269] : memref<4x4x2x128x64xf32, #tpu.memory_space<vmem>>, vector<1x1x1x128x64xf32>
      %267 = vector.shape_cast %266 : vector<1x1x1x128x64xf32> to vector<128x64xf32>
      %cst_270 = arith.constant dense<0.000000e+00> : vector<32x64xf32>
      %268 = tpu.matmul %261, %267, %cst_270 {dimension_numbers = #tpu.dot_dimension_numbers<[1], [0], [0], [1], [0, 0, 1, 1], [], []>} : vector<32x128xf32>, vector<128x64xf32>, vector<32x64xf32> -> vector<32x64xf32>
      %269 = arith.addf %253, %268 : vector<32x64xf32>
      %c1_271 = arith.constant 1 : index
      %c2_272 = arith.constant 2 : index
      %c1_273 = arith.constant 1 : index
      %c0_274 = arith.constant 0 : index
      %c0_275 = arith.constant 0 : index
      %270 = vector.load %arg3[%c1_271, %c2_272, %c1_273, %c0_274, %c0_275] : memref<4x4x2x128x64xf32, #tpu.memory_space<vmem>>, vector<1x1x1x128x64xf32>
      %271 = vector.shape_cast %270 : vector<1x1x1x128x64xf32> to vector<128x64xf32>
      %cst_276 = arith.constant dense<0.000000e+00> : vector<32x64xf32>
      %272 = tpu.matmul %265, %271, %cst_276 {dimension_numbers = #tpu.dot_dimension_numbers<[1], [0], [0], [1], [0, 0, 1, 1], [], []>} : vector<32x128xf32>, vector<128x64xf32>, vector<32x64xf32> -> vector<32x64xf32>
      %273 = arith.addf %269, %272 : vector<32x64xf32>
      %c2_i32_277 = arith.constant 2 : i32
      %274 = arith.muli %c2_i32_277, %arg12 : i32
      %c3_i32 = arith.constant 3 : i32
      %275 = arith.addi %274, %c3_i32 : i32
      %276 = arith.index_cast %275 : i32 to index
      %c0_278 = arith.constant 0 : index
      %c0_279 = arith.constant 0 : index
      %277 = vector.load %arg8[%276, %c0_278, %c0_279] : memref<66x34x128xf32, #tpu.memory_space<vmem>>, vector<1x32x128xf32>
      %278 = vector.shape_cast %277 : vector<1x32x128xf32> to vector<32x128xf32>
      %279 = arith.index_cast %275 : i32 to index
      %c1_280 = arith.constant 1 : index
      %c0_281 = arith.constant 0 : index
      %280 = vector.load %arg8[%279, %c1_280, %c0_281] : memref<66x34x128xf32, #tpu.memory_space<vmem>>, vector<1x32x128xf32>
      %281 = vector.shape_cast %280 : vector<1x32x128xf32> to vector<32x128xf32>
      %282 = arith.index_cast %275 : i32 to index
      %c2_282 = arith.constant 2 : index
      %c0_283 = arith.constant 0 : index
      %283 = vector.load %arg8[%282, %c2_282, %c0_283] : memref<66x34x128xf32, #tpu.memory_space<vmem>>, vector<1x32x128xf32>
      %284 = vector.shape_cast %283 : vector<1x32x128xf32> to vector<32x128xf32>
      %285 = arith.select %50, %284, %278 : vector<32x128xi1>, vector<32x128xf32>
      %c1_284 = arith.constant 1 : index
      %c3_285 = arith.constant 3 : index
      %c0_286 = arith.constant 0 : index
      %c0_287 = arith.constant 0 : index
      %c0_288 = arith.constant 0 : index
      %286 = vector.load %arg3[%c1_284, %c3_285, %c0_286, %c0_287, %c0_288] : memref<4x4x2x128x64xf32, #tpu.memory_space<vmem>>, vector<1x1x1x128x64xf32>
      %287 = vector.shape_cast %286 : vector<1x1x1x128x64xf32> to vector<128x64xf32>
      %cst_289 = arith.constant dense<0.000000e+00> : vector<32x64xf32>
      %288 = tpu.matmul %281, %287, %cst_289 {dimension_numbers = #tpu.dot_dimension_numbers<[1], [0], [0], [1], [0, 0, 1, 1], [], []>} : vector<32x128xf32>, vector<128x64xf32>, vector<32x64xf32> -> vector<32x64xf32>
      %289 = arith.addf %273, %288 : vector<32x64xf32>
      %c1_290 = arith.constant 1 : index
      %c3_291 = arith.constant 3 : index
      %c1_292 = arith.constant 1 : index
      %c0_293 = arith.constant 0 : index
      %c0_294 = arith.constant 0 : index
      %290 = vector.load %arg3[%c1_290, %c3_291, %c1_292, %c0_293, %c0_294] : memref<4x4x2x128x64xf32, #tpu.memory_space<vmem>>, vector<1x1x1x128x64xf32>
      %291 = vector.shape_cast %290 : vector<1x1x1x128x64xf32> to vector<128x64xf32>
      %cst_295 = arith.constant dense<0.000000e+00> : vector<32x64xf32>
      %292 = tpu.matmul %285, %291, %cst_295 {dimension_numbers = #tpu.dot_dimension_numbers<[1], [0], [0], [1], [0, 0, 1, 1], [], []>} : vector<32x128xf32>, vector<128x64xf32>, vector<32x64xf32> -> vector<32x64xf32>
      %293 = arith.addf %289, %292 : vector<32x64xf32>
      %294 = vector.broadcast %47 : vector<1x64xf32> to vector<32x64xf32>
      %295 = arith.addf %293, %294 : vector<32x64xf32>
      %cst_296 = arith.constant 0.000000e+00 : f32
      %296 = vector.broadcast %cst_296 : f32 to vector<32x64xf32>
      %297 = arith.maximumf %295, %296 : vector<32x64xf32>
      %cst_297 = arith.constant dense<0.000000e+00> : vector<16x64xf32>
      %298 = tpu.matmul %57, %297, %cst_297 {dimension_numbers = #tpu.dot_dimension_numbers<[1], [0], [0], [1], [0, 0, 1, 1], [], []>} : vector<16x32xf32>, vector<32x64xf32>, vector<16x64xf32> -> vector<16x64xf32>
      %cst_298 = arith.constant dense<0.000000e+00> : vector<16x64xf32>
      %299 = tpu.matmul %64, %297, %cst_298 {dimension_numbers = #tpu.dot_dimension_numbers<[1], [0], [0], [1], [0, 0, 1, 1], [], []>} : vector<16x32xf32>, vector<32x64xf32>, vector<16x64xf32> -> vector<16x64xf32>
      %300 = tpu.concatenate %298, %299 in 1 : vector<16x64xf32>, vector<16x64xf32> -> vector<16x128xf32>
      %301 = vector.shape_cast %300 : vector<16x128xf32> to vector<1x16x128xf32>
      %c1_i32_299 = arith.constant 1 : i32
      %302 = arith.addi %arg12, %c1_i32_299 : i32
      %303 = arith.index_cast %302 : i32 to index
      %c1_300 = arith.constant 1 : index
      %c0_301 = arith.constant 0 : index
      %304 = vector.load %arg9[%303, %c1_300, %c0_301] : memref<34x18x128xf32, #tpu.memory_space<vmem>>, vector<1x16x128xf32>
      tpu.vector_store %arg9[%303, %c1_300, %c0_301], %301 {strides = array<i32>} : memref<34x18x128xf32, #tpu.memory_space<vmem>>, vector<1x16x128xf32>,
    }
    %c32_i32_69 = arith.constant 32 : i32
    %c3 = arith.constant 3 : index
    %c0_70 = arith.constant 0 : index
    %66 = vector.load %arg5[%c3, %c0_70] : memref<6x64xf32, #tpu.memory_space<vmem>>, vector<1x64xf32>
    %67 = tpu.iota {dimensions = array<i32: 1>} : vector<16x128xi32>
    %c64_i32_71 = arith.constant 64 : i32
    %68 = vector.broadcast %c64_i32_71 : i32 to vector<16x128xi32>
    %69 = arith.cmpi slt, %67, %68 : vector<16x128xi32>
    %70 = tpu.iota {dimensions = array<i32: 0>} : vector<8x16xi32>
    %71 = tpu.iota {dimensions = array<i32: 1>} : vector<8x16xi32>
    %c2_i32_72 = arith.constant 2 : i32
    %72 = vector.broadcast %c2_i32_72 : i32 to vector<8x16xi32>
    %73 = arith.muli %72, %70 : vector<8x16xi32>
    %74 = arith.cmpi eq, %71, %73 : vector<8x16xi32>
    %75 = arith.extui %74 : vector<8x16xi1> to vector<8x16xi32>
    %76 = arith.sitofp %75 : vector<8x16xi32> to vector<8x16xf32>
    %c2_i32_73 = arith.constant 2 : i32
    %77 = vector.broadcast %c2_i32_73 : i32 to vector<8x16xi32>
    %78 = arith.muli %77, %70 : vector<8x16xi32>
    %c1_i32_74 = arith.constant 1 : i32
    %79 = vector.broadcast %c1_i32_74 : i32 to vector<8x16xi32>
    %80 = arith.addi %78, %79 : vector<8x16xi32>
    %81 = arith.cmpi eq, %71, %80 : vector<8x16xi32>
    %82 = arith.extui %81 : vector<8x16xi1> to vector<8x16xi32>
    %83 = arith.sitofp %82 : vector<8x16xi32> to vector<8x16xf32>
    %c0_i32_75 = arith.constant 0 : i32
    %c16_i32 = arith.constant 16 : i32
    %84 = arith.addi %c0_i32_75, %c16_i32 : i32
    %c1_i32_76 = arith.constant 1 : i32
    scf.for %arg12 = %c0_i32_75 to %84 step %c1_i32_76  : i32 {
      %cst_216 = arith.constant 0.000000e+00 : f32
      %213 = vector.broadcast %cst_216 : f32 to vector<16x64xf32>
      %c2_i32_217 = arith.constant 2 : i32
      %214 = arith.muli %c2_i32_217, %arg12 : i32
      %c0_i32_218 = arith.constant 0 : i32
      %215 = arith.addi %214, %c0_i32_218 : i32
      %216 = arith.index_cast %215 : i32 to index
      %c0_219 = arith.constant 0 : index
      %c0_220 = arith.constant 0 : index
      %217 = vector.load %arg9[%216, %c0_219, %c0_220] : memref<34x18x128xf32, #tpu.memory_space<vmem>>, vector<1x16x128xf32>
      %218 = vector.shape_cast %217 : vector<1x16x128xf32> to vector<16x128xf32>
      %219 = arith.index_cast %215 : i32 to index
      %c1_221 = arith.constant 1 : index
      %c0_222 = arith.constant 0 : index
      %220 = vector.load %arg9[%219, %c1_221, %c0_222] : memref<34x18x128xf32, #tpu.memory_space<vmem>>, vector<1x16x128xf32>
      %221 = vector.shape_cast %220 : vector<1x16x128xf32> to vector<16x128xf32>
      %222 = arith.index_cast %215 : i32 to index
      %c2_223 = arith.constant 2 : index
      %c0_224 = arith.constant 0 : index
      %223 = vector.load %arg9[%222, %c2_223, %c0_224] : memref<34x18x128xf32, #tpu.memory_space<vmem>>, vector<1x16x128xf32>
      %224 = vector.shape_cast %223 : vector<1x16x128xf32> to vector<16x128xf32>
      %225 = arith.select %69, %224, %218 : vector<16x128xi1>, vector<16x128xf32>
      %c2_225 = arith.constant 2 : index
      %c0_226 = arith.constant 0 : index
      %c0_227 = arith.constant 0 : index
      %c0_228 = arith.constant 0 : index
      %c0_229 = arith.constant 0 : index
      %226 = vector.load %arg3[%c2_225, %c0_226, %c0_227, %c0_228, %c0_229] : memref<4x4x2x128x64xf32, #tpu.memory_space<vmem>>, vector<1x1x1x128x64xf32>
      %227 = vector.shape_cast %226 : vector<1x1x1x128x64xf32> to vector<128x64xf32>
      %cst_230 = arith.constant dense<0.000000e+00> : vector<16x64xf32>
      %228 = tpu.matmul %221, %227, %cst_230 {dimension_numbers = #tpu.dot_dimension_numbers<[1], [0], [0], [1], [0, 0, 1, 1], [], []>} : vector<16x128xf32>, vector<128x64xf32>, vector<16x64xf32> -> vector<16x64xf32>
      %229 = arith.addf %213, %228 : vector<16x64xf32>
      %c2_231 = arith.constant 2 : index
      %c0_232 = arith.constant 0 : index
      %c1_233 = arith.constant 1 : index
      %c0_234 = arith.constant 0 : index
      %c0_235 = arith.constant 0 : index
      %230 = vector.load %arg3[%c2_231, %c0_232, %c1_233, %c0_234, %c0_235] : memref<4x4x2x128x64xf32, #tpu.memory_space<vmem>>, vector<1x1x1x128x64xf32>
      %231 = vector.shape_cast %230 : vector<1x1x1x128x64xf32> to vector<128x64xf32>
      %cst_236 = arith.constant dense<0.000000e+00> : vector<16x64xf32>
      %232 = tpu.matmul %225, %231, %cst_236 {dimension_numbers = #tpu.dot_dimension_numbers<[1], [0], [0], [1], [0, 0, 1, 1], [], []>} : vector<16x128xf32>, vector<128x64xf32>, vector<16x64xf32> -> vector<16x64xf32>
      %233 = arith.addf %229, %232 : vector<16x64xf32>
      %c2_i32_237 = arith.constant 2 : i32
      %234 = arith.muli %c2_i32_237, %arg12 : i32
      %c1_i32_238 = arith.constant 1 : i32
      %235 = arith.addi %234, %c1_i32_238 : i32
      %236 = arith.index_cast %235 : i32 to index
      %c0_239 = arith.constant 0 : index
      %c0_240 = arith.constant 0 : index
      %237 = vector.load %arg9[%236, %c0_239, %c0_240] : memref<34x18x128xf32, #tpu.memory_space<vmem>>, vector<1x16x128xf32>
      %238 = vector.shape_cast %237 : vector<1x16x128xf32> to vector<16x128xf32>
      %239 = arith.index_cast %235 : i32 to index
      %c1_241 = arith.constant 1 : index
      %c0_242 = arith.constant 0 : index
      %240 = vector.load %arg9[%239, %c1_241, %c0_242] : memref<34x18x128xf32, #tpu.memory_space<vmem>>, vector<1x16x128xf32>
      %241 = vector.shape_cast %240 : vector<1x16x128xf32> to vector<16x128xf32>
      %242 = arith.index_cast %235 : i32 to index
      %c2_243 = arith.constant 2 : index
      %c0_244 = arith.constant 0 : index
      %243 = vector.load %arg9[%242, %c2_243, %c0_244] : memref<34x18x128xf32, #tpu.memory_space<vmem>>, vector<1x16x128xf32>
      %244 = vector.shape_cast %243 : vector<1x16x128xf32> to vector<16x128xf32>
      %245 = arith.select %69, %244, %238 : vector<16x128xi1>, vector<16x128xf32>
      %c2_245 = arith.constant 2 : index
      %c1_246 = arith.constant 1 : index
      %c0_247 = arith.constant 0 : index
      %c0_248 = arith.constant 0 : index
      %c0_249 = arith.constant 0 : index
      %246 = vector.load %arg3[%c2_245, %c1_246, %c0_247, %c0_248, %c0_249] : memref<4x4x2x128x64xf32, #tpu.memory_space<vmem>>, vector<1x1x1x128x64xf32>
      %247 = vector.shape_cast %246 : vector<1x1x1x128x64xf32> to vector<128x64xf32>
      %cst_250 = arith.constant dense<0.000000e+00> : vector<16x64xf32>
      %248 = tpu.matmul %241, %247, %cst_250 {dimension_numbers = #tpu.dot_dimension_numbers<[1], [0], [0], [1], [0, 0, 1, 1], [], []>} : vector<16x128xf32>, vector<128x64xf32>, vector<16x64xf32> -> vector<16x64xf32>
      %249 = arith.addf %233, %248 : vector<16x64xf32>
      %c2_251 = arith.constant 2 : index
      %c1_252 = arith.constant 1 : index
      %c1_253 = arith.constant 1 : index
      %c0_254 = arith.constant 0 : index
      %c0_255 = arith.constant 0 : index
      %250 = vector.load %arg3[%c2_251, %c1_252, %c1_253, %c0_254, %c0_255] : memref<4x4x2x128x64xf32, #tpu.memory_space<vmem>>, vector<1x1x1x128x64xf32>
      %251 = vector.shape_cast %250 : vector<1x1x1x128x64xf32> to vector<128x64xf32>
      %cst_256 = arith.constant dense<0.000000e+00> : vector<16x64xf32>
      %252 = tpu.matmul %245, %251, %cst_256 {dimension_numbers = #tpu.dot_dimension_numbers<[1], [0], [0], [1], [0, 0, 1, 1], [], []>} : vector<16x128xf32>, vector<128x64xf32>, vector<16x64xf32> -> vector<16x64xf32>
      %253 = arith.addf %249, %252 : vector<16x64xf32>
      %c2_i32_257 = arith.constant 2 : i32
      %254 = arith.muli %c2_i32_257, %arg12 : i32
      %c2_i32_258 = arith.constant 2 : i32
      %255 = arith.addi %254, %c2_i32_258 : i32
      %256 = arith.index_cast %255 : i32 to index
      %c0_259 = arith.constant 0 : index
      %c0_260 = arith.constant 0 : index
      %257 = vector.load %arg9[%256, %c0_259, %c0_260] : memref<34x18x128xf32, #tpu.memory_space<vmem>>, vector<1x16x128xf32>
      %258 = vector.shape_cast %257 : vector<1x16x128xf32> to vector<16x128xf32>
      %259 = arith.index_cast %255 : i32 to index
      %c1_261 = arith.constant 1 : index
      %c0_262 = arith.constant 0 : index
      %260 = vector.load %arg9[%259, %c1_261, %c0_262] : memref<34x18x128xf32, #tpu.memory_space<vmem>>, vector<1x16x128xf32>
      %261 = vector.shape_cast %260 : vector<1x16x128xf32> to vector<16x128xf32>
      %262 = arith.index_cast %255 : i32 to index
      %c2_263 = arith.constant 2 : index
      %c0_264 = arith.constant 0 : index
      %263 = vector.load %arg9[%262, %c2_263, %c0_264] : memref<34x18x128xf32, #tpu.memory_space<vmem>>, vector<1x16x128xf32>
      %264 = vector.shape_cast %263 : vector<1x16x128xf32> to vector<16x128xf32>
      %265 = arith.select %69, %264, %258 : vector<16x128xi1>, vector<16x128xf32>
      %c2_265 = arith.constant 2 : index
      %c2_266 = arith.constant 2 : index
      %c0_267 = arith.constant 0 : index
      %c0_268 = arith.constant 0 : index
      %c0_269 = arith.constant 0 : index
      %266 = vector.load %arg3[%c2_265, %c2_266, %c0_267, %c0_268, %c0_269] : memref<4x4x2x128x64xf32, #tpu.memory_space<vmem>>, vector<1x1x1x128x64xf32>
      %267 = vector.shape_cast %266 : vector<1x1x1x128x64xf32> to vector<128x64xf32>
      %cst_270 = arith.constant dense<0.000000e+00> : vector<16x64xf32>
      %268 = tpu.matmul %261, %267, %cst_270 {dimension_numbers = #tpu.dot_dimension_numbers<[1], [0], [0], [1], [0, 0, 1, 1], [], []>} : vector<16x128xf32>, vector<128x64xf32>, vector<16x64xf32> -> vector<16x64xf32>
      %269 = arith.addf %253, %268 : vector<16x64xf32>
      %c2_271 = arith.constant 2 : index
      %c2_272 = arith.constant 2 : index
      %c1_273 = arith.constant 1 : index
      %c0_274 = arith.constant 0 : index
      %c0_275 = arith.constant 0 : index
      %270 = vector.load %arg3[%c2_271, %c2_272, %c1_273, %c0_274, %c0_275] : memref<4x4x2x128x64xf32, #tpu.memory_space<vmem>>, vector<1x1x1x128x64xf32>
      %271 = vector.shape_cast %270 : vector<1x1x1x128x64xf32> to vector<128x64xf32>
      %cst_276 = arith.constant dense<0.000000e+00> : vector<16x64xf32>
      %272 = tpu.matmul %265, %271, %cst_276 {dimension_numbers = #tpu.dot_dimension_numbers<[1], [0], [0], [1], [0, 0, 1, 1], [], []>} : vector<16x128xf32>, vector<128x64xf32>, vector<16x64xf32> -> vector<16x64xf32>
      %273 = arith.addf %269, %272 : vector<16x64xf32>
      %c2_i32_277 = arith.constant 2 : i32
      %274 = arith.muli %c2_i32_277, %arg12 : i32
      %c3_i32 = arith.constant 3 : i32
      %275 = arith.addi %274, %c3_i32 : i32
      %276 = arith.index_cast %275 : i32 to index
      %c0_278 = arith.constant 0 : index
      %c0_279 = arith.constant 0 : index
      %277 = vector.load %arg9[%276, %c0_278, %c0_279] : memref<34x18x128xf32, #tpu.memory_space<vmem>>, vector<1x16x128xf32>
      %278 = vector.shape_cast %277 : vector<1x16x128xf32> to vector<16x128xf32>
      %279 = arith.index_cast %275 : i32 to index
      %c1_280 = arith.constant 1 : index
      %c0_281 = arith.constant 0 : index
      %280 = vector.load %arg9[%279, %c1_280, %c0_281] : memref<34x18x128xf32, #tpu.memory_space<vmem>>, vector<1x16x128xf32>
      %281 = vector.shape_cast %280 : vector<1x16x128xf32> to vector<16x128xf32>
      %282 = arith.index_cast %275 : i32 to index
      %c2_282 = arith.constant 2 : index
      %c0_283 = arith.constant 0 : index
      %283 = vector.load %arg9[%282, %c2_282, %c0_283] : memref<34x18x128xf32, #tpu.memory_space<vmem>>, vector<1x16x128xf32>
      %284 = vector.shape_cast %283 : vector<1x16x128xf32> to vector<16x128xf32>
      %285 = arith.select %69, %284, %278 : vector<16x128xi1>, vector<16x128xf32>
      %c2_284 = arith.constant 2 : index
      %c3_285 = arith.constant 3 : index
      %c0_286 = arith.constant 0 : index
      %c0_287 = arith.constant 0 : index
      %c0_288 = arith.constant 0 : index
      %286 = vector.load %arg3[%c2_284, %c3_285, %c0_286, %c0_287, %c0_288] : memref<4x4x2x128x64xf32, #tpu.memory_space<vmem>>, vector<1x1x1x128x64xf32>
      %287 = vector.shape_cast %286 : vector<1x1x1x128x64xf32> to vector<128x64xf32>
      %cst_289 = arith.constant dense<0.000000e+00> : vector<16x64xf32>
      %288 = tpu.matmul %281, %287, %cst_289 {dimension_numbers = #tpu.dot_dimension_numbers<[1], [0], [0], [1], [0, 0, 1, 1], [], []>} : vector<16x128xf32>, vector<128x64xf32>, vector<16x64xf32> -> vector<16x64xf32>
      %289 = arith.addf %273, %288 : vector<16x64xf32>
      %c2_290 = arith.constant 2 : index
      %c3_291 = arith.constant 3 : index
      %c1_292 = arith.constant 1 : index
      %c0_293 = arith.constant 0 : index
      %c0_294 = arith.constant 0 : index
      %290 = vector.load %arg3[%c2_290, %c3_291, %c1_292, %c0_293, %c0_294] : memref<4x4x2x128x64xf32, #tpu.memory_space<vmem>>, vector<1x1x1x128x64xf32>
      %291 = vector.shape_cast %290 : vector<1x1x1x128x64xf32> to vector<128x64xf32>
      %cst_295 = arith.constant dense<0.000000e+00> : vector<16x64xf32>
      %292 = tpu.matmul %285, %291, %cst_295 {dimension_numbers = #tpu.dot_dimension_numbers<[1], [0], [0], [1], [0, 0, 1, 1], [], []>} : vector<16x128xf32>, vector<128x64xf32>, vector<16x64xf32> -> vector<16x64xf32>
      %293 = arith.addf %289, %292 : vector<16x64xf32>
      %294 = vector.broadcast %66 : vector<1x64xf32> to vector<16x64xf32>
      %295 = arith.addf %293, %294 : vector<16x64xf32>
      %cst_296 = arith.constant 0.000000e+00 : f32
      %296 = vector.broadcast %cst_296 : f32 to vector<16x64xf32>
      %297 = arith.maximumf %295, %296 : vector<16x64xf32>
      %cst_297 = arith.constant dense<0.000000e+00> : vector<8x64xf32>
      %298 = tpu.matmul %76, %297, %cst_297 {dimension_numbers = #tpu.dot_dimension_numbers<[1], [0], [0], [1], [0, 0, 1, 1], [], []>} : vector<8x16xf32>, vector<16x64xf32>, vector<8x64xf32> -> vector<8x64xf32>
      %cst_298 = arith.constant dense<0.000000e+00> : vector<8x64xf32>
      %299 = tpu.matmul %83, %297, %cst_298 {dimension_numbers = #tpu.dot_dimension_numbers<[1], [0], [0], [1], [0, 0, 1, 1], [], []>} : vector<8x16xf32>, vector<16x64xf32>, vector<8x64xf32> -> vector<8x64xf32>
      %300 = tpu.concatenate %298, %299 in 1 : vector<8x64xf32>, vector<8x64xf32> -> vector<8x128xf32>
      %301 = vector.shape_cast %300 : vector<8x128xf32> to vector<1x8x128xf32>
      %c1_i32_299 = arith.constant 1 : i32
      %302 = arith.addi %arg12, %c1_i32_299 : i32
      %303 = arith.index_cast %302 : i32 to index
      %c1_300 = arith.constant 1 : index
      %c0_301 = arith.constant 0 : index
      %304 = vector.load %arg10[%303, %c1_300, %c0_301] : memref<18x10x128xf32, #tpu.memory_space<vmem>>, vector<1x8x128xf32>
      tpu.vector_store %arg10[%303, %c1_300, %c0_301], %301 {strides = array<i32>} : memref<18x10x128xf32, #tpu.memory_space<vmem>>, vector<1x8x128xf32>,
    }
    %c16_i32_77 = arith.constant 16 : i32
    %c4 = arith.constant 4 : index
    %c0_78 = arith.constant 0 : index
    %85 = vector.load %arg5[%c4, %c0_78] : memref<6x64xf32, #tpu.memory_space<vmem>>, vector<1x64xf32>
    %86 = tpu.iota {dimensions = array<i32: 1>} : vector<8x128xi32>
    %c64_i32_79 = arith.constant 64 : i32
    %87 = vector.broadcast %c64_i32_79 : i32 to vector<8x128xi32>
    %88 = arith.cmpi slt, %86, %87 : vector<8x128xi32>
    %89 = tpu.iota {dimensions = array<i32: 0>} : vector<4x8xi32>
    %90 = tpu.iota {dimensions = array<i32: 1>} : vector<4x8xi32>
    %c2_i32_80 = arith.constant 2 : i32
    %91 = vector.broadcast %c2_i32_80 : i32 to vector<4x8xi32>
    %92 = arith.muli %91, %89 : vector<4x8xi32>
    %93 = arith.cmpi eq, %90, %92 : vector<4x8xi32>
    %94 = arith.extui %93 : vector<4x8xi1> to vector<4x8xi32>
    %95 = arith.sitofp %94 : vector<4x8xi32> to vector<4x8xf32>
    %c2_i32_81 = arith.constant 2 : i32
    %96 = vector.broadcast %c2_i32_81 : i32 to vector<4x8xi32>
    %97 = arith.muli %96, %89 : vector<4x8xi32>
    %c1_i32_82 = arith.constant 1 : i32
    %98 = vector.broadcast %c1_i32_82 : i32 to vector<4x8xi32>
    %99 = arith.addi %97, %98 : vector<4x8xi32>
    %100 = arith.cmpi eq, %90, %99 : vector<4x8xi32>
    %101 = arith.extui %100 : vector<4x8xi1> to vector<4x8xi32>
    %102 = arith.sitofp %101 : vector<4x8xi32> to vector<4x8xf32>
    %c0_i32_83 = arith.constant 0 : i32
    %c8_i32 = arith.constant 8 : i32
    %103 = arith.addi %c0_i32_83, %c8_i32 : i32
    %c1_i32_84 = arith.constant 1 : i32
    scf.for %arg12 = %c0_i32_83 to %103 step %c1_i32_84  : i32 {
      %cst_216 = arith.constant 0.000000e+00 : f32
      %213 = vector.broadcast %cst_216 : f32 to vector<8x64xf32>
      %c2_i32_217 = arith.constant 2 : i32
      %214 = arith.muli %c2_i32_217, %arg12 : i32
      %c0_i32_218 = arith.constant 0 : i32
      %215 = arith.addi %214, %c0_i32_218 : i32
      %216 = arith.index_cast %215 : i32 to index
      %c0_219 = arith.constant 0 : index
      %c0_220 = arith.constant 0 : index
      %217 = vector.load %arg10[%216, %c0_219, %c0_220] : memref<18x10x128xf32, #tpu.memory_space<vmem>>, vector<1x8x128xf32>
      %218 = vector.shape_cast %217 : vector<1x8x128xf32> to vector<8x128xf32>
      %219 = arith.index_cast %215 : i32 to index
      %c1_221 = arith.constant 1 : index
      %c0_222 = arith.constant 0 : index
      %220 = vector.load %arg10[%219, %c1_221, %c0_222] : memref<18x10x128xf32, #tpu.memory_space<vmem>>, vector<1x8x128xf32>
      %221 = vector.shape_cast %220 : vector<1x8x128xf32> to vector<8x128xf32>
      %222 = arith.index_cast %215 : i32 to index
      %c2_223 = arith.constant 2 : index
      %c0_224 = arith.constant 0 : index
      %223 = vector.load %arg10[%222, %c2_223, %c0_224] : memref<18x10x128xf32, #tpu.memory_space<vmem>>, vector<1x8x128xf32>
      %224 = vector.shape_cast %223 : vector<1x8x128xf32> to vector<8x128xf32>
      %225 = arith.select %88, %224, %218 : vector<8x128xi1>, vector<8x128xf32>
      %c3_225 = arith.constant 3 : index
      %c0_226 = arith.constant 0 : index
      %c0_227 = arith.constant 0 : index
      %c0_228 = arith.constant 0 : index
      %c0_229 = arith.constant 0 : index
      %226 = vector.load %arg3[%c3_225, %c0_226, %c0_227, %c0_228, %c0_229] : memref<4x4x2x128x64xf32, #tpu.memory_space<vmem>>, vector<1x1x1x128x64xf32>
      %227 = vector.shape_cast %226 : vector<1x1x1x128x64xf32> to vector<128x64xf32>
      %cst_230 = arith.constant dense<0.000000e+00> : vector<8x64xf32>
      %228 = tpu.matmul %221, %227, %cst_230 {dimension_numbers = #tpu.dot_dimension_numbers<[1], [0], [0], [1], [0, 0, 1, 1], [], []>} : vector<8x128xf32>, vector<128x64xf32>, vector<8x64xf32> -> vector<8x64xf32>
      %229 = arith.addf %213, %228 : vector<8x64xf32>
      %c3_231 = arith.constant 3 : index
      %c0_232 = arith.constant 0 : index
      %c1_233 = arith.constant 1 : index
      %c0_234 = arith.constant 0 : index
      %c0_235 = arith.constant 0 : index
      %230 = vector.load %arg3[%c3_231, %c0_232, %c1_233, %c0_234, %c0_235] : memref<4x4x2x128x64xf32, #tpu.memory_space<vmem>>, vector<1x1x1x128x64xf32>
      %231 = vector.shape_cast %230 : vector<1x1x1x128x64xf32> to vector<128x64xf32>
      %cst_236 = arith.constant dense<0.000000e+00> : vector<8x64xf32>
      %232 = tpu.matmul %225, %231, %cst_236 {dimension_numbers = #tpu.dot_dimension_numbers<[1], [0], [0], [1], [0, 0, 1, 1], [], []>} : vector<8x128xf32>, vector<128x64xf32>, vector<8x64xf32> -> vector<8x64xf32>
      %233 = arith.addf %229, %232 : vector<8x64xf32>
      %c2_i32_237 = arith.constant 2 : i32
      %234 = arith.muli %c2_i32_237, %arg12 : i32
      %c1_i32_238 = arith.constant 1 : i32
      %235 = arith.addi %234, %c1_i32_238 : i32
      %236 = arith.index_cast %235 : i32 to index
      %c0_239 = arith.constant 0 : index
      %c0_240 = arith.constant 0 : index
      %237 = vector.load %arg10[%236, %c0_239, %c0_240] : memref<18x10x128xf32, #tpu.memory_space<vmem>>, vector<1x8x128xf32>
      %238 = vector.shape_cast %237 : vector<1x8x128xf32> to vector<8x128xf32>
      %239 = arith.index_cast %235 : i32 to index
      %c1_241 = arith.constant 1 : index
      %c0_242 = arith.constant 0 : index
      %240 = vector.load %arg10[%239, %c1_241, %c0_242] : memref<18x10x128xf32, #tpu.memory_space<vmem>>, vector<1x8x128xf32>
      %241 = vector.shape_cast %240 : vector<1x8x128xf32> to vector<8x128xf32>
      %242 = arith.index_cast %235 : i32 to index
      %c2_243 = arith.constant 2 : index
      %c0_244 = arith.constant 0 : index
      %243 = vector.load %arg10[%242, %c2_243, %c0_244] : memref<18x10x128xf32, #tpu.memory_space<vmem>>, vector<1x8x128xf32>
      %244 = vector.shape_cast %243 : vector<1x8x128xf32> to vector<8x128xf32>
      %245 = arith.select %88, %244, %238 : vector<8x128xi1>, vector<8x128xf32>
      %c3_245 = arith.constant 3 : index
      %c1_246 = arith.constant 1 : index
      %c0_247 = arith.constant 0 : index
      %c0_248 = arith.constant 0 : index
      %c0_249 = arith.constant 0 : index
      %246 = vector.load %arg3[%c3_245, %c1_246, %c0_247, %c0_248, %c0_249] : memref<4x4x2x128x64xf32, #tpu.memory_space<vmem>>, vector<1x1x1x128x64xf32>
      %247 = vector.shape_cast %246 : vector<1x1x1x128x64xf32> to vector<128x64xf32>
      %cst_250 = arith.constant dense<0.000000e+00> : vector<8x64xf32>
      %248 = tpu.matmul %241, %247, %cst_250 {dimension_numbers = #tpu.dot_dimension_numbers<[1], [0], [0], [1], [0, 0, 1, 1], [], []>} : vector<8x128xf32>, vector<128x64xf32>, vector<8x64xf32> -> vector<8x64xf32>
      %249 = arith.addf %233, %248 : vector<8x64xf32>
      %c3_251 = arith.constant 3 : index
      %c1_252 = arith.constant 1 : index
      %c1_253 = arith.constant 1 : index
      %c0_254 = arith.constant 0 : index
      %c0_255 = arith.constant 0 : index
      %250 = vector.load %arg3[%c3_251, %c1_252, %c1_253, %c0_254, %c0_255] : memref<4x4x2x128x64xf32, #tpu.memory_space<vmem>>, vector<1x1x1x128x64xf32>
      %251 = vector.shape_cast %250 : vector<1x1x1x128x64xf32> to vector<128x64xf32>
      %cst_256 = arith.constant dense<0.000000e+00> : vector<8x64xf32>
      %252 = tpu.matmul %245, %251, %cst_256 {dimension_numbers = #tpu.dot_dimension_numbers<[1], [0], [0], [1], [0, 0, 1, 1], [], []>} : vector<8x128xf32>, vector<128x64xf32>, vector<8x64xf32> -> vector<8x64xf32>
      %253 = arith.addf %249, %252 : vector<8x64xf32>
      %c2_i32_257 = arith.constant 2 : i32
      %254 = arith.muli %c2_i32_257, %arg12 : i32
      %c2_i32_258 = arith.constant 2 : i32
      %255 = arith.addi %254, %c2_i32_258 : i32
      %256 = arith.index_cast %255 : i32 to index
      %c0_259 = arith.constant 0 : index
      %c0_260 = arith.constant 0 : index
      %257 = vector.load %arg10[%256, %c0_259, %c0_260] : memref<18x10x128xf32, #tpu.memory_space<vmem>>, vector<1x8x128xf32>
      %258 = vector.shape_cast %257 : vector<1x8x128xf32> to vector<8x128xf32>
      %259 = arith.index_cast %255 : i32 to index
      %c1_261 = arith.constant 1 : index
      %c0_262 = arith.constant 0 : index
      %260 = vector.load %arg10[%259, %c1_261, %c0_262] : memref<18x10x128xf32, #tpu.memory_space<vmem>>, vector<1x8x128xf32>
      %261 = vector.shape_cast %260 : vector<1x8x128xf32> to vector<8x128xf32>
      %262 = arith.index_cast %255 : i32 to index
      %c2_263 = arith.constant 2 : index
      %c0_264 = arith.constant 0 : index
      %263 = vector.load %arg10[%262, %c2_263, %c0_264] : memref<18x10x128xf32, #tpu.memory_space<vmem>>, vector<1x8x128xf32>
      %264 = vector.shape_cast %263 : vector<1x8x128xf32> to vector<8x128xf32>
      %265 = arith.select %88, %264, %258 : vector<8x128xi1>, vector<8x128xf32>
      %c3_265 = arith.constant 3 : index
      %c2_266 = arith.constant 2 : index
      %c0_267 = arith.constant 0 : index
      %c0_268 = arith.constant 0 : index
      %c0_269 = arith.constant 0 : index
      %266 = vector.load %arg3[%c3_265, %c2_266, %c0_267, %c0_268, %c0_269] : memref<4x4x2x128x64xf32, #tpu.memory_space<vmem>>, vector<1x1x1x128x64xf32>
      %267 = vector.shape_cast %266 : vector<1x1x1x128x64xf32> to vector<128x64xf32>
      %cst_270 = arith.constant dense<0.000000e+00> : vector<8x64xf32>
      %268 = tpu.matmul %261, %267, %cst_270 {dimension_numbers = #tpu.dot_dimension_numbers<[1], [0], [0], [1], [0, 0, 1, 1], [], []>} : vector<8x128xf32>, vector<128x64xf32>, vector<8x64xf32> -> vector<8x64xf32>
      %269 = arith.addf %253, %268 : vector<8x64xf32>
      %c3_271 = arith.constant 3 : index
      %c2_272 = arith.constant 2 : index
      %c1_273 = arith.constant 1 : index
      %c0_274 = arith.constant 0 : index
      %c0_275 = arith.constant 0 : index
      %270 = vector.load %arg3[%c3_271, %c2_272, %c1_273, %c0_274, %c0_275] : memref<4x4x2x128x64xf32, #tpu.memory_space<vmem>>, vector<1x1x1x128x64xf32>
      %271 = vector.shape_cast %270 : vector<1x1x1x128x64xf32> to vector<128x64xf32>
      %cst_276 = arith.constant dense<0.000000e+00> : vector<8x64xf32>
      %272 = tpu.matmul %265, %271, %cst_276 {dimension_numbers = #tpu.dot_dimension_numbers<[1], [0], [0], [1], [0, 0, 1, 1], [], []>} : vector<8x128xf32>, vector<128x64xf32>, vector<8x64xf32> -> vector<8x64xf32>
      %273 = arith.addf %269, %272 : vector<8x64xf32>
      %c2_i32_277 = arith.constant 2 : i32
      %274 = arith.muli %c2_i32_277, %arg12 : i32
      %c3_i32 = arith.constant 3 : i32
      %275 = arith.addi %274, %c3_i32 : i32
      %276 = arith.index_cast %275 : i32 to index
      %c0_278 = arith.constant 0 : index
      %c0_279 = arith.constant 0 : index
      %277 = vector.load %arg10[%276, %c0_278, %c0_279] : memref<18x10x128xf32, #tpu.memory_space<vmem>>, vector<1x8x128xf32>
      %278 = vector.shape_cast %277 : vector<1x8x128xf32> to vector<8x128xf32>
      %279 = arith.index_cast %275 : i32 to index
      %c1_280 = arith.constant 1 : index
      %c0_281 = arith.constant 0 : index
      %280 = vector.load %arg10[%279, %c1_280, %c0_281] : memref<18x10x128xf32, #tpu.memory_space<vmem>>, vector<1x8x128xf32>
      %281 = vector.shape_cast %280 : vector<1x8x128xf32> to vector<8x128xf32>
      %282 = arith.index_cast %275 : i32 to index
      %c2_282 = arith.constant 2 : index
      %c0_283 = arith.constant 0 : index
      %283 = vector.load %arg10[%282, %c2_282, %c0_283] : memref<18x10x128xf32, #tpu.memory_space<vmem>>, vector<1x8x128xf32>
      %284 = vector.shape_cast %283 : vector<1x8x128xf32> to vector<8x128xf32>
      %285 = arith.select %88, %284, %278 : vector<8x128xi1>, vector<8x128xf32>
      %c3_284 = arith.constant 3 : index
      %c3_285 = arith.constant 3 : index
      %c0_286 = arith.constant 0 : index
      %c0_287 = arith.constant 0 : index
      %c0_288 = arith.constant 0 : index
      %286 = vector.load %arg3[%c3_284, %c3_285, %c0_286, %c0_287, %c0_288] : memref<4x4x2x128x64xf32, #tpu.memory_space<vmem>>, vector<1x1x1x128x64xf32>
      %287 = vector.shape_cast %286 : vector<1x1x1x128x64xf32> to vector<128x64xf32>
      %cst_289 = arith.constant dense<0.000000e+00> : vector<8x64xf32>
      %288 = tpu.matmul %281, %287, %cst_289 {dimension_numbers = #tpu.dot_dimension_numbers<[1], [0], [0], [1], [0, 0, 1, 1], [], []>} : vector<8x128xf32>, vector<128x64xf32>, vector<8x64xf32> -> vector<8x64xf32>
      %289 = arith.addf %273, %288 : vector<8x64xf32>
      %c3_290 = arith.constant 3 : index
      %c3_291 = arith.constant 3 : index
      %c1_292 = arith.constant 1 : index
      %c0_293 = arith.constant 0 : index
      %c0_294 = arith.constant 0 : index
      %290 = vector.load %arg3[%c3_290, %c3_291, %c1_292, %c0_293, %c0_294] : memref<4x4x2x128x64xf32, #tpu.memory_space<vmem>>, vector<1x1x1x128x64xf32>
      %291 = vector.shape_cast %290 : vector<1x1x1x128x64xf32> to vector<128x64xf32>
      %cst_295 = arith.constant dense<0.000000e+00> : vector<8x64xf32>
      %292 = tpu.matmul %285, %291, %cst_295 {dimension_numbers = #tpu.dot_dimension_numbers<[1], [0], [0], [1], [0, 0, 1, 1], [], []>} : vector<8x128xf32>, vector<128x64xf32>, vector<8x64xf32> -> vector<8x64xf32>
      %293 = arith.addf %289, %292 : vector<8x64xf32>
      %294 = vector.broadcast %85 : vector<1x64xf32> to vector<8x64xf32>
      %295 = arith.addf %293, %294 : vector<8x64xf32>
      %cst_296 = arith.constant 0.000000e+00 : f32
      %296 = vector.broadcast %cst_296 : f32 to vector<8x64xf32>
      %297 = arith.maximumf %295, %296 : vector<8x64xf32>
      %cst_297 = arith.constant dense<0.000000e+00> : vector<4x64xf32>
      %298 = tpu.matmul %95, %297, %cst_297 {dimension_numbers = #tpu.dot_dimension_numbers<[1], [0], [0], [1], [0, 0, 1, 1], [], []>} : vector<4x8xf32>, vector<8x64xf32>, vector<4x64xf32> -> vector<4x64xf32>
      %cst_298 = arith.constant dense<0.000000e+00> : vector<4x64xf32>
      %299 = tpu.matmul %102, %297, %cst_298 {dimension_numbers = #tpu.dot_dimension_numbers<[1], [0], [0], [1], [0, 0, 1, 1], [], []>} : vector<4x8xf32>, vector<8x64xf32>, vector<4x64xf32> -> vector<4x64xf32>
      %300 = tpu.concatenate %298, %299 in 1 : vector<4x64xf32>, vector<4x64xf32> -> vector<4x128xf32>
      %301 = vector.shape_cast %300 : vector<4x128xf32> to vector<1x4x128xf32>
      %c1_i32_299 = arith.constant 1 : i32
      %302 = arith.addi %arg12, %c1_i32_299 : i32
      %303 = arith.index_cast %302 : i32 to index
      %c1_300 = arith.constant 1 : index
      %c0_301 = arith.constant 0 : index
      %304 = vector.load %arg11[%303, %c1_300, %c0_301] : memref<10x6x128xf32, #tpu.memory_space<vmem>>, vector<1x4x128xf32>
      tpu.vector_store %arg11[%303, %c1_300, %c0_301], %301 {strides = array<i32>} : memref<10x6x128xf32, #tpu.memory_space<vmem>>, vector<1x4x128xf32>,
    }
    %c8_i32_85 = arith.constant 8 : i32
    %cst_86 = arith.constant 0.000000e+00 : f32
    %104 = vector.broadcast %cst_86 : f32 to vector<1x64xf32>
    %c1_87 = arith.constant 1 : index
    %c1_88 = arith.constant 1 : index
    %c0_89 = arith.constant 0 : index
    %105 = vector.load %arg11[%c1_87, %c1_88, %c0_89] : memref<10x6x128xf32, #tpu.memory_space<vmem>>, vector<1x1x128xf32>
    %106 = vector.shape_cast %105 : vector<1x1x128xf32> to vector<1x128xf32>
    %c1_90 = arith.constant 1 : index
    %c2_91 = arith.constant 2 : index
    %c0_92 = arith.constant 0 : index
    %107 = vector.load %arg11[%c1_90, %c2_91, %c0_92] : memref<10x6x128xf32, #tpu.memory_space<vmem>>, vector<1x1x128xf32>
    %108 = vector.shape_cast %107 : vector<1x1x128xf32> to vector<1x128xf32>
    %c1_93 = arith.constant 1 : index
    %c3_94 = arith.constant 3 : index
    %c0_95 = arith.constant 0 : index
    %109 = vector.load %arg11[%c1_93, %c3_94, %c0_95] : memref<10x6x128xf32, #tpu.memory_space<vmem>>, vector<1x1x128xf32>
    %110 = vector.shape_cast %109 : vector<1x1x128xf32> to vector<1x128xf32>
    %c1_96 = arith.constant 1 : index
    %c4_97 = arith.constant 4 : index
    %c0_98 = arith.constant 0 : index
    %111 = vector.load %arg11[%c1_96, %c4_97, %c0_98] : memref<10x6x128xf32, #tpu.memory_space<vmem>>, vector<1x1x128xf32>
    %112 = vector.shape_cast %111 : vector<1x1x128xf32> to vector<1x128xf32>
    %113 = tpu.concatenate %106, %108, %110, %112 in 1 : vector<1x128xf32>, vector<1x128xf32>, vector<1x128xf32>, vector<1x128xf32> -> vector<1x512xf32>
    %c0_99 = arith.constant 0 : index
    %c0_100 = arith.constant 0 : index
    %c0_101 = arith.constant 0 : index
    %114 = vector.load %arg4[%c0_99, %c0_100, %c0_101] : memref<8x512x64xf32, #tpu.memory_space<vmem>>, vector<1x512x64xf32>
    %115 = vector.shape_cast %114 : vector<1x512x64xf32> to vector<512x64xf32>
    %cst_102 = arith.constant dense<0.000000e+00> : vector<1x64xf32>
    %116 = tpu.matmul %113, %115, %cst_102 {dimension_numbers = #tpu.dot_dimension_numbers<[1], [0], [0], [1], [0, 0, 1, 1], [], []>} : vector<1x512xf32>, vector<512x64xf32>, vector<1x64xf32> -> vector<1x64xf32>
    %117 = arith.addf %104, %116 : vector<1x64xf32>
    %c2_103 = arith.constant 2 : index
    %c1_104 = arith.constant 1 : index
    %c0_105 = arith.constant 0 : index
    %118 = vector.load %arg11[%c2_103, %c1_104, %c0_105] : memref<10x6x128xf32, #tpu.memory_space<vmem>>, vector<1x1x128xf32>
    %119 = vector.shape_cast %118 : vector<1x1x128xf32> to vector<1x128xf32>
    %c2_106 = arith.constant 2 : index
    %c2_107 = arith.constant 2 : index
    %c0_108 = arith.constant 0 : index
    %120 = vector.load %arg11[%c2_106, %c2_107, %c0_108] : memref<10x6x128xf32, #tpu.memory_space<vmem>>, vector<1x1x128xf32>
    %121 = vector.shape_cast %120 : vector<1x1x128xf32> to vector<1x128xf32>
    %c2_109 = arith.constant 2 : index
    %c3_110 = arith.constant 3 : index
    %c0_111 = arith.constant 0 : index
    %122 = vector.load %arg11[%c2_109, %c3_110, %c0_111] : memref<10x6x128xf32, #tpu.memory_space<vmem>>, vector<1x1x128xf32>
    %123 = vector.shape_cast %122 : vector<1x1x128xf32> to vector<1x128xf32>
    %c2_112 = arith.constant 2 : index
    %c4_113 = arith.constant 4 : index
    %c0_114 = arith.constant 0 : index
    %124 = vector.load %arg11[%c2_112, %c4_113, %c0_114] : memref<10x6x128xf32, #tpu.memory_space<vmem>>, vector<1x1x128xf32>
    %125 = vector.shape_cast %124 : vector<1x1x128xf32> to vector<1x128xf32>
    %126 = tpu.concatenate %119, %121, %123, %125 in 1 : vector<1x128xf32>, vector<1x128xf32>, vector<1x128xf32>, vector<1x128xf32> -> vector<1x512xf32>
    %c1_115 = arith.constant 1 : index
    %c0_116 = arith.constant 0 : index
    %c0_117 = arith.constant 0 : index
    %127 = vector.load %arg4[%c1_115, %c0_116, %c0_117] : memref<8x512x64xf32, #tpu.memory_space<vmem>>, vector<1x512x64xf32>
    %128 = vector.shape_cast %127 : vector<1x512x64xf32> to vector<512x64xf32>
    %cst_118 = arith.constant dense<0.000000e+00> : vector<1x64xf32>
    %129 = tpu.matmul %126, %128, %cst_118 {dimension_numbers = #tpu.dot_dimension_numbers<[1], [0], [0], [1], [0, 0, 1, 1], [], []>} : vector<1x512xf32>, vector<512x64xf32>, vector<1x64xf32> -> vector<1x64xf32>
    %130 = arith.addf %117, %129 : vector<1x64xf32>
    %c3_119 = arith.constant 3 : index
    %c1_120 = arith.constant 1 : index
    %c0_121 = arith.constant 0 : index
    %131 = vector.load %arg11[%c3_119, %c1_120, %c0_121] : memref<10x6x128xf32, #tpu.memory_space<vmem>>, vector<1x1x128xf32>
    %132 = vector.shape_cast %131 : vector<1x1x128xf32> to vector<1x128xf32>
    %c3_122 = arith.constant 3 : index
    %c2_123 = arith.constant 2 : index
    %c0_124 = arith.constant 0 : index
    %133 = vector.load %arg11[%c3_122, %c2_123, %c0_124] : memref<10x6x128xf32, #tpu.memory_space<vmem>>, vector<1x1x128xf32>
    %134 = vector.shape_cast %133 : vector<1x1x128xf32> to vector<1x128xf32>
    %c3_125 = arith.constant 3 : index
    %c3_126 = arith.constant 3 : index
    %c0_127 = arith.constant 0 : index
    %135 = vector.load %arg11[%c3_125, %c3_126, %c0_127] : memref<10x6x128xf32, #tpu.memory_space<vmem>>, vector<1x1x128xf32>
    %136 = vector.shape_cast %135 : vector<1x1x128xf32> to vector<1x128xf32>
    %c3_128 = arith.constant 3 : index
    %c4_129 = arith.constant 4 : index
    %c0_130 = arith.constant 0 : index
    %137 = vector.load %arg11[%c3_128, %c4_129, %c0_130] : memref<10x6x128xf32, #tpu.memory_space<vmem>>, vector<1x1x128xf32>
    %138 = vector.shape_cast %137 : vector<1x1x128xf32> to vector<1x128xf32>
    %139 = tpu.concatenate %132, %134, %136, %138 in 1 : vector<1x128xf32>, vector<1x128xf32>, vector<1x128xf32>, vector<1x128xf32> -> vector<1x512xf32>
    %c2_131 = arith.constant 2 : index
    %c0_132 = arith.constant 0 : index
    %c0_133 = arith.constant 0 : index
    %140 = vector.load %arg4[%c2_131, %c0_132, %c0_133] : memref<8x512x64xf32, #tpu.memory_space<vmem>>, vector<1x512x64xf32>
    %141 = vector.shape_cast %140 : vector<1x512x64xf32> to vector<512x64xf32>
    %cst_134 = arith.constant dense<0.000000e+00> : vector<1x64xf32>
    %142 = tpu.matmul %139, %141, %cst_134 {dimension_numbers = #tpu.dot_dimension_numbers<[1], [0], [0], [1], [0, 0, 1, 1], [], []>} : vector<1x512xf32>, vector<512x64xf32>, vector<1x64xf32> -> vector<1x64xf32>
    %143 = arith.addf %130, %142 : vector<1x64xf32>
    %c4_135 = arith.constant 4 : index
    %c1_136 = arith.constant 1 : index
    %c0_137 = arith.constant 0 : index
    %144 = vector.load %arg11[%c4_135, %c1_136, %c0_137] : memref<10x6x128xf32, #tpu.memory_space<vmem>>, vector<1x1x128xf32>
    %145 = vector.shape_cast %144 : vector<1x1x128xf32> to vector<1x128xf32>
    %c4_138 = arith.constant 4 : index
    %c2_139 = arith.constant 2 : index
    %c0_140 = arith.constant 0 : index
    %146 = vector.load %arg11[%c4_138, %c2_139, %c0_140] : memref<10x6x128xf32, #tpu.memory_space<vmem>>, vector<1x1x128xf32>
    %147 = vector.shape_cast %146 : vector<1x1x128xf32> to vector<1x128xf32>
    %c4_141 = arith.constant 4 : index
    %c3_142 = arith.constant 3 : index
    %c0_143 = arith.constant 0 : index
    %148 = vector.load %arg11[%c4_141, %c3_142, %c0_143] : memref<10x6x128xf32, #tpu.memory_space<vmem>>, vector<1x1x128xf32>
    %149 = vector.shape_cast %148 : vector<1x1x128xf32> to vector<1x128xf32>
    %c4_144 = arith.constant 4 : index
    %c4_145 = arith.constant 4 : index
    %c0_146 = arith.constant 0 : index
    %150 = vector.load %arg11[%c4_144, %c4_145, %c0_146] : memref<10x6x128xf32, #tpu.memory_space<vmem>>, vector<1x1x128xf32>
    %151 = vector.shape_cast %150 : vector<1x1x128xf32> to vector<1x128xf32>
    %152 = tpu.concatenate %145, %147, %149, %151 in 1 : vector<1x128xf32>, vector<1x128xf32>, vector<1x128xf32>, vector<1x128xf32> -> vector<1x512xf32>
    %c3_147 = arith.constant 3 : index
    %c0_148 = arith.constant 0 : index
    %c0_149 = arith.constant 0 : index
    %153 = vector.load %arg4[%c3_147, %c0_148, %c0_149] : memref<8x512x64xf32, #tpu.memory_space<vmem>>, vector<1x512x64xf32>
    %154 = vector.shape_cast %153 : vector<1x512x64xf32> to vector<512x64xf32>
    %cst_150 = arith.constant dense<0.000000e+00> : vector<1x64xf32>
    %155 = tpu.matmul %152, %154, %cst_150 {dimension_numbers = #tpu.dot_dimension_numbers<[1], [0], [0], [1], [0, 0, 1, 1], [], []>} : vector<1x512xf32>, vector<512x64xf32>, vector<1x64xf32> -> vector<1x64xf32>
    %156 = arith.addf %143, %155 : vector<1x64xf32>
    %c5 = arith.constant 5 : index
    %c1_151 = arith.constant 1 : index
    %c0_152 = arith.constant 0 : index
    %157 = vector.load %arg11[%c5, %c1_151, %c0_152] : memref<10x6x128xf32, #tpu.memory_space<vmem>>, vector<1x1x128xf32>
    %158 = vector.shape_cast %157 : vector<1x1x128xf32> to vector<1x128xf32>
    %c5_153 = arith.constant 5 : index
    %c2_154 = arith.constant 2 : index
    %c0_155 = arith.constant 0 : index
    %159 = vector.load %arg11[%c5_153, %c2_154, %c0_155] : memref<10x6x128xf32, #tpu.memory_space<vmem>>, vector<1x1x128xf32>
    %160 = vector.shape_cast %159 : vector<1x1x128xf32> to vector<1x128xf32>
    %c5_156 = arith.constant 5 : index
    %c3_157 = arith.constant 3 : index
    %c0_158 = arith.constant 0 : index
    %161 = vector.load %arg11[%c5_156, %c3_157, %c0_158] : memref<10x6x128xf32, #tpu.memory_space<vmem>>, vector<1x1x128xf32>
    %162 = vector.shape_cast %161 : vector<1x1x128xf32> to vector<1x128xf32>
    %c5_159 = arith.constant 5 : index
    %c4_160 = arith.constant 4 : index
    %c0_161 = arith.constant 0 : index
    %163 = vector.load %arg11[%c5_159, %c4_160, %c0_161] : memref<10x6x128xf32, #tpu.memory_space<vmem>>, vector<1x1x128xf32>
    %164 = vector.shape_cast %163 : vector<1x1x128xf32> to vector<1x128xf32>
    %165 = tpu.concatenate %158, %160, %162, %164 in 1 : vector<1x128xf32>, vector<1x128xf32>, vector<1x128xf32>, vector<1x128xf32> -> vector<1x512xf32>
    %c4_162 = arith.constant 4 : index
    %c0_163 = arith.constant 0 : index
    %c0_164 = arith.constant 0 : index
    %166 = vector.load %arg4[%c4_162, %c0_163, %c0_164] : memref<8x512x64xf32, #tpu.memory_space<vmem>>, vector<1x512x64xf32>
    %167 = vector.shape_cast %166 : vector<1x512x64xf32> to vector<512x64xf32>
    %cst_165 = arith.constant dense<0.000000e+00> : vector<1x64xf32>
    %168 = tpu.matmul %165, %167, %cst_165 {dimension_numbers = #tpu.dot_dimension_numbers<[1], [0], [0], [1], [0, 0, 1, 1], [], []>} : vector<1x512xf32>, vector<512x64xf32>, vector<1x64xf32> -> vector<1x64xf32>
    %169 = arith.addf %156, %168 : vector<1x64xf32>
    %c6 = arith.constant 6 : index
    %c1_166 = arith.constant 1 : index
    %c0_167 = arith.constant 0 : index
    %170 = vector.load %arg11[%c6, %c1_166, %c0_167] : memref<10x6x128xf32, #tpu.memory_space<vmem>>, vector<1x1x128xf32>
    %171 = vector.shape_cast %170 : vector<1x1x128xf32> to vector<1x128xf32>
    %c6_168 = arith.constant 6 : index
    %c2_169 = arith.constant 2 : index
    %c0_170 = arith.constant 0 : index
    %172 = vector.load %arg11[%c6_168, %c2_169, %c0_170] : memref<10x6x128xf32, #tpu.memory_space<vmem>>, vector<1x1x128xf32>
    %173 = vector.shape_cast %172 : vector<1x1x128xf32> to vector<1x128xf32>
    %c6_171 = arith.constant 6 : index
    %c3_172 = arith.constant 3 : index
    %c0_173 = arith.constant 0 : index
    %174 = vector.load %arg11[%c6_171, %c3_172, %c0_173] : memref<10x6x128xf32, #tpu.memory_space<vmem>>, vector<1x1x128xf32>
    %175 = vector.shape_cast %174 : vector<1x1x128xf32> to vector<1x128xf32>
    %c6_174 = arith.constant 6 : index
    %c4_175 = arith.constant 4 : index
    %c0_176 = arith.constant 0 : index
    %176 = vector.load %arg11[%c6_174, %c4_175, %c0_176] : memref<10x6x128xf32, #tpu.memory_space<vmem>>, vector<1x1x128xf32>
    %177 = vector.shape_cast %176 : vector<1x1x128xf32> to vector<1x128xf32>
    %178 = tpu.concatenate %171, %173, %175, %177 in 1 : vector<1x128xf32>, vector<1x128xf32>, vector<1x128xf32>, vector<1x128xf32> -> vector<1x512xf32>
    %c5_177 = arith.constant 5 : index
    %c0_178 = arith.constant 0 : index
    %c0_179 = arith.constant 0 : index
    %179 = vector.load %arg4[%c5_177, %c0_178, %c0_179] : memref<8x512x64xf32, #tpu.memory_space<vmem>>, vector<1x512x64xf32>
    %180 = vector.shape_cast %179 : vector<1x512x64xf32> to vector<512x64xf32>
    %cst_180 = arith.constant dense<0.000000e+00> : vector<1x64xf32>
    %181 = tpu.matmul %178, %180, %cst_180 {dimension_numbers = #tpu.dot_dimension_numbers<[1], [0], [0], [1], [0, 0, 1, 1], [], []>} : vector<1x512xf32>, vector<512x64xf32>, vector<1x64xf32> -> vector<1x64xf32>
    %182 = arith.addf %169, %181 : vector<1x64xf32>
    %c7 = arith.constant 7 : index
    %c1_181 = arith.constant 1 : index
    %c0_182 = arith.constant 0 : index
    %183 = vector.load %arg11[%c7, %c1_181, %c0_182] : memref<10x6x128xf32, #tpu.memory_space<vmem>>, vector<1x1x128xf32>
    %184 = vector.shape_cast %183 : vector<1x1x128xf32> to vector<1x128xf32>
    %c7_183 = arith.constant 7 : index
    %c2_184 = arith.constant 2 : index
    %c0_185 = arith.constant 0 : index
    %185 = vector.load %arg11[%c7_183, %c2_184, %c0_185] : memref<10x6x128xf32, #tpu.memory_space<vmem>>, vector<1x1x128xf32>
    %186 = vector.shape_cast %185 : vector<1x1x128xf32> to vector<1x128xf32>
    %c7_186 = arith.constant 7 : index
    %c3_187 = arith.constant 3 : index
    %c0_188 = arith.constant 0 : index
    %187 = vector.load %arg11[%c7_186, %c3_187, %c0_188] : memref<10x6x128xf32, #tpu.memory_space<vmem>>, vector<1x1x128xf32>
    %188 = vector.shape_cast %187 : vector<1x1x128xf32> to vector<1x128xf32>
    %c7_189 = arith.constant 7 : index
    %c4_190 = arith.constant 4 : index
    %c0_191 = arith.constant 0 : index
    %189 = vector.load %arg11[%c7_189, %c4_190, %c0_191] : memref<10x6x128xf32, #tpu.memory_space<vmem>>, vector<1x1x128xf32>
    %190 = vector.shape_cast %189 : vector<1x1x128xf32> to vector<1x128xf32>
    %191 = tpu.concatenate %184, %186, %188, %190 in 1 : vector<1x128xf32>, vector<1x128xf32>, vector<1x128xf32>, vector<1x128xf32> -> vector<1x512xf32>
    %c6_192 = arith.constant 6 : index
    %c0_193 = arith.constant 0 : index
    %c0_194 = arith.constant 0 : index
    %192 = vector.load %arg4[%c6_192, %c0_193, %c0_194] : memref<8x512x64xf32, #tpu.memory_space<vmem>>, vector<1x512x64xf32>
    %193 = vector.shape_cast %192 : vector<1x512x64xf32> to vector<512x64xf32>
    %cst_195 = arith.constant dense<0.000000e+00> : vector<1x64xf32>
    %194 = tpu.matmul %191, %193, %cst_195 {dimension_numbers = #tpu.dot_dimension_numbers<[1], [0], [0], [1], [0, 0, 1, 1], [], []>} : vector<1x512xf32>, vector<512x64xf32>, vector<1x64xf32> -> vector<1x64xf32>
    %195 = arith.addf %182, %194 : vector<1x64xf32>
    %c8 = arith.constant 8 : index
    %c1_196 = arith.constant 1 : index
    %c0_197 = arith.constant 0 : index
    %196 = vector.load %arg11[%c8, %c1_196, %c0_197] : memref<10x6x128xf32, #tpu.memory_space<vmem>>, vector<1x1x128xf32>
    %197 = vector.shape_cast %196 : vector<1x1x128xf32> to vector<1x128xf32>
    %c8_198 = arith.constant 8 : index
    %c2_199 = arith.constant 2 : index
    %c0_200 = arith.constant 0 : index
    %198 = vector.load %arg11[%c8_198, %c2_199, %c0_200] : memref<10x6x128xf32, #tpu.memory_space<vmem>>, vector<1x1x128xf32>
    %199 = vector.shape_cast %198 : vector<1x1x128xf32> to vector<1x128xf32>
    %c8_201 = arith.constant 8 : index
    %c3_202 = arith.constant 3 : index
    %c0_203 = arith.constant 0 : index
    %200 = vector.load %arg11[%c8_201, %c3_202, %c0_203] : memref<10x6x128xf32, #tpu.memory_space<vmem>>, vector<1x1x128xf32>
    %201 = vector.shape_cast %200 : vector<1x1x128xf32> to vector<1x128xf32>
    %c8_204 = arith.constant 8 : index
    %c4_205 = arith.constant 4 : index
    %c0_206 = arith.constant 0 : index
    %202 = vector.load %arg11[%c8_204, %c4_205, %c0_206] : memref<10x6x128xf32, #tpu.memory_space<vmem>>, vector<1x1x128xf32>
    %203 = vector.shape_cast %202 : vector<1x1x128xf32> to vector<1x128xf32>
    %204 = tpu.concatenate %197, %199, %201, %203 in 1 : vector<1x128xf32>, vector<1x128xf32>, vector<1x128xf32>, vector<1x128xf32> -> vector<1x512xf32>
    %c7_207 = arith.constant 7 : index
    %c0_208 = arith.constant 0 : index
    %c0_209 = arith.constant 0 : index
    %205 = vector.load %arg4[%c7_207, %c0_208, %c0_209] : memref<8x512x64xf32, #tpu.memory_space<vmem>>, vector<1x512x64xf32>
    %206 = vector.shape_cast %205 : vector<1x512x64xf32> to vector<512x64xf32>
    %cst_210 = arith.constant dense<0.000000e+00> : vector<1x64xf32>
    %207 = tpu.matmul %204, %206, %cst_210 {dimension_numbers = #tpu.dot_dimension_numbers<[1], [0], [0], [1], [0, 0, 1, 1], [], []>} : vector<1x512xf32>, vector<512x64xf32>, vector<1x64xf32> -> vector<1x64xf32>
    %208 = arith.addf %195, %207 : vector<1x64xf32>
    %c5_211 = arith.constant 5 : index
    %c0_212 = arith.constant 0 : index
    %209 = vector.load %arg5[%c5_211, %c0_212] : memref<6x64xf32, #tpu.memory_space<vmem>>, vector<1x64xf32>
    %210 = arith.addf %208, %209 : vector<1x64xf32>
    %211 = vector.shape_cast %210 : vector<1x64xf32> to vector<1x1x64xf32>
    %c0_213 = arith.constant 0 : index
    %c0_214 = arith.constant 0 : index
    %c0_215 = arith.constant 0 : index
    %212 = vector.load %arg6[%c0_213, %c0_214, %c0_215] : memref<1x1x64xf32, #tpu.memory_space<vmem>>, vector<1x1x64xf32>
    tpu.vector_store %arg6[%c0_213, %c0_214, %c0_215], %211 {strides = array<i32>} : memref<1x1x64xf32, #tpu.memory_space<vmem>>, vector<1x1x64xf32>,
    return
  }
  func.func @transform_0(%arg0: i32) -> (i32, i32, i32, i32) {
    %c0_i32 = arith.constant 0 : i32
    %c0_i32_0 = arith.constant 0 : i32
    %c0_i32_1 = arith.constant 0 : i32
    %c0_i32_2 = arith.constant 0 : i32
    return %arg0, %c0_i32, %c0_i32_0, %c0_i32_1 : i32, i32, i32, i32
  }
  func.func @transform_1(%arg0: i32) -> (i32, i32) {
    %c0_i32 = arith.constant 0 : i32
    %c0_i32_0 = arith.constant 0 : i32
    %c0_i32_1 = arith.constant 0 : i32
    return %c0_i32, %c0_i32_0 : i32, i32
  }
  func.func @transform_2(%arg0: i32) -> (i32, i32, i32, i32, i32) {
    %c0_i32 = arith.constant 0 : i32
    %c0_i32_0 = arith.constant 0 : i32
    %c0_i32_1 = arith.constant 0 : i32
    %c0_i32_2 = arith.constant 0 : i32
    %c0_i32_3 = arith.constant 0 : i32
    %c0_i32_4 = arith.constant 0 : i32
    return %c0_i32, %c0_i32_0, %c0_i32_1, %c0_i32_2, %c0_i32_3 : i32, i32, i32, i32, i32
  }
  func.func @transform_3(%arg0: i32) -> (i32, i32, i32) {
    %c0_i32 = arith.constant 0 : i32
    %c0_i32_0 = arith.constant 0 : i32
    %c0_i32_1 = arith.constant 0 : i32
    %c0_i32_2 = arith.constant 0 : i32
    return %c0_i32, %c0_i32_0, %c0_i32_1 : i32, i32, i32
  }
  func.func @transform_4(%arg0: i32) -> (i32, i32) {
    %c0_i32 = arith.constant 0 : i32
    %c0_i32_0 = arith.constant 0 : i32
    %c0_i32_1 = arith.constant 0 : i32
    return %c0_i32, %c0_i32_0 : i32, i32
  }
  func.func @transform_5(%arg0: i32) -> (i32, i32, i32) {
    %c0_i32 = arith.constant 0 : i32
    %c0_i32_0 = arith.constant 0 : i32
    %c0_i32_1 = arith.constant 0 : i32
    return %arg0, %c0_i32, %c0_i32_0 : i32, i32, i32
  }
}

</mosaic_0001>

<llo_original>
// kernel: enc_conv_forward.1
$region0: #{enc_conv_forward.1}
  #allocation0 [shape = 'u32[]', space=smem, size = 0x4, offset = 0x4, fixed_abs, tag = 'smem constant byte address 0x4 - core index']
  #allocation1 [shape = 'u32[144,128]{1,0:T(1,128)}', space=vmem, size = 0x12000, scoped, tag = 'internal scratch']
  #allocation2 [shape = 'f32[130,66,128]{2,1,0:T(8,128)}', space=vmem, size = 0x492000, scoped, tag = 'scratch operand']
  #allocation3 [shape = 'f32[66,34,128]{2,1,0:T(8,128)}', space=vmem, size = 0x14a000, scoped, tag = 'scratch operand']
  #allocation4 [shape = 'f32[34,18,128]{2,1,0:T(8,128)}', space=vmem, size = 0x66000, scoped, tag = 'scratch operand']
  #allocation5 [shape = 'f32[18,10,128]{2,1,0:T(8,128)}', space=vmem, size = 0x24000, scoped, tag = 'scratch operand']
  #allocation6 [shape = 'f32[10,6,128]{2,1,0:T(8,128)}', space=vmem, size = 0xa000, scoped, tag = 'scratch operand']
  %s0 = inlined_call_operand.vmem [shape: f32[2,128,64,96], index: 0, kind: input, shape index: {}]
  %s1 = inlined_call_operand.vmem [shape: f32[96,128], index: 1, kind: input, shape index: {}]
  %s2 = inlined_call_operand.vmem [shape: f32[4,4,2,128,64], index: 2, kind: input, shape index: {}]
  %s3 = inlined_call_operand.vmem [shape: f32[8,512,64], index: 3, kind: input, shape index: {}]
  %s4 = inlined_call_operand.vmem [shape: f32[6,64], index: 4, kind: input, shape index: {}]
  %s5 = inlined_call_operand.hbm [shape: f32[2,1,64], index: 5, kind: output, shape index: {}]
  %s6 = sld [smem:[#allocation0]]
  $region88: #{enc_conv_forward.1} parent=0
    _
  %s8 = ssub.s32 1, %s6
  %s9 = scalar_select 0, %s8, %s6
  $region1: #{enc_conv_forward.1} parent=0
    #allocation7 [shape = 'u8[1024]{0}', space=vmem, size = 0x400, scoped, tag = 'output window, operand 0']
    #allocation8 [shape = 's32[2]{0}', space=sflag, size = 0x8, scoped, tag = 'scoped memory for enc_conv_forward.1']
    %10 = vsyncpa [#allocation8], 0
    %s11 = scalar_lea.sflag [#allocation8], 1
    %12 = vsyncpa %s11, 0
    loop: start=0, step=1, limit=4
    $region2: #{enc_conv_forward.1} parent=1 // loop_pre_header
      _
    $region3: #{enc_conv_forward.1} parent=1 // loop_header
      %s14 = sphi 0, %s18
      %p15 = scmp.ge.s32.totalorder %s14, 4
      %s24 = sphi 0, %s26
      %s27 = sphi 0, %s24
      %s28 = sphi 0, %s27
      %s44 = sphi 0, %s28
      %s48 = sphi 0, %s48
      %s50 = sphi 0, %s48
      %s51 = sphi 0, %s50
      %s65 = sphi 0, %s51
      %s69 = sphi 0, %s69
      %s71 = sphi 0, %s69
      %s72 = sphi 0, %s71
      %s86 = sphi 0, %s72
      %s90 = sphi 0, %s90
      %s92 = sphi 0, %s90
      %s93 = sphi 0, %s92
      %s107 = sphi 0, %s93
      %s111 = sphi 0, %s111
      %s113 = sphi 0, %s111
      %s114 = sphi 0, %s113
      %s128 = sphi 0, %s114
      %s134 = sphi 0, %s136
      %s137 = sphi 0, %s134
      %s138 = sphi 0, %s137
      %s154 = sphi 0, %s138
    $region4: #{enc_conv_forward.1} parent=1 // loop_header_branch
      %17 = sbr.rel (%p15) target = $region8
    $region5: #{enc_conv_forward.1} parent=1 // loop_body
      %s19 = ssub.s32 %s14, 1
      %s20 = ssub.s32 %s14, 2
      %s21 = sadd.s32 %s14, 1
      %s22 = ssub.s32 %s14, %s21
      %p23 = scmp.eq.s32.totalorder %s22, 0
      %s25 = sadd.s32 %s24, 1
      %s26 = scalar_select %p23, %s24, %s25
      %p29 = pneg %p23
      %p30 = scmp.eq.s32.totalorder %s14, 1
      %p31 = por %p29, %p30
      %p32 = scmp.ne.s32.totalorder %s24, %s27
      %p33 = scmp.eq.s32.totalorder %s14, 0
      %p34 = por %p32, %p33
      %p35 = scmp.ne.s32.totalorder %s24, %s27
      %p36 = scmp.eq.s32.totalorder %s19, 1
      %p37 = por %p35, %p36
      %p38 = scmp.ne.s32.totalorder %s27, %s28
      %p39 = scmp.eq.s32.totalorder %s19, 0
      %p40 = por %p38, %p39
      %p41 = scmp.ne.s32.totalorder %s27, %s28
      %p42 = scmp.eq.s32.totalorder %s20, 1
      %p43 = por %p41, %p42
      %p45 = scmp.ne.s32.totalorder %s28, %s44
      %p46 = scmp.eq.s32.totalorder %s20, 0
      %p47 = por %p45, %p46
      %s49 = sadd.s32 %s48, 1
      %p52 = scmp.eq.s32.totalorder %s14, 1
      %p53 = scmp.ne.s32.totalorder %s48, %s50
      %p54 = scmp.eq.s32.totalorder %s14, 0
      %p55 = por %p53, %p54
      %p56 = scmp.ne.s32.totalorder %s48, %s50
      %p57 = scmp.eq.s32.totalorder %s19, 1
      %p58 = por %p56, %p57
      %p59 = scmp.ne.s32.totalorder %s50, %s51
      %p60 = scmp.eq.s32.totalorder %s19, 0
      %p61 = por %p59, %p60
      %p62 = scmp.ne.s32.totalorder %s50, %s51
      %p63 = scmp.eq.s32.totalorder %s20, 1
      %p64 = por %p62, %p63
      %p66 = scmp.ne.s32.totalorder %s51, %s65
      %p67 = scmp.eq.s32.totalorder %s20, 0
      %p68 = por %p66, %p67
      %s70 = sadd.s32 %s69, 1
      %p73 = scmp.eq.s32.totalorder %s14, 1
      %p74 = scmp.ne.s32.totalorder %s69, %s71
      %p75 = scmp.eq.s32.totalorder %s14, 0
      %p76 = por %p74, %p75
      %p77 = scmp.ne.s32.totalorder %s69, %s71
      %p78 = scmp.eq.s32.totalorder %s19, 1
      %p79 = por %p77, %p78
      %p80 = scmp.ne.s32.totalorder %s71, %s72
      %p81 = scmp.eq.s32.totalorder %s19, 0
      %p82 = por %p80, %p81
      %p83 = scmp.ne.s32.totalorder %s71, %s72
      %p84 = scmp.eq.s32.totalorder %s20, 1
      %p85 = por %p83, %p84
      %p87 = scmp.ne.s32.totalorder %s72, %s86
      %p88 = scmp.eq.s32.totalorder %s20, 0
      %p89 = por %p87, %p88
      %s91 = sadd.s32 %s90, 1
      %p94 = scmp.eq.s32.totalorder %s14, 1
      %p95 = scmp.ne.s32.totalorder %s90, %s92
      %p96 = scmp.eq.s32.totalorder %s14, 0
      %p97 = por %p95, %p96
      %p98 = scmp.ne.s32.totalorder %s90, %s92
      %p99 = scmp.eq.s32.totalorder %s19, 1
      %p100 = por %p98, %p99
      %p101 = scmp.ne.s32.totalorder %s92, %s93
      %p102 = scmp.eq.s32.totalorder %s19, 0
      %p103 = por %p101, %p102
      %p104 = scmp.ne.s32.totalorder %s92, %s93
      %p105 = scmp.eq.s32.totalorder %s20, 1
      %p106 = por %p104, %p105
      %p108 = scmp.ne.s32.totalorder %s93, %s107
      %p109 = scmp.eq.s32.totalorder %s20, 0
      %p110 = por %p108, %p109
      %s112 = sadd.s32 %s111, 1
      %p115 = scmp.eq.s32.totalorder %s14, 1
      %p116 = scmp.ne.s32.totalorder %s111, %s113
      %p117 = scmp.eq.s32.totalorder %s14, 0
      %p118 = por %p116, %p117
      %p119 = scmp.ne.s32.totalorder %s111, %s113
      %p120 = scmp.eq.s32.totalorder %s19, 1
      %p121 = por %p119, %p120
      %p122 = scmp.ne.s32.totalorder %s113, %s114
      %p123 = scmp.eq.s32.totalorder %s19, 0
      %p124 = por %p122, %p123
      %p125 = scmp.ne.s32.totalorder %s113, %s114
      %p126 = scmp.eq.s32.totalorder %s20, 1
      %p127 = por %p125, %p126
      %p129 = scmp.ne.s32.totalorder %s114, %s128
      %p130 = scmp.eq.s32.totalorder %s20, 0
      %p131 = por %p129, %p130
      %s132 = ssub.s32 %s14, %s21
      %p133 = scmp.eq.s32.totalorder %s132, 0
      %s135 = sadd.s32 %s134, 1
      %s136 = scalar_select %p133, %s134, %s135
      %p139 = pneg %p133
      %p140 = scmp.eq.s32.totalorder %s14, 1
      %p141 = por %p139, %p140
      %p142 = scmp.ne.s32.totalorder %s134, %s137
      %p143 = scmp.eq.s32.totalorder %s14, 0
      %p144 = por %p142, %p143
      %p145 = scmp.ne.s32.totalorder %s134, %s137
      %p146 = scmp.eq.s32.totalorder %s19, 1
      %p147 = por %p145, %p146
      %p148 = scmp.ne.s32.totalorder %s137, %s138
      %p149 = scmp.eq.s32.totalorder %s19, 0
      %p150 = por %p148, %p149
      %p151 = scmp.ne.s32.totalorder %s137, %s138
      %p152 = scmp.eq.s32.totalorder %s20, 1
      %p153 = por %p151, %p152
      %p155 = scmp.ne.s32.totalorder %s138, %s154
      %p156 = scmp.eq.s32.totalorder %s20, 0
      %p157 = por %p155, %p156
      %p158 = scmp.le.s32.totalorder 1, %s14
      %p159 = scmp.lt.s32.totalorder %s14, 3
      %p160 = pnand %p158, %p159
      %p161 = pneg %p160
      // Predicated region
      $region9: #{enc_conv_forward.1} parent=5 // pred_check
        _
      $region10: #{enc_conv_forward.1} parent=5 // pred_check_branch
        %163 = sbr.rel (%p160) target = $region12
      $region11: #{enc_conv_forward.1} parent=5 // pred_region
        %s164 = ssub.s32 %s14, 1
        // Predicated region
        $region13: #{enc_conv_forward.1} parent=11 // pred_check
          %p165 = pneg %p61
        $region14: #{enc_conv_forward.1} parent=11 // pred_check_branch
          %167 = sbr.rel (%p165) target = $region16
        $region15: #{enc_conv_forward.1} parent=11 // pred_region
          _
        $region16: #{enc_conv_forward.1} parent=11 // pred_fallthru
          _
        // Predicated region
        $region17: #{enc_conv_forward.1} parent=11 // pred_check
          %p168 = pneg %p82
        $region18: #{enc_conv_forward.1} parent=11 // pred_check_branch
          %170 = sbr.rel (%p168) target = $region20
        $region19: #{enc_conv_forward.1} parent=11 // pred_region
          _
        $region20: #{enc_conv_forward.1} parent=11 // pred_fallthru
          _
        // Predicated region
        $region21: #{enc_conv_forward.1} parent=11 // pred_check
          %p171 = pneg %p103
        $region22: #{enc_conv_forward.1} parent=11 // pred_check_branch
          %173 = sbr.rel (%p171) target = $region24
        $region23: #{enc_conv_forward.1} parent=11 // pred_region
          _
        $region24: #{enc_conv_forward.1} parent=11 // pred_fallthru
          _
        // Predicated region
        $region25: #{enc_conv_forward.1} parent=11 // pred_check
          %p174 = pneg %p124
        $region26: #{enc_conv_forward.1} parent=11 // pred_check_branch
          %176 = sbr.rel (%p174) target = $region28
        $region27: #{enc_conv_forward.1} parent=11 // pred_region
          _
        $region28: #{enc_conv_forward.1} parent=11 // pred_fallthru
          _
      $region12: #{enc_conv_forward.1} parent=5 // pred_fallthru
        _
      %p177 = scmp.lt.s32.totalorder %s14, 2
      // Predicated region
      $region29: #{enc_conv_forward.1} parent=5 // pred_check
        %p178 = pneg %p177
      $region30: #{enc_conv_forward.1} parent=5 // pred_check_branch
        %180 = sbr.rel (%p178) target = $region32
      $region31: #{enc_conv_forward.1} parent=5 // pred_region
        // Predicated region
        $region33: #{enc_conv_forward.1} parent=31 // pred_check
          %p181 = pneg %p34
        $region34: #{enc_conv_forward.1} parent=31 // pred_check_branch
          %183 = sbr.rel (%p181) target = $region36
        $region35: #{enc_conv_forward.1} parent=31 // pred_region
          %p184 = scmp.lt.s32.totalorder %s14, 1
          %s185 = scalar_select %p184, %s14, 1
          %s186 = smul.addr %s185, 1024
          %s187 = smul.addr %s186, 8
          %s188 = scalar_lea.vmem %s0, %s187
        $region36: #{enc_conv_forward.1} parent=31 // pred_fallthru
          _
      $region32: #{enc_conv_forward.1} parent=5 // pred_fallthru
        _
      %p189 = scmp.le.s32.totalorder 1, %s14
      %p190 = scmp.lt.s32.totalorder %s14, 3
      %p191 = pnand %p189, %p190
      %p192 = pneg %p191
      // Predicated region
      $region37: #{enc_conv_forward.1} parent=5 // pred_check
        _
      $region38: #{enc_conv_forward.1} parent=5 // pred_check_branch
        %194 = sbr.rel (%p191) target = $region40
      $region39: #{enc_conv_forward.1} parent=5 // pred_region
        %s195 = ssub.s32 %s14, 1
        %p196 = scmp.lt.s32.totalorder %s19, 1
        %s197 = scalar_select %p196, %s19, 1
        %s198 = smul.addr %s197, 1024
        %s199 = smul.addr %s198, 8
        %s200 = scalar_lea.vmem %s0, %s199
        %p201 = pneg %p40
        %p202 = pneg %p37
        %p203 = pneg %p61
        %p204 = pneg %p58
        %p205 = pneg %p82
        %p206 = pneg %p79
        %p207 = pneg %p103
        %p208 = pneg %p100
        %p209 = pneg %p124
        %p210 = pneg %p121
        %p211 = pneg %p150
        %p212 = pneg %p147
        %s213 = sand.u32 %s137, 1
        %s214 = scalar_lea.sflag [#allocation8], %s213
        %s215 = sand.u32 %s137, 1
        %s216 = scalar_lea.vmem [#allocation7], %s215
        %p217 = scmp.lt.s32.totalorder %s19, 1
        %s218 = scalar_select %p217, %s19, 1
        %s219 = smul.addr %s218, 1024
        %s220 = smul.addr %s219, 8
        %s221 = scalar_lea.vmem %s0, %s220
        %222 = vst [vmem:[#allocation2] sm:$0xff] 0.0
        %223 = vst [vmem:[#allocation2 + $0x8] sm:$0xff] 0.0
        %224 = vst [vmem:[#allocation2 + $0x10] sm:$0xff] 0.0
        %225 = vst [vmem:[#allocation2 + $0x18] sm:$0xff] 0.0
        %226 = vst [vmem:[#allocation2 + $0x20] sm:$0xff] 0.0
        %227 = vst [vmem:[#allocation2 + $0x28] sm:$0xff] 0.0
        %228 = vst [vmem:[#allocation2 + $0x30] sm:$0xff] 0.0
        %229 = vst [vmem:[#allocation2 + $0x38] sm:$0xff] 0.0
        %230 = vst [vmem:[#allocation2 + $0x40] sm:$0x3] 0.0
        %s231 = scalar_lea.vmem [#allocation2], 9288
        %232 = vst [vmem:[%s231] sm:$0xff] 0.0
        %233 = vst [vmem:[%s231 + $0x8] sm:$0xff] 0.0
        %234 = vst [vmem:[%s231 + $0x10] sm:$0xff] 0.0
        %235 = vst [vmem:[%s231 + $0x18] sm:$0xff] 0.0
        %236 = vst [vmem:[%s231 + $0x20] sm:$0xff] 0.0
        %237 = vst [vmem:[%s231 + $0x28] sm:$0xff] 0.0
        %238 = vst [vmem:[%s231 + $0x30] sm:$0xff] 0.0
        %239 = vst [vmem:[%s231 + $0x38] sm:$0xff] 0.0
        %240 = vst [vmem:[%s231 + $0x40] sm:$0x3] 0.0
        %241 = vst [vmem:[#allocation2] sm:$0x1] 0.0
        %242 = vst [vmem:[#allocation2 + $0x48] sm:$0x1] 0.0
        %243 = vst [vmem:[#allocation2 + $0x90] sm:$0x1] 0.0
        %244 = vst [vmem:[#allocation2 + $0xd8] sm:$0x1] 0.0
        %245 = vst [vmem:[#allocation2 + $0x120] sm:$0x1] 0.0
        %246 = vst [vmem:[#allocation2 + $0x168] sm:$0x1] 0.0
        %247 = vst [vmem:[#allocation2 + $0x1b0] sm:$0x1] 0.0
        %248 = vst [vmem:[#allocation2 + $0x1f8] sm:$0x1] 0.0
        %249 = vst [vmem:[#allocation2 + $0x240] sm:$0x1] 0.0
        %250 = vst [vmem:[#allocation2 + $0x288] sm:$0x1] 0.0
        %251 = vst [vmem:[#allocation2 + $0x2d0] sm:$0x1] 0.0
        %252 = vst [vmem:[#allocation2 + $0x318] sm:$0x1] 0.0
        %253 = vst [vmem:[#allocation2 + $0x360] sm:$0x1] 0.0
        %254 = vst [vmem:[#allocation2 + $0x3a8] sm:$0x1] 0.0
        %255 = vst [vmem:[#allocation2 + $0x3f0] sm:$0x1] 0.0
        %256 = vst [vmem:[#allocation2 + $0x438] sm:$0x1] 0.0
        %257 = vst [vmem:[#allocation2 + $0x480] sm:$0x1] 0.0
        %258 = vst [vmem:[#allocation2 + $0x4c8] sm:$0x1] 0.0
        %259 = vst [vmem:[#allocation2 + $0x510] sm:$0x1] 0.0
        %260 = vst [vmem:[#allocation2 + $0x558] sm:$0x1] 0.0
        %261 = vst [vmem:[#allocation2 + $0x5a0] sm:$0x1] 0.0
        %262 = vst [vmem:[#allocation2 + $0x5e8] sm:$0x1] 0.0
        %263 = vst [vmem:[#allocation2 + $0x630] sm:$0x1] 0.0
        %264 = vst [vmem:[#allocation2 + $0x678] sm:$0x1] 0.0
        %265 = vst [vmem:[#allocation2 + $0x6c0] sm:$0x1] 0.0
        %266 = vst [vmem:[#allocation2 + $0x708] sm:$0x1] 0.0
        %267 = vst [vmem:[#allocation2 + $0x750] sm:$0x1] 0.0
        %268 = vst [vmem:[#allocation2 + $0x798] sm:$0x1] 0.0
        %269 = vst [vmem:[#allocation2 + $0x7e0] sm:$0x1] 0.0
        %270 = vst [vmem:[#allocation2 + $0x828] sm:$0x1] 0.0
        %271 = vst [vmem:[#allocation2 + $0x870] sm:$0x1] 0.0
        %272 = vst [vmem:[#allocation2 + $0x8b8] sm:$0x1] 0.0
        %273 = vst [vmem:[#allocation2 + $0x900] sm:$0x1] 0.0
        %274 = vst [vmem:[#allocation2 + $0x948] sm:$0x1] 0.0
        %275 = vst [vmem:[#allocation2 + $0x990] sm:$0x1] 0.0
        %276 = vst [vmem:[#allocation2 + $0x9d8] sm:$0x1] 0.0
        %277 = vst [vmem:[#allocation2 + $0xa20] sm:$0x1] 0.0
        %278 = vst [vmem:[#allocation2 + $0xa68] sm:$0x1] 0.0
        %279 = vst [vmem:[#allocation2 + $0xab0] sm:$0x1] 0.0
        %280 = vst [vmem:[#allocation2 + $0xaf8] sm:$0x1] 0.0
        %281 = vst [vmem:[#allocation2 + $0xb40] sm:$0x1] 0.0
        %282 = vst [vmem:[#allocation2 + $0xb88] sm:$0x1] 0.0
        %283 = vst [vmem:[#allocation2 + $0xbd0] sm:$0x1] 0.0
        %284 = vst [vmem:[#allocation2 + $0xc18] sm:$0x1] 0.0
        %285 = vst [vmem:[#allocation2 + $0xc60] sm:$0x1] 0.0
        %286 = vst [vmem:[#allocation2 + $0xca8] sm:$0x1] 0.0
        %287 = vst [vmem:[#allocation2 + $0xcf0] sm:$0x1] 0.0
        %288 = vst [vmem:[#allocation2 + $0xd38] sm:$0x1] 0.0
        %289 = vst [vmem:[#allocation2 + $0xd80] sm:$0x1] 0.0
        %290 = vst [vmem:[#allocation2 + $0xdc8] sm:$0x1] 0.0
        %291 = vst [vmem:[#allocation2 + $0xe10] sm:$0x1] 0.0
        %292 = vst [vmem:[#allocation2 + $0xe58] sm:$0x1] 0.0
        %293 = vst [vmem:[#allocation2 + $0xea0] sm:$0x1] 0.0
        %294 = vst [vmem:[#allocation2 + $0xee8] sm:$0x1] 0.0
        %295 = vst [vmem:[#allocation2 + $0xf30] sm:$0x1] 0.0
        %296 = vst [vmem:[#allocation2 + $0xf78] sm:$0x1] 0.0
        %297 = vst [vmem:[#allocation2 + $0xfc0] sm:$0x1] 0.0
        %298 = vst [vmem:[#allocation2 + $0x1008] sm:$0x1] 0.0
        %299 = vst [vmem:[#allocation2 + $0x1050] sm:$0x1] 0.0
        %300 = vst [vmem:[#allocation2 + $0x1098] sm:$0x1] 0.0
        %301 = vst [vmem:[#allocation2 + $0x10e0] sm:$0x1] 0.0
        %302 = vst [vmem:[#allocation2 + $0x1128] sm:$0x1] 0.0
        %303 = vst [vmem:[#allocation2 + $0x1170] sm:$0x1] 0.0
        %304 = vst [vmem:[#allocation2 + $0x11b8] sm:$0x1] 0.0
        %305 = vst [vmem:[#allocation2 + $0x1200] sm:$0x1] 0.0
        %306 = vst [vmem:[#allocation2 + $0x1248] sm:$0x1] 0.0
        %307 = vst [vmem:[#allocation2 + $0x1290] sm:$0x1] 0.0
        %308 = vst [vmem:[#allocation2 + $0x12d8] sm:$0x1] 0.0
        %309 = vst [vmem:[#allocation2 + $0x1320] sm:$0x1] 0.0
        %310 = vst [vmem:[#allocation2 + $0x1368] sm:$0x1] 0.0
        %311 = vst [vmem:[#allocation2 + $0x13b0] sm:$0x1] 0.0
        %312 = vst [vmem:[#allocation2 + $0x13f8] sm:$0x1] 0.0
        %313 = vst [vmem:[#allocation2 + $0x1440] sm:$0x1] 0.0
        %314 = vst [vmem:[#allocation2 + $0x1488] sm:$0x1] 0.0
        %315 = vst [vmem:[#allocation2 + $0x14d0] sm:$0x1] 0.0
        %316 = vst [vmem:[#allocation2 + $0x1518] sm:$0x1] 0.0
        %317 = vst [vmem:[#allocation2 + $0x1560] sm:$0x1] 0.0
        %318 = vst [vmem:[#allocation2 + $0x15a8] sm:$0x1] 0.0
        %319 = vst [vmem:[#allocation2 + $0x15f0] sm:$0x1] 0.0
        %320 = vst [vmem:[#allocation2 + $0x1638] sm:$0x1] 0.0
        %321 = vst [vmem:[#allocation2 + $0x1680] sm:$0x1] 0.0
        %322 = vst [vmem:[#allocation2 + $0x16c8] sm:$0x1] 0.0
        %323 = vst [vmem:[#allocation2 + $0x1710] sm:$0x1] 0.0
        %324 = vst [vmem:[#allocation2 + $0x1758] sm:$0x1] 0.0
        %325 = vst [vmem:[#allocation2 + $0x17a0] sm:$0x1] 0.0
        %326 = vst [vmem:[#allocation2 + $0x17e8] sm:$0x1] 0.0
        %327 = vst [vmem:[#allocation2 + $0x1830] sm:$0x1] 0.0
        %328 = vst [vmem:[#allocation2 + $0x1878] sm:$0x1] 0.0
        %329 = vst [vmem:[#allocation2 + $0x18c0] sm:$0x1] 0.0
        %330 = vst [vmem:[#allocation2 + $0x1908] sm:$0x1] 0.0
        %331 = vst [vmem:[#allocation2 + $0x1950] sm:$0x1] 0.0
        %332 = vst [vmem:[#allocation2 + $0x1998] sm:$0x1] 0.0
        %333 = vst [vmem:[#allocation2 + $0x19e0] sm:$0x1] 0.0
        %334 = vst [vmem:[#allocation2 + $0x1a28] sm:$0x1] 0.0
        %335 = vst [vmem:[#allocation2 + $0x1a70] sm:$0x1] 0.0
        %336 = vst [vmem:[#allocation2 + $0x1ab8] sm:$0x1] 0.0
        %337 = vst [vmem:[#allocation2 + $0x1b00] sm:$0x1] 0.0
        %338 = vst [vmem:[#allocation2 + $0x1b48] sm:$0x1] 0.0
        %339 = vst [vmem:[#allocation2 + $0x1b90] sm:$0x1] 0.0
        %340 = vst [vmem:[#allocation2 + $0x1bd8] sm:$0x1] 0.0
        %341 = vst [vmem:[#allocation2 + $0x1c20] sm:$0x1] 0.0
        %342 = vst [vmem:[#allocation2 + $0x1c68] sm:$0x1] 0.0
        %343 = vst [vmem:[#allocation2 + $0x1cb0] sm:$0x1] 0.0
        %344 = vst [vmem:[#allocation2 + $0x1cf8] sm:$0x1] 0.0
        %345 = vst [vmem:[#allocation2 + $0x1d40] sm:$0x1] 0.0
        %346 = vst [vmem:[#allocation2 + $0x1d88] sm:$0x1] 0.0
        %347 = vst [vmem:[#allocation2 + $0x1dd0] sm:$0x1] 0.0
        %348 = vst [vmem:[#allocation2 + $0x1e18] sm:$0x1] 0.0
        %349 = vst [vmem:[#allocation2 + $0x1e60] sm:$0x1] 0.0
        %350 = vst [vmem:[#allocation2 + $0x1ea8] sm:$0x1] 0.0
        %351 = vst [vmem:[#allocation2 + $0x1ef0] sm:$0x1] 0.0
        %352 = vst [vmem:[#allocation2 + $0x1f38] sm:$0x1] 0.0
        %353 = vst [vmem:[#allocation2 + $0x1f80] sm:$0x1] 0.0
        %354 = vst [vmem:[#allocation2 + $0x1fc8] sm:$0x1] 0.0
        %355 = vst [vmem:[#allocation2 + $0x2010] sm:$0x1] 0.0
        %356 = vst [vmem:[#allocation2 + $0x2058] sm:$0x1] 0.0
        %357 = vst [vmem:[#allocation2 + $0x20a0] sm:$0x1] 0.0
        %358 = vst [vmem:[#allocation2 + $0x20e8] sm:$0x1] 0.0
        %359 = vst [vmem:[#allocation2 + $0x2130] sm:$0x1] 0.0
        %360 = vst [vmem:[#allocation2 + $0x2178] sm:$0x1] 0.0
        %361 = vst [vmem:[#allocation2 + $0x21c0] sm:$0x1] 0.0
        %362 = vst [vmem:[#allocation2 + $0x2208] sm:$0x1] 0.0
        %363 = vst [vmem:[#allocation2 + $0x2250] sm:$0x1] 0.0
        %364 = vst [vmem:[#allocation2 + $0x2298] sm:$0x1] 0.0
        %365 = vst [vmem:[#allocation2 + $0x22e0] sm:$0x1] 0.0
        %366 = vst [vmem:[#allocation2 + $0x2328] sm:$0x1] 0.0
        %367 = vst [vmem:[#allocation2 + $0x2370] sm:$0x1] 0.0
        %368 = vst [vmem:[#allocation2 + $0x23b8] sm:$0x1] 0.0
        %369 = vst [vmem:[#allocation2 + $0x2400] sm:$0x1] 0.0
        %370 = vst [vmem:[#allocation2 + $0x2448] sm:$0x1] 0.0
        %371 = vst [vmem:[#allocation2 + $0x41] sm:$0x1] 0.0
        %372 = vst [vmem:[#allocation2 + $0x89] sm:$0x1] 0.0
        %373 = vst [vmem:[#allocation2 + $0xd1] sm:$0x1] 0.0
        %374 = vst [vmem:[#allocation2 + $0x119] sm:$0x1] 0.0
        %375 = vst [vmem:[#allocation2 + $0x161] sm:$0x1] 0.0
        %376 = vst [vmem:[#allocation2 + $0x1a9] sm:$0x1] 0.0
        %377 = vst [vmem:[#allocation2 + $0x1f1] sm:$0x1] 0.0
        %378 = vst [vmem:[#allocation2 + $0x239] sm:$0x1] 0.0
        %379 = vst [vmem:[#allocation2 + $0x281] sm:$0x1] 0.0
        %380 = vst [vmem:[#allocation2 + $0x2c9] sm:$0x1] 0.0
        %381 = vst [vmem:[#allocation2 + $0x311] sm:$0x1] 0.0
        %382 = vst [vmem:[#allocation2 + $0x359] sm:$0x1] 0.0
        %383 = vst [vmem:[#allocation2 + $0x3a1] sm:$0x1] 0.0
        %384 = vst [vmem:[#allocation2 + $0x3e9] sm:$0x1] 0.0
        %385 = vst [vmem:[#allocation2 + $0x431] sm:$0x1] 0.0
        %386 = vst [vmem:[#allocation2 + $0x479] sm:$0x1] 0.0
        %387 = vst [vmem:[#allocation2 + $0x4c1] sm:$0x1] 0.0
        %388 = vst [vmem:[#allocation2 + $0x509] sm:$0x1] 0.0
        %389 = vst [vmem:[#allocation2 + $0x551] sm:$0x1] 0.0
        %390 = vst [vmem:[#allocation2 + $0x599] sm:$0x1] 0.0
        %391 = vst [vmem:[#allocation2 + $0x5e1] sm:$0x1] 0.0
        %392 = vst [vmem:[#allocation2 + $0x629] sm:$0x1] 0.0
        %393 = vst [vmem:[#allocation2 + $0x671] sm:$0x1] 0.0
        %394 = vst [vmem:[#allocation2 + $0x6b9] sm:$0x1] 0.0
        %395 = vst [vmem:[#allocation2 + $0x701] sm:$0x1] 0.0
        %396 = vst [vmem:[#allocation2 + $0x749] sm:$0x1] 0.0
        %397 = vst [vmem:[#allocation2 + $0x791] sm:$0x1] 0.0
        %398 = vst [vmem:[#allocation2 + $0x7d9] sm:$0x1] 0.0
        %399 = vst [vmem:[#allocation2 + $0x821] sm:$0x1] 0.0
        %400 = vst [vmem:[#allocation2 + $0x869] sm:$0x1] 0.0
        %401 = vst [vmem:[#allocation2 + $0x8b1] sm:$0x1] 0.0
        %402 = vst [vmem:[#allocation2 + $0x8f9] sm:$0x1] 0.0
        %403 = vst [vmem:[#allocation2 + $0x941] sm:$0x1] 0.0
        %404 = vst [vmem:[#allocation2 + $0x989] sm:$0x1] 0.0
        %405 = vst [vmem:[#allocation2 + $0x9d1] sm:$0x1] 0.0
        %406 = vst [vmem:[#allocation2 + $0xa19] sm:$0x1] 0.0
        %407 = vst [vmem:[#allocation2 + $0xa61] sm:$0x1] 0.0
        %408 = vst [vmem:[#allocation2 + $0xaa9] sm:$0x1] 0.0
        %409 = vst [vmem:[#allocation2 + $0xaf1] sm:$0x1] 0.0
        %410 = vst [vmem:[#allocation2 + $0xb39] sm:$0x1] 0.0
        %411 = vst [vmem:[#allocation2 + $0xb81] sm:$0x1] 0.0
        %412 = vst [vmem:[#allocation2 + $0xbc9] sm:$0x1] 0.0
        %413 = vst [vmem:[#allocation2 + $0xc11] sm:$0x1] 0.0
        %414 = vst [vmem:[#allocation2 + $0xc59] sm:$0x1] 0.0
        %415 = vst [vmem:[#allocation2 + $0xca1] sm:$0x1] 0.0
        %416 = vst [vmem:[#allocation2 + $0xce9] sm:$0x1] 0.0
        %417 = vst [vmem:[#allocation2 + $0xd31] sm:$0x1] 0.0
        %418 = vst [vmem:[#allocation2 + $0xd79] sm:$0x1] 0.0
        %419 = vst [vmem:[#allocation2 + $0xdc1] sm:$0x1] 0.0
        %420 = vst [vmem:[#allocation2 + $0xe09] sm:$0x1] 0.0
        %421 = vst [vmem:[#allocation2 + $0xe51] sm:$0x1] 0.0
        %422 = vst [vmem:[#allocation2 + $0xe99] sm:$0x1] 0.0
        %423 = vst [vmem:[#allocation2 + $0xee1] sm:$0x1] 0.0
        %424 = vst [vmem:[#allocation2 + $0xf29] sm:$0x1] 0.0
        %425 = vst [vmem:[#allocation2 + $0xf71] sm:$0x1] 0.0
        %426 = vst [vmem:[#allocation2 + $0xfb9] sm:$0x1] 0.0
        %427 = vst [vmem:[#allocation2 + $0x1001] sm:$0x1] 0.0
        %428 = vst [vmem:[#allocation2 + $0x1049] sm:$0x1] 0.0
        %429 = vst [vmem:[#allocation2 + $0x1091] sm:$0x1] 0.0
        %430 = vst [vmem:[#allocation2 + $0x10d9] sm:$0x1] 0.0
        %431 = vst [vmem:[#allocation2 + $0x1121] sm:$0x1] 0.0
        %432 = vst [vmem:[#allocation2 + $0x1169] sm:$0x1] 0.0
        %433 = vst [vmem:[#allocation2 + $0x11b1] sm:$0x1] 0.0
        %434 = vst [vmem:[#allocation2 + $0x11f9] sm:$0x1] 0.0
        %435 = vst [vmem:[#allocation2 + $0x1241] sm:$0x1] 0.0
        %436 = vst [vmem:[#allocation2 + $0x1289] sm:$0x1] 0.0
        %437 = vst [vmem:[#allocation2 + $0x12d1] sm:$0x1] 0.0
        %438 = vst [vmem:[#allocation2 + $0x1319] sm:$0x1] 0.0
        %439 = vst [vmem:[#allocation2 + $0x1361] sm:$0x1] 0.0
        %440 = vst [vmem:[#allocation2 + $0x13a9] sm:$0x1] 0.0
        %441 = vst [vmem:[#allocation2 + $0x13f1] sm:$0x1] 0.0
        %442 = vst [vmem:[#allocation2 + $0x1439] sm:$0x1] 0.0
        %443 = vst [vmem:[#allocation2 + $0x1481] sm:$0x1] 0.0
        %444 = vst [vmem:[#allocation2 + $0x14c9] sm:$0x1] 0.0
        %445 = vst [vmem:[#allocation2 + $0x1511] sm:$0x1] 0.0
        %446 = vst [vmem:[#allocation2 + $0x1559] sm:$0x1] 0.0
        %447 = vst [vmem:[#allocation2 + $0x15a1] sm:$0x1] 0.0
        %448 = vst [vmem:[#allocation2 + $0x15e9] sm:$0x1] 0.0
        %449 = vst [vmem:[#allocation2 + $0x1631] sm:$0x1] 0.0
        %450 = vst [vmem:[#allocation2 + $0x1679] sm:$0x1] 0.0
        %451 = vst [vmem:[#allocation2 + $0x16c1] sm:$0x1] 0.0
        %452 = vst [vmem:[#allocation2 + $0x1709] sm:$0x1] 0.0
        %453 = vst [vmem:[#allocation2 + $0x1751] sm:$0x1] 0.0
        %454 = vst [vmem:[#allocation2 + $0x1799] sm:$0x1] 0.0
        %455 = vst [vmem:[#allocation2 + $0x17e1] sm:$0x1] 0.0
        %456 = vst [vmem:[#allocation2 + $0x1829] sm:$0x1] 0.0
        %457 = vst [vmem:[#allocation2 + $0x1871] sm:$0x1] 0.0
        %458 = vst [vmem:[#allocation2 + $0x18b9] sm:$0x1] 0.0
        %459 = vst [vmem:[#allocation2 + $0x1901] sm:$0x1] 0.0
        %460 = vst [vmem:[#allocation2 + $0x1949] sm:$0x1] 0.0
        %461 = vst [vmem:[#allocation2 + $0x1991] sm:$0x1] 0.0
        %462 = vst [vmem:[#allocation2 + $0x19d9] sm:$0x1] 0.0
        %463 = vst [vmem:[#allocation2 + $0x1a21] sm:$0x1] 0.0
        %464 = vst [vmem:[#allocation2 + $0x1a69] sm:$0x1] 0.0
        %465 = vst [vmem:[#allocation2 + $0x1ab1] sm:$0x1] 0.0
        %466 = vst [vmem:[#allocation2 + $0x1af9] sm:$0x1] 0.0
        %467 = vst [vmem:[#allocation2 + $0x1b41] sm:$0x1] 0.0
        %468 = vst [vmem:[#allocation2 + $0x1b89] sm:$0x1] 0.0
        %469 = vst [vmem:[#allocation2 + $0x1bd1] sm:$0x1] 0.0
        %470 = vst [vmem:[#allocation2 + $0x1c19] sm:$0x1] 0.0
        %471 = vst [vmem:[#allocation2 + $0x1c61] sm:$0x1] 0.0
        %472 = vst [vmem:[#allocation2 + $0x1ca9] sm:$0x1] 0.0
        %473 = vst [vmem:[#allocation2 + $0x1cf1] sm:$0x1] 0.0
        %474 = vst [vmem:[#allocation2 + $0x1d39] sm:$0x1] 0.0
        %475 = vst [vmem:[#allocation2 + $0x1d81] sm:$0x1] 0.0
        %476 = vst [vmem:[#allocation2 + $0x1dc9] sm:$0x1] 0.0
        %477 = vst [vmem:[#allocation2 + $0x1e11] sm:$0x1] 0.0
        %478 = vst [vmem:[#allocation2 + $0x1e59] sm:$0x1] 0.0
        %479 = vst [vmem:[#allocation2 + $0x1ea1] sm:$0x1] 0.0
        %480 = vst [vmem:[#allocation2 + $0x1ee9] sm:$0x1] 0.0
        %481 = vst [vmem:[#allocation2 + $0x1f31] sm:$0x1] 0.0
        %482 = vst [vmem:[#allocation2 + $0x1f79] sm:$0x1] 0.0
        %483 = vst [vmem:[#allocation2 + $0x1fc1] sm:$0x1] 0.0
        %484 = vst [vmem:[#allocation2 + $0x2009] sm:$0x1] 0.0
        %485 = vst [vmem:[#allocation2 + $0x2051] sm:$0x1] 0.0
        %486 = vst [vmem:[#allocation2 + $0x2099] sm:$0x1] 0.0
        %487 = vst [vmem:[#allocation2 + $0x20e1] sm:$0x1] 0.0
        %488 = vst [vmem:[#allocation2 + $0x2129] sm:$0x1] 0.0
        %489 = vst [vmem:[#allocation2 + $0x2171] sm:$0x1] 0.0
        %490 = vst [vmem:[#allocation2 + $0x21b9] sm:$0x1] 0.0
        %491 = vst [vmem:[#allocation2 + $0x2201] sm:$0x1] 0.0
        %492 = vst [vmem:[#allocation2 + $0x2249] sm:$0x1] 0.0
        %493 = vst [vmem:[#allocation2 + $0x2291] sm:$0x1] 0.0
        %494 = vst [vmem:[#allocation2 + $0x22d9] sm:$0x1] 0.0
        %495 = vst [vmem:[#allocation2 + $0x2321] sm:$0x1] 0.0
        %496 = vst [vmem:[#allocation2 + $0x2369] sm:$0x1] 0.0
        %497 = vst [vmem:[#allocation2 + $0x23b1] sm:$0x1] 0.0
        %498 = vst [vmem:[#allocation2 + $0x23f9] sm:$0x1] 0.0
        %499 = vst [vmem:[#allocation2 + $0x2441] sm:$0x1] 0.0
        %500 = vst [vmem:[#allocation2 + $0x2489] sm:$0x1] 0.0
        %501 = vst [vmem:[#allocation3] sm:$0xff] 0.0
        %502 = vst [vmem:[#allocation3 + $0x8] sm:$0xff] 0.0
        %503 = vst [vmem:[#allocation3 + $0x10] sm:$0xff] 0.0
        %504 = vst [vmem:[#allocation3 + $0x18] sm:$0xff] 0.0
        %505 = vst [vmem:[#allocation3 + $0x20] sm:$0x3] 0.0
        %s506 = scalar_lea.vmem [#allocation3], 2600
        %507 = vst [vmem:[%s506] sm:$0xff] 0.0
        %508 = vst [vmem:[%s506 + $0x8] sm:$0xff] 0.0
        %509 = vst [vmem:[%s506 + $0x10] sm:$0xff] 0.0
        %510 = vst [vmem:[%s506 + $0x18] sm:$0xff] 0.0
        %511 = vst [vmem:[%s506 + $0x20] sm:$0x3] 0.0
        %512 = vst [vmem:[#allocation3] sm:$0x1] 0.0
        %513 = vst [vmem:[#allocation3 + $0x28] sm:$0x1] 0.0
        %514 = vst [vmem:[#allocation3 + $0x50] sm:$0x1] 0.0
        %515 = vst [vmem:[#allocation3 + $0x78] sm:$0x1] 0.0
        %516 = vst [vmem:[#allocation3 + $0xa0] sm:$0x1] 0.0
        %517 = vst [vmem:[#allocation3 + $0xc8] sm:$0x1] 0.0
        %518 = vst [vmem:[#allocation3 + $0xf0] sm:$0x1] 0.0
        %519 = vst [vmem:[#allocation3 + $0x118] sm:$0x1] 0.0
        %520 = vst [vmem:[#allocation3 + $0x140] sm:$0x1] 0.0
        %521 = vst [vmem:[#allocation3 + $0x168] sm:$0x1] 0.0
        %522 = vst [vmem:[#allocation3 + $0x190] sm:$0x1] 0.0
        %523 = vst [vmem:[#allocation3 + $0x1b8] sm:$0x1] 0.0
        %524 = vst [vmem:[#allocation3 + $0x1e0] sm:$0x1] 0.0
        %525 = vst [vmem:[#allocation3 + $0x208] sm:$0x1] 0.0
        %526 = vst [vmem:[#allocation3 + $0x230] sm:$0x1] 0.0
        %527 = vst [vmem:[#allocation3 + $0x258] sm:$0x1] 0.0
        %528 = vst [vmem:[#allocation3 + $0x280] sm:$0x1] 0.0
        %529 = vst [vmem:[#allocation3 + $0x2a8] sm:$0x1] 0.0
        %530 = vst [vmem:[#allocation3 + $0x2d0] sm:$0x1] 0.0
        %531 = vst [vmem:[#allocation3 + $0x2f8] sm:$0x1] 0.0
        %532 = vst [vmem:[#allocation3 + $0x320] sm:$0x1] 0.0
        %533 = vst [vmem:[#allocation3 + $0x348] sm:$0x1] 0.0
        %534 = vst [vmem:[#allocation3 + $0x370] sm:$0x1] 0.0
        %535 = vst [vmem:[#allocation3 + $0x398] sm:$0x1] 0.0
        %536 = vst [vmem:[#allocation3 + $0x3c0] sm:$0x1] 0.0
        %537 = vst [vmem:[#allocation3 + $0x3e8] sm:$0x1] 0.0
        %538 = vst [vmem:[#allocation3 + $0x410] sm:$0x1] 0.0
        %539 = vst [vmem:[#allocation3 + $0x438] sm:$0x1] 0.0
        %540 = vst [vmem:[#allocation3 + $0x460] sm:$0x1] 0.0
        %541 = vst [vmem:[#allocation3 + $0x488] sm:$0x1] 0.0
        %542 = vst [vmem:[#allocation3 + $0x4b0] sm:$0x1] 0.0
        %543 = vst [vmem:[#allocation3 + $0x4d8] sm:$0x1] 0.0
        %544 = vst [vmem:[#allocation3 + $0x500] sm:$0x1] 0.0
        %545 = vst [vmem:[#allocation3 + $0x528] sm:$0x1] 0.0
        %546 = vst [vmem:[#allocation3 + $0x550] sm:$0x1] 0.0
        %547 = vst [vmem:[#allocation3 + $0x578] sm:$0x1] 0.0
        %548 = vst [vmem:[#allocation3 + $0x5a0] sm:$0x1] 0.0
        %549 = vst [vmem:[#allocation3 + $0x5c8] sm:$0x1] 0.0
        %550 = vst [vmem:[#allocation3 + $0x5f0] sm:$0x1] 0.0
        %551 = vst [vmem:[#allocation3 + $0x618] sm:$0x1] 0.0
        %552 = vst [vmem:[#allocation3 + $0x640] sm:$0x1] 0.0
        %553 = vst [vmem:[#allocation3 + $0x668] sm:$0x1] 0.0
        %554 = vst [vmem:[#allocation3 + $0x690] sm:$0x1] 0.0
        %555 = vst [vmem:[#allocation3 + $0x6b8] sm:$0x1] 0.0
        %556 = vst [vmem:[#allocation3 + $0x6e0] sm:$0x1] 0.0
        %557 = vst [vmem:[#allocation3 + $0x708] sm:$0x1] 0.0
        %558 = vst [vmem:[#allocation3 + $0x730] sm:$0x1] 0.0
        %559 = vst [vmem:[#allocation3 + $0x758] sm:$0x1] 0.0
        %560 = vst [vmem:[#allocation3 + $0x780] sm:$0x1] 0.0
        %561 = vst [vmem:[#allocation3 + $0x7a8] sm:$0x1] 0.0
        %562 = vst [vmem:[#allocation3 + $0x7d0] sm:$0x1] 0.0
        %563 = vst [vmem:[#allocation3 + $0x7f8] sm:$0x1] 0.0
        %564 = vst [vmem:[#allocation3 + $0x820] sm:$0x1] 0.0
        %565 = vst [vmem:[#allocation3 + $0x848] sm:$0x1] 0.0
        %566 = vst [vmem:[#allocation3 + $0x870] sm:$0x1] 0.0
        %567 = vst [vmem:[#allocation3 + $0x898] sm:$0x1] 0.0
        %568 = vst [vmem:[#allocation3 + $0x8c0] sm:$0x1] 0.0
        %569 = vst [vmem:[#allocation3 + $0x8e8] sm:$0x1] 0.0
        %570 = vst [vmem:[#allocation3 + $0x910] sm:$0x1] 0.0
        %571 = vst [vmem:[#allocation3 + $0x938] sm:$0x1] 0.0
        %572 = vst [vmem:[#allocation3 + $0x960] sm:$0x1] 0.0
        %573 = vst [vmem:[#allocation3 + $0x988] sm:$0x1] 0.0
        %574 = vst [vmem:[#allocation3 + $0x9b0] sm:$0x1] 0.0
        %575 = vst [vmem:[#allocation3 + $0x9d8] sm:$0x1] 0.0
        %576 = vst [vmem:[#allocation3 + $0xa00] sm:$0x1] 0.0
        %577 = vst [vmem:[#allocation3 + $0xa28] sm:$0x1] 0.0
        %578 = vst [vmem:[#allocation3 + $0x21] sm:$0x1] 0.0
        %579 = vst [vmem:[#allocation3 + $0x49] sm:$0x1] 0.0
        %580 = vst [vmem:[#allocation3 + $0x71] sm:$0x1] 0.0
        %581 = vst [vmem:[#allocation3 + $0x99] sm:$0x1] 0.0
        %582 = vst [vmem:[#allocation3 + $0xc1] sm:$0x1] 0.0
        %583 = vst [vmem:[#allocation3 + $0xe9] sm:$0x1] 0.0
        %584 = vst [vmem:[#allocation3 + $0x111] sm:$0x1] 0.0
        %585 = vst [vmem:[#allocation3 + $0x139] sm:$0x1] 0.0
        %586 = vst [vmem:[#allocation3 + $0x161] sm:$0x1] 0.0
        %587 = vst [vmem:[#allocation3 + $0x189] sm:$0x1] 0.0
        %588 = vst [vmem:[#allocation3 + $0x1b1] sm:$0x1] 0.0
        %589 = vst [vmem:[#allocation3 + $0x1d9] sm:$0x1] 0.0
        %590 = vst [vmem:[#allocation3 + $0x201] sm:$0x1] 0.0
        %591 = vst [vmem:[#allocation3 + $0x229] sm:$0x1] 0.0
        %592 = vst [vmem:[#allocation3 + $0x251] sm:$0x1] 0.0
        %593 = vst [vmem:[#allocation3 + $0x279] sm:$0x1] 0.0
        %594 = vst [vmem:[#allocation3 + $0x2a1] sm:$0x1] 0.0
        %595 = vst [vmem:[#allocation3 + $0x2c9] sm:$0x1] 0.0
        %596 = vst [vmem:[#allocation3 + $0x2f1] sm:$0x1] 0.0
        %597 = vst [vmem:[#allocation3 + $0x319] sm:$0x1] 0.0
        %598 = vst [vmem:[#allocation3 + $0x341] sm:$0x1] 0.0
        %599 = vst [vmem:[#allocation3 + $0x369] sm:$0x1] 0.0
        %600 = vst [vmem:[#allocation3 + $0x391] sm:$0x1] 0.0
        %601 = vst [vmem:[#allocation3 + $0x3b9] sm:$0x1] 0.0
        %602 = vst [vmem:[#allocation3 + $0x3e1] sm:$0x1] 0.0
        %603 = vst [vmem:[#allocation3 + $0x409] sm:$0x1] 0.0
        %604 = vst [vmem:[#allocation3 + $0x431] sm:$0x1] 0.0
        %605 = vst [vmem:[#allocation3 + $0x459] sm:$0x1] 0.0
        %606 = vst [vmem:[#allocation3 + $0x481] sm:$0x1] 0.0
        %607 = vst [vmem:[#allocation3 + $0x4a9] sm:$0x1] 0.0
        %608 = vst [vmem:[#allocation3 + $0x4d1] sm:$0x1] 0.0
        %609 = vst [vmem:[#allocation3 + $0x4f9] sm:$0x1] 0.0
        %610 = vst [vmem:[#allocation3 + $0x521] sm:$0x1] 0.0
        %611 = vst [vmem:[#allocation3 + $0x549] sm:$0x1] 0.0
        %612 = vst [vmem:[#allocation3 + $0x571] sm:$0x1] 0.0
        %613 = vst [vmem:[#allocation3 + $0x599] sm:$0x1] 0.0
        %614 = vst [vmem:[#allocation3 + $0x5c1] sm:$0x1] 0.0
        %615 = vst [vmem:[#allocation3 + $0x5e9] sm:$0x1] 0.0
        %616 = vst [vmem:[#allocation3 + $0x611] sm:$0x1] 0.0
        %617 = vst [vmem:[#allocation3 + $0x639] sm:$0x1] 0.0
        %618 = vst [vmem:[#allocation3 + $0x661] sm:$0x1] 0.0
        %619 = vst [vmem:[#allocation3 + $0x689] sm:$0x1] 0.0
        %620 = vst [vmem:[#allocation3 + $0x6b1] sm:$0x1] 0.0
        %621 = vst [vmem:[#allocation3 + $0x6d9] sm:$0x1] 0.0
        %622 = vst [vmem:[#allocation3 + $0x701] sm:$0x1] 0.0
        %623 = vst [vmem:[#allocation3 + $0x729] sm:$0x1] 0.0
        %624 = vst [vmem:[#allocation3 + $0x751] sm:$0x1] 0.0
        %625 = vst [vmem:[#allocation3 + $0x779] sm:$0x1] 0.0
        %626 = vst [vmem:[#allocation3 + $0x7a1] sm:$0x1] 0.0
        %627 = vst [vmem:[#allocation3 + $0x7c9] sm:$0x1] 0.0
        %628 = vst [vmem:[#allocation3 + $0x7f1] sm:$0x1] 0.0
        %629 = vst [vmem:[#allocation3 + $0x819] sm:$0x1] 0.0
        %630 = vst [vmem:[#allocation3 + $0x841] sm:$0x1] 0.0
        %631 = vst [vmem:[#allocation3 + $0x869] sm:$0x1] 0.0
        %632 = vst [vmem:[#allocation3 + $0x891] sm:$0x1] 0.0
        %633 = vst [vmem:[#allocation3 + $0x8b9] sm:$0x1] 0.0
        %634 = vst [vmem:[#allocation3 + $0x8e1] sm:$0x1] 0.0
        %635 = vst [vmem:[#allocation3 + $0x909] sm:$0x1] 0.0
        %636 = vst [vmem:[#allocation3 + $0x931] sm:$0x1] 0.0
        %637 = vst [vmem:[#allocation3 + $0x959] sm:$0x1] 0.0
        %638 = vst [vmem:[#allocation3 + $0x981] sm:$0x1] 0.0
        %639 = vst [vmem:[#allocation3 + $0x9a9] sm:$0x1] 0.0
        %640 = vst [vmem:[#allocation3 + $0x9d1] sm:$0x1] 0.0
        %641 = vst [vmem:[#allocation3 + $0x9f9] sm:$0x1] 0.0
        %642 = vst [vmem:[#allocation3 + $0xa21] sm:$0x1] 0.0
        %643 = vst [vmem:[#allocation3 + $0xa49] sm:$0x1] 0.0
        %644 = vst [vmem:[#allocation4] sm:$0xff] 0.0
        %645 = vst [vmem:[#allocation4 + $0x8] sm:$0xff] 0.0
        %646 = vst [vmem:[#allocation4 + $0x10] sm:$0x3] 0.0
        %s647 = scalar_lea.vmem [#allocation4], 792
        %648 = vst [vmem:[%s647] sm:$0xff] 0.0
        %649 = vst [vmem:[%s647 + $0x8] sm:$0xff] 0.0
        %650 = vst [vmem:[%s647 + $0x10] sm:$0x3] 0.0
        %651 = vst [vmem:[#allocation4] sm:$0x1] 0.0
        %652 = vst [vmem:[#allocation4 + $0x18] sm:$0x1] 0.0
        %653 = vst [vmem:[#allocation4 + $0x30] sm:$0x1] 0.0
        %654 = vst [vmem:[#allocation4 + $0x48] sm:$0x1] 0.0
        %655 = vst [vmem:[#allocation4 + $0x60] sm:$0x1] 0.0
        %656 = vst [vmem:[#allocation4 + $0x78] sm:$0x1] 0.0
        %657 = vst [vmem:[#allocation4 + $0x90] sm:$0x1] 0.0
        %658 = vst [vmem:[#allocation4 + $0xa8] sm:$0x1] 0.0
        %659 = vst [vmem:[#allocation4 + $0xc0] sm:$0x1] 0.0
        %660 = vst [vmem:[#allocation4 + $0xd8] sm:$0x1] 0.0
        %661 = vst [vmem:[#allocation4 + $0xf0] sm:$0x1] 0.0
        %662 = vst [vmem:[#allocation4 + $0x108] sm:$0x1] 0.0
        %663 = vst [vmem:[#allocation4 + $0x120] sm:$0x1] 0.0
        %664 = vst [vmem:[#allocation4 + $0x138] sm:$0x1] 0.0
        %665 = vst [vmem:[#allocation4 + $0x150] sm:$0x1] 0.0
        %666 = vst [vmem:[#allocation4 + $0x168] sm:$0x1] 0.0
        %667 = vst [vmem:[#allocation4 + $0x180] sm:$0x1] 0.0
        %668 = vst [vmem:[#allocation4 + $0x198] sm:$0x1] 0.0
        %669 = vst [vmem:[#allocation4 + $0x1b0] sm:$0x1] 0.0
        %670 = vst [vmem:[#allocation4 + $0x1c8] sm:$0x1] 0.0
        %671 = vst [vmem:[#allocation4 + $0x1e0] sm:$0x1] 0.0
        %672 = vst [vmem:[#allocation4 + $0x1f8] sm:$0x1] 0.0
        %673 = vst [vmem:[#allocation4 + $0x210] sm:$0x1] 0.0
        %674 = vst [vmem:[#allocation4 + $0x228] sm:$0x1] 0.0
        %675 = vst [vmem:[#allocation4 + $0x240] sm:$0x1] 0.0
        %676 = vst [vmem:[#allocation4 + $0x258] sm:$0x1] 0.0
        %677 = vst [vmem:[#allocation4 + $0x270] sm:$0x1] 0.0
        %678 = vst [vmem:[#allocation4 + $0x288] sm:$0x1] 0.0
        %679 = vst [vmem:[#allocation4 + $0x2a0] sm:$0x1] 0.0
        %680 = vst [vmem:[#allocation4 + $0x2b8] sm:$0x1] 0.0
        %681 = vst [vmem:[#allocation4 + $0x2d0] sm:$0x1] 0.0
        %682 = vst [vmem:[#allocation4 + $0x2e8] sm:$0x1] 0.0
        %683 = vst [vmem:[#allocation4 + $0x300] sm:$0x1] 0.0
        %684 = vst [vmem:[#allocation4 + $0x318] sm:$0x1] 0.0
        %685 = vst [vmem:[#allocation4 + $0x11] sm:$0x1] 0.0
        %686 = vst [vmem:[#allocation4 + $0x29] sm:$0x1] 0.0
        %687 = vst [vmem:[#allocation4 + $0x41] sm:$0x1] 0.0
        %688 = vst [vmem:[#allocation4 + $0x59] sm:$0x1] 0.0
        %689 = vst [vmem:[#allocation4 + $0x71] sm:$0x1] 0.0
        %690 = vst [vmem:[#allocation4 + $0x89] sm:$0x1] 0.0
        %691 = vst [vmem:[#allocation4 + $0xa1] sm:$0x1] 0.0
        %692 = vst [vmem:[#allocation4 + $0xb9] sm:$0x1] 0.0
        %693 = vst [vmem:[#allocation4 + $0xd1] sm:$0x1] 0.0
        %694 = vst [vmem:[#allocation4 + $0xe9] sm:$0x1] 0.0
        %695 = vst [vmem:[#allocation4 + $0x101] sm:$0x1] 0.0
        %696 = vst [vmem:[#allocation4 + $0x119] sm:$0x1] 0.0
        %697 = vst [vmem:[#allocation4 + $0x131] sm:$0x1] 0.0
        %698 = vst [vmem:[#allocation4 + $0x149] sm:$0x1] 0.0
        %699 = vst [vmem:[#allocation4 + $0x161] sm:$0x1] 0.0
        %700 = vst [vmem:[#allocation4 + $0x179] sm:$0x1] 0.0
        %701 = vst [vmem:[#allocation4 + $0x191] sm:$0x1] 0.0
        %702 = vst [vmem:[#allocation4 + $0x1a9] sm:$0x1] 0.0
        %703 = vst [vmem:[#allocation4 + $0x1c1] sm:$0x1] 0.0
        %704 = vst [vmem:[#allocation4 + $0x1d9] sm:$0x1] 0.0
        %705 = vst [vmem:[#allocation4 + $0x1f1] sm:$0x1] 0.0
        %706 = vst [vmem:[#allocation4 + $0x209] sm:$0x1] 0.0
        %707 = vst [vmem:[#allocation4 + $0x221] sm:$0x1] 0.0
        %708 = vst [vmem:[#allocation4 + $0x239] sm:$0x1] 0.0
        %709 = vst [vmem:[#allocation4 + $0x251] sm:$0x1] 0.0
        %710 = vst [vmem:[#allocation4 + $0x269] sm:$0x1] 0.0
        %711 = vst [vmem:[#allocation4 + $0x281] sm:$0x1] 0.0
        %712 = vst [vmem:[#allocation4 + $0x299] sm:$0x1] 0.0
        %713 = vst [vmem:[#allocation4 + $0x2b1] sm:$0x1] 0.0
        %714 = vst [vmem:[#allocation4 + $0x2c9] sm:$0x1] 0.0
        %715 = vst [vmem:[#allocation4 + $0x2e1] sm:$0x1] 0.0
        %716 = vst [vmem:[#allocation4 + $0x2f9] sm:$0x1] 0.0
        %717 = vst [vmem:[#allocation4 + $0x311] sm:$0x1] 0.0
        %718 = vst [vmem:[#allocation4 + $0x329] sm:$0x1] 0.0
        %719 = vst [vmem:[#allocation5] sm:$0xff] 0.0
        %720 = vst [vmem:[#allocation5 + $0x8] sm:$0x3] 0.0
        %s721 = scalar_lea.vmem [#allocation5], 272
        %722 = vst [vmem:[%s721] sm:$0xff] 0.0
        %723 = vst [vmem:[%s721 + $0x8] sm:$0x3] 0.0
        %724 = vst [vmem:[#allocation5] sm:$0x1] 0.0
        %725 = vst [vmem:[#allocation5 + $0x10] sm:$0x1] 0.0
        %726 = vst [vmem:[#allocation5 + $0x20] sm:$0x1] 0.0
        %727 = vst [vmem:[#allocation5 + $0x30] sm:$0x1] 0.0
        %728 = vst [vmem:[#allocation5 + $0x40] sm:$0x1] 0.0
        %729 = vst [vmem:[#allocation5 + $0x50] sm:$0x1] 0.0
        %730 = vst [vmem:[#allocation5 + $0x60] sm:$0x1] 0.0
        %731 = vst [vmem:[#allocation5 + $0x70] sm:$0x1] 0.0
        %732 = vst [vmem:[#allocation5 + $0x80] sm:$0x1] 0.0
        %733 = vst [vmem:[#allocation5 + $0x90] sm:$0x1] 0.0
        %734 = vst [vmem:[#allocation5 + $0xa0] sm:$0x1] 0.0
        %735 = vst [vmem:[#allocation5 + $0xb0] sm:$0x1] 0.0
        %736 = vst [vmem:[#allocation5 + $0xc0] sm:$0x1] 0.0
        %737 = vst [vmem:[#allocation5 + $0xd0] sm:$0x1] 0.0
        %738 = vst [vmem:[#allocation5 + $0xe0] sm:$0x1] 0.0
        %739 = vst [vmem:[#allocation5 + $0xf0] sm:$0x1] 0.0
        %740 = vst [vmem:[#allocation5 + $0x100] sm:$0x1] 0.0
        %741 = vst [vmem:[#allocation5 + $0x110] sm:$0x1] 0.0
        %742 = vst [vmem:[#allocation5 + $0x9] sm:$0x1] 0.0
        %743 = vst [vmem:[#allocation5 + $0x19] sm:$0x1] 0.0
        %744 = vst [vmem:[#allocation5 + $0x29] sm:$0x1] 0.0
        %745 = vst [vmem:[#allocation5 + $0x39] sm:$0x1] 0.0
        %746 = vst [vmem:[#allocation5 + $0x49] sm:$0x1] 0.0
        %747 = vst [vmem:[#allocation5 + $0x59] sm:$0x1] 0.0
        %748 = vst [vmem:[#allocation5 + $0x69] sm:$0x1] 0.0
        %749 = vst [vmem:[#allocation5 + $0x79] sm:$0x1] 0.0
        %750 = vst [vmem:[#allocation5 + $0x89] sm:$0x1] 0.0
        %751 = vst [vmem:[#allocation5 + $0x99] sm:$0x1] 0.0
        %752 = vst [vmem:[#allocation5 + $0xa9] sm:$0x1] 0.0
        %753 = vst [vmem:[#allocation5 + $0xb9] sm:$0x1] 0.0
        %754 = vst [vmem:[#allocation5 + $0xc9] sm:$0x1] 0.0
        %755 = vst [vmem:[#allocation5 + $0xd9] sm:$0x1] 0.0
        %756 = vst [vmem:[#allocation5 + $0xe9] sm:$0x1] 0.0
        %757 = vst [vmem:[#allocation5 + $0xf9] sm:$0x1] 0.0
        %758 = vst [vmem:[#allocation5 + $0x109] sm:$0x1] 0.0
        %759 = vst [vmem:[#allocation5 + $0x119] sm:$0x1] 0.0
        %v760 = vld [vmem:[%s1] sm:$0xff]
        %v761 = vld [vmem:[%s1 + $0x8] sm:$0xff]
        %v762 = vld [vmem:[%s1 + $0x10] sm:$0xff]
        %v763 = vld [vmem:[%s1 + $0x18] sm:$0xff]
        %v764 = vld [vmem:[%s1 + $0x20] sm:$0xff]
        %v765 = vld [vmem:[%s1 + $0x28] sm:$0xff]
        %v766 = vld [vmem:[%s1 + $0x30] sm:$0xff]
        %v767 = vld [vmem:[%s1 + $0x38] sm:$0xff]
        %v768 = vld [vmem:[%s1 + $0x40] sm:$0xff]
        %v769 = vld [vmem:[%s1 + $0x48] sm:$0xff]
        %v770 = vld [vmem:[%s1 + $0x50] sm:$0xff]
        %v771 = vld [vmem:[%s1 + $0x58] sm:$0xff]
        %v772 = vld [vmem:[%s4] sm:$0x1]
        %774 = vrot.lane.b32.xlu0 %v772, 64
        %v775 = vpop.permute.xlu0 %774
        %vm777 = vcmask 523264
        %v778 = vsel %vm777, %v772, %v775
        loop: start=0, step=1, limit=64
        $region41: #{enc_conv_forward.1} parent=39 // loop_pre_header
          _
        $region42: #{enc_conv_forward.1} parent=39 // loop_header
          %s780 = sphi 0, %s784
          %p781 = scmp.ge.s32.totalorder %s780, 64
        $region43: #{enc_conv_forward.1} parent=39 // loop_header_branch
          %783 = sbr.rel (%p781) target = $region47
        $region44: #{enc_conv_forward.1} parent=39 // loop_body
          %s785 = smul.u32 %s780, 2
          %s786 = smul.u32 %s785, 64
          %s787 = scalar_lea.vmem %s221, %s786
          %v788 = vld [vmem:[%s787] sm:$0xff]
          %v789 = vld [vmem:[%s787 + $0x8] sm:$0xff]
          %v790 = vld [vmem:[%s787 + $0x10] sm:$0xff]
          %v791 = vld [vmem:[%s787 + $0x18] sm:$0xff]
          %v792 = vld [vmem:[%s787 + $0x20] sm:$0xff]
          %v793 = vld [vmem:[%s787 + $0x28] sm:$0xff]
          %v794 = vld [vmem:[%s787 + $0x30] sm:$0xff]
          %v795 = vld [vmem:[%s787 + $0x38] sm:$0xff]
          %v796 = vld [vmem:[%s787 + $0x40] sm:$0xff]
          %v797 = vld [vmem:[%s787 + $0x48] sm:$0xff]
          %v798 = vld [vmem:[%s787 + $0x50] sm:$0xff]
          %v799 = vld [vmem:[%s787 + $0x58] sm:$0xff]
          %v800 = vld [vmem:[%s787 + $0x60] sm:$0xff]
          %v801 = vld [vmem:[%s787 + $0x68] sm:$0xff]
          %v802 = vld [vmem:[%s787 + $0x70] sm:$0xff]
          %v803 = vld [vmem:[%s787 + $0x78] sm:$0xff]
          %v804 = vlaneseq
          %v805 = vshrl.u32 %v804, 7
          %v806 = vsub.s32 0, %v805
          %v807 = vrot.slane %v778, %v806
          %vm808 = vcmask 785408
          %v810 = vsel %vm808, %v788, 0
          %v813 = vsel %vm808, %v789, 0
          %v816 = vsel %vm808, %v790, 0
          %v819 = vsel %vm808, %v791, 0
          %v822 = vsel %vm808, %v792, 0
          %v825 = vsel %vm808, %v793, 0
          %v828 = vsel %vm808, %v794, 0
          %v831 = vsel %vm808, %v795, 0
          %v834 = vsel %vm808, %v796, 0
          %v837 = vsel %vm808, %v797, 0
          %v840 = vsel %vm808, %v798, 0
          %v843 = vsel %vm808, %v799, 0
          %v846 = vsel %vm808, %v800, 0
          %v849 = vsel %vm808, %v801, 0
          %v852 = vsel %vm808, %v802, 0
          %v855 = vsel %vm808, %v803, 0
          %857 = vmatprep.subr.mxu0 0.0
          %858 = vmatpush1.msra.mxu0 0.0
          %859 = vmatprep.subr.mxu0 0.0
          %860 = vmatpush1.msra.mxu0 0.0
          %861 = vmatprep.subr.mxu0 0.0
          %862 = vmatpush1.msra.mxu0 0.0
          %863 = vmatprep.subr.mxu0 0.0
          %864 = vmatpush1.msra.mxu0 0.0
          %865 = vmatprep.subr.mxu0 0.0
          %866 = vmatpush1.msra.mxu0 %v771
          %867 = vmatprep.subr.mxu0 0.0
          %868 = vmatpush1.msra.mxu0 %v770
          %869 = vmatprep.subr.mxu0 0.0
          %870 = vmatpush1.msra.mxu0 %v769
          %871 = vmatprep.subr.mxu0 0.0
          %872 = vmatpush1.msra.mxu0 %v768
          %873 = vmatprep.subr.mxu0 0.0
          %874 = vmatpush1.msra.mxu0 %v767
          %875 = vmatprep.subr.mxu0 0.0
          %876 = vmatpush1.msra.mxu0 %v766
          %877 = vmatprep.subr.mxu0 0.0
          %878 = vmatpush1.msra.mxu0 %v765
          %879 = vmatprep.subr.mxu0 0.0
          %880 = vmatpush1.msra.mxu0 %v764
          %881 = vmatprep.subr.mxu0 0.0
          %882 = vmatpush1.msra.mxu0 %v763
          %883 = vmatprep.subr.mxu0 0.0
          %884 = vmatpush1.msra.mxu0 %v762
          %885 = vmatprep.subr.mxu0 0.0
          %886 = vmatpush1.msra.mxu0 %v761
          %887 = vmatprep.subr.mxu0 0.0
          %888 = vmatpush1.msra.mxu0 %v760
          %889 = vmatprep.subr.mxu0 0.0
          %890 = vmatpush2.msra.mxu0 0.0
          %891 = vmatprep.subr.mxu0 0.0
          %892 = vmatpush2.msra.mxu0 0.0
          %893 = vmatprep.subr.mxu0 0.0
          %894 = vmatpush2.msra.mxu0 0.0
          %895 = vmatprep.subr.mxu0 0.0
          %896 = vmatpush2.msra.mxu0 0.0
          %897 = vmatprep.subr.mxu0 0.0
          %898 = vmatpush2.msra.mxu0 0.0
          %899 = vmatprep.subr.mxu0 0.0
          %900 = vmatpush2.msra.mxu0 0.0
          %901 = vmatprep.subr.mxu0 0.0
          %902 = vmatpush2.msra.mxu0 0.0
          %903 = vmatprep.subr.mxu0 0.0
          %904 = vmatpush2.msra.mxu0 0.0
          %905 = vmatprep.subr.mxu0 0.0
          %906 = vmatpush2.msra.mxu0 0.0
          %907 = vmatprep.subr.mxu0 0.0
          %908 = vmatpush2.msra.mxu0 0.0
          %909 = vmatprep.subr.mxu0 0.0
          %910 = vmatpush2.msra.mxu0 0.0
          %911 = vmatprep.subr.mxu0 0.0
          %912 = vmatpush2.msra.mxu0 0.0
          %913 = vmatprep.subr.mxu0 0.0
          %914 = vmatpush2.msra.mxu0 0.0
          %915 = vmatprep.subr.mxu0 0.0
          %916 = vmatpush2.msra.mxu0 0.0
          %917 = vmatprep.subr.mxu0 0.0
          %918 = vmatpush2.msra.mxu0 0.0
          %919 = vmatprep.subr.mxu0 0.0
          %920 = vmatpush2.msra.mxu0 0.0
          %921 = vmatprep.mubr.f32.mxu0 0.0
          %922 = vmatmul.mubr.f32.gmra.mxu0 %v810
          %v923 = vpop.f32.mrf.mxu0
          %v924 = vadd.f32 %v807, %v923
          %v925 = vpop.f32.mrf.mxu0
          %926 = vmatprep.mubr.f32.mxu0 0.0
          %927 = vmatmul.mubr.f32.gmra.mxu0 %v813
          %v928 = vpop.f32.mrf.mxu0
          %v929 = vadd.f32 %v807, %v928
          %v930 = vpop.f32.mrf.mxu0
          %931 = vmatprep.mubr.f32.mxu0 0.0
          %932 = vmatmul.mubr.f32.gmra.mxu0 %v816
          %v933 = vpop.f32.mrf.mxu0
          %v934 = vadd.f32 %v807, %v933
          %v935 = vpop.f32.mrf.mxu0
          %936 = vmatprep.mubr.f32.mxu0 0.0
          %937 = vmatmul.mubr.f32.gmra.mxu0 %v819
          %v938 = vpop.f32.mrf.mxu0
          %v939 = vadd.f32 %v807, %v938
          %v940 = vpop.f32.mrf.mxu0
          %941 = vmatprep.mubr.f32.mxu0 0.0
          %942 = vmatmul.mubr.f32.gmra.mxu0 %v822
          %v943 = vpop.f32.mrf.mxu0
          %v944 = vadd.f32 %v807, %v943
          %v945 = vpop.f32.mrf.mxu0
          %946 = vmatprep.mubr.f32.mxu0 0.0
          %947 = vmatmul.mubr.f32.gmra.mxu0 %v825
          %v948 = vpop.f32.mrf.mxu0
          %v949 = vadd.f32 %v807, %v948
          %v950 = vpop.f32.mrf.mxu0
          %951 = vmatprep.mubr.f32.mxu0 0.0
          %952 = vmatmul.mubr.f32.gmra.mxu0 %v828
          %v953 = vpop.f32.mrf.mxu0
          %v954 = vadd.f32 %v807, %v953
          %v955 = vpop.f32.mrf.mxu0
          %956 = vmatprep.mubr.f32.mxu0 0.0
          %957 = vmatmul.mubr.f32.gmra.mxu0 %v831
          %v958 = vpop.f32.mrf.mxu0
          %v959 = vadd.f32 %v807, %v958
          %v960 = vpop.f32.mrf.mxu0
          %961 = vmatprep.mubr.f32.mxu0 0.0
          %962 = vmatmul.mubr.f32.gmra.mxu0 %v834
          %v963 = vpop.f32.mrf.mxu0
          %v964 = vadd.f32 %v807, %v963
          %v965 = vpop.f32.mrf.mxu0
          %966 = vmatprep.mubr.f32.mxu0 0.0
          %967 = vmatmul.mubr.f32.gmra.mxu0 %v837
          %v968 = vpop.f32.mrf.mxu0
          %v969 = vadd.f32 %v807, %v968
          %v970 = vpop.f32.mrf.mxu0
          %971 = vmatprep.mubr.f32.mxu0 0.0
          %972 = vmatmul.mubr.f32.gmra.mxu0 %v840
          %v973 = vpop.f32.mrf.mxu0
          %v974 = vadd.f32 %v807, %v973
          %v975 = vpop.f32.mrf.mxu0
          %976 = vmatprep.mubr.f32.mxu0 0.0
          %977 = vmatmul.mubr.f32.gmra.mxu0 %v843
          %v978 = vpop.f32.mrf.mxu0
          %v979 = vadd.f32 %v807, %v978
          %v980 = vpop.f32.mrf.mxu0
          %981 = vmatprep.mubr.f32.mxu0 0.0
          %982 = vmatmul.mubr.f32.gmra.mxu0 %v846
          %v983 = vpop.f32.mrf.mxu0
          %v984 = vadd.f32 %v807, %v983
          %v985 = vpop.f32.mrf.mxu0
          %986 = vmatprep.mubr.f32.mxu0 0.0
          %987 = vmatmul.mubr.f32.gmra.mxu0 %v849
          %v988 = vpop.f32.mrf.mxu0
          %v989 = vadd.f32 %v807, %v988
          %v990 = vpop.f32.mrf.mxu0
          %991 = vmatprep.mubr.f32.mxu0 0.0
          %992 = vmatmul.mubr.f32.gmra.mxu0 %v852
          %v993 = vpop.f32.mrf.mxu0
          %v994 = vadd.f32 %v807, %v993
          %v995 = vpop.f32.mrf.mxu0
          %996 = vmatprep.mubr.f32.mxu0 0.0
          %997 = vmatmul.mubr.f32.gmra.mxu0 %v855
          %v998 = vpop.f32.mrf.mxu0
          %v999 = vadd.f32 %v807, %v998
          %v1000 = vpop.f32.mrf.mxu0
          %1001 = vdwg.mxu0
          %v1002 = vmax.f32 %v924, 0.0
          %v1003 = vmax.f32 %v929, 0.0
          %v1004 = vmax.f32 %v934, 0.0
          %v1005 = vmax.f32 %v939, 0.0
          %v1006 = vmax.f32 %v944, 0.0
          %v1007 = vmax.f32 %v949, 0.0
          %v1008 = vmax.f32 %v954, 0.0
          %v1009 = vmax.f32 %v959, 0.0
          %v1010 = vmax.f32 %v964, 0.0
          %v1011 = vmax.f32 %v969, 0.0
          %v1012 = vmax.f32 %v974, 0.0
          %v1013 = vmax.f32 %v979, 0.0
          %v1014 = vmax.f32 %v984, 0.0
          %v1015 = vmax.f32 %v989, 0.0
          %v1016 = vmax.f32 %v994, 0.0
          %v1017 = vmax.f32 %v999, 0.0
          %s1018 = sadd.s32 %s785, 1
          %s1019 = smul.u32 %s1018, 72
          %s1020 = scalar_lea.vmem [#allocation2], %s1019
          %1021 = vst [vmem:[%s1020 + $0x1] sm:$0xff] %v1002
          %1022 = vst [vmem:[%s1020 + $0x9] sm:$0xff] %v1003
          %1023 = vst [vmem:[%s1020 + $0x11] sm:$0xff] %v1004
          %1024 = vst [vmem:[%s1020 + $0x19] sm:$0xff] %v1005
          %1025 = vst [vmem:[%s1020 + $0x21] sm:$0xff] %v1006
          %1026 = vst [vmem:[%s1020 + $0x29] sm:$0xff] %v1007
          %1027 = vst [vmem:[%s1020 + $0x31] sm:$0xff] %v1008
          %1028 = vst [vmem:[%s1020 + $0x39] sm:$0xff] %v1009
          %1029 = vst [vmem:[%s1020 + $0x49] sm:$0xff] %v1010
          %1030 = vst [vmem:[%s1020 + $0x51] sm:$0xff] %v1011
          %1031 = vst [vmem:[%s1020 + $0x59] sm:$0xff] %v1012
          %1032 = vst [vmem:[%s1020 + $0x61] sm:$0xff] %v1013
          %1033 = vst [vmem:[%s1020 + $0x69] sm:$0xff] %v1014
          %1034 = vst [vmem:[%s1020 + $0x71] sm:$0xff] %v1015
          %1035 = vst [vmem:[%s1020 + $0x79] sm:$0xff] %v1016
          %1036 = vst [vmem:[%s1020 + $0x81] sm:$0xff] %v1017
        $region45: #{enc_conv_forward.1} parent=39 // loop_footer
          %s784 = sadd.s32 1, %s780
        $region46: #{enc_conv_forward.1} parent=39 // loop_footer_branch
          %779 = sbr.rel target = $region42
        $region47: #{enc_conv_forward.1} parent=39 // loop_exit
          _
        %v1037 = vld [vmem:[%s4 + $0x1] sm:$0x1]
        %v1038 = vlaneseq
        %v1039 = vand.u32 %v1038, 127
        %vm1040 = vcmp.lt.s32.totalorder %v1039, 64
        %v1041 = vlaneseq
        %v1042 = vshrl.u32 %v1041, 7
        %v1043 = vadd.s32 %v1042, 8
        %v1044 = vadd.s32 %v1042, 16
        %v1045 = vadd.s32 %v1042, 24
        %v1046 = vmul.u32 %v1042, 2
        %v1047 = vmul.u32 %v1043, 2
        %v1048 = vmul.u32 %v1044, 2
        %v1049 = vmul.u32 %v1045, 2
        %vm1050 = vcmp.eq.s32.totalorder %v1039, %v1046
        %vm1051 = vcmp.eq.s32.totalorder %v1039, %v1047
        %vm1052 = vcmp.eq.s32.totalorder %v1039, %v1048
        %vm1053 = vcmp.eq.s32.totalorder %v1039, %v1049
        %v1054 = vsel %vm1050, 1, 0
        %v1055 = vsel %vm1051, 1, 0
        %v1056 = vsel %vm1052, 1, 0
        %v1057 = vsel %vm1053, 1, 0
        %v1058 = vcvt.s32.f32 %v1054
        %v1059 = vcvt.s32.f32 %v1055
        %v1060 = vcvt.s32.f32 %v1056
        %v1061 = vcvt.s32.f32 %v1057
        %v1062 = vadd.s32 %v1046, 1
        %v1063 = vadd.s32 %v1047, 1
        %v1064 = vadd.s32 %v1048, 1
        %v1065 = vadd.s32 %v1049, 1
        %vm1066 = vcmp.eq.s32.totalorder %v1039, %v1062
        %vm1067 = vcmp.eq.s32.totalorder %v1039, %v1063
        %vm1068 = vcmp.eq.s32.totalorder %v1039, %v1064
        %vm1069 = vcmp.eq.s32.totalorder %v1039, %v1065
        %v1070 = vsel %vm1066, 1, 0
        %v1071 = vsel %vm1067, 1, 0
        %v1072 = vsel %vm1068, 1, 0
        %v1073 = vsel %vm1069, 1, 0
        %v1074 = vcvt.s32.f32 %v1070
        %v1075 = vcvt.s32.f32 %v1071
        %v1076 = vcvt.s32.f32 %v1072
        %v1077 = vcvt.s32.f32 %v1073
        loop: start=0, step=1, limit=64
        $region48: #{enc_conv_forward.1} parent=39 // loop_pre_header
          _
        $region49: #{enc_conv_forward.1} parent=39 // loop_header
          %s1079 = sphi 0, %s1083
          %p1080 = scmp.ge.s32.totalorder %s1079, 64
        $region50: #{enc_conv_forward.1} parent=39 // loop_header_branch
          %1082 = sbr.rel (%p1080) target = $region54
        $region51: #{enc_conv_forward.1} parent=39 // loop_body
          %s1084 = smul.u32 %s1079, 2
          %s1085 = smul.u32 %s1084, 72
          %s1086 = scalar_lea.vmem [#allocation2], %s1085
          %v1087 = vld [vmem:[%s1086] sm:$0xff]
          %v1088 = vld [vmem:[%s1086 + $0x8] sm:$0xff]
          %v1089 = vld [vmem:[%s1086 + $0x10] sm:$0xff]
          %v1090 = vld [vmem:[%s1086 + $0x18] sm:$0xff]
          %v1091 = vld [vmem:[%s1086 + $0x20] sm:$0xff]
          %v1092 = vld [vmem:[%s1086 + $0x28] sm:$0xff]
          %v1093 = vld [vmem:[%s1086 + $0x30] sm:$0xff]
          %v1094 = vld [vmem:[%s1086 + $0x38] sm:$0xff]
          %v1095 = vld [vmem:[%s1086 + $0x1] sm:$0xff]
          %v1096 = vld [vmem:[%s1086 + $0x9] sm:$0xff]
          %v1097 = vld [vmem:[%s1086 + $0x11] sm:$0xff]
          %v1098 = vld [vmem:[%s1086 + $0x19] sm:$0xff]
          %v1099 = vld [vmem:[%s1086 + $0x21] sm:$0xff]
          %v1100 = vld [vmem:[%s1086 + $0x29] sm:$0xff]
          %v1101 = vld [vmem:[%s1086 + $0x31] sm:$0xff]
          %v1102 = vld [vmem:[%s1086 + $0x39] sm:$0xff]
          %v1103 = vld [vmem:[%s1086 + $0x2] sm:$0xff]
          %v1104 = vld [vmem:[%s1086 + $0xa] sm:$0xff]
          %v1105 = vld [vmem:[%s1086 + $0x12] sm:$0xff]
          %v1106 = vld [vmem:[%s1086 + $0x1a] sm:$0xff]
          %v1107 = vld [vmem:[%s1086 + $0x22] sm:$0xff]
          %v1108 = vld [vmem:[%s1086 + $0x2a] sm:$0xff]
          %v1109 = vld [vmem:[%s1086 + $0x32] sm:$0xff]
          %v1110 = vld [vmem:[%s1086 + $0x3a] sm:$0xff]
          %v1111 = vsel %vm1040, %v1103, %v1087
          %v1112 = vsel %vm1040, %v1104, %v1088
          %v1113 = vsel %vm1040, %v1105, %v1089
          %v1114 = vsel %vm1040, %v1106, %v1090
          %v1115 = vsel %vm1040, %v1107, %v1091
          %v1116 = vsel %vm1040, %v1108, %v1092
          %v1117 = vsel %vm1040, %v1109, %v1093
          %v1118 = vsel %vm1040, %v1110, %v1094
          %v1119 = vld [vmem:[%s2] sm:$0xff]
          %v1120 = vld [vmem:[%s2 + $0x8] sm:$0xff]
          %v1121 = vld [vmem:[%s2 + $0x10] sm:$0xff]
          %v1122 = vld [vmem:[%s2 + $0x18] sm:$0xff]
          %v1123 = vld [vmem:[%s2 + $0x20] sm:$0xff]
          %v1124 = vld [vmem:[%s2 + $0x28] sm:$0xff]
          %v1125 = vld [vmem:[%s2 + $0x30] sm:$0xff]
          %v1126 = vld [vmem:[%s2 + $0x38] sm:$0xff]
          %v1127 = vld [vmem:[%s2 + $0x40] sm:$0xff]
          %v1128 = vld [vmem:[%s2 + $0x48] sm:$0xff]
          %v1129 = vld [vmem:[%s2 + $0x50] sm:$0xff]
          %v1130 = vld [vmem:[%s2 + $0x58] sm:$0xff]
          %v1131 = vld [vmem:[%s2 + $0x60] sm:$0xff]
          %v1132 = vld [vmem:[%s2 + $0x68] sm:$0xff]
          %v1133 = vld [vmem:[%s2 + $0x70] sm:$0xff]
          %v1134 = vld [vmem:[%s2 + $0x78] sm:$0xff]
          %s1135 = scalar_lea.vmem %s2, 128
          %v1136 = vld [vmem:[%s1135] sm:$0xff]
          %v1137 = vld [vmem:[%s1135 + $0x8] sm:$0xff]
          %v1138 = vld [vmem:[%s1135 + $0x10] sm:$0xff]
          %v1139 = vld [vmem:[%s1135 + $0x18] sm:$0xff]
          %v1140 = vld [vmem:[%s1135 + $0x20] sm:$0xff]
          %v1141 = vld [vmem:[%s1135 + $0x28] sm:$0xff]
          %v1142 = vld [vmem:[%s1135 + $0x30] sm:$0xff]
          %v1143 = vld [vmem:[%s1135 + $0x38] sm:$0xff]
          %v1144 = vld [vmem:[%s1135 + $0x40] sm:$0xff]
          %v1145 = vld [vmem:[%s1135 + $0x48] sm:$0xff]
          %v1146 = vld [vmem:[%s1135 + $0x50] sm:$0xff]
          %v1147 = vld [vmem:[%s1135 + $0x58] sm:$0xff]
          %v1148 = vld [vmem:[%s1135 + $0x60] sm:$0xff]
          %v1149 = vld [vmem:[%s1135 + $0x68] sm:$0xff]
          %v1150 = vld [vmem:[%s1135 + $0x70] sm:$0xff]
          %v1151 = vld [vmem:[%s1135 + $0x78] sm:$0xff]
          %1152 = vmatprep.subr.mxu0 0.0
          %1153 = vmatpush1.msra.mxu0 %v1151
          %1154 = vmatprep.subr.mxu0 0.0
          %1155 = vmatpush1.msra.mxu0 %v1150
          %1156 = vmatprep.subr.mxu0 0.0
          %1157 = vmatpush1.msra.mxu0 %v1149
          %1158 = vmatprep.subr.mxu0 0.0
          %1159 = vmatpush1.msra.mxu0 %v1148
          %1160 = vmatprep.subr.mxu0 0.0
          %1161 = vmatpush1.msra.mxu0 %v1147
          %1162 = vmatprep.subr.mxu0 0.0
          %1163 = vmatpush1.msra.mxu0 %v1146
          %1164 = vmatprep.subr.mxu0 0.0
          %1165 = vmatpush1.msra.mxu0 %v1145
          %1166 = vmatprep.subr.mxu0 0.0
          %1167 = vmatpush1.msra.mxu0 %v1144
          %1168 = vmatprep.subr.mxu0 0.0
          %1169 = vmatpush1.msra.mxu0 %v1143
          %1170 = vmatprep.subr.mxu0 0.0
          %1171 = vmatpush1.msra.mxu0 %v1142
          %1172 = vmatprep.subr.mxu0 0.0
          %1173 = vmatpush1.msra.mxu0 %v1141
          %1174 = vmatprep.subr.mxu0 0.0
          %1175 = vmatpush1.msra.mxu0 %v1140
          %1176 = vmatprep.subr.mxu0 0.0
          %1177 = vmatpush1.msra.mxu0 %v1139
          %1178 = vmatprep.subr.mxu0 0.0
          %1179 = vmatpush1.msra.mxu0 %v1138
          %1180 = vmatprep.subr.mxu0 0.0
          %1181 = vmatpush1.msra.mxu0 %v1137
          %1182 = vmatprep.subr.mxu0 0.0
          %1183 = vmatpush1.msra.mxu0 %v1136
          %1184 = vmatprep.subr.mxu0 0.0
          %1185 = vmatpush2.msra.mxu0 0.0
          %1186 = vmatprep.subr.mxu0 0.0
          %1187 = vmatpush2.msra.mxu0 0.0
          %1188 = vmatprep.subr.mxu0 0.0
          %1189 = vmatpush2.msra.mxu0 0.0
          %1190 = vmatprep.subr.mxu0 0.0
          %1191 = vmatpush2.msra.mxu0 0.0
          %1192 = vmatprep.subr.mxu0 0.0
          %1193 = vmatpush2.msra.mxu0 0.0
          %1194 = vmatprep.subr.mxu0 0.0
          %1195 = vmatpush2.msra.mxu0 0.0
          %1196 = vmatprep.subr.mxu0 0.0
          %1197 = vmatpush2.msra.mxu0 0.0
          %1198 = vmatprep.subr.mxu0 0.0
          %1199 = vmatpush2.msra.mxu0 0.0
          %1200 = vmatprep.subr.mxu0 0.0
          %1201 = vmatpush2.msra.mxu0 0.0
          %1202 = vmatprep.subr.mxu0 0.0
          %1203 = vmatpush2.msra.mxu0 0.0
          %1204 = vmatprep.subr.mxu0 0.0
          %1205 = vmatpush2.msra.mxu0 0.0
          %1206 = vmatprep.subr.mxu0 0.0
          %1207 = vmatpush2.msra.mxu0 0.0
          %1208 = vmatprep.subr.mxu0 0.0
          %1209 = vmatpush2.msra.mxu0 0.0
          %1210 = vmatprep.subr.mxu0 0.0
          %1211 = vmatpush2.msra.mxu0 0.0
          %1212 = vmatprep.subr.mxu0 0.0
          %1213 = vmatpush2.msra.mxu0 0.0
          %1214 = vmatprep.subr.mxu0 0.0
          %1215 = vmatpush2.msra.mxu0 0.0
          %1216 = vmatprep.mubr.f32.mxu0 0.0
          %1217 = vmatmul.mubr.f32.gmra.mxu0 %v1111
          %v1218 = vpop.f32.mrf.mxu0
          %v1219 = vadd.f32 0.0, %v1218
          %v1220 = vpop.f32.mrf.mxu0
          %1221 = vmatprep.mubr.f32.mxu0 0.0
          %1222 = vmatmul.mubr.f32.gmra.mxu0 %v1112
          %v1223 = vpop.f32.mrf.mxu0
          %v1224 = vadd.f32 0.0, %v1223
          %v1225 = vpop.f32.mrf.mxu0
          %1226 = vmatprep.mubr.f32.mxu0 0.0
          %1227 = vmatmul.mubr.f32.gmra.mxu0 %v1113
          %v1228 = vpop.f32.mrf.mxu0
          %v1229 = vadd.f32 0.0, %v1228
          %v1230 = vpop.f32.mrf.mxu0
          %1231 = vmatprep.mubr.f32.mxu0 0.0
          %1232 = vmatmul.mubr.f32.gmra.mxu0 %v1114
          %v1233 = vpop.f32.mrf.mxu0
          %v1234 = vadd.f32 0.0, %v1233
          %v1235 = vpop.f32.mrf.mxu0
          %1236 = vmatprep.mubr.f32.mxu0 0.0
          %1237 = vmatmul.mubr.f32.gmra.mxu0 %v1115
          %v1238 = vpop.f32.mrf.mxu0
          %v1239 = vadd.f32 0.0, %v1238
          %v1240 = vpop.f32.mrf.mxu0
          %1241 = vmatprep.mubr.f32.mxu0 0.0
          %1242 = vmatmul.mubr.f32.gmra.mxu0 %v1116
          %v1243 = vpop.f32.mrf.mxu0
          %v1244 = vadd.f32 0.0, %v1243
          %v1245 = vpop.f32.mrf.mxu0
          %1246 = vmatprep.mubr.f32.mxu0 0.0
          %1247 = vmatmul.mubr.f32.gmra.mxu0 %v1117
          %v1248 = vpop.f32.mrf.mxu0
          %v1249 = vadd.f32 0.0, %v1248
          %v1250 = vpop.f32.mrf.mxu0
          %1251 = vmatprep.mubr.f32.mxu0 0.0
          %1252 = vmatmul.mubr.f32.gmra.mxu0 %v1118
          %v1253 = vpop.f32.mrf.mxu0
          %v1254 = vadd.f32 0.0, %v1253
          %v1255 = vpop.f32.mrf.mxu0
          %1256 = vdwg.mxu0
          %1257 = vmatprep.subr.mxu0 0.0
          %1258 = vmatpush1.msra.mxu0 %v1134
          %1259 = vmatprep.subr.mxu0 0.0
          %1260 = vmatpush1.msra.mxu0 %v1133
          %1261 = vmatprep.subr.mxu0 0.0
          %1262 = vmatpush1.msra.mxu0 %v1132
          %1263 = vmatprep.subr.mxu0 0.0
          %1264 = vmatpush1.msra.mxu0 %v1131
          %1265 = vmatprep.subr.mxu0 0.0
          %1266 = vmatpush1.msra.mxu0 %v1130
          %1267 = vmatprep.subr.mxu0 0.0
          %1268 = vmatpush1.msra.mxu0 %v1129
          %1269 = vmatprep.subr.mxu0 0.0
          %1270 = vmatpush1.msra.mxu0 %v1128
          %1271 = vmatprep.subr.mxu0 0.0
          %1272 = vmatpush1.msra.mxu0 %v1127
          %1273 = vmatprep.subr.mxu0 0.0
          %1274 = vmatpush1.msra.mxu0 %v1126
          %1275 = vmatprep.subr.mxu0 0.0
          %1276 = vmatpush1.msra.mxu0 %v1125
          %1277 = vmatprep.subr.mxu0 0.0
          %1278 = vmatpush1.msra.mxu0 %v1124
          %1279 = vmatprep.subr.mxu0 0.0
          %1280 = vmatpush1.msra.mxu0 %v1123
          %1281 = vmatprep.subr.mxu0 0.0
          %1282 = vmatpush1.msra.mxu0 %v1122
          %1283 = vmatprep.subr.mxu0 0.0
          %1284 = vmatpush1.msra.mxu0 %v1121
          %1285 = vmatprep.subr.mxu0 0.0
          %1286 = vmatpush1.msra.mxu0 %v1120
          %1287 = vmatprep.subr.mxu0 0.0
          %1288 = vmatpush1.msra.mxu0 %v1119
          %1289 = vmatprep.subr.mxu0 0.0
          %1290 = vmatpush2.msra.mxu0 0.0
          %1291 = vmatprep.subr.mxu0 0.0
          %1292 = vmatpush2.msra.mxu0 0.0
          %1293 = vmatprep.subr.mxu0 0.0
          %1294 = vmatpush2.msra.mxu0 0.0
          %1295 = vmatprep.subr.mxu0 0.0
          %1296 = vmatpush2.msra.mxu0 0.0
          %1297 = vmatprep.subr.mxu0 0.0
          %1298 = vmatpush2.msra.mxu0 0.0
          %1299 = vmatprep.subr.mxu0 0.0
          %1300 = vmatpush2.msra.mxu0 0.0
          %1301 = vmatprep.subr.mxu0 0.0
          %1302 = vmatpush2.msra.mxu0 0.0
          %1303 = vmatprep.subr.mxu0 0.0
          %1304 = vmatpush2.msra.mxu0 0.0
          %1305 = vmatprep.subr.mxu0 0.0
          %1306 = vmatpush2.msra.mxu0 0.0
          %1307 = vmatprep.subr.mxu0 0.0
          %1308 = vmatpush2.msra.mxu0 0.0
          %1309 = vmatprep.subr.mxu0 0.0
          %1310 = vmatpush2.msra.mxu0 0.0
          %1311 = vmatprep.subr.mxu0 0.0
          %1312 = vmatpush2.msra.mxu0 0.0
          %1313 = vmatprep.subr.mxu0 0.0
          %1314 = vmatpush2.msra.mxu0 0.0
          %1315 = vmatprep.subr.mxu0 0.0
          %1316 = vmatpush2.msra.mxu0 0.0
          %1317 = vmatprep.subr.mxu0 0.0
          %1318 = vmatpush2.msra.mxu0 0.0
          %1319 = vmatprep.subr.mxu0 0.0
          %1320 = vmatpush2.msra.mxu0 0.0
          %1321 = vmatprep.mubr.f32.mxu0 0.0
          %1322 = vmatmul.mubr.f32.gmra.mxu0 %v1095
          %v1323 = vpop.f32.mrf.mxu0
          %v1324 = vadd.f32 %v1219, %v1323
          %v1325 = vpop.f32.mrf.mxu0
          %1326 = vmatprep.mubr.f32.mxu0 0.0
          %1327 = vmatmul.mubr.f32.gmra.mxu0 %v1096
          %v1328 = vpop.f32.mrf.mxu0
          %v1329 = vadd.f32 %v1224, %v1328
          %v1330 = vpop.f32.mrf.mxu0
          %1331 = vmatprep.mubr.f32.mxu0 0.0
          %1332 = vmatmul.mubr.f32.gmra.mxu0 %v1097
          %v1333 = vpop.f32.mrf.mxu0
          %v1334 = vadd.f32 %v1229, %v1333
          %v1335 = vpop.f32.mrf.mxu0
          %1336 = vmatprep.mubr.f32.mxu0 0.0
          %1337 = vmatmul.mubr.f32.gmra.mxu0 %v1098
          %v1338 = vpop.f32.mrf.mxu0
          %v1339 = vadd.f32 %v1234, %v1338
          %v1340 = vpop.f32.mrf.mxu0
          %1341 = vmatprep.mubr.f32.mxu0 0.0
          %1342 = vmatmul.mubr.f32.gmra.mxu0 %v1099
          %v1343 = vpop.f32.mrf.mxu0
          %v1344 = vadd.f32 %v1239, %v1343
          %v1345 = vpop.f32.mrf.mxu0
          %1346 = vmatprep.mubr.f32.mxu0 0.0
          %1347 = vmatmul.mubr.f32.gmra.mxu0 %v1100
          %v1348 = vpop.f32.mrf.mxu0
          %v1349 = vadd.f32 %v1244, %v1348
          %v1350 = vpop.f32.mrf.mxu0
          %1351 = vmatprep.mubr.f32.mxu0 0.0
          %1352 = vmatmul.mubr.f32.gmra.mxu0 %v1101
          %v1353 = vpop.f32.mrf.mxu0
          %v1354 = vadd.f32 %v1249, %v1353
          %v1355 = vpop.f32.mrf.mxu0
          %1356 = vmatprep.mubr.f32.mxu0 0.0
          %1357 = vmatmul.mubr.f32.gmra.mxu0 %v1102
          %v1358 = vpop.f32.mrf.mxu0
          %v1359 = vadd.f32 %v1254, %v1358
          %v1360 = vpop.f32.mrf.mxu0
          %1361 = vdwg.mxu0
          %s1362 = sadd.s32 %s1084, 1
          %s1363 = smul.u32 %s1362, 72
          %s1364 = scalar_lea.vmem [#allocation2], %s1363
          %v1365 = vld [vmem:[%s1364] sm:$0xff]
          %v1366 = vld [vmem:[%s1364 + $0x8] sm:$0xff]
          %v1367 = vld [vmem:[%s1364 + $0x10] sm:$0xff]
          %v1368 = vld [vmem:[%s1364 + $0x18] sm:$0xff]
          %v1369 = vld [vmem:[%s1364 + $0x20] sm:$0xff]
          %v1370 = vld [vmem:[%s1364 + $0x28] sm:$0xff]
          %v1371 = vld [vmem:[%s1364 + $0x30] sm:$0xff]
          %v1372 = vld [vmem:[%s1364 + $0x38] sm:$0xff]
          %v1373 = vld [vmem:[%s1364 + $0x1] sm:$0xff]
          %v1374 = vld [vmem:[%s1364 + $0x9] sm:$0xff]
          %v1375 = vld [vmem:[%s1364 + $0x11] sm:$0xff]
          %v1376 = vld [vmem:[%s1364 + $0x19] sm:$0xff]
          %v1377 = vld [vmem:[%s1364 + $0x21] sm:$0xff]
          %v1378 = vld [vmem:[%s1364 + $0x29] sm:$0xff]
          %v1379 = vld [vmem:[%s1364 + $0x31] sm:$0xff]
          %v1380 = vld [vmem:[%s1364 + $0x39] sm:$0xff]
          %v1381 = vld [vmem:[%s1364 + $0x2] sm:$0xff]
          %v1382 = vld [vmem:[%s1364 + $0xa] sm:$0xff]
          %v1383 = vld [vmem:[%s1364 + $0x12] sm:$0xff]
          %v1384 = vld [vmem:[%s1364 + $0x1a] sm:$0xff]
          %v1385 = vld [vmem:[%s1364 + $0x22] sm:$0xff]
          %v1386 = vld [vmem:[%s1364 + $0x2a] sm:$0xff]
          %v1387 = vld [vmem:[%s1364 + $0x32] sm:$0xff]
          %v1388 = vld [vmem:[%s1364 + $0x3a] sm:$0xff]
          %v1389 = vsel %vm1040, %v1381, %v1365
          %v1390 = vsel %vm1040, %v1382, %v1366
          %v1391 = vsel %vm1040, %v1383, %v1367
          %v1392 = vsel %vm1040, %v1384, %v1368
          %v1393 = vsel %vm1040, %v1385, %v1369
          %v1394 = vsel %vm1040, %v1386, %v1370
          %v1395 = vsel %vm1040, %v1387, %v1371
          %v1396 = vsel %vm1040, %v1388, %v1372
          %s1397 = scalar_lea.vmem %s2, 256
          %v1398 = vld [vmem:[%s1397] sm:$0xff]
          %v1399 = vld [vmem:[%s1397 + $0x8] sm:$0xff]
          %v1400 = vld [vmem:[%s1397 + $0x10] sm:$0xff]
          %v1401 = vld [vmem:[%s1397 + $0x18] sm:$0xff]
          %v1402 = vld [vmem:[%s1397 + $0x20] sm:$0xff]
          %v1403 = vld [vmem:[%s1397 + $0x28] sm:$0xff]
          %v1404 = vld [vmem:[%s1397 + $0x30] sm:$0xff]
          %v1405 = vld [vmem:[%s1397 + $0x38] sm:$0xff]
          %v1406 = vld [vmem:[%s1397 + $0x40] sm:$0xff]
          %v1407 = vld [vmem:[%s1397 + $0x48] sm:$0xff]
          %v1408 = vld [vmem:[%s1397 + $0x50] sm:$0xff]
          %v1409 = vld [vmem:[%s1397 + $0x58] sm:$0xff]
          %v1410 = vld [vmem:[%s1397 + $0x60] sm:$0xff]
          %v1411 = vld [vmem:[%s1397 + $0x68] sm:$0xff]
          %v1412 = vld [vmem:[%s1397 + $0x70] sm:$0xff]
          %v1413 = vld [vmem:[%s1397 + $0x78] sm:$0xff]
          %1414 = vmatprep.subr.mxu0 0.0
          %1415 = vmatpush1.msra.mxu0 %v1413
          %1416 = vmatprep.subr.mxu0 0.0
          %1417 = vmatpush1.msra.mxu0 %v1412
          %1418 = vmatprep.subr.mxu0 0.0
          %1419 = vmatpush1.msra.mxu0 %v1411
          %1420 = vmatprep.subr.mxu0 0.0
          %1421 = vmatpush1.msra.mxu0 %v1410
          %1422 = vmatprep.subr.mxu0 0.0
          %1423 = vmatpush1.msra.mxu0 %v1409
          %1424 = vmatprep.subr.mxu0 0.0
          %1425 = vmatpush1.msra.mxu0 %v1408
          %1426 = vmatprep.subr.mxu0 0.0
          %1427 = vmatpush1.msra.mxu0 %v1407
          %1428 = vmatprep.subr.mxu0 0.0
          %1429 = vmatpush1.msra.mxu0 %v1406
          %1430 = vmatprep.subr.mxu0 0.0
          %1431 = vmatpush1.msra.mxu0 %v1405
          %1432 = vmatprep.subr.mxu0 0.0
          %1433 = vmatpush1.msra.mxu0 %v1404
          %1434 = vmatprep.subr.mxu0 0.0
          %1435 = vmatpush1.msra.mxu0 %v1403
          %1436 = vmatprep.subr.mxu0 0.0
          %1437 = vmatpush1.msra.mxu0 %v1402
          %1438 = vmatprep.subr.mxu0 0.0
          %1439 = vmatpush1.msra.mxu0 %v1401
          %1440 = vmatprep.subr.mxu0 0.0
          %1441 = vmatpush1.msra.mxu0 %v1400
          %1442 = vmatprep.subr.mxu0 0.0
          %1443 = vmatpush1.msra.mxu0 %v1399
          %1444 = vmatprep.subr.mxu0 0.0
          %1445 = vmatpush1.msra.mxu0 %v1398
          %1446 = vmatprep.subr.mxu0 0.0
          %1447 = vmatpush2.msra.mxu0 0.0
          %1448 = vmatprep.subr.mxu0 0.0
          %1449 = vmatpush2.msra.mxu0 0.0
          %1450 = vmatprep.subr.mxu0 0.0
          %1451 = vmatpush2.msra.mxu0 0.0
          %1452 = vmatprep.subr.mxu0 0.0
          %1453 = vmatpush2.msra.mxu0 0.0
          %1454 = vmatprep.subr.mxu0 0.0
          %1455 = vmatpush2.msra.mxu0 0.0
          %1456 = vmatprep.subr.mxu0 0.0
          %1457 = vmatpush2.msra.mxu0 0.0
          %1458 = vmatprep.subr.mxu0 0.0
          %1459 = vmatpush2.msra.mxu0 0.0
          %1460 = vmatprep.subr.mxu0 0.0
          %1461 = vmatpush2.msra.mxu0 0.0
          %1462 = vmatprep.subr.mxu0 0.0
          %1463 = vmatpush2.msra.mxu0 0.0
          %1464 = vmatprep.subr.mxu0 0.0
          %1465 = vmatpush2.msra.mxu0 0.0
          %1466 = vmatprep.subr.mxu0 0.0
          %1467 = vmatpush2.msra.mxu0 0.0
          %1468 = vmatprep.subr.mxu0 0.0
          %1469 = vmatpush2.msra.mxu0 0.0
          %1470 = vmatprep.subr.mxu0 0.0
          %1471 = vmatpush2.msra.mxu0 0.0
          %1472 = vmatprep.subr.mxu0 0.0
          %1473 = vmatpush2.msra.mxu0 0.0
          %1474 = vmatprep.subr.mxu0 0.0
          %1475 = vmatpush2.msra.mxu0 0.0
          %1476 = vmatprep.subr.mxu0 0.0
          %1477 = vmatpush2.msra.mxu0 0.0
          %1478 = vmatprep.mubr.f32.mxu0 0.0
          %1479 = vmatmul.mubr.f32.gmra.mxu0 %v1373
          %v1480 = vpop.f32.mrf.mxu0
          %v1481 = vadd.f32 0.0, %v1480
          %v1482 = vpop.f32.mrf.mxu0
          %1483 = vmatprep.mubr.f32.mxu0 0.0
          %1484 = vmatmul.mubr.f32.gmra.mxu0 %v1374
          %v1485 = vpop.f32.mrf.mxu0
          %v1486 = vadd.f32 0.0, %v1485
          %v1487 = vpop.f32.mrf.mxu0
          %1488 = vmatprep.mubr.f32.mxu0 0.0
          %1489 = vmatmul.mubr.f32.gmra.mxu0 %v1375
          %v1490 = vpop.f32.mrf.mxu0
          %v1491 = vadd.f32 0.0, %v1490
          %v1492 = vpop.f32.mrf.mxu0
          %1493 = vmatprep.mubr.f32.mxu0 0.0
          %1494 = vmatmul.mubr.f32.gmra.mxu0 %v1376
          %v1495 = vpop.f32.mrf.mxu0
          %v1496 = vadd.f32 0.0, %v1495
          %v1497 = vpop.f32.mrf.mxu0
          %1498 = vmatprep.mubr.f32.mxu0 0.0
          %1499 = vmatmul.mubr.f32.gmra.mxu0 %v1377
          %v1500 = vpop.f32.mrf.mxu0
          %v1501 = vadd.f32 0.0, %v1500
          %v1502 = vpop.f32.mrf.mxu0
          %1503 = vmatprep.mubr.f32.mxu0 0.0
          %1504 = vmatmul.mubr.f32.gmra.mxu0 %v1378
          %v1505 = vpop.f32.mrf.mxu0
          %v1506 = vadd.f32 0.0, %v1505
          %v1507 = vpop.f32.mrf.mxu0
          %1508 = vmatprep.mubr.f32.mxu0 0.0
          %1509 = vmatmul.mubr.f32.gmra.mxu0 %v1379
          %v1510 = vpop.f32.mrf.mxu0
          %v1511 = vadd.f32 0.0, %v1510
          %v1512 = vpop.f32.mrf.mxu0
          %1513 = vmatprep.mubr.f32.mxu0 0.0
          %1514 = vmatmul.mubr.f32.gmra.mxu0 %v1380
          %v1515 = vpop.f32.mrf.mxu0
          %v1516 = vadd.f32 0.0, %v1515
          %v1517 = vpop.f32.mrf.mxu0
          %1518 = vdwg.mxu0
          %v1519 = vadd.f32 %v1324, %v1481
          %v1520 = vadd.f32 %v1329, %v1486
          %v1521 = vadd.f32 %v1334, %v1491
          %v1522 = vadd.f32 %v1339, %v1496
          %v1523 = vadd.f32 %v1344, %v1501
          %v1524 = vadd.f32 %v1349, %v1506
          %v1525 = vadd.f32 %v1354, %v1511
          %v1526 = vadd.f32 %v1359, %v1516
          %s1527 = scalar_lea.vmem %s2, 384
          %v1528 = vld [vmem:[%s1527] sm:$0xff]
          %v1529 = vld [vmem:[%s1527 + $0x8] sm:$0xff]
          %v1530 = vld [vmem:[%s1527 + $0x10] sm:$0xff]
          %v1531 = vld [vmem:[%s1527 + $0x18] sm:$0xff]
          %v1532 = vld [vmem:[%s1527 + $0x20] sm:$0xff]
          %v1533 = vld [vmem:[%s1527 + $0x28] sm:$0xff]
          %v1534 = vld [vmem:[%s1527 + $0x30] sm:$0xff]
          %v1535 = vld [vmem:[%s1527 + $0x38] sm:$0xff]
          %v1536 = vld [vmem:[%s1527 + $0x40] sm:$0xff]
          %v1537 = vld [vmem:[%s1527 + $0x48] sm:$0xff]
          %v1538 = vld [vmem:[%s1527 + $0x50] sm:$0xff]
          %v1539 = vld [vmem:[%s1527 + $0x58] sm:$0xff]
          %v1540 = vld [vmem:[%s1527 + $0x60] sm:$0xff]
          %v1541 = vld [vmem:[%s1527 + $0x68] sm:$0xff]
          %v1542 = vld [vmem:[%s1527 + $0x70] sm:$0xff]
          %v1543 = vld [vmem:[%s1527 + $0x78] sm:$0xff]
          %1544 = vmatprep.subr.mxu0 0.0
          %1545 = vmatpush1.msra.mxu0 %v1543
          %1546 = vmatprep.subr.mxu0 0.0
          %1547 = vmatpush1.msra.mxu0 %v1542
          %1548 = vmatprep.subr.mxu0 0.0
          %1549 = vmatpush1.msra.mxu0 %v1541
          %1550 = vmatprep.subr.mxu0 0.0
          %1551 = vmatpush1.msra.mxu0 %v1540
          %1552 = vmatprep.subr.mxu0 0.0
          %1553 = vmatpush1.msra.mxu0 %v1539
          %1554 = vmatprep.subr.mxu0 0.0
          %1555 = vmatpush1.msra.mxu0 %v1538
          %1556 = vmatprep.subr.mxu0 0.0
          %1557 = vmatpush1.msra.mxu0 %v1537
          %1558 = vmatprep.subr.mxu0 0.0
          %1559 = vmatpush1.msra.mxu0 %v1536
          %1560 = vmatprep.subr.mxu0 0.0
          %1561 = vmatpush1.msra.mxu0 %v1535
          %1562 = vmatprep.subr.mxu0 0.0
          %1563 = vmatpush1.msra.mxu0 %v1534
          %1564 = vmatprep.subr.mxu0 0.0
          %1565 = vmatpush1.msra.mxu0 %v1533
          %1566 = vmatprep.subr.mxu0 0.0
          %1567 = vmatpush1.msra.mxu0 %v1532
          %1568 = vmatprep.subr.mxu0 0.0
          %1569 = vmatpush1.msra.mxu0 %v1531
          %1570 = vmatprep.subr.mxu0 0.0
          %1571 = vmatpush1.msra.mxu0 %v1530
          %1572 = vmatprep.subr.mxu0 0.0
          %1573 = vmatpush1.msra.mxu0 %v1529
          %1574 = vmatprep.subr.mxu0 0.0
          %1575 = vmatpush1.msra.mxu0 %v1528
          %1576 = vmatprep.subr.mxu0 0.0
          %1577 = vmatpush2.msra.mxu0 0.0
          %1578 = vmatprep.subr.mxu0 0.0
          %1579 = vmatpush2.msra.mxu0 0.0
          %1580 = vmatprep.subr.mxu0 0.0
          %1581 = vmatpush2.msra.mxu0 0.0
          %1582 = vmatprep.subr.mxu0 0.0
          %1583 = vmatpush2.msra.mxu0 0.0
          %1584 = vmatprep.subr.mxu0 0.0
          %1585 = vmatpush2.msra.mxu0 0.0
          %1586 = vmatprep.subr.mxu0 0.0
          %1587 = vmatpush2.msra.mxu0 0.0
          %1588 = vmatprep.subr.mxu0 0.0
          %1589 = vmatpush2.msra.mxu0 0.0
          %1590 = vmatprep.subr.mxu0 0.0
          %1591 = vmatpush2.msra.mxu0 0.0
          %1592 = vmatprep.subr.mxu0 0.0
          %1593 = vmatpush2.msra.mxu0 0.0
          %1594 = vmatprep.subr.mxu0 0.0
          %1595 = vmatpush2.msra.mxu0 0.0
          %1596 = vmatprep.subr.mxu0 0.0
          %1597 = vmatpush2.msra.mxu0 0.0
          %1598 = vmatprep.subr.mxu0 0.0
          %1599 = vmatpush2.msra.mxu0 0.0
          %1600 = vmatprep.subr.mxu0 0.0
          %1601 = vmatpush2.msra.mxu0 0.0
          %1602 = vmatprep.subr.mxu0 0.0
          %1603 = vmatpush2.msra.mxu0 0.0
          %1604 = vmatprep.subr.mxu0 0.0
          %1605 = vmatpush2.msra.mxu0 0.0
          %1606 = vmatprep.subr.mxu0 0.0
          %1607 = vmatpush2.msra.mxu0 0.0
          %1608 = vmatprep.mubr.f32.mxu0 0.0
          %1609 = vmatmul.mubr.f32.gmra.mxu0 %v1389
          %v1610 = vpop.f32.mrf.mxu0
          %v1611 = vadd.f32 0.0, %v1610
          %v1612 = vpop.f32.mrf.mxu0
          %1613 = vmatprep.mubr.f32.mxu0 0.0
          %1614 = vmatmul.mubr.f32.gmra.mxu0 %v1390
          %v1615 = vpop.f32.mrf.mxu0
          %v1616 = vadd.f32 0.0, %v1615
          %v1617 = vpop.f32.mrf.mxu0
          %1618 = vmatprep.mubr.f32.mxu0 0.0
          %1619 = vmatmul.mubr.f32.gmra.mxu0 %v1391
          %v1620 = vpop.f32.mrf.mxu0
          %v1621 = vadd.f32 0.0, %v1620
          %v1622 = vpop.f32.mrf.mxu0
          %1623 = vmatprep.mubr.f32.mxu0 0.0
          %1624 = vmatmul.mubr.f32.gmra.mxu0 %v1392
          %v1625 = vpop.f32.mrf.mxu0
          %v1626 = vadd.f32 0.0, %v1625
          %v1627 = vpop.f32.mrf.mxu0
          %1628 = vmatprep.mubr.f32.mxu0 0.0
          %1629 = vmatmul.mubr.f32.gmra.mxu0 %v1393
          %v1630 = vpop.f32.mrf.mxu0
          %v1631 = vadd.f32 0.0, %v1630
          %v1632 = vpop.f32.mrf.mxu0
          %1633 = vmatprep.mubr.f32.mxu0 0.0
          %1634 = vmatmul.mubr.f32.gmra.mxu0 %v1394
          %v1635 = vpop.f32.mrf.mxu0
          %v1636 = vadd.f32 0.0, %v1635
          %v1637 = vpop.f32.mrf.mxu0
          %1638 = vmatprep.mubr.f32.mxu0 0.0
          %1639 = vmatmul.mubr.f32.gmra.mxu0 %v1395
          %v1640 = vpop.f32.mrf.mxu0
          %v1641 = vadd.f32 0.0, %v1640
          %v1642 = vpop.f32.mrf.mxu0
          %1643 = vmatprep.mubr.f32.mxu0 0.0
          %1644 = vmatmul.mubr.f32.gmra.mxu0 %v1396
          %v1645 = vpop.f32.mrf.mxu0
          %v1646 = vadd.f32 0.0, %v1645
          %v1647 = vpop.f32.mrf.mxu0
          %1648 = vdwg.mxu0
          %v1649 = vadd.f32 %v1519, %v1611
          %v1650 = vadd.f32 %v1520, %v1616
          %v1651 = vadd.f32 %v1521, %v1621
          %v1652 = vadd.f32 %v1522, %v1626
          %v1653 = vadd.f32 %v1523, %v1631
          %v1654 = vadd.f32 %v1524, %v1636
          %v1655 = vadd.f32 %v1525, %v1641
          %v1656 = vadd.f32 %v1526, %v1646
          %s1657 = sadd.s32 %s1084, 2
          %s1658 = smul.u32 %s1657, 72
          %s1659 = scalar_lea.vmem [#allocation2], %s1658
          %v1660 = vld [vmem:[%s1659] sm:$0xff]
          %v1661 = vld [vmem:[%s1659 + $0x8] sm:$0xff]
          %v1662 = vld [vmem:[%s1659 + $0x10] sm:$0xff]
          %v1663 = vld [vmem:[%s1659 + $0x18] sm:$0xff]
          %v1664 = vld [vmem:[%s1659 + $0x20] sm:$0xff]
          %v1665 = vld [vmem:[%s1659 + $0x28] sm:$0xff]
          %v1666 = vld [vmem:[%s1659 + $0x30] sm:$0xff]
          %v1667 = vld [vmem:[%s1659 + $0x38] sm:$0xff]
          %v1668 = vld [vmem:[%s1659 + $0x1] sm:$0xff]
          %v1669 = vld [vmem:[%s1659 + $0x9] sm:$0xff]
          %v1670 = vld [vmem:[%s1659 + $0x11] sm:$0xff]
          %v1671 = vld [vmem:[%s1659 + $0x19] sm:$0xff]
          %v1672 = vld [vmem:[%s1659 + $0x21] sm:$0xff]
          %v1673 = vld [vmem:[%s1659 + $0x29] sm:$0xff]
          %v1674 = vld [vmem:[%s1659 + $0x31] sm:$0xff]
          %v1675 = vld [vmem:[%s1659 + $0x39] sm:$0xff]
          %v1676 = vld [vmem:[%s1659 + $0x2] sm:$0xff]
          %v1677 = vld [vmem:[%s1659 + $0xa] sm:$0xff]
          %v1678 = vld [vmem:[%s1659 + $0x12] sm:$0xff]
          %v1679 = vld [vmem:[%s1659 + $0x1a] sm:$0xff]
          %v1680 = vld [vmem:[%s1659 + $0x22] sm:$0xff]
          %v1681 = vld [vmem:[%s1659 + $0x2a] sm:$0xff]
          %v1682 = vld [vmem:[%s1659 + $0x32] sm:$0xff]
          %v1683 = vld [vmem:[%s1659 + $0x3a] sm:$0xff]
          %v1684 = vsel %vm1040, %v1676, %v1660
          %v1685 = vsel %vm1040, %v1677, %v1661
          %v1686 = vsel %vm1040, %v1678, %v1662
          %v1687 = vsel %vm1040, %v1679, %v1663
          %v1688 = vsel %vm1040, %v1680, %v1664
          %v1689 = vsel %vm1040, %v1681, %v1665
          %v1690 = vsel %vm1040, %v1682, %v1666
          %v1691 = vsel %vm1040, %v1683, %v1667
          %s1692 = scalar_lea.vmem %s2, 512
          %v1693 = vld [vmem:[%s1692] sm:$0xff]
          %v1694 = vld [vmem:[%s1692 + $0x8] sm:$0xff]
          %v1695 = vld [vmem:[%s1692 + $0x10] sm:$0xff]
          %v1696 = vld [vmem:[%s1692 + $0x18] sm:$0xff]
          %v1697 = vld [vmem:[%s1692 + $0x20] sm:$0xff]
          %v1698 = vld [vmem:[%s1692 + $0x28] sm:$0xff]
          %v1699 = vld [vmem:[%s1692 + $0x30] sm:$0xff]
          %v1700 = vld [vmem:[%s1692 + $0x38] sm:$0xff]
          %v1701 = vld [vmem:[%s1692 + $0x40] sm:$0xff]
          %v1702 = vld [vmem:[%s1692 + $0x48] sm:$0xff]
          %v1703 = vld [vmem:[%s1692 + $0x50] sm:$0xff]
          %v1704 = vld [vmem:[%s1692 + $0x58] sm:$0xff]
          %v1705 = vld [vmem:[%s1692 + $0x60] sm:$0xff]
          %v1706 = vld [vmem:[%s1692 + $0x68] sm:$0xff]
          %v1707 = vld [vmem:[%s1692 + $0x70] sm:$0xff]
          %v1708 = vld [vmem:[%s1692 + $0x78] sm:$0xff]
          %1709 = vmatprep.subr.mxu0 0.0
          %1710 = vmatpush1.msra.mxu0 %v1708
          %1711 = vmatprep.subr.mxu0 0.0
          %1712 = vmatpush1.msra.mxu0 %v1707
          %1713 = vmatprep.subr.mxu0 0.0
          %1714 = vmatpush1.msra.mxu0 %v1706
          %1715 = vmatprep.subr.mxu0 0.0
          %1716 = vmatpush1.msra.mxu0 %v1705
          %1717 = vmatprep.subr.mxu0 0.0
          %1718 = vmatpush1.msra.mxu0 %v1704
          %1719 = vmatprep.subr.mxu0 0.0
          %1720 = vmatpush1.msra.mxu0 %v1703
          %1721 = vmatprep.subr.mxu0 0.0
          %1722 = vmatpush1.msra.mxu0 %v1702
          %1723 = vmatprep.subr.mxu0 0.0
          %1724 = vmatpush1.msra.mxu0 %v1701
          %1725 = vmatprep.subr.mxu0 0.0
          %1726 = vmatpush1.msra.mxu0 %v1700
          %1727 = vmatprep.subr.mxu0 0.0
          %1728 = vmatpush1.msra.mxu0 %v1699
          %1729 = vmatprep.subr.mxu0 0.0
          %1730 = vmatpush1.msra.mxu0 %v1698
          %1731 = vmatprep.subr.mxu0 0.0
          %1732 = vmatpush1.msra.mxu0 %v1697
          %1733 = vmatprep.subr.mxu0 0.0
          %1734 = vmatpush1.msra.mxu0 %v1696
          %1735 = vmatprep.subr.mxu0 0.0
          %1736 = vmatpush1.msra.mxu0 %v1695
          %1737 = vmatprep.subr.mxu0 0.0
          %1738 = vmatpush1.msra.mxu0 %v1694
          %1739 = vmatprep.subr.mxu0 0.0
          %1740 = vmatpush1.msra.mxu0 %v1693
          %1741 = vmatprep.subr.mxu0 0.0
          %1742 = vmatpush2.msra.mxu0 0.0
          %1743 = vmatprep.subr.mxu0 0.0
          %1744 = vmatpush2.msra.mxu0 0.0
          %1745 = vmatprep.subr.mxu0 0.0
          %1746 = vmatpush2.msra.mxu0 0.0
          %1747 = vmatprep.subr.mxu0 0.0
          %1748 = vmatpush2.msra.mxu0 0.0
          %1749 = vmatprep.subr.mxu0 0.0
          %1750 = vmatpush2.msra.mxu0 0.0
          %1751 = vmatprep.subr.mxu0 0.0
          %1752 = vmatpush2.msra.mxu0 0.0
          %1753 = vmatprep.subr.mxu0 0.0
          %1754 = vmatpush2.msra.mxu0 0.0
          %1755 = vmatprep.subr.mxu0 0.0
          %1756 = vmatpush2.msra.mxu0 0.0
          %1757 = vmatprep.subr.mxu0 0.0
          %1758 = vmatpush2.msra.mxu0 0.0
          %1759 = vmatprep.subr.mxu0 0.0
          %1760 = vmatpush2.msra.mxu0 0.0
          %1761 = vmatprep.subr.mxu0 0.0
          %1762 = vmatpush2.msra.mxu0 0.0
          %1763 = vmatprep.subr.mxu0 0.0
          %1764 = vmatpush2.msra.mxu0 0.0
          %1765 = vmatprep.subr.mxu0 0.0
          %1766 = vmatpush2.msra.mxu0 0.0
          %1767 = vmatprep.subr.mxu0 0.0
          %1768 = vmatpush2.msra.mxu0 0.0
          %1769 = vmatprep.subr.mxu0 0.0
          %1770 = vmatpush2.msra.mxu0 0.0
          %1771 = vmatprep.subr.mxu0 0.0
          %1772 = vmatpush2.msra.mxu0 0.0
          %1773 = vmatprep.mubr.f32.mxu0 0.0
          %1774 = vmatmul.mubr.f32.gmra.mxu0 %v1668
          %v1775 = vpop.f32.mrf.mxu0
          %v1776 = vadd.f32 0.0, %v1775
          %v1777 = vpop.f32.mrf.mxu0
          %1778 = vmatprep.mubr.f32.mxu0 0.0
          %1779 = vmatmul.mubr.f32.gmra.mxu0 %v1669
          %v1780 = vpop.f32.mrf.mxu0
          %v1781 = vadd.f32 0.0, %v1780
          %v1782 = vpop.f32.mrf.mxu0
          %1783 = vmatprep.mubr.f32.mxu0 0.0
          %1784 = vmatmul.mubr.f32.gmra.mxu0 %v1670
          %v1785 = vpop.f32.mrf.mxu0
          %v1786 = vadd.f32 0.0, %v1785
          %v1787 = vpop.f32.mrf.mxu0
          %1788 = vmatprep.mubr.f32.mxu0 0.0
          %1789 = vmatmul.mubr.f32.gmra.mxu0 %v1671
          %v1790 = vpop.f32.mrf.mxu0
          %v1791 = vadd.f32 0.0, %v1790
          %v1792 = vpop.f32.mrf.mxu0
          %1793 = vmatprep.mubr.f32.mxu0 0.0
          %1794 = vmatmul.mubr.f32.gmra.mxu0 %v1672
          %v1795 = vpop.f32.mrf.mxu0
          %v1796 = vadd.f32 0.0, %v1795
          %v1797 = vpop.f32.mrf.mxu0
          %1798 = vmatprep.mubr.f32.mxu0 0.0
          %1799 = vmatmul.mubr.f32.gmra.mxu0 %v1673
          %v1800 = vpop.f32.mrf.mxu0
          %v1801 = vadd.f32 0.0, %v1800
          %v1802 = vpop.f32.mrf.mxu0
          %1803 = vmatprep.mubr.f32.mxu0 0.0
          %1804 = vmatmul.mubr.f32.gmra.mxu0 %v1674
          %v1805 = vpop.f32.mrf.mxu0
          %v1806 = vadd.f32 0.0, %v1805
          %v1807 = vpop.f32.mrf.mxu0
          %1808 = vmatprep.mubr.f32.mxu0 0.0
          %1809 = vmatmul.mubr.f32.gmra.mxu0 %v1675
          %v1810 = vpop.f32.mrf.mxu0
          %v1811 = vadd.f32 0.0, %v1810
          %v1812 = vpop.f32.mrf.mxu0
          %1813 = vdwg.mxu0
          %v1814 = vadd.f32 %v1649, %v1776
          %v1815 = vadd.f32 %v1650, %v1781
          %v1816 = vadd.f32 %v1651, %v1786
          %v1817 = vadd.f32 %v1652, %v1791
          %v1818 = vadd.f32 %v1653, %v1796
          %v1819 = vadd.f32 %v1654, %v1801
          %v1820 = vadd.f32 %v1655, %v1806
          %v1821 = vadd.f32 %v1656, %v1811
          %s1822 = scalar_lea.vmem %s2, 640
          %v1823 = vld [vmem:[%s1822] sm:$0xff]
          %v1824 = vld [vmem:[%s1822 + $0x8] sm:$0xff]
          %v1825 = vld [vmem:[%s1822 + $0x10] sm:$0xff]
          %v1826 = vld [vmem:[%s1822 + $0x18] sm:$0xff]
          %v1827 = vld [vmem:[%s1822 + $0x20] sm:$0xff]
          %v1828 = vld [vmem:[%s1822 + $0x28] sm:$0xff]
          %v1829 = vld [vmem:[%s1822 + $0x30] sm:$0xff]
          %v1830 = vld [vmem:[%s1822 + $0x38] sm:$0xff]
          %v1831 = vld [vmem:[%s1822 + $0x40] sm:$0xff]
          %v1832 = vld [vmem:[%s1822 + $0x48] sm:$0xff]
          %v1833 = vld [vmem:[%s1822 + $0x50] sm:$0xff]
          %v1834 = vld [vmem:[%s1822 + $0x58] sm:$0xff]
          %v1835 = vld [vmem:[%s1822 + $0x60] sm:$0xff]
          %v1836 = vld [vmem:[%s1822 + $0x68] sm:$0xff]
          %v1837 = vld [vmem:[%s1822 + $0x70] sm:$0xff]
          %v1838 = vld [vmem:[%s1822 + $0x78] sm:$0xff]
          %1839 = vmatprep.subr.mxu0 0.0
          %1840 = vmatpush1.msra.mxu0 %v1838
          %1841 = vmatprep.subr.mxu0 0.0
          %1842 = vmatpush1.msra.mxu0 %v1837
          %1843 = vmatprep.subr.mxu0 0.0
          %1844 = vmatpush1.msra.mxu0 %v1836
          %1845 = vmatprep.subr.mxu0 0.0
          %1846 = vmatpush1.msra.mxu0 %v1835
          %1847 = vmatprep.subr.mxu0 0.0
          %1848 = vmatpush1.msra.mxu0 %v1834
          %1849 = vmatprep.subr.mxu0 0.0
          %1850 = vmatpush1.msra.mxu0 %v1833
          %1851 = vmatprep.subr.mxu0 0.0
          %1852 = vmatpush1.msra.mxu0 %v1832
          %1853 = vmatprep.subr.mxu0 0.0
          %1854 = vmatpush1.msra.mxu0 %v1831
          %1855 = vmatprep.subr.mxu0 0.0
          %1856 = vmatpush1.msra.mxu0 %v1830
          %1857 = vmatprep.subr.mxu0 0.0
          %1858 = vmatpush1.msra.mxu0 %v1829
          %1859 = vmatprep.subr.mxu0 0.0
          %1860 = vmatpush1.msra.mxu0 %v1828
          %1861 = vmatprep.subr.mxu0 0.0
          %1862 = vmatpush1.msra.mxu0 %v1827
          %1863 = vmatprep.subr.mxu0 0.0
          %1864 = vmatpush1.msra.mxu0 %v1826
          %1865 = vmatprep.subr.mxu0 0.0
          %1866 = vmatpush1.msra.mxu0 %v1825
          %1867 = vmatprep.subr.mxu0 0.0
          %1868 = vmatpush1.msra.mxu0 %v1824
          %1869 = vmatprep.subr.mxu0 0.0
          %1870 = vmatpush1.msra.mxu0 %v1823
          %1871 = vmatprep.subr.mxu0 0.0
          %1872 = vmatpush2.msra.mxu0 0.0
          %1873 = vmatprep.subr.mxu0 0.0
          %1874 = vmatpush2.msra.mxu0 0.0
          %1875 = vmatprep.subr.mxu0 0.0
          %1876 = vmatpush2.msra.mxu0 0.0
          %1877 = vmatprep.subr.mxu0 0.0
          %1878 = vmatpush2.msra.mxu0 0.0
          %1879 = vmatprep.subr.mxu0 0.0
          %1880 = vmatpush2.msra.mxu0 0.0
          %1881 = vmatprep.subr.mxu0 0.0
          %1882 = vmatpush2.msra.mxu0 0.0
          %1883 = vmatprep.subr.mxu0 0.0
          %1884 = vmatpush2.msra.mxu0 0.0
          %1885 = vmatprep.subr.mxu0 0.0
          %1886 = vmatpush2.msra.mxu0 0.0
          %1887 = vmatprep.subr.mxu0 0.0
          %1888 = vmatpush2.msra.mxu0 0.0
          %1889 = vmatprep.subr.mxu0 0.0
          %1890 = vmatpush2.msra.mxu0 0.0
          %1891 = vmatprep.subr.mxu0 0.0
          %1892 = vmatpush2.msra.mxu0 0.0
          %1893 = vmatprep.subr.mxu0 0.0
          %1894 = vmatpush2.msra.mxu0 0.0
          %1895 = vmatprep.subr.mxu0 0.0
          %1896 = vmatpush2.msra.mxu0 0.0
          %1897 = vmatprep.subr.mxu0 0.0
          %1898 = vmatpush2.msra.mxu0 0.0
          %1899 = vmatprep.subr.mxu0 0.0
          %1900 = vmatpush2.msra.mxu0 0.0
          %1901 = vmatprep.subr.mxu0 0.0
          %1902 = vmatpush2.msra.mxu0 0.0
          %1903 = vmatprep.mubr.f32.mxu0 0.0
          %1904 = vmatmul.mubr.f32.gmra.mxu0 %v1684
          %v1905 = vpop.f32.mrf.mxu0
          %v1906 = vadd.f32 0.0, %v1905
          %v1907 = vpop.f32.mrf.mxu0
          %1908 = vmatprep.mubr.f32.mxu0 0.0
          %1909 = vmatmul.mubr.f32.gmra.mxu0 %v1685
          %v1910 = vpop.f32.mrf.mxu0
          %v1911 = vadd.f32 0.0, %v1910
          %v1912 = vpop.f32.mrf.mxu0
          %1913 = vmatprep.mubr.f32.mxu0 0.0
          %1914 = vmatmul.mubr.f32.gmra.mxu0 %v1686
          %v1915 = vpop.f32.mrf.mxu0
          %v1916 = vadd.f32 0.0, %v1915
          %v1917 = vpop.f32.mrf.mxu0
          %1918 = vmatprep.mubr.f32.mxu0 0.0
          %1919 = vmatmul.mubr.f32.gmra.mxu0 %v1687
          %v1920 = vpop.f32.mrf.mxu0
          %v1921 = vadd.f32 0.0, %v1920
          %v1922 = vpop.f32.mrf.mxu0
          %1923 = vmatprep.mubr.f32.mxu0 0.0
          %1924 = vmatmul.mubr.f32.gmra.mxu0 %v1688
          %v1925 = vpop.f32.mrf.mxu0
          %v1926 = vadd.f32 0.0, %v1925
          %v1927 = vpop.f32.mrf.mxu0
          %1928 = vmatprep.mubr.f32.mxu0 0.0
          %1929 = vmatmul.mubr.f32.gmra.mxu0 %v1689
          %v1930 = vpop.f32.mrf.mxu0
          %v1931 = vadd.f32 0.0, %v1930
          %v1932 = vpop.f32.mrf.mxu0
          %1933 = vmatprep.mubr.f32.mxu0 0.0
          %1934 = vmatmul.mubr.f32.gmra.mxu0 %v1690
          %v1935 = vpop.f32.mrf.mxu0
          %v1936 = vadd.f32 0.0, %v1935
          %v1937 = vpop.f32.mrf.mxu0
          %1938 = vmatprep.mubr.f32.mxu0 0.0
          %1939 = vmatmul.mubr.f32.gmra.mxu0 %v1691
          %v1940 = vpop.f32.mrf.mxu0
          %v1941 = vadd.f32 0.0, %v1940
          %v1942 = vpop.f32.mrf.mxu0
          %1943 = vdwg.mxu0
          %v1944 = vadd.f32 %v1814, %v1906
          %v1945 = vadd.f32 %v1815, %v1911
          %v1946 = vadd.f32 %v1816, %v1916
          %v1947 = vadd.f32 %v1817, %v1921
          %v1948 = vadd.f32 %v1818, %v1926
          %v1949 = vadd.f32 %v1819, %v1931
          %v1950 = vadd.f32 %v1820, %v1936
          %v1951 = vadd.f32 %v1821, %v1941
          %s1952 = sadd.s32 %s1084, 3
          %s1953 = smul.u32 %s1952, 72
          %s1954 = scalar_lea.vmem [#allocation2], %s1953
          %v1955 = vld [vmem:[%s1954] sm:$0xff]
          %v1956 = vld [vmem:[%s1954 + $0x8] sm:$0xff]
          %v1957 = vld [vmem:[%s1954 + $0x10] sm:$0xff]
          %v1958 = vld [vmem:[%s1954 + $0x18] sm:$0xff]
          %v1959 = vld [vmem:[%s1954 + $0x20] sm:$0xff]
          %v1960 = vld [vmem:[%s1954 + $0x28] sm:$0xff]
          %v1961 = vld [vmem:[%s1954 + $0x30] sm:$0xff]
          %v1962 = vld [vmem:[%s1954 + $0x38] sm:$0xff]
          %v1963 = vld [vmem:[%s1954 + $0x1] sm:$0xff]
          %v1964 = vld [vmem:[%s1954 + $0x9] sm:$0xff]
          %v1965 = vld [vmem:[%s1954 + $0x11] sm:$0xff]
          %v1966 = vld [vmem:[%s1954 + $0x19] sm:$0xff]
          %v1967 = vld [vmem:[%s1954 + $0x21] sm:$0xff]
          %v1968 = vld [vmem:[%s1954 + $0x29] sm:$0xff]
          %v1969 = vld [vmem:[%s1954 + $0x31] sm:$0xff]
          %v1970 = vld [vmem:[%s1954 + $0x39] sm:$0xff]
          %v1971 = vld [vmem:[%s1954 + $0x2] sm:$0xff]
          %v1972 = vld [vmem:[%s1954 + $0xa] sm:$0xff]
          %v1973 = vld [vmem:[%s1954 + $0x12] sm:$0xff]
          %v1974 = vld [vmem:[%s1954 + $0x1a] sm:$0xff]
          %v1975 = vld [vmem:[%s1954 + $0x22] sm:$0xff]
          %v1976 = vld [vmem:[%s1954 + $0x2a] sm:$0xff]
          %v1977 = vld [vmem:[%s1954 + $0x32] sm:$0xff]
          %v1978 = vld [vmem:[%s1954 + $0x3a] sm:$0xff]
          %v1979 = vsel %vm1040, %v1971, %v1955
          %v1980 = vsel %vm1040, %v1972, %v1956
          %v1981 = vsel %vm1040, %v1973, %v1957
          %v1982 = vsel %vm1040, %v1974, %v1958
          %v1983 = vsel %vm1040, %v1975, %v1959
          %v1984 = vsel %vm1040, %v1976, %v1960
          %v1985 = vsel %vm1040, %v1977, %v1961
          %v1986 = vsel %vm1040, %v1978, %v1962
          %s1987 = scalar_lea.vmem %s2, 768
          %v1988 = vld [vmem:[%s1987] sm:$0xff]
          %v1989 = vld [vmem:[%s1987 + $0x8] sm:$0xff]
          %v1990 = vld [vmem:[%s1987 + $0x10] sm:$0xff]
          %v1991 = vld [vmem:[%s1987 + $0x18] sm:$0xff]
          %v1992 = vld [vmem:[%s1987 + $0x20] sm:$0xff]
          %v1993 = vld [vmem:[%s1987 + $0x28] sm:$0xff]
          %v1994 = vld [vmem:[%s1987 + $0x30] sm:$0xff]
          %v1995 = vld [vmem:[%s1987 + $0x38] sm:$0xff]
          %v1996 = vld [vmem:[%s1987 + $0x40] sm:$0xff]
          %v1997 = vld [vmem:[%s1987 + $0x48] sm:$0xff]
          %v1998 = vld [vmem:[%s1987 + $0x50] sm:$0xff]
          %v1999 = vld [vmem:[%s1987 + $0x58] sm:$0xff]
          %v2000 = vld [vmem:[%s1987 + $0x60] sm:$0xff]
          %v2001 = vld [vmem:[%s1987 + $0x68] sm:$0xff]
          %v2002 = vld [vmem:[%s1987 + $0x70] sm:$0xff]
          %v2003 = vld [vmem:[%s1987 + $0x78] sm:$0xff]
          %2004 = vmatprep.subr.mxu0 0.0
          %2005 = vmatpush1.msra.mxu0 %v2003
          %2006 = vmatprep.subr.mxu0 0.0
          %2007 = vmatpush1.msra.mxu0 %v2002
          %2008 = vmatprep.subr.mxu0 0.0
          %2009 = vmatpush1.msra.mxu0 %v2001
          %2010 = vmatprep.subr.mxu0 0.0
          %2011 = vmatpush1.msra.mxu0 %v2000
          %2012 = vmatprep.subr.mxu0 0.0
          %2013 = vmatpush1.msra.mxu0 %v1999
          %2014 = vmatprep.subr.mxu0 0.0
          %2015 = vmatpush1.msra.mxu0 %v1998
          %2016 = vmatprep.subr.mxu0 0.0
          %2017 = vmatpush1.msra.mxu0 %v1997
          %2018 = vmatprep.subr.mxu0 0.0
          %2019 = vmatpush1.msra.mxu0 %v1996
          %2020 = vmatprep.subr.mxu0 0.0
          %2021 = vmatpush1.msra.mxu0 %v1995
          %2022 = vmatprep.subr.mxu0 0.0
          %2023 = vmatpush1.msra.mxu0 %v1994
          %2024 = vmatprep.subr.mxu0 0.0
          %2025 = vmatpush1.msra.mxu0 %v1993
          %2026 = vmatprep.subr.mxu0 0.0
          %2027 = vmatpush1.msra.mxu0 %v1992
          %2028 = vmatprep.subr.mxu0 0.0
          %2029 = vmatpush1.msra.mxu0 %v1991
          %2030 = vmatprep.subr.mxu0 0.0
          %2031 = vmatpush1.msra.mxu0 %v1990
          %2032 = vmatprep.subr.mxu0 0.0
          %2033 = vmatpush1.msra.mxu0 %v1989
          %2034 = vmatprep.subr.mxu0 0.0
          %2035 = vmatpush1.msra.mxu0 %v1988
          %2036 = vmatprep.subr.mxu0 0.0
          %2037 = vmatpush2.msra.mxu0 0.0
          %2038 = vmatprep.subr.mxu0 0.0
          %2039 = vmatpush2.msra.mxu0 0.0
          %2040 = vmatprep.subr.mxu0 0.0
          %2041 = vmatpush2.msra.mxu0 0.0
          %2042 = vmatprep.subr.mxu0 0.0
          %2043 = vmatpush2.msra.mxu0 0.0
          %2044 = vmatprep.subr.mxu0 0.0
          %2045 = vmatpush2.msra.mxu0 0.0
          %2046 = vmatprep.subr.mxu0 0.0
          %2047 = vmatpush2.msra.mxu0 0.0
          %2048 = vmatprep.subr.mxu0 0.0
          %2049 = vmatpush2.msra.mxu0 0.0
          %2050 = vmatprep.subr.mxu0 0.0
          %2051 = vmatpush2.msra.mxu0 0.0
          %2052 = vmatprep.subr.mxu0 0.0
          %2053 = vmatpush2.msra.mxu0 0.0
          %2054 = vmatprep.subr.mxu0 0.0
          %2055 = vmatpush2.msra.mxu0 0.0
          %2056 = vmatprep.subr.mxu0 0.0
          %2057 = vmatpush2.msra.mxu0 0.0
          %2058 = vmatprep.subr.mxu0 0.0
          %2059 = vmatpush2.msra.mxu0 0.0
          %2060 = vmatprep.subr.mxu0 0.0
          %2061 = vmatpush2.msra.mxu0 0.0
          %2062 = vmatprep.subr.mxu0 0.0
          %2063 = vmatpush2.msra.mxu0 0.0
          %2064 = vmatprep.subr.mxu0 0.0
          %2065 = vmatpush2.msra.mxu0 0.0
          %2066 = vmatprep.subr.mxu0 0.0
          %2067 = vmatpush2.msra.mxu0 0.0
          %2068 = vmatprep.mubr.f32.mxu0 0.0
          %2069 = vmatmul.mubr.f32.gmra.mxu0 %v1963
          %v2070 = vpop.f32.mrf.mxu0
          %v2071 = vadd.f32 0.0, %v2070
          %v2072 = vpop.f32.mrf.mxu0
          %2073 = vmatprep.mubr.f32.mxu0 0.0
          %2074 = vmatmul.mubr.f32.gmra.mxu0 %v1964
          %v2075 = vpop.f32.mrf.mxu0
          %v2076 = vadd.f32 0.0, %v2075
          %v2077 = vpop.f32.mrf.mxu0
          %2078 = vmatprep.mubr.f32.mxu0 0.0
          %2079 = vmatmul.mubr.f32.gmra.mxu0 %v1965
          %v2080 = vpop.f32.mrf.mxu0
          %v2081 = vadd.f32 0.0, %v2080
          %v2082 = vpop.f32.mrf.mxu0
          %2083 = vmatprep.mubr.f32.mxu0 0.0
          %2084 = vmatmul.mubr.f32.gmra.mxu0 %v1966
          %v2085 = vpop.f32.mrf.mxu0
          %v2086 = vadd.f32 0.0, %v2085
          %v2087 = vpop.f32.mrf.mxu0
          %2088 = vmatprep.mubr.f32.mxu0 0.0
          %2089 = vmatmul.mubr.f32.gmra.mxu0 %v1967
          %v2090 = vpop.f32.mrf.mxu0
          %v2091 = vadd.f32 0.0, %v2090
          %v2092 = vpop.f32.mrf.mxu0
          %2093 = vmatprep.mubr.f32.mxu0 0.0
          %2094 = vmatmul.mubr.f32.gmra.mxu0 %v1968
          %v2095 = vpop.f32.mrf.mxu0
          %v2096 = vadd.f32 0.0, %v2095
          %v2097 = vpop.f32.mrf.mxu0
          %2098 = vmatprep.mubr.f32.mxu0 0.0
          %2099 = vmatmul.mubr.f32.gmra.mxu0 %v1969
          %v2100 = vpop.f32.mrf.mxu0
          %v2101 = vadd.f32 0.0, %v2100
          %v2102 = vpop.f32.mrf.mxu0
          %2103 = vmatprep.mubr.f32.mxu0 0.0
          %2104 = vmatmul.mubr.f32.gmra.mxu0 %v1970
          %v2105 = vpop.f32.mrf.mxu0
          %v2106 = vadd.f32 0.0, %v2105
          %v2107 = vpop.f32.mrf.mxu0
          %2108 = vdwg.mxu0
          %v2109 = vadd.f32 %v1944, %v2071
          %v2110 = vadd.f32 %v1945, %v2076
          %v2111 = vadd.f32 %v1946, %v2081
          %v2112 = vadd.f32 %v1947, %v2086
          %v2113 = vadd.f32 %v1948, %v2091
          %v2114 = vadd.f32 %v1949, %v2096
          %v2115 = vadd.f32 %v1950, %v2101
          %v2116 = vadd.f32 %v1951, %v2106
          %s2117 = scalar_lea.vmem %s2, 896
          %v2118 = vld [vmem:[%s2117] sm:$0xff]
          %v2119 = vld [vmem:[%s2117 + $0x8] sm:$0xff]
          %v2120 = vld [vmem:[%s2117 + $0x10] sm:$0xff]
          %v2121 = vld [vmem:[%s2117 + $0x18] sm:$0xff]
          %v2122 = vld [vmem:[%s2117 + $0x20] sm:$0xff]
          %v2123 = vld [vmem:[%s2117 + $0x28] sm:$0xff]
          %v2124 = vld [vmem:[%s2117 + $0x30] sm:$0xff]
          %v2125 = vld [vmem:[%s2117 + $0x38] sm:$0xff]
          %v2126 = vld [vmem:[%s2117 + $0x40] sm:$0xff]
          %v2127 = vld [vmem:[%s2117 + $0x48] sm:$0xff]
          %v2128 = vld [vmem:[%s2117 + $0x50] sm:$0xff]
          %v2129 = vld [vmem:[%s2117 + $0x58] sm:$0xff]
          %v2130 = vld [vmem:[%s2117 + $0x60] sm:$0xff]
          %v2131 = vld [vmem:[%s2117 + $0x68] sm:$0xff]
          %v2132 = vld [vmem:[%s2117 + $0x70] sm:$0xff]
          %v2133 = vld [vmem:[%s2117 + $0x78] sm:$0xff]
          %2134 = vmatprep.subr.mxu0 0.0
          %2135 = vmatpush1.msra.mxu0 %v2133
          %2136 = vmatprep.subr.mxu0 0.0
          %2137 = vmatpush1.msra.mxu0 %v2132
          %2138 = vmatprep.subr.mxu0 0.0
          %2139 = vmatpush1.msra.mxu0 %v2131
          %2140 = vmatprep.subr.mxu0 0.0
          %2141 = vmatpush1.msra.mxu0 %v2130
          %2142 = vmatprep.subr.mxu0 0.0
          %2143 = vmatpush1.msra.mxu0 %v2129
          %2144 = vmatprep.subr.mxu0 0.0
          %2145 = vmatpush1.msra.mxu0 %v2128
          %2146 = vmatprep.subr.mxu0 0.0
          %2147 = vmatpush1.msra.mxu0 %v2127
          %2148 = vmatprep.subr.mxu0 0.0
          %2149 = vmatpush1.msra.mxu0 %v2126
          %2150 = vmatprep.subr.mxu0 0.0
          %2151 = vmatpush1.msra.mxu0 %v2125
          %2152 = vmatprep.subr.mxu0 0.0
          %2153 = vmatpush1.msra.mxu0 %v2124
          %2154 = vmatprep.subr.mxu0 0.0
          %2155 = vmatpush1.msra.mxu0 %v2123
          %2156 = vmatprep.subr.mxu0 0.0
          %2157 = vmatpush1.msra.mxu0 %v2122
          %2158 = vmatprep.subr.mxu0 0.0
          %2159 = vmatpush1.msra.mxu0 %v2121
          %2160 = vmatprep.subr.mxu0 0.0
          %2161 = vmatpush1.msra.mxu0 %v2120
          %2162 = vmatprep.subr.mxu0 0.0
          %2163 = vmatpush1.msra.mxu0 %v2119
          %2164 = vmatprep.subr.mxu0 0.0
          %2165 = vmatpush1.msra.mxu0 %v2118
          %2166 = vmatprep.subr.mxu0 0.0
          %2167 = vmatpush2.msra.mxu0 0.0
          %2168 = vmatprep.subr.mxu0 0.0
          %2169 = vmatpush2.msra.mxu0 0.0
          %2170 = vmatprep.subr.mxu0 0.0
          %2171 = vmatpush2.msra.mxu0 0.0
          %2172 = vmatprep.subr.mxu0 0.0
          %2173 = vmatpush2.msra.mxu0 0.0
          %2174 = vmatprep.subr.mxu0 0.0
          %2175 = vmatpush2.msra.mxu0 0.0
          %2176 = vmatprep.subr.mxu0 0.0
          %2177 = vmatpush2.msra.mxu0 0.0
          %2178 = vmatprep.subr.mxu0 0.0
          %2179 = vmatpush2.msra.mxu0 0.0
          %2180 = vmatprep.subr.mxu0 0.0
          %2181 = vmatpush2.msra.mxu0 0.0
          %2182 = vmatprep.subr.mxu0 0.0
          %2183 = vmatpush2.msra.mxu0 0.0
          %2184 = vmatprep.subr.mxu0 0.0
          %2185 = vmatpush2.msra.mxu0 0.0
          %2186 = vmatprep.subr.mxu0 0.0
          %2187 = vmatpush2.msra.mxu0 0.0
          %2188 = vmatprep.subr.mxu0 0.0
          %2189 = vmatpush2.msra.mxu0 0.0
          %2190 = vmatprep.subr.mxu0 0.0
          %2191 = vmatpush2.msra.mxu0 0.0
          %2192 = vmatprep.subr.mxu0 0.0
          %2193 = vmatpush2.msra.mxu0 0.0
          %2194 = vmatprep.subr.mxu0 0.0
          %2195 = vmatpush2.msra.mxu0 0.0
          %2196 = vmatprep.subr.mxu0 0.0
          %2197 = vmatpush2.msra.mxu0 0.0
          %2198 = vmatprep.mubr.f32.mxu0 0.0
          %2199 = vmatmul.mubr.f32.gmra.mxu0 %v1979
          %v2200 = vpop.f32.mrf.mxu0
          %v2201 = vadd.f32 0.0, %v2200
          %v2202 = vpop.f32.mrf.mxu0
          %2203 = vmatprep.mubr.f32.mxu0 0.0
          %2204 = vmatmul.mubr.f32.gmra.mxu0 %v1980
          %v2205 = vpop.f32.mrf.mxu0
          %v2206 = vadd.f32 0.0, %v2205
          %v2207 = vpop.f32.mrf.mxu0
          %2208 = vmatprep.mubr.f32.mxu0 0.0
          %2209 = vmatmul.mubr.f32.gmra.mxu0 %v1981
          %v2210 = vpop.f32.mrf.mxu0
          %v2211 = vadd.f32 0.0, %v2210
          %v2212 = vpop.f32.mrf.mxu0
          %2213 = vmatprep.mubr.f32.mxu0 0.0
          %2214 = vmatmul.mubr.f32.gmra.mxu0 %v1982
          %v2215 = vpop.f32.mrf.mxu0
          %v2216 = vadd.f32 0.0, %v2215
          %v2217 = vpop.f32.mrf.mxu0
          %2218 = vmatprep.mubr.f32.mxu0 0.0
          %2219 = vmatmul.mubr.f32.gmra.mxu0 %v1983
          %v2220 = vpop.f32.mrf.mxu0
          %v2221 = vadd.f32 0.0, %v2220
          %v2222 = vpop.f32.mrf.mxu0
          %2223 = vmatprep.mubr.f32.mxu0 0.0
          %2224 = vmatmul.mubr.f32.gmra.mxu0 %v1984
          %v2225 = vpop.f32.mrf.mxu0
          %v2226 = vadd.f32 0.0, %v2225
          %v2227 = vpop.f32.mrf.mxu0
          %2228 = vmatprep.mubr.f32.mxu0 0.0
          %2229 = vmatmul.mubr.f32.gmra.mxu0 %v1985
          %v2230 = vpop.f32.mrf.mxu0
          %v2231 = vadd.f32 0.0, %v2230
          %v2232 = vpop.f32.mrf.mxu0
          %2233 = vmatprep.mubr.f32.mxu0 0.0
          %2234 = vmatmul.mubr.f32.gmra.mxu0 %v1986
          %v2235 = vpop.f32.mrf.mxu0
          %v2236 = vadd.f32 0.0, %v2235
          %v2237 = vpop.f32.mrf.mxu0
          %2238 = vdwg.mxu0
          %v2239 = vadd.f32 %v2109, %v2201
          %v2240 = vadd.f32 %v2110, %v2206
          %v2241 = vadd.f32 %v2111, %v2211
          %v2242 = vadd.f32 %v2112, %v2216
          %v2243 = vadd.f32 %v2113, %v2221
          %v2244 = vadd.f32 %v2114, %v2226
          %v2245 = vadd.f32 %v2115, %v2231
          %v2246 = vadd.f32 %v2116, %v2236
          %v2247 = vlaneseq
          %v2248 = vshrl.u32 %v2247, 7
          %v2249 = vsub.s32 0, %v2248
          %v2250 = vrot.slane %v1037, %v2249
          %v2251 = vadd.f32 %v2239, %v2250
          %v2252 = vadd.f32 %v2240, %v2250
          %v2253 = vadd.f32 %v2241, %v2250
          %v2254 = vadd.f32 %v2242, %v2250
          %v2255 = vadd.f32 %v2243, %v2250
          %v2256 = vadd.f32 %v2244, %v2250
          %v2257 = vadd.f32 %v2245, %v2250
          %v2258 = vadd.f32 %v2246, %v2250
          %v2259 = vmax.f32 %v2251, 0.0
          %v2260 = vmax.f32 %v2252, 0.0
          %v2261 = vmax.f32 %v2253, 0.0
          %v2262 = vmax.f32 %v2254, 0.0
          %v2263 = vmax.f32 %v2255, 0.0
          %v2264 = vmax.f32 %v2256, 0.0
          %v2265 = vmax.f32 %v2257, 0.0
          %v2266 = vmax.f32 %v2258, 0.0
          %v2268 = vsel %vm777, %v1058, 0
          %v2271 = vsel %vm777, %v1059, 0
          %v2274 = vsel %vm777, %v1060, 0
          %v2277 = vsel %vm777, %v1061, 0
          %2279 = vmatprep.subr.mxu0 0.0
          %2280 = vmatpush1.msra.mxu0 0.0
          %2281 = vmatprep.subr.mxu0 0.0
          %2282 = vmatpush1.msra.mxu0 0.0
          %2283 = vmatprep.subr.mxu0 0.0
          %2284 = vmatpush1.msra.mxu0 0.0
          %2285 = vmatprep.subr.mxu0 0.0
          %2286 = vmatpush1.msra.mxu0 0.0
          %2287 = vmatprep.subr.mxu0 0.0
          %2288 = vmatpush1.msra.mxu0 0.0
          %2289 = vmatprep.subr.mxu0 0.0
          %2290 = vmatpush1.msra.mxu0 0.0
          %2291 = vmatprep.subr.mxu0 0.0
          %2292 = vmatpush1.msra.mxu0 0.0
          %2293 = vmatprep.subr.mxu0 0.0
          %2294 = vmatpush1.msra.mxu0 0.0
          %2295 = vmatprep.subr.mxu0 0.0
          %2296 = vmatpush1.msra.mxu0 %v2266
          %2297 = vmatprep.subr.mxu0 0.0
          %2298 = vmatpush1.msra.mxu0 %v2265
          %2299 = vmatprep.subr.mxu0 0.0
          %2300 = vmatpush1.msra.mxu0 %v2264
          %2301 = vmatprep.subr.mxu0 0.0
          %2302 = vmatpush1.msra.mxu0 %v2263
          %2303 = vmatprep.subr.mxu0 0.0
          %2304 = vmatpush1.msra.mxu0 %v2262
          %2305 = vmatprep.subr.mxu0 0.0
          %2306 = vmatpush1.msra.mxu0 %v2261
          %2307 = vmatprep.subr.mxu0 0.0
          %2308 = vmatpush1.msra.mxu0 %v2260
          %2309 = vmatprep.subr.mxu0 0.0
          %2310 = vmatpush1.msra.mxu0 %v2259
          %2311 = vmatprep.subr.mxu0 0.0
          %2312 = vmatpush2.msra.mxu0 0.0
          %2313 = vmatprep.subr.mxu0 0.0
          %2314 = vmatpush2.msra.mxu0 0.0
          %2315 = vmatprep.subr.mxu0 0.0
          %2316 = vmatpush2.msra.mxu0 0.0
          %2317 = vmatprep.subr.mxu0 0.0
          %2318 = vmatpush2.msra.mxu0 0.0
          %2319 = vmatprep.subr.mxu0 0.0
          %2320 = vmatpush2.msra.mxu0 0.0
          %2321 = vmatprep.subr.mxu0 0.0
          %2322 = vmatpush2.msra.mxu0 0.0
          %2323 = vmatprep.subr.mxu0 0.0
          %2324 = vmatpush2.msra.mxu0 0.0
          %2325 = vmatprep.subr.mxu0 0.0
          %2326 = vmatpush2.msra.mxu0 0.0
          %2327 = vmatprep.subr.mxu0 0.0
          %2328 = vmatpush2.msra.mxu0 0.0
          %2329 = vmatprep.subr.mxu0 0.0
          %2330 = vmatpush2.msra.mxu0 0.0
          %2331 = vmatprep.subr.mxu0 0.0
          %2332 = vmatpush2.msra.mxu0 0.0
          %2333 = vmatprep.subr.mxu0 0.0
          %2334 = vmatpush2.msra.mxu0 0.0
          %2335 = vmatprep.subr.mxu0 0.0
          %2336 = vmatpush2.msra.mxu0 0.0
          %2337 = vmatprep.subr.mxu0 0.0
          %2338 = vmatpush2.msra.mxu0 0.0
          %2339 = vmatprep.subr.mxu0 0.0
          %2340 = vmatpush2.msra.mxu0 0.0
          %2341 = vmatprep.subr.mxu0 0.0
          %2342 = vmatpush2.msra.mxu0 0.0
          %2343 = vmatprep.mubr.f32.mxu0 0.0
          %2344 = vmatmul.mubr.f32.gmra.mxu0 %v2268
          %v2345 = vpop.f32.mrf.mxu0
          %v2346 = vadd.f32 0.0, %v2345
          %v2347 = vpop.f32.mrf.mxu0
          %2348 = vmatprep.mubr.f32.mxu0 0.0
          %2349 = vmatmul.mubr.f32.gmra.mxu0 %v2271
          %v2350 = vpop.f32.mrf.mxu0
          %v2351 = vadd.f32 0.0, %v2350
          %v2352 = vpop.f32.mrf.mxu0
          %2353 = vmatprep.mubr.f32.mxu0 0.0
          %2354 = vmatmul.mubr.f32.gmra.mxu0 %v2274
          %v2355 = vpop.f32.mrf.mxu0
          %v2356 = vadd.f32 0.0, %v2355
          %v2357 = vpop.f32.mrf.mxu0
          %2358 = vmatprep.mubr.f32.mxu0 0.0
          %2359 = vmatmul.mubr.f32.gmra.mxu0 %v2277
          %v2360 = vpop.f32.mrf.mxu0
          %v2361 = vadd.f32 0.0, %v2360
          %v2362 = vpop.f32.mrf.mxu0
          %2363 = vdwg.mxu0
          %v2365 = vsel %vm777, %v1074, 0
          %v2368 = vsel %vm777, %v1075, 0
          %v2371 = vsel %vm777, %v1076, 0
          %v2374 = vsel %vm777, %v1077, 0
          %2376 = vmatprep.subr.mxu0 0.0
          %2377 = vmatpush1.msra.mxu0 0.0
          %2378 = vmatprep.subr.mxu0 0.0
          %2379 = vmatpush1.msra.mxu0 0.0
          %2380 = vmatprep.subr.mxu0 0.0
          %2381 = vmatpush1.msra.mxu0 0.0
          %2382 = vmatprep.subr.mxu0 0.0
          %2383 = vmatpush1.msra.mxu0 0.0
          %2384 = vmatprep.subr.mxu0 0.0
          %2385 = vmatpush1.msra.mxu0 0.0
          %2386 = vmatprep.subr.mxu0 0.0
          %2387 = vmatpush1.msra.mxu0 0.0
          %2388 = vmatprep.subr.mxu0 0.0
          %2389 = vmatpush1.msra.mxu0 0.0
          %2390 = vmatprep.subr.mxu0 0.0
          %2391 = vmatpush1.msra.mxu0 0.0
          %2392 = vmatprep.subr.mxu0 0.0
          %2393 = vmatpush1.msra.mxu0 %v2266
          %2394 = vmatprep.subr.mxu0 0.0
          %2395 = vmatpush1.msra.mxu0 %v2265
          %2396 = vmatprep.subr.mxu0 0.0
          %2397 = vmatpush1.msra.mxu0 %v2264
          %2398 = vmatprep.subr.mxu0 0.0
          %2399 = vmatpush1.msra.mxu0 %v2263
          %2400 = vmatprep.subr.mxu0 0.0
          %2401 = vmatpush1.msra.mxu0 %v2262
          %2402 = vmatprep.subr.mxu0 0.0
          %2403 = vmatpush1.msra.mxu0 %v2261
          %2404 = vmatprep.subr.mxu0 0.0
          %2405 = vmatpush1.msra.mxu0 %v2260
          %2406 = vmatprep.subr.mxu0 0.0
          %2407 = vmatpush1.msra.mxu0 %v2259
          %2408 = vmatprep.subr.mxu0 0.0
          %2409 = vmatpush2.msra.mxu0 0.0
          %2410 = vmatprep.subr.mxu0 0.0
          %2411 = vmatpush2.msra.mxu0 0.0
          %2412 = vmatprep.subr.mxu0 0.0
          %2413 = vmatpush2.msra.mxu0 0.0
          %2414 = vmatprep.subr.mxu0 0.0
          %2415 = vmatpush2.msra.mxu0 0.0
          %2416 = vmatprep.subr.mxu0 0.0
          %2417 = vmatpush2.msra.mxu0 0.0
          %2418 = vmatprep.subr.mxu0 0.0
          %2419 = vmatpush2.msra.mxu0 0.0
          %2420 = vmatprep.subr.mxu0 0.0
          %2421 = vmatpush2.msra.mxu0 0.0
          %2422 = vmatprep.subr.mxu0 0.0
          %2423 = vmatpush2.msra.mxu0 0.0
          %2424 = vmatprep.subr.mxu0 0.0
          %2425 = vmatpush2.msra.mxu0 0.0
          %2426 = vmatprep.subr.mxu0 0.0
          %2427 = vmatpush2.msra.mxu0 0.0
          %2428 = vmatprep.subr.mxu0 0.0
          %2429 = vmatpush2.msra.mxu0 0.0
          %2430 = vmatprep.subr.mxu0 0.0
          %2431 = vmatpush2.msra.mxu0 0.0
          %2432 = vmatprep.subr.mxu0 0.0
          %2433 = vmatpush2.msra.mxu0 0.0
          %2434 = vmatprep.subr.mxu0 0.0
          %2435 = vmatpush2.msra.mxu0 0.0
          %2436 = vmatprep.subr.mxu0 0.0
          %2437 = vmatpush2.msra.mxu0 0.0
          %2438 = vmatprep.subr.mxu0 0.0
          %2439 = vmatpush2.msra.mxu0 0.0
          %2440 = vmatprep.mubr.f32.mxu0 0.0
          %2441 = vmatmul.mubr.f32.gmra.mxu0 %v2365
          %v2442 = vpop.f32.mrf.mxu0
          %v2443 = vadd.f32 0.0, %v2442
          %v2444 = vpop.f32.mrf.mxu0
          %2445 = vmatprep.mubr.f32.mxu0 0.0
          %2446 = vmatmul.mubr.f32.gmra.mxu0 %v2368
          %v2447 = vpop.f32.mrf.mxu0
          %v2448 = vadd.f32 0.0, %v2447
          %v2449 = vpop.f32.mrf.mxu0
          %2450 = vmatprep.mubr.f32.mxu0 0.0
          %2451 = vmatmul.mubr.f32.gmra.mxu0 %v2371
          %v2452 = vpop.f32.mrf.mxu0
          %v2453 = vadd.f32 0.0, %v2452
          %v2454 = vpop.f32.mrf.mxu0
          %2455 = vmatprep.mubr.f32.mxu0 0.0
          %2456 = vmatmul.mubr.f32.gmra.mxu0 %v2374
          %v2457 = vpop.f32.mrf.mxu0
          %v2458 = vadd.f32 0.0, %v2457
          %v2459 = vpop.f32.mrf.mxu0
          %2460 = vdwg.mxu0
          %2465 = vrot.lane.b32.xlu0 %v2443, 64
          %v2466 = vpop.permute.xlu0 %2465
          %2467 = vrot.lane.b32.xlu0 %v2448, 64
          %v2468 = vpop.permute.xlu0 %2467
          %2469 = vrot.lane.b32.xlu0 %v2453, 64
          %v2470 = vpop.permute.xlu0 %2469
          %2471 = vrot.lane.b32.xlu0 %v2458, 64
          %v2472 = vpop.permute.xlu0 %2471
          %v2477 = vsel %vm777, %v2346, %v2466
          %v2478 = vsel %vm777, %v2351, %v2468
          %v2479 = vsel %vm777, %v2356, %v2470
          %v2480 = vsel %vm777, %v2361, %v2472
          %s2481 = sadd.s32 %s1079, 1
          %s2482 = smul.u32 %s2481, 40
          %s2483 = scalar_lea.vmem [#allocation3], %s2482
          %2484 = vst [vmem:[%s2483 + $0x1] sm:$0xff] %v2477
          %2485 = vst [vmem:[%s2483 + $0x9] sm:$0xff] %v2478
          %2486 = vst [vmem:[%s2483 + $0x11] sm:$0xff] %v2479
          %2487 = vst [vmem:[%s2483 + $0x19] sm:$0xff] %v2480
        $region52: #{enc_conv_forward.1} parent=39 // loop_footer
          %s1083 = sadd.s32 1, %s1079
        $region53: #{enc_conv_forward.1} parent=39 // loop_footer_branch
          %1078 = sbr.rel target = $region49
        $region54: #{enc_conv_forward.1} parent=39 // loop_exit
          _
        %v2488 = vld [vmem:[%s4 + $0x2] sm:$0x1]
        loop: start=0, step=1, limit=32
        $region55: #{enc_conv_forward.1} parent=39 // loop_pre_header
          _
        $region56: #{enc_conv_forward.1} parent=39 // loop_header
          %s2490 = sphi 0, %s2494
          %p2491 = scmp.ge.s32.totalorder %s2490, 32
        $region57: #{enc_conv_forward.1} parent=39 // loop_header_branch
          %2493 = sbr.rel (%p2491) target = $region61
        $region58: #{enc_conv_forward.1} parent=39 // loop_body
          %s2495 = smul.u32 %s2490, 2
          %s2496 = smul.u32 %s2495, 40
          %s2497 = scalar_lea.vmem [#allocation3], %s2496
          %v2498 = vld [vmem:[%s2497] sm:$0xff]
          %v2499 = vld [vmem:[%s2497 + $0x8] sm:$0xff]
          %v2500 = vld [vmem:[%s2497 + $0x10] sm:$0xff]
          %v2501 = vld [vmem:[%s2497 + $0x18] sm:$0xff]
          %v2502 = vld [vmem:[%s2497 + $0x1] sm:$0xff]
          %v2503 = vld [vmem:[%s2497 + $0x9] sm:$0xff]
          %v2504 = vld [vmem:[%s2497 + $0x11] sm:$0xff]
          %v2505 = vld [vmem:[%s2497 + $0x19] sm:$0xff]
          %v2506 = vld [vmem:[%s2497 + $0x2] sm:$0xff]
          %v2507 = vld [vmem:[%s2497 + $0xa] sm:$0xff]
          %v2508 = vld [vmem:[%s2497 + $0x12] sm:$0xff]
          %v2509 = vld [vmem:[%s2497 + $0x1a] sm:$0xff]
          %v2510 = vsel %vm1040, %v2506, %v2498
          %v2511 = vsel %vm1040, %v2507, %v2499
          %v2512 = vsel %vm1040, %v2508, %v2500
          %v2513 = vsel %vm1040, %v2509, %v2501
          %s2514 = scalar_lea.vmem %s2, 1024
          %v2515 = vld [vmem:[%s2514] sm:$0xff]
          %v2516 = vld [vmem:[%s2514 + $0x8] sm:$0xff]
          %v2517 = vld [vmem:[%s2514 + $0x10] sm:$0xff]
          %v2518 = vld [vmem:[%s2514 + $0x18] sm:$0xff]
          %v2519 = vld [vmem:[%s2514 + $0x20] sm:$0xff]
          %v2520 = vld [vmem:[%s2514 + $0x28] sm:$0xff]
          %v2521 = vld [vmem:[%s2514 + $0x30] sm:$0xff]
          %v2522 = vld [vmem:[%s2514 + $0x38] sm:$0xff]
          %v2523 = vld [vmem:[%s2514 + $0x40] sm:$0xff]
          %v2524 = vld [vmem:[%s2514 + $0x48] sm:$0xff]
          %v2525 = vld [vmem:[%s2514 + $0x50] sm:$0xff]
          %v2526 = vld [vmem:[%s2514 + $0x58] sm:$0xff]
          %v2527 = vld [vmem:[%s2514 + $0x60] sm:$0xff]
          %v2528 = vld [vmem:[%s2514 + $0x68] sm:$0xff]
          %v2529 = vld [vmem:[%s2514 + $0x70] sm:$0xff]
          %v2530 = vld [vmem:[%s2514 + $0x78] sm:$0xff]
          %s2531 = scalar_lea.vmem %s2, 1152
          %v2532 = vld [vmem:[%s2531] sm:$0xff]
          %v2533 = vld [vmem:[%s2531 + $0x8] sm:$0xff]
          %v2534 = vld [vmem:[%s2531 + $0x10] sm:$0xff]
          %v2535 = vld [vmem:[%s2531 + $0x18] sm:$0xff]
          %v2536 = vld [vmem:[%s2531 + $0x20] sm:$0xff]
          %v2537 = vld [vmem:[%s2531 + $0x28] sm:$0xff]
          %v2538 = vld [vmem:[%s2531 + $0x30] sm:$0xff]
          %v2539 = vld [vmem:[%s2531 + $0x38] sm:$0xff]
          %v2540 = vld [vmem:[%s2531 + $0x40] sm:$0xff]
          %v2541 = vld [vmem:[%s2531 + $0x48] sm:$0xff]
          %v2542 = vld [vmem:[%s2531 + $0x50] sm:$0xff]
          %v2543 = vld [vmem:[%s2531 + $0x58] sm:$0xff]
          %v2544 = vld [vmem:[%s2531 + $0x60] sm:$0xff]
          %v2545 = vld [vmem:[%s2531 + $0x68] sm:$0xff]
          %v2546 = vld [vmem:[%s2531 + $0x70] sm:$0xff]
          %v2547 = vld [vmem:[%s2531 + $0x78] sm:$0xff]
          %2548 = vmatprep.subr.mxu0 0.0
          %2549 = vmatpush1.msra.mxu0 %v2547
          %2550 = vmatprep.subr.mxu0 0.0
          %2551 = vmatpush1.msra.mxu0 %v2546
          %2552 = vmatprep.subr.mxu0 0.0
          %2553 = vmatpush1.msra.mxu0 %v2545
          %2554 = vmatprep.subr.mxu0 0.0
          %2555 = vmatpush1.msra.mxu0 %v2544
          %2556 = vmatprep.subr.mxu0 0.0
          %2557 = vmatpush1.msra.mxu0 %v2543
          %2558 = vmatprep.subr.mxu0 0.0
          %2559 = vmatpush1.msra.mxu0 %v2542
          %2560 = vmatprep.subr.mxu0 0.0
          %2561 = vmatpush1.msra.mxu0 %v2541
          %2562 = vmatprep.subr.mxu0 0.0
          %2563 = vmatpush1.msra.mxu0 %v2540
          %2564 = vmatprep.subr.mxu0 0.0
          %2565 = vmatpush1.msra.mxu0 %v2539
          %2566 = vmatprep.subr.mxu0 0.0
          %2567 = vmatpush1.msra.mxu0 %v2538
          %2568 = vmatprep.subr.mxu0 0.0
          %2569 = vmatpush1.msra.mxu0 %v2537
          %2570 = vmatprep.subr.mxu0 0.0
          %2571 = vmatpush1.msra.mxu0 %v2536
          %2572 = vmatprep.subr.mxu0 0.0
          %2573 = vmatpush1.msra.mxu0 %v2535
          %2574 = vmatprep.subr.mxu0 0.0
          %2575 = vmatpush1.msra.mxu0 %v2534
          %2576 = vmatprep.subr.mxu0 0.0
          %2577 = vmatpush1.msra.mxu0 %v2533
          %2578 = vmatprep.subr.mxu0 0.0
          %2579 = vmatpush1.msra.mxu0 %v2532
          %2580 = vmatprep.subr.mxu0 0.0
          %2581 = vmatpush2.msra.mxu0 0.0
          %2582 = vmatprep.subr.mxu0 0.0
          %2583 = vmatpush2.msra.mxu0 0.0
          %2584 = vmatprep.subr.mxu0 0.0
          %2585 = vmatpush2.msra.mxu0 0.0
          %2586 = vmatprep.subr.mxu0 0.0
          %2587 = vmatpush2.msra.mxu0 0.0
          %2588 = vmatprep.subr.mxu0 0.0
          %2589 = vmatpush2.msra.mxu0 0.0
          %2590 = vmatprep.subr.mxu0 0.0
          %2591 = vmatpush2.msra.mxu0 0.0
          %2592 = vmatprep.subr.mxu0 0.0
          %2593 = vmatpush2.msra.mxu0 0.0
          %2594 = vmatprep.subr.mxu0 0.0
          %2595 = vmatpush2.msra.mxu0 0.0
          %2596 = vmatprep.subr.mxu0 0.0
          %2597 = vmatpush2.msra.mxu0 0.0
          %2598 = vmatprep.subr.mxu0 0.0
          %2599 = vmatpush2.msra.mxu0 0.0
          %2600 = vmatprep.subr.mxu0 0.0
          %2601 = vmatpush2.msra.mxu0 0.0
          %2602 = vmatprep.subr.mxu0 0.0
          %2603 = vmatpush2.msra.mxu0 0.0
          %2604 = vmatprep.subr.mxu0 0.0
          %2605 = vmatpush2.msra.mxu0 0.0
          %2606 = vmatprep.subr.mxu0 0.0
          %2607 = vmatpush2.msra.mxu0 0.0
          %2608 = vmatprep.subr.mxu0 0.0
          %2609 = vmatpush2.msra.mxu0 0.0
          %2610 = vmatprep.subr.mxu0 0.0
          %2611 = vmatpush2.msra.mxu0 0.0
          %2612 = vmatprep.mubr.f32.mxu0 0.0
          %2613 = vmatmul.mubr.f32.gmra.mxu0 %v2510
          %v2614 = vpop.f32.mrf.mxu0
          %v2615 = vadd.f32 0.0, %v2614
          %v2616 = vpop.f32.mrf.mxu0
          %2617 = vmatprep.mubr.f32.mxu0 0.0
          %2618 = vmatmul.mubr.f32.gmra.mxu0 %v2511
          %v2619 = vpop.f32.mrf.mxu0
          %v2620 = vadd.f32 0.0, %v2619
          %v2621 = vpop.f32.mrf.mxu0
          %2622 = vmatprep.mubr.f32.mxu0 0.0
          %2623 = vmatmul.mubr.f32.gmra.mxu0 %v2512
          %v2624 = vpop.f32.mrf.mxu0
          %v2625 = vadd.f32 0.0, %v2624
          %v2626 = vpop.f32.mrf.mxu0
          %2627 = vmatprep.mubr.f32.mxu0 0.0
          %2628 = vmatmul.mubr.f32.gmra.mxu0 %v2513
          %v2629 = vpop.f32.mrf.mxu0
          %v2630 = vadd.f32 0.0, %v2629
          %v2631 = vpop.f32.mrf.mxu0
          %2632 = vdwg.mxu0
          %2633 = vmatprep.subr.mxu0 0.0
          %2634 = vmatpush1.msra.mxu0 %v2530
          %2635 = vmatprep.subr.mxu0 0.0
          %2636 = vmatpush1.msra.mxu0 %v2529
          %2637 = vmatprep.subr.mxu0 0.0
          %2638 = vmatpush1.msra.mxu0 %v2528
          %2639 = vmatprep.subr.mxu0 0.0
          %2640 = vmatpush1.msra.mxu0 %v2527
          %2641 = vmatprep.subr.mxu0 0.0
          %2642 = vmatpush1.msra.mxu0 %v2526
          %2643 = vmatprep.subr.mxu0 0.0
          %2644 = vmatpush1.msra.mxu0 %v2525
          %2645 = vmatprep.subr.mxu0 0.0
          %2646 = vmatpush1.msra.mxu0 %v2524
          %2647 = vmatprep.subr.mxu0 0.0
          %2648 = vmatpush1.msra.mxu0 %v2523
          %2649 = vmatprep.subr.mxu0 0.0
          %2650 = vmatpush1.msra.mxu0 %v2522
          %2651 = vmatprep.subr.mxu0 0.0
          %2652 = vmatpush1.msra.mxu0 %v2521
          %2653 = vmatprep.subr.mxu0 0.0
          %2654 = vmatpush1.msra.mxu0 %v2520
          %2655 = vmatprep.subr.mxu0 0.0
          %2656 = vmatpush1.msra.mxu0 %v2519
          %2657 = vmatprep.subr.mxu0 0.0
          %2658 = vmatpush1.msra.mxu0 %v2518
          %2659 = vmatprep.subr.mxu0 0.0
          %2660 = vmatpush1.msra.mxu0 %v2517
          %2661 = vmatprep.subr.mxu0 0.0
          %2662 = vmatpush1.msra.mxu0 %v2516
          %2663 = vmatprep.subr.mxu0 0.0
          %2664 = vmatpush1.msra.mxu0 %v2515
          %2665 = vmatprep.subr.mxu0 0.0
          %2666 = vmatpush2.msra.mxu0 0.0
          %2667 = vmatprep.subr.mxu0 0.0
          %2668 = vmatpush2.msra.mxu0 0.0
          %2669 = vmatprep.subr.mxu0 0.0
          %2670 = vmatpush2.msra.mxu0 0.0
          %2671 = vmatprep.subr.mxu0 0.0
          %2672 = vmatpush2.msra.mxu0 0.0
          %2673 = vmatprep.subr.mxu0 0.0
          %2674 = vmatpush2.msra.mxu0 0.0
          %2675 = vmatprep.subr.mxu0 0.0
          %2676 = vmatpush2.msra.mxu0 0.0
          %2677 = vmatprep.subr.mxu0 0.0
          %2678 = vmatpush2.msra.mxu0 0.0
          %2679 = vmatprep.subr.mxu0 0.0
          %2680 = vmatpush2.msra.mxu0 0.0
          %2681 = vmatprep.subr.mxu0 0.0
          %2682 = vmatpush2.msra.mxu0 0.0
          %2683 = vmatprep.subr.mxu0 0.0
          %2684 = vmatpush2.msra.mxu0 0.0
          %2685 = vmatprep.subr.mxu0 0.0
          %2686 = vmatpush2.msra.mxu0 0.0
          %2687 = vmatprep.subr.mxu0 0.0
          %2688 = vmatpush2.msra.mxu0 0.0
          %2689 = vmatprep.subr.mxu0 0.0
          %2690 = vmatpush2.msra.mxu0 0.0
          %2691 = vmatprep.subr.mxu0 0.0
          %2692 = vmatpush2.msra.mxu0 0.0
          %2693 = vmatprep.subr.mxu0 0.0
          %2694 = vmatpush2.msra.mxu0 0.0
          %2695 = vmatprep.subr.mxu0 0.0
          %2696 = vmatpush2.msra.mxu0 0.0
          %2697 = vmatprep.mubr.f32.mxu0 0.0
          %2698 = vmatmul.mubr.f32.gmra.mxu0 %v2502
          %v2699 = vpop.f32.mrf.mxu0
          %v2700 = vadd.f32 %v2615, %v2699
          %v2701 = vpop.f32.mrf.mxu0
          %2702 = vmatprep.mubr.f32.mxu0 0.0
          %2703 = vmatmul.mubr.f32.gmra.mxu0 %v2503
          %v2704 = vpop.f32.mrf.mxu0
          %v2705 = vadd.f32 %v2620, %v2704
          %v2706 = vpop.f32.mrf.mxu0
          %2707 = vmatprep.mubr.f32.mxu0 0.0
          %2708 = vmatmul.mubr.f32.gmra.mxu0 %v2504
          %v2709 = vpop.f32.mrf.mxu0
          %v2710 = vadd.f32 %v2625, %v2709
          %v2711 = vpop.f32.mrf.mxu0
          %2712 = vmatprep.mubr.f32.mxu0 0.0
          %2713 = vmatmul.mubr.f32.gmra.mxu0 %v2505
          %v2714 = vpop.f32.mrf.mxu0
          %v2715 = vadd.f32 %v2630, %v2714
          %v2716 = vpop.f32.mrf.mxu0
          %2717 = vdwg.mxu0
          %s2718 = sadd.s32 %s2495, 1
          %s2719 = smul.u32 %s2718, 40
          %s2720 = scalar_lea.vmem [#allocation3], %s2719
          %v2721 = vld [vmem:[%s2720] sm:$0xff]
          %v2722 = vld [vmem:[%s2720 + $0x8] sm:$0xff]
          %v2723 = vld [vmem:[%s2720 + $0x10] sm:$0xff]
          %v2724 = vld [vmem:[%s2720 + $0x18] sm:$0xff]
          %v2725 = vld [vmem:[%s2720 + $0x1] sm:$0xff]
          %v2726 = vld [vmem:[%s2720 + $0x9] sm:$0xff]
          %v2727 = vld [vmem:[%s2720 + $0x11] sm:$0xff]
          %v2728 = vld [vmem:[%s2720 + $0x19] sm:$0xff]
          %v2729 = vld [vmem:[%s2720 + $0x2] sm:$0xff]
          %v2730 = vld [vmem:[%s2720 + $0xa] sm:$0xff]
          %v2731 = vld [vmem:[%s2720 + $0x12] sm:$0xff]
          %v2732 = vld [vmem:[%s2720 + $0x1a] sm:$0xff]
          %v2733 = vsel %vm1040, %v2729, %v2721
          %v2734 = vsel %vm1040, %v2730, %v2722
          %v2735 = vsel %vm1040, %v2731, %v2723
          %v2736 = vsel %vm1040, %v2732, %v2724
          %s2737 = scalar_lea.vmem %s2, 1280
          %v2738 = vld [vmem:[%s2737] sm:$0xff]
          %v2739 = vld [vmem:[%s2737 + $0x8] sm:$0xff]
          %v2740 = vld [vmem:[%s2737 + $0x10] sm:$0xff]
          %v2741 = vld [vmem:[%s2737 + $0x18] sm:$0xff]
          %v2742 = vld [vmem:[%s2737 + $0x20] sm:$0xff]
          %v2743 = vld [vmem:[%s2737 + $0x28] sm:$0xff]
          %v2744 = vld [vmem:[%s2737 + $0x30] sm:$0xff]
          %v2745 = vld [vmem:[%s2737 + $0x38] sm:$0xff]
          %v2746 = vld [vmem:[%s2737 + $0x40] sm:$0xff]
          %v2747 = vld [vmem:[%s2737 + $0x48] sm:$0xff]
          %v2748 = vld [vmem:[%s2737 + $0x50] sm:$0xff]
          %v2749 = vld [vmem:[%s2737 + $0x58] sm:$0xff]
          %v2750 = vld [vmem:[%s2737 + $0x60] sm:$0xff]
          %v2751 = vld [vmem:[%s2737 + $0x68] sm:$0xff]
          %v2752 = vld [vmem:[%s2737 + $0x70] sm:$0xff]
          %v2753 = vld [vmem:[%s2737 + $0x78] sm:$0xff]
          %2754 = vmatprep.subr.mxu0 0.0
          %2755 = vmatpush1.msra.mxu0 %v2753
          %2756 = vmatprep.subr.mxu0 0.0
          %2757 = vmatpush1.msra.mxu0 %v2752
          %2758 = vmatprep.subr.mxu0 0.0
          %2759 = vmatpush1.msra.mxu0 %v2751
          %2760 = vmatprep.subr.mxu0 0.0
          %2761 = vmatpush1.msra.mxu0 %v2750
          %2762 = vmatprep.subr.mxu0 0.0
          %2763 = vmatpush1.msra.mxu0 %v2749
          %2764 = vmatprep.subr.mxu0 0.0
          %2765 = vmatpush1.msra.mxu0 %v2748
          %2766 = vmatprep.subr.mxu0 0.0
          %2767 = vmatpush1.msra.mxu0 %v2747
          %2768 = vmatprep.subr.mxu0 0.0
          %2769 = vmatpush1.msra.mxu0 %v2746
          %2770 = vmatprep.subr.mxu0 0.0
          %2771 = vmatpush1.msra.mxu0 %v2745
          %2772 = vmatprep.subr.mxu0 0.0
          %2773 = vmatpush1.msra.mxu0 %v2744
          %2774 = vmatprep.subr.mxu0 0.0
          %2775 = vmatpush1.msra.mxu0 %v2743
          %2776 = vmatprep.subr.mxu0 0.0
          %2777 = vmatpush1.msra.mxu0 %v2742
          %2778 = vmatprep.subr.mxu0 0.0
          %2779 = vmatpush1.msra.mxu0 %v2741
          %2780 = vmatprep.subr.mxu0 0.0
          %2781 = vmatpush1.msra.mxu0 %v2740
          %2782 = vmatprep.subr.mxu0 0.0
          %2783 = vmatpush1.msra.mxu0 %v2739
          %2784 = vmatprep.subr.mxu0 0.0
          %2785 = vmatpush1.msra.mxu0 %v2738
          %2786 = vmatprep.subr.mxu0 0.0
          %2787 = vmatpush2.msra.mxu0 0.0
          %2788 = vmatprep.subr.mxu0 0.0
          %2789 = vmatpush2.msra.mxu0 0.0
          %2790 = vmatprep.subr.mxu0 0.0
          %2791 = vmatpush2.msra.mxu0 0.0
          %2792 = vmatprep.subr.mxu0 0.0
          %2793 = vmatpush2.msra.mxu0 0.0
          %2794 = vmatprep.subr.mxu0 0.0
          %2795 = vmatpush2.msra.mxu0 0.0
          %2796 = vmatprep.subr.mxu0 0.0
          %2797 = vmatpush2.msra.mxu0 0.0
          %2798 = vmatprep.subr.mxu0 0.0
          %2799 = vmatpush2.msra.mxu0 0.0
          %2800 = vmatprep.subr.mxu0 0.0
          %2801 = vmatpush2.msra.mxu0 0.0
          %2802 = vmatprep.subr.mxu0 0.0
          %2803 = vmatpush2.msra.mxu0 0.0
          %2804 = vmatprep.subr.mxu0 0.0
          %2805 = vmatpush2.msra.mxu0 0.0
          %2806 = vmatprep.subr.mxu0 0.0
          %2807 = vmatpush2.msra.mxu0 0.0
          %2808 = vmatprep.subr.mxu0 0.0
          %2809 = vmatpush2.msra.mxu0 0.0
          %2810 = vmatprep.subr.mxu0 0.0
          %2811 = vmatpush2.msra.mxu0 0.0
          %2812 = vmatprep.subr.mxu0 0.0
          %2813 = vmatpush2.msra.mxu0 0.0
          %2814 = vmatprep.subr.mxu0 0.0
          %2815 = vmatpush2.msra.mxu0 0.0
          %2816 = vmatprep.subr.mxu0 0.0
          %2817 = vmatpush2.msra.mxu0 0.0
          %2818 = vmatprep.mubr.f32.mxu0 0.0
          %2819 = vmatmul.mubr.f32.gmra.mxu0 %v2725
          %v2820 = vpop.f32.mrf.mxu0
          %v2821 = vadd.f32 0.0, %v2820
          %v2822 = vpop.f32.mrf.mxu0
          %2823 = vmatprep.mubr.f32.mxu0 0.0
          %2824 = vmatmul.mubr.f32.gmra.mxu0 %v2726
          %v2825 = vpop.f32.mrf.mxu0
          %v2826 = vadd.f32 0.0, %v2825
          %v2827 = vpop.f32.mrf.mxu0
          %2828 = vmatprep.mubr.f32.mxu0 0.0
          %2829 = vmatmul.mubr.f32.gmra.mxu0 %v2727
          %v2830 = vpop.f32.mrf.mxu0
          %v2831 = vadd.f32 0.0, %v2830
          %v2832 = vpop.f32.mrf.mxu0
          %2833 = vmatprep.mubr.f32.mxu0 0.0
          %2834 = vmatmul.mubr.f32.gmra.mxu0 %v2728
          %v2835 = vpop.f32.mrf.mxu0
          %v2836 = vadd.f32 0.0, %v2835
          %v2837 = vpop.f32.mrf.mxu0
          %2838 = vdwg.mxu0
          %v2839 = vadd.f32 %v2700, %v2821
          %v2840 = vadd.f32 %v2705, %v2826
          %v2841 = vadd.f32 %v2710, %v2831
          %v2842 = vadd.f32 %v2715, %v2836
          %s2843 = scalar_lea.vmem %s2, 1408
          %v2844 = vld [vmem:[%s2843] sm:$0xff]
          %v2845 = vld [vmem:[%s2843 + $0x8] sm:$0xff]
          %v2846 = vld [vmem:[%s2843 + $0x10] sm:$0xff]
          %v2847 = vld [vmem:[%s2843 + $0x18] sm:$0xff]
          %v2848 = vld [vmem:[%s2843 + $0x20] sm:$0xff]
          %v2849 = vld [vmem:[%s2843 + $0x28] sm:$0xff]
          %v2850 = vld [vmem:[%s2843 + $0x30] sm:$0xff]
          %v2851 = vld [vmem:[%s2843 + $0x38] sm:$0xff]
          %v2852 = vld [vmem:[%s2843 + $0x40] sm:$0xff]
          %v2853 = vld [vmem:[%s2843 + $0x48] sm:$0xff]
          %v2854 = vld [vmem:[%s2843 + $0x50] sm:$0xff]
          %v2855 = vld [vmem:[%s2843 + $0x58] sm:$0xff]
          %v2856 = vld [vmem:[%s2843 + $0x60] sm:$0xff]
          %v2857 = vld [vmem:[%s2843 + $0x68] sm:$0xff]
          %v2858 = vld [vmem:[%s2843 + $0x70] sm:$0xff]
          %v2859 = vld [vmem:[%s2843 + $0x78] sm:$0xff]
          %2860 = vmatprep.subr.mxu0 0.0
          %2861 = vmatpush1.msra.mxu0 %v2859
          %2862 = vmatprep.subr.mxu0 0.0
          %2863 = vmatpush1.msra.mxu0 %v2858
          %2864 = vmatprep.subr.mxu0 0.0
          %2865 = vmatpush1.msra.mxu0 %v2857
          %2866 = vmatprep.subr.mxu0 0.0
          %2867 = vmatpush1.msra.mxu0 %v2856
          %2868 = vmatprep.subr.mxu0 0.0
          %2869 = vmatpush1.msra.mxu0 %v2855
          %2870 = vmatprep.subr.mxu0 0.0
          %2871 = vmatpush1.msra.mxu0 %v2854
          %2872 = vmatprep.subr.mxu0 0.0
          %2873 = vmatpush1.msra.mxu0 %v2853
          %2874 = vmatprep.subr.mxu0 0.0
          %2875 = vmatpush1.msra.mxu0 %v2852
          %2876 = vmatprep.subr.mxu0 0.0
          %2877 = vmatpush1.msra.mxu0 %v2851
          %2878 = vmatprep.subr.mxu0 0.0
          %2879 = vmatpush1.msra.mxu0 %v2850
          %2880 = vmatprep.subr.mxu0 0.0
          %2881 = vmatpush1.msra.mxu0 %v2849
          %2882 = vmatprep.subr.mxu0 0.0
          %2883 = vmatpush1.msra.mxu0 %v2848
          %2884 = vmatprep.subr.mxu0 0.0
          %2885 = vmatpush1.msra.mxu0 %v2847
          %2886 = vmatprep.subr.mxu0 0.0
          %2887 = vmatpush1.msra.mxu0 %v2846
          %2888 = vmatprep.subr.mxu0 0.0
          %2889 = vmatpush1.msra.mxu0 %v2845
          %2890 = vmatprep.subr.mxu0 0.0
          %2891 = vmatpush1.msra.mxu0 %v2844
          %2892 = vmatprep.subr.mxu0 0.0
          %2893 = vmatpush2.msra.mxu0 0.0
          %2894 = vmatprep.subr.mxu0 0.0
          %2895 = vmatpush2.msra.mxu0 0.0
          %2896 = vmatprep.subr.mxu0 0.0
          %2897 = vmatpush2.msra.mxu0 0.0
          %2898 = vmatprep.subr.mxu0 0.0
          %2899 = vmatpush2.msra.mxu0 0.0
          %2900 = vmatprep.subr.mxu0 0.0
          %2901 = vmatpush2.msra.mxu0 0.0
          %2902 = vmatprep.subr.mxu0 0.0
          %2903 = vmatpush2.msra.mxu0 0.0
          %2904 = vmatprep.subr.mxu0 0.0
          %2905 = vmatpush2.msra.mxu0 0.0
          %2906 = vmatprep.subr.mxu0 0.0
          %2907 = vmatpush2.msra.mxu0 0.0
          %2908 = vmatprep.subr.mxu0 0.0
          %2909 = vmatpush2.msra.mxu0 0.0
          %2910 = vmatprep.subr.mxu0 0.0
          %2911 = vmatpush2.msra.mxu0 0.0
          %2912 = vmatprep.subr.mxu0 0.0
          %2913 = vmatpush2.msra.mxu0 0.0
          %2914 = vmatprep.subr.mxu0 0.0
          %2915 = vmatpush2.msra.mxu0 0.0
          %2916 = vmatprep.subr.mxu0 0.0
          %2917 = vmatpush2.msra.mxu0 0.0
          %2918 = vmatprep.subr.mxu0 0.0
          %2919 = vmatpush2.msra.mxu0 0.0
          %2920 = vmatprep.subr.mxu0 0.0
          %2921 = vmatpush2.msra.mxu0 0.0
          %2922 = vmatprep.subr.mxu0 0.0
          %2923 = vmatpush2.msra.mxu0 0.0
          %2924 = vmatprep.mubr.f32.mxu0 0.0
          %2925 = vmatmul.mubr.f32.gmra.mxu0 %v2733
          %v2926 = vpop.f32.mrf.mxu0
          %v2927 = vadd.f32 0.0, %v2926
          %v2928 = vpop.f32.mrf.mxu0
          %2929 = vmatprep.mubr.f32.mxu0 0.0
          %2930 = vmatmul.mubr.f32.gmra.mxu0 %v2734
          %v2931 = vpop.f32.mrf.mxu0
          %v2932 = vadd.f32 0.0, %v2931
          %v2933 = vpop.f32.mrf.mxu0
          %2934 = vmatprep.mubr.f32.mxu0 0.0
          %2935 = vmatmul.mubr.f32.gmra.mxu0 %v2735
          %v2936 = vpop.f32.mrf.mxu0
          %v2937 = vadd.f32 0.0, %v2936
          %v2938 = vpop.f32.mrf.mxu0
          %2939 = vmatprep.mubr.f32.mxu0 0.0
          %2940 = vmatmul.mubr.f32.gmra.mxu0 %v2736
          %v2941 = vpop.f32.mrf.mxu0
          %v2942 = vadd.f32 0.0, %v2941
          %v2943 = vpop.f32.mrf.mxu0
          %2944 = vdwg.mxu0
          %v2945 = vadd.f32 %v2839, %v2927
          %v2946 = vadd.f32 %v2840, %v2932
          %v2947 = vadd.f32 %v2841, %v2937
          %v2948 = vadd.f32 %v2842, %v2942
          %s2949 = sadd.s32 %s2495, 2
          %s2950 = smul.u32 %s2949, 40
          %s2951 = scalar_lea.vmem [#allocation3], %s2950
          %v2952 = vld [vmem:[%s2951] sm:$0xff]
          %v2953 = vld [vmem:[%s2951 + $0x8] sm:$0xff]
          %v2954 = vld [vmem:[%s2951 + $0x10] sm:$0xff]
          %v2955 = vld [vmem:[%s2951 + $0x18] sm:$0xff]
          %v2956 = vld [vmem:[%s2951 + $0x1] sm:$0xff]
          %v2957 = vld [vmem:[%s2951 + $0x9] sm:$0xff]
          %v2958 = vld [vmem:[%s2951 + $0x11] sm:$0xff]
          %v2959 = vld [vmem:[%s2951 + $0x19] sm:$0xff]
          %v2960 = vld [vmem:[%s2951 + $0x2] sm:$0xff]
          %v2961 = vld [vmem:[%s2951 + $0xa] sm:$0xff]
          %v2962 = vld [vmem:[%s2951 + $0x12] sm:$0xff]
          %v2963 = vld [vmem:[%s2951 + $0x1a] sm:$0xff]
          %v2964 = vsel %vm1040, %v2960, %v2952
          %v2965 = vsel %vm1040, %v2961, %v2953
          %v2966 = vsel %vm1040, %v2962, %v2954
          %v2967 = vsel %vm1040, %v2963, %v2955
          %s2968 = scalar_lea.vmem %s2, 1536
          %v2969 = vld [vmem:[%s2968] sm:$0xff]
          %v2970 = vld [vmem:[%s2968 + $0x8] sm:$0xff]
          %v2971 = vld [vmem:[%s2968 + $0x10] sm:$0xff]
          %v2972 = vld [vmem:[%s2968 + $0x18] sm:$0xff]
          %v2973 = vld [vmem:[%s2968 + $0x20] sm:$0xff]
          %v2974 = vld [vmem:[%s2968 + $0x28] sm:$0xff]
          %v2975 = vld [vmem:[%s2968 + $0x30] sm:$0xff]
          %v2976 = vld [vmem:[%s2968 + $0x38] sm:$0xff]
          %v2977 = vld [vmem:[%s2968 + $0x40] sm:$0xff]
          %v2978 = vld [vmem:[%s2968 + $0x48] sm:$0xff]
          %v2979 = vld [vmem:[%s2968 + $0x50] sm:$0xff]
          %v2980 = vld [vmem:[%s2968 + $0x58] sm:$0xff]
          %v2981 = vld [vmem:[%s2968 + $0x60] sm:$0xff]
          %v2982 = vld [vmem:[%s2968 + $0x68] sm:$0xff]
          %v2983 = vld [vmem:[%s2968 + $0x70] sm:$0xff]
          %v2984 = vld [vmem:[%s2968 + $0x78] sm:$0xff]
          %2985 = vmatprep.subr.mxu0 0.0
          %2986 = vmatpush1.msra.mxu0 %v2984
          %2987 = vmatprep.subr.mxu0 0.0
          %2988 = vmatpush1.msra.mxu0 %v2983
          %2989 = vmatprep.subr.mxu0 0.0
          %2990 = vmatpush1.msra.mxu0 %v2982
          %2991 = vmatprep.subr.mxu0 0.0
          %2992 = vmatpush1.msra.mxu0 %v2981
          %2993 = vmatprep.subr.mxu0 0.0
          %2994 = vmatpush1.msra.mxu0 %v2980
          %2995 = vmatprep.subr.mxu0 0.0
          %2996 = vmatpush1.msra.mxu0 %v2979
          %2997 = vmatprep.subr.mxu0 0.0
          %2998 = vmatpush1.msra.mxu0 %v2978
          %2999 = vmatprep.subr.mxu0 0.0
          %3000 = vmatpush1.msra.mxu0 %v2977
          %3001 = vmatprep.subr.mxu0 0.0
          %3002 = vmatpush1.msra.mxu0 %v2976
          %3003 = vmatprep.subr.mxu0 0.0
          %3004 = vmatpush1.msra.mxu0 %v2975
          %3005 = vmatprep.subr.mxu0 0.0
          %3006 = vmatpush1.msra.mxu0 %v2974
          %3007 = vmatprep.subr.mxu0 0.0
          %3008 = vmatpush1.msra.mxu0 %v2973
          %3009 = vmatprep.subr.mxu0 0.0
          %3010 = vmatpush1.msra.mxu0 %v2972
          %3011 = vmatprep.subr.mxu0 0.0
          %3012 = vmatpush1.msra.mxu0 %v2971
          %3013 = vmatprep.subr.mxu0 0.0
          %3014 = vmatpush1.msra.mxu0 %v2970
          %3015 = vmatprep.subr.mxu0 0.0
          %3016 = vmatpush1.msra.mxu0 %v2969
          %3017 = vmatprep.subr.mxu0 0.0
          %3018 = vmatpush2.msra.mxu0 0.0
          %3019 = vmatprep.subr.mxu0 0.0
          %3020 = vmatpush2.msra.mxu0 0.0
          %3021 = vmatprep.subr.mxu0 0.0
          %3022 = vmatpush2.msra.mxu0 0.0
          %3023 = vmatprep.subr.mxu0 0.0
          %3024 = vmatpush2.msra.mxu0 0.0
          %3025 = vmatprep.subr.mxu0 0.0
          %3026 = vmatpush2.msra.mxu0 0.0
          %3027 = vmatprep.subr.mxu0 0.0
          %3028 = vmatpush2.msra.mxu0 0.0
          %3029 = vmatprep.subr.mxu0 0.0
          %3030 = vmatpush2.msra.mxu0 0.0
          %3031 = vmatprep.subr.mxu0 0.0
          %3032 = vmatpush2.msra.mxu0 0.0
          %3033 = vmatprep.subr.mxu0 0.0
          %3034 = vmatpush2.msra.mxu0 0.0
          %3035 = vmatprep.subr.mxu0 0.0
          %3036 = vmatpush2.msra.mxu0 0.0
          %3037 = vmatprep.subr.mxu0 0.0
          %3038 = vmatpush2.msra.mxu0 0.0
          %3039 = vmatprep.subr.mxu0 0.0
          %3040 = vmatpush2.msra.mxu0 0.0
          %3041 = vmatprep.subr.mxu0 0.0
          %3042 = vmatpush2.msra.mxu0 0.0
          %3043 = vmatprep.subr.mxu0 0.0
          %3044 = vmatpush2.msra.mxu0 0.0
          %3045 = vmatprep.subr.mxu0 0.0
          %3046 = vmatpush2.msra.mxu0 0.0
          %3047 = vmatprep.subr.mxu0 0.0
          %3048 = vmatpush2.msra.mxu0 0.0
          %3049 = vmatprep.mubr.f32.mxu0 0.0
          %3050 = vmatmul.mubr.f32.gmra.mxu0 %v2956
          %v3051 = vpop.f32.mrf.mxu0
          %v3052 = vadd.f32 0.0, %v3051
          %v3053 = vpop.f32.mrf.mxu0
          %3054 = vmatprep.mubr.f32.mxu0 0.0
          %3055 = vmatmul.mubr.f32.gmra.mxu0 %v2957
          %v3056 = vpop.f32.mrf.mxu0
          %v3057 = vadd.f32 0.0, %v3056
          %v3058 = vpop.f32.mrf.mxu0
          %3059 = vmatprep.mubr.f32.mxu0 0.0
          %3060 = vmatmul.mubr.f32.gmra.mxu0 %v2958
          %v3061 = vpop.f32.mrf.mxu0
          %v3062 = vadd.f32 0.0, %v3061
          %v3063 = vpop.f32.mrf.mxu0
          %3064 = vmatprep.mubr.f32.mxu0 0.0
          %3065 = vmatmul.mubr.f32.gmra.mxu0 %v2959
          %v3066 = vpop.f32.mrf.mxu0
          %v3067 = vadd.f32 0.0, %v3066
          %v3068 = vpop.f32.mrf.mxu0
          %3069 = vdwg.mxu0
          %v3070 = vadd.f32 %v2945, %v3052
          %v3071 = vadd.f32 %v2946, %v3057
          %v3072 = vadd.f32 %v2947, %v3062
          %v3073 = vadd.f32 %v2948, %v3067
          %s3074 = scalar_lea.vmem %s2, 1664
          %v3075 = vld [vmem:[%s3074] sm:$0xff]
          %v3076 = vld [vmem:[%s3074 + $0x8] sm:$0xff]
          %v3077 = vld [vmem:[%s3074 + $0x10] sm:$0xff]
          %v3078 = vld [vmem:[%s3074 + $0x18] sm:$0xff]
          %v3079 = vld [vmem:[%s3074 + $0x20] sm:$0xff]
          %v3080 = vld [vmem:[%s3074 + $0x28] sm:$0xff]
          %v3081 = vld [vmem:[%s3074 + $0x30] sm:$0xff]
          %v3082 = vld [vmem:[%s3074 + $0x38] sm:$0xff]
          %v3083 = vld [vmem:[%s3074 + $0x40] sm:$0xff]
          %v3084 = vld [vmem:[%s3074 + $0x48] sm:$0xff]
          %v3085 = vld [vmem:[%s3074 + $0x50] sm:$0xff]
          %v3086 = vld [vmem:[%s3074 + $0x58] sm:$0xff]
          %v3087 = vld [vmem:[%s3074 + $0x60] sm:$0xff]
          %v3088 = vld [vmem:[%s3074 + $0x68] sm:$0xff]
          %v3089 = vld [vmem:[%s3074 + $0x70] sm:$0xff]
          %v3090 = vld [vmem:[%s3074 + $0x78] sm:$0xff]
          %3091 = vmatprep.subr.mxu0 0.0
          %3092 = vmatpush1.msra.mxu0 %v3090
          %3093 = vmatprep.subr.mxu0 0.0
          %3094 = vmatpush1.msra.mxu0 %v3089
          %3095 = vmatprep.subr.mxu0 0.0
          %3096 = vmatpush1.msra.mxu0 %v3088
          %3097 = vmatprep.subr.mxu0 0.0
          %3098 = vmatpush1.msra.mxu0 %v3087
          %3099 = vmatprep.subr.mxu0 0.0
          %3100 = vmatpush1.msra.mxu0 %v3086
          %3101 = vmatprep.subr.mxu0 0.0
          %3102 = vmatpush1.msra.mxu0 %v3085
          %3103 = vmatprep.subr.mxu0 0.0
          %3104 = vmatpush1.msra.mxu0 %v3084
          %3105 = vmatprep.subr.mxu0 0.0
          %3106 = vmatpush1.msra.mxu0 %v3083
          %3107 = vmatprep.subr.mxu0 0.0
          %3108 = vmatpush1.msra.mxu0 %v3082
          %3109 = vmatprep.subr.mxu0 0.0
          %3110 = vmatpush1.msra.mxu0 %v3081
          %3111 = vmatprep.subr.mxu0 0.0
          %3112 = vmatpush1.msra.mxu0 %v3080
          %3113 = vmatprep.subr.mxu0 0.0
          %3114 = vmatpush1.msra.mxu0 %v3079
          %3115 = vmatprep.subr.mxu0 0.0
          %3116 = vmatpush1.msra.mxu0 %v3078
          %3117 = vmatprep.subr.mxu0 0.0
          %3118 = vmatpush1.msra.mxu0 %v3077
          %3119 = vmatprep.subr.mxu0 0.0
          %3120 = vmatpush1.msra.mxu0 %v3076
          %3121 = vmatprep.subr.mxu0 0.0
          %3122 = vmatpush1.msra.mxu0 %v3075
          %3123 = vmatprep.subr.mxu0 0.0
          %3124 = vmatpush2.msra.mxu0 0.0
          %3125 = vmatprep.subr.mxu0 0.0
          %3126 = vmatpush2.msra.mxu0 0.0
          %3127 = vmatprep.subr.mxu0 0.0
          %3128 = vmatpush2.msra.mxu0 0.0
          %3129 = vmatprep.subr.mxu0 0.0
          %3130 = vmatpush2.msra.mxu0 0.0
          %3131 = vmatprep.subr.mxu0 0.0
          %3132 = vmatpush2.msra.mxu0 0.0
          %3133 = vmatprep.subr.mxu0 0.0
          %3134 = vmatpush2.msra.mxu0 0.0
          %3135 = vmatprep.subr.mxu0 0.0
          %3136 = vmatpush2.msra.mxu0 0.0
          %3137 = vmatprep.subr.mxu0 0.0
          %3138 = vmatpush2.msra.mxu0 0.0
          %3139 = vmatprep.subr.mxu0 0.0
          %3140 = vmatpush2.msra.mxu0 0.0
          %3141 = vmatprep.subr.mxu0 0.0
          %3142 = vmatpush2.msra.mxu0 0.0
          %3143 = vmatprep.subr.mxu0 0.0
          %3144 = vmatpush2.msra.mxu0 0.0
          %3145 = vmatprep.subr.mxu0 0.0
          %3146 = vmatpush2.msra.mxu0 0.0
          %3147 = vmatprep.subr.mxu0 0.0
          %3148 = vmatpush2.msra.mxu0 0.0
          %3149 = vmatprep.subr.mxu0 0.0
          %3150 = vmatpush2.msra.mxu0 0.0
          %3151 = vmatprep.subr.mxu0 0.0
          %3152 = vmatpush2.msra.mxu0 0.0
          %3153 = vmatprep.subr.mxu0 0.0
          %3154 = vmatpush2.msra.mxu0 0.0
          %3155 = vmatprep.mubr.f32.mxu0 0.0
          %3156 = vmatmul.mubr.f32.gmra.mxu0 %v2964
          %v3157 = vpop.f32.mrf.mxu0
          %v3158 = vadd.f32 0.0, %v3157
          %v3159 = vpop.f32.mrf.mxu0
          %3160 = vmatprep.mubr.f32.mxu0 0.0
          %3161 = vmatmul.mubr.f32.gmra.mxu0 %v2965
          %v3162 = vpop.f32.mrf.mxu0
          %v3163 = vadd.f32 0.0, %v3162
          %v3164 = vpop.f32.mrf.mxu0
          %3165 = vmatprep.mubr.f32.mxu0 0.0
          %3166 = vmatmul.mubr.f32.gmra.mxu0 %v2966
          %v3167 = vpop.f32.mrf.mxu0
          %v3168 = vadd.f32 0.0, %v3167
          %v3169 = vpop.f32.mrf.mxu0
          %3170 = vmatprep.mubr.f32.mxu0 0.0
          %3171 = vmatmul.mubr.f32.gmra.mxu0 %v2967
          %v3172 = vpop.f32.mrf.mxu0
          %v3173 = vadd.f32 0.0, %v3172
          %v3174 = vpop.f32.mrf.mxu0
          %3175 = vdwg.mxu0
          %v3176 = vadd.f32 %v3070, %v3158
          %v3177 = vadd.f32 %v3071, %v3163
          %v3178 = vadd.f32 %v3072, %v3168
          %v3179 = vadd.f32 %v3073, %v3173
          %s3180 = sadd.s32 %s2495, 3
          %s3181 = smul.u32 %s3180, 40
          %s3182 = scalar_lea.vmem [#allocation3], %s3181
          %v3183 = vld [vmem:[%s3182] sm:$0xff]
          %v3184 = vld [vmem:[%s3182 + $0x8] sm:$0xff]
          %v3185 = vld [vmem:[%s3182 + $0x10] sm:$0xff]
          %v3186 = vld [vmem:[%s3182 + $0x18] sm:$0xff]
          %v3187 = vld [vmem:[%s3182 + $0x1] sm:$0xff]
          %v3188 = vld [vmem:[%s3182 + $0x9] sm:$0xff]
          %v3189 = vld [vmem:[%s3182 + $0x11] sm:$0xff]
          %v3190 = vld [vmem:[%s3182 + $0x19] sm:$0xff]
          %v3191 = vld [vmem:[%s3182 + $0x2] sm:$0xff]
          %v3192 = vld [vmem:[%s3182 + $0xa] sm:$0xff]
          %v3193 = vld [vmem:[%s3182 + $0x12] sm:$0xff]
          %v3194 = vld [vmem:[%s3182 + $0x1a] sm:$0xff]
          %v3195 = vsel %vm1040, %v3191, %v3183
          %v3196 = vsel %vm1040, %v3192, %v3184
          %v3197 = vsel %vm1040, %v3193, %v3185
          %v3198 = vsel %vm1040, %v3194, %v3186
          %s3199 = scalar_lea.vmem %s2, 1792
          %v3200 = vld [vmem:[%s3199] sm:$0xff]
          %v3201 = vld [vmem:[%s3199 + $0x8] sm:$0xff]
          %v3202 = vld [vmem:[%s3199 + $0x10] sm:$0xff]
          %v3203 = vld [vmem:[%s3199 + $0x18] sm:$0xff]
          %v3204 = vld [vmem:[%s3199 + $0x20] sm:$0xff]
          %v3205 = vld [vmem:[%s3199 + $0x28] sm:$0xff]
          %v3206 = vld [vmem:[%s3199 + $0x30] sm:$0xff]
          %v3207 = vld [vmem:[%s3199 + $0x38] sm:$0xff]
          %v3208 = vld [vmem:[%s3199 + $0x40] sm:$0xff]
          %v3209 = vld [vmem:[%s3199 + $0x48] sm:$0xff]
          %v3210 = vld [vmem:[%s3199 + $0x50] sm:$0xff]
          %v3211 = vld [vmem:[%s3199 + $0x58] sm:$0xff]
          %v3212 = vld [vmem:[%s3199 + $0x60] sm:$0xff]
          %v3213 = vld [vmem:[%s3199 + $0x68] sm:$0xff]
          %v3214 = vld [vmem:[%s3199 + $0x70] sm:$0xff]
          %v3215 = vld [vmem:[%s3199 + $0x78] sm:$0xff]
          %3216 = vmatprep.subr.mxu0 0.0
          %3217 = vmatpush1.msra.mxu0 %v3215
          %3218 = vmatprep.subr.mxu0 0.0
          %3219 = vmatpush1.msra.mxu0 %v3214
          %3220 = vmatprep.subr.mxu0 0.0
          %3221 = vmatpush1.msra.mxu0 %v3213
          %3222 = vmatprep.subr.mxu0 0.0
          %3223 = vmatpush1.msra.mxu0 %v3212
          %3224 = vmatprep.subr.mxu0 0.0
          %3225 = vmatpush1.msra.mxu0 %v3211
          %3226 = vmatprep.subr.mxu0 0.0
          %3227 = vmatpush1.msra.mxu0 %v3210
          %3228 = vmatprep.subr.mxu0 0.0
          %3229 = vmatpush1.msra.mxu0 %v3209
          %3230 = vmatprep.subr.mxu0 0.0
          %3231 = vmatpush1.msra.mxu0 %v3208
          %3232 = vmatprep.subr.mxu0 0.0
          %3233 = vmatpush1.msra.mxu0 %v3207
          %3234 = vmatprep.subr.mxu0 0.0
          %3235 = vmatpush1.msra.mxu0 %v3206
          %3236 = vmatprep.subr.mxu0 0.0
          %3237 = vmatpush1.msra.mxu0 %v3205
          %3238 = vmatprep.subr.mxu0 0.0
          %3239 = vmatpush1.msra.mxu0 %v3204
          %3240 = vmatprep.subr.mxu0 0.0
          %3241 = vmatpush1.msra.mxu0 %v3203
          %3242 = vmatprep.subr.mxu0 0.0
          %3243 = vmatpush1.msra.mxu0 %v3202
          %3244 = vmatprep.subr.mxu0 0.0
          %3245 = vmatpush1.msra.mxu0 %v3201
          %3246 = vmatprep.subr.mxu0 0.0
          %3247 = vmatpush1.msra.mxu0 %v3200
          %3248 = vmatprep.subr.mxu0 0.0
          %3249 = vmatpush2.msra.mxu0 0.0
          %3250 = vmatprep.subr.mxu0 0.0
          %3251 = vmatpush2.msra.mxu0 0.0
          %3252 = vmatprep.subr.mxu0 0.0
          %3253 = vmatpush2.msra.mxu0 0.0
          %3254 = vmatprep.subr.mxu0 0.0
          %3255 = vmatpush2.msra.mxu0 0.0
          %3256 = vmatprep.subr.mxu0 0.0
          %3257 = vmatpush2.msra.mxu0 0.0
          %3258 = vmatprep.subr.mxu0 0.0
          %3259 = vmatpush2.msra.mxu0 0.0
          %3260 = vmatprep.subr.mxu0 0.0
          %3261 = vmatpush2.msra.mxu0 0.0
          %3262 = vmatprep.subr.mxu0 0.0
          %3263 = vmatpush2.msra.mxu0 0.0
          %3264 = vmatprep.subr.mxu0 0.0
          %3265 = vmatpush2.msra.mxu0 0.0
          %3266 = vmatprep.subr.mxu0 0.0
          %3267 = vmatpush2.msra.mxu0 0.0
          %3268 = vmatprep.subr.mxu0 0.0
          %3269 = vmatpush2.msra.mxu0 0.0
          %3270 = vmatprep.subr.mxu0 0.0
          %3271 = vmatpush2.msra.mxu0 0.0
          %3272 = vmatprep.subr.mxu0 0.0
          %3273 = vmatpush2.msra.mxu0 0.0
          %3274 = vmatprep.subr.mxu0 0.0
          %3275 = vmatpush2.msra.mxu0 0.0
          %3276 = vmatprep.subr.mxu0 0.0
          %3277 = vmatpush2.msra.mxu0 0.0
          %3278 = vmatprep.subr.mxu0 0.0
          %3279 = vmatpush2.msra.mxu0 0.0
          %3280 = vmatprep.mubr.f32.mxu0 0.0
          %3281 = vmatmul.mubr.f32.gmra.mxu0 %v3187
          %v3282 = vpop.f32.mrf.mxu0
          %v3283 = vadd.f32 0.0, %v3282
          %v3284 = vpop.f32.mrf.mxu0
          %3285 = vmatprep.mubr.f32.mxu0 0.0
          %3286 = vmatmul.mubr.f32.gmra.mxu0 %v3188
          %v3287 = vpop.f32.mrf.mxu0
          %v3288 = vadd.f32 0.0, %v3287
          %v3289 = vpop.f32.mrf.mxu0
          %3290 = vmatprep.mubr.f32.mxu0 0.0
          %3291 = vmatmul.mubr.f32.gmra.mxu0 %v3189
          %v3292 = vpop.f32.mrf.mxu0
          %v3293 = vadd.f32 0.0, %v3292
          %v3294 = vpop.f32.mrf.mxu0
          %3295 = vmatprep.mubr.f32.mxu0 0.0
          %3296 = vmatmul.mubr.f32.gmra.mxu0 %v3190
          %v3297 = vpop.f32.mrf.mxu0
          %v3298 = vadd.f32 0.0, %v3297
          %v3299 = vpop.f32.mrf.mxu0
          %3300 = vdwg.mxu0
          %v3301 = vadd.f32 %v3176, %v3283
          %v3302 = vadd.f32 %v3177, %v3288
          %v3303 = vadd.f32 %v3178, %v3293
          %v3304 = vadd.f32 %v3179, %v3298
          %s3305 = scalar_lea.vmem %s2, 1920
          %v3306 = vld [vmem:[%s3305] sm:$0xff]
          %v3307 = vld [vmem:[%s3305 + $0x8] sm:$0xff]
          %v3308 = vld [vmem:[%s3305 + $0x10] sm:$0xff]
          %v3309 = vld [vmem:[%s3305 + $0x18] sm:$0xff]
          %v3310 = vld [vmem:[%s3305 + $0x20] sm:$0xff]
          %v3311 = vld [vmem:[%s3305 + $0x28] sm:$0xff]
          %v3312 = vld [vmem:[%s3305 + $0x30] sm:$0xff]
          %v3313 = vld [vmem:[%s3305 + $0x38] sm:$0xff]
          %v3314 = vld [vmem:[%s3305 + $0x40] sm:$0xff]
          %v3315 = vld [vmem:[%s3305 + $0x48] sm:$0xff]
          %v3316 = vld [vmem:[%s3305 + $0x50] sm:$0xff]
          %v3317 = vld [vmem:[%s3305 + $0x58] sm:$0xff]
          %v3318 = vld [vmem:[%s3305 + $0x60] sm:$0xff]
          %v3319 = vld [vmem:[%s3305 + $0x68] sm:$0xff]
          %v3320 = vld [vmem:[%s3305 + $0x70] sm:$0xff]
          %v3321 = vld [vmem:[%s3305 + $0x78] sm:$0xff]
          %3322 = vmatprep.subr.mxu0 0.0
          %3323 = vmatpush1.msra.mxu0 %v3321
          %3324 = vmatprep.subr.mxu0 0.0
          %3325 = vmatpush1.msra.mxu0 %v3320
          %3326 = vmatprep.subr.mxu0 0.0
          %3327 = vmatpush1.msra.mxu0 %v3319
          %3328 = vmatprep.subr.mxu0 0.0
          %3329 = vmatpush1.msra.mxu0 %v3318
          %3330 = vmatprep.subr.mxu0 0.0
          %3331 = vmatpush1.msra.mxu0 %v3317
          %3332 = vmatprep.subr.mxu0 0.0
          %3333 = vmatpush1.msra.mxu0 %v3316
          %3334 = vmatprep.subr.mxu0 0.0
          %3335 = vmatpush1.msra.mxu0 %v3315
          %3336 = vmatprep.subr.mxu0 0.0
          %3337 = vmatpush1.msra.mxu0 %v3314
          %3338 = vmatprep.subr.mxu0 0.0
          %3339 = vmatpush1.msra.mxu0 %v3313
          %3340 = vmatprep.subr.mxu0 0.0
          %3341 = vmatpush1.msra.mxu0 %v3312
          %3342 = vmatprep.subr.mxu0 0.0
          %3343 = vmatpush1.msra.mxu0 %v3311
          %3344 = vmatprep.subr.mxu0 0.0
          %3345 = vmatpush1.msra.mxu0 %v3310
          %3346 = vmatprep.subr.mxu0 0.0
          %3347 = vmatpush1.msra.mxu0 %v3309
          %3348 = vmatprep.subr.mxu0 0.0
          %3349 = vmatpush1.msra.mxu0 %v3308
          %3350 = vmatprep.subr.mxu0 0.0
          %3351 = vmatpush1.msra.mxu0 %v3307
          %3352 = vmatprep.subr.mxu0 0.0
          %3353 = vmatpush1.msra.mxu0 %v3306
          %3354 = vmatprep.subr.mxu0 0.0
          %3355 = vmatpush2.msra.mxu0 0.0
          %3356 = vmatprep.subr.mxu0 0.0
          %3357 = vmatpush2.msra.mxu0 0.0
          %3358 = vmatprep.subr.mxu0 0.0
          %3359 = vmatpush2.msra.mxu0 0.0
          %3360 = vmatprep.subr.mxu0 0.0
          %3361 = vmatpush2.msra.mxu0 0.0
          %3362 = vmatprep.subr.mxu0 0.0
          %3363 = vmatpush2.msra.mxu0 0.0
          %3364 = vmatprep.subr.mxu0 0.0
          %3365 = vmatpush2.msra.mxu0 0.0
          %3366 = vmatprep.subr.mxu0 0.0
          %3367 = vmatpush2.msra.mxu0 0.0
          %3368 = vmatprep.subr.mxu0 0.0
          %3369 = vmatpush2.msra.mxu0 0.0
          %3370 = vmatprep.subr.mxu0 0.0
          %3371 = vmatpush2.msra.mxu0 0.0
          %3372 = vmatprep.subr.mxu0 0.0
          %3373 = vmatpush2.msra.mxu0 0.0
          %3374 = vmatprep.subr.mxu0 0.0
          %3375 = vmatpush2.msra.mxu0 0.0
          %3376 = vmatprep.subr.mxu0 0.0
          %3377 = vmatpush2.msra.mxu0 0.0
          %3378 = vmatprep.subr.mxu0 0.0
          %3379 = vmatpush2.msra.mxu0 0.0
          %3380 = vmatprep.subr.mxu0 0.0
          %3381 = vmatpush2.msra.mxu0 0.0
          %3382 = vmatprep.subr.mxu0 0.0
          %3383 = vmatpush2.msra.mxu0 0.0
          %3384 = vmatprep.subr.mxu0 0.0
          %3385 = vmatpush2.msra.mxu0 0.0
          %3386 = vmatprep.mubr.f32.mxu0 0.0
          %3387 = vmatmul.mubr.f32.gmra.mxu0 %v3195
          %v3388 = vpop.f32.mrf.mxu0
          %v3389 = vadd.f32 0.0, %v3388
          %v3390 = vpop.f32.mrf.mxu0
          %3391 = vmatprep.mubr.f32.mxu0 0.0
          %3392 = vmatmul.mubr.f32.gmra.mxu0 %v3196
          %v3393 = vpop.f32.mrf.mxu0
          %v3394 = vadd.f32 0.0, %v3393
          %v3395 = vpop.f32.mrf.mxu0
          %3396 = vmatprep.mubr.f32.mxu0 0.0
          %3397 = vmatmul.mubr.f32.gmra.mxu0 %v3197
          %v3398 = vpop.f32.mrf.mxu0
          %v3399 = vadd.f32 0.0, %v3398
          %v3400 = vpop.f32.mrf.mxu0
          %3401 = vmatprep.mubr.f32.mxu0 0.0
          %3402 = vmatmul.mubr.f32.gmra.mxu0 %v3198
          %v3403 = vpop.f32.mrf.mxu0
          %v3404 = vadd.f32 0.0, %v3403
          %v3405 = vpop.f32.mrf.mxu0
          %3406 = vdwg.mxu0
          %v3407 = vadd.f32 %v3301, %v3389
          %v3408 = vadd.f32 %v3302, %v3394
          %v3409 = vadd.f32 %v3303, %v3399
          %v3410 = vadd.f32 %v3304, %v3404
          %v3411 = vlaneseq
          %v3412 = vshrl.u32 %v3411, 7
          %v3413 = vsub.s32 0, %v3412
          %v3414 = vrot.slane %v2488, %v3413
          %v3415 = vadd.f32 %v3407, %v3414
          %v3416 = vadd.f32 %v3408, %v3414
          %v3417 = vadd.f32 %v3409, %v3414
          %v3418 = vadd.f32 %v3410, %v3414
          %v3419 = vmax.f32 %v3415, 0.0
          %v3420 = vmax.f32 %v3416, 0.0
          %v3421 = vmax.f32 %v3417, 0.0
          %v3422 = vmax.f32 %v3418, 0.0
          %vm3423 = vcmask 261120
          %v3425 = vsel %vm3423, %v1058, 0
          %v3428 = vsel %vm3423, %v1059, 0
          %3430 = vmatprep.subr.mxu0 0.0
          %3431 = vmatpush1.msra.mxu0 0.0
          %3432 = vmatprep.subr.mxu0 0.0
          %3433 = vmatpush1.msra.mxu0 0.0
          %3434 = vmatprep.subr.mxu0 0.0
          %3435 = vmatpush1.msra.mxu0 0.0
          %3436 = vmatprep.subr.mxu0 0.0
          %3437 = vmatpush1.msra.mxu0 0.0
          %3438 = vmatprep.subr.mxu0 0.0
          %3439 = vmatpush1.msra.mxu0 0.0
          %3440 = vmatprep.subr.mxu0 0.0
          %3441 = vmatpush1.msra.mxu0 0.0
          %3442 = vmatprep.subr.mxu0 0.0
          %3443 = vmatpush1.msra.mxu0 0.0
          %3444 = vmatprep.subr.mxu0 0.0
          %3445 = vmatpush1.msra.mxu0 0.0
          %3446 = vmatprep.subr.mxu0 0.0
          %3447 = vmatpush1.msra.mxu0 0.0
          %3448 = vmatprep.subr.mxu0 0.0
          %3449 = vmatpush1.msra.mxu0 0.0
          %3450 = vmatprep.subr.mxu0 0.0
          %3451 = vmatpush1.msra.mxu0 0.0
          %3452 = vmatprep.subr.mxu0 0.0
          %3453 = vmatpush1.msra.mxu0 0.0
          %3454 = vmatprep.subr.mxu0 0.0
          %3455 = vmatpush1.msra.mxu0 %v3422
          %3456 = vmatprep.subr.mxu0 0.0
          %3457 = vmatpush1.msra.mxu0 %v3421
          %3458 = vmatprep.subr.mxu0 0.0
          %3459 = vmatpush1.msra.mxu0 %v3420
          %3460 = vmatprep.subr.mxu0 0.0
          %3461 = vmatpush1.msra.mxu0 %v3419
          %3462 = vmatprep.subr.mxu0 0.0
          %3463 = vmatpush2.msra.mxu0 0.0
          %3464 = vmatprep.subr.mxu0 0.0
          %3465 = vmatpush2.msra.mxu0 0.0
          %3466 = vmatprep.subr.mxu0 0.0
          %3467 = vmatpush2.msra.mxu0 0.0
          %3468 = vmatprep.subr.mxu0 0.0
          %3469 = vmatpush2.msra.mxu0 0.0
          %3470 = vmatprep.subr.mxu0 0.0
          %3471 = vmatpush2.msra.mxu0 0.0
          %3472 = vmatprep.subr.mxu0 0.0
          %3473 = vmatpush2.msra.mxu0 0.0
          %3474 = vmatprep.subr.mxu0 0.0
          %3475 = vmatpush2.msra.mxu0 0.0
          %3476 = vmatprep.subr.mxu0 0.0
          %3477 = vmatpush2.msra.mxu0 0.0
          %3478 = vmatprep.subr.mxu0 0.0
          %3479 = vmatpush2.msra.mxu0 0.0
          %3480 = vmatprep.subr.mxu0 0.0
          %3481 = vmatpush2.msra.mxu0 0.0
          %3482 = vmatprep.subr.mxu0 0.0
          %3483 = vmatpush2.msra.mxu0 0.0
          %3484 = vmatprep.subr.mxu0 0.0
          %3485 = vmatpush2.msra.mxu0 0.0
          %3486 = vmatprep.subr.mxu0 0.0
          %3487 = vmatpush2.msra.mxu0 0.0
          %3488 = vmatprep.subr.mxu0 0.0
          %3489 = vmatpush2.msra.mxu0 0.0
          %3490 = vmatprep.subr.mxu0 0.0
          %3491 = vmatpush2.msra.mxu0 0.0
          %3492 = vmatprep.subr.mxu0 0.0
          %3493 = vmatpush2.msra.mxu0 0.0
          %3494 = vmatprep.mubr.f32.mxu0 0.0
          %3495 = vmatmul.mubr.f32.gmra.mxu0 %v3425
          %v3496 = vpop.f32.mrf.mxu0
          %v3497 = vadd.f32 0.0, %v3496
          %v3498 = vpop.f32.mrf.mxu0
          %3499 = vmatprep.mubr.f32.mxu0 0.0
          %3500 = vmatmul.mubr.f32.gmra.mxu0 %v3428
          %v3501 = vpop.f32.mrf.mxu0
          %v3502 = vadd.f32 0.0, %v3501
          %v3503 = vpop.f32.mrf.mxu0
          %3504 = vdwg.mxu0
          %v3506 = vsel %vm3423, %v1074, 0
          %v3509 = vsel %vm3423, %v1075, 0
          %3511 = vmatprep.subr.mxu0 0.0
          %3512 = vmatpush1.msra.mxu0 0.0
          %3513 = vmatprep.subr.mxu0 0.0
          %3514 = vmatpush1.msra.mxu0 0.0
          %3515 = vmatprep.subr.mxu0 0.0
          %3516 = vmatpush1.msra.mxu0 0.0
          %3517 = vmatprep.subr.mxu0 0.0
          %3518 = vmatpush1.msra.mxu0 0.0
          %3519 = vmatprep.subr.mxu0 0.0
          %3520 = vmatpush1.msra.mxu0 0.0
          %3521 = vmatprep.subr.mxu0 0.0
          %3522 = vmatpush1.msra.mxu0 0.0
          %3523 = vmatprep.subr.mxu0 0.0
          %3524 = vmatpush1.msra.mxu0 0.0
          %3525 = vmatprep.subr.mxu0 0.0
          %3526 = vmatpush1.msra.mxu0 0.0
          %3527 = vmatprep.subr.mxu0 0.0
          %3528 = vmatpush1.msra.mxu0 0.0
          %3529 = vmatprep.subr.mxu0 0.0
          %3530 = vmatpush1.msra.mxu0 0.0
          %3531 = vmatprep.subr.mxu0 0.0
          %3532 = vmatpush1.msra.mxu0 0.0
          %3533 = vmatprep.subr.mxu0 0.0
          %3534 = vmatpush1.msra.mxu0 0.0
          %3535 = vmatprep.subr.mxu0 0.0
          %3536 = vmatpush1.msra.mxu0 %v3422
          %3537 = vmatprep.subr.mxu0 0.0
          %3538 = vmatpush1.msra.mxu0 %v3421
          %3539 = vmatprep.subr.mxu0 0.0
          %3540 = vmatpush1.msra.mxu0 %v3420
          %3541 = vmatprep.subr.mxu0 0.0
          %3542 = vmatpush1.msra.mxu0 %v3419
          %3543 = vmatprep.subr.mxu0 0.0
          %3544 = vmatpush2.msra.mxu0 0.0
          %3545 = vmatprep.subr.mxu0 0.0
          %3546 = vmatpush2.msra.mxu0 0.0
          %3547 = vmatprep.subr.mxu0 0.0
          %3548 = vmatpush2.msra.mxu0 0.0
          %3549 = vmatprep.subr.mxu0 0.0
          %3550 = vmatpush2.msra.mxu0 0.0
          %3551 = vmatprep.subr.mxu0 0.0
          %3552 = vmatpush2.msra.mxu0 0.0
          %3553 = vmatprep.subr.mxu0 0.0
          %3554 = vmatpush2.msra.mxu0 0.0
          %3555 = vmatprep.subr.mxu0 0.0
          %3556 = vmatpush2.msra.mxu0 0.0
          %3557 = vmatprep.subr.mxu0 0.0
          %3558 = vmatpush2.msra.mxu0 0.0
          %3559 = vmatprep.subr.mxu0 0.0
          %3560 = vmatpush2.msra.mxu0 0.0
          %3561 = vmatprep.subr.mxu0 0.0
          %3562 = vmatpush2.msra.mxu0 0.0
          %3563 = vmatprep.subr.mxu0 0.0
          %3564 = vmatpush2.msra.mxu0 0.0
          %3565 = vmatprep.subr.mxu0 0.0
          %3566 = vmatpush2.msra.mxu0 0.0
          %3567 = vmatprep.subr.mxu0 0.0
          %3568 = vmatpush2.msra.mxu0 0.0
          %3569 = vmatprep.subr.mxu0 0.0
          %3570 = vmatpush2.msra.mxu0 0.0
          %3571 = vmatprep.subr.mxu0 0.0
          %3572 = vmatpush2.msra.mxu0 0.0
          %3573 = vmatprep.subr.mxu0 0.0
          %3574 = vmatpush2.msra.mxu0 0.0
          %3575 = vmatprep.mubr.f32.mxu0 0.0
          %3576 = vmatmul.mubr.f32.gmra.mxu0 %v3506
          %v3577 = vpop.f32.mrf.mxu0
          %v3578 = vadd.f32 0.0, %v3577
          %v3579 = vpop.f32.mrf.mxu0
          %3580 = vmatprep.mubr.f32.mxu0 0.0
          %3581 = vmatmul.mubr.f32.gmra.mxu0 %v3509
          %v3582 = vpop.f32.mrf.mxu0
          %v3583 = vadd.f32 0.0, %v3582
          %v3584 = vpop.f32.mrf.mxu0
          %3585 = vdwg.mxu0
          %3588 = vrot.lane.b32.xlu0 %v3578, 64
          %v3589 = vpop.permute.xlu0 %3588
          %3590 = vrot.lane.b32.xlu0 %v3583, 64
          %v3591 = vpop.permute.xlu0 %3590
          %v3594 = vsel %vm777, %v3497, %v3589
          %v3595 = vsel %vm777, %v3502, %v3591
          %s3596 = sadd.s32 %s2490, 1
          %s3597 = smul.u32 %s3596, 24
          %s3598 = scalar_lea.vmem [#allocation4], %s3597
          %3599 = vst [vmem:[%s3598 + $0x1] sm:$0xff] %v3594
          %3600 = vst [vmem:[%s3598 + $0x9] sm:$0xff] %v3595
        $region59: #{enc_conv_forward.1} parent=39 // loop_footer
          %s2494 = sadd.s32 1, %s2490
        $region60: #{enc_conv_forward.1} parent=39 // loop_footer_branch
          %2489 = sbr.rel target = $region56
        $region61: #{enc_conv_forward.1} parent=39 // loop_exit
          _
        %v3601 = vld [vmem:[%s4 + $0x3] sm:$0x1]
        loop: start=0, step=1, limit=16
        $region62: #{enc_conv_forward.1} parent=39 // loop_pre_header
          _
        $region63: #{enc_conv_forward.1} parent=39 // loop_header
          %s3603 = sphi 0, %s3607
          %p3604 = scmp.ge.s32.totalorder %s3603, 16
        $region64: #{enc_conv_forward.1} parent=39 // loop_header_branch
          %3606 = sbr.rel (%p3604) target = $region68
        $region65: #{enc_conv_forward.1} parent=39 // loop_body
          %s3608 = smul.u32 %s3603, 2
          %s3609 = smul.u32 %s3608, 24
          %s3610 = scalar_lea.vmem [#allocation4], %s3609
          %v3611 = vld [vmem:[%s3610] sm:$0xff]
          %v3612 = vld [vmem:[%s3610 + $0x8] sm:$0xff]
          %v3613 = vld [vmem:[%s3610 + $0x1] sm:$0xff]
          %v3614 = vld [vmem:[%s3610 + $0x9] sm:$0xff]
          %v3615 = vld [vmem:[%s3610 + $0x2] sm:$0xff]
          %v3616 = vld [vmem:[%s3610 + $0xa] sm:$0xff]
          %v3617 = vsel %vm1040, %v3615, %v3611
          %v3618 = vsel %vm1040, %v3616, %v3612
          %s3619 = scalar_lea.vmem %s2, 2048
          %v3620 = vld [vmem:[%s3619] sm:$0xff]
          %v3621 = vld [vmem:[%s3619 + $0x8] sm:$0xff]
          %v3622 = vld [vmem:[%s3619 + $0x10] sm:$0xff]
          %v3623 = vld [vmem:[%s3619 + $0x18] sm:$0xff]
          %v3624 = vld [vmem:[%s3619 + $0x20] sm:$0xff]
          %v3625 = vld [vmem:[%s3619 + $0x28] sm:$0xff]
          %v3626 = vld [vmem:[%s3619 + $0x30] sm:$0xff]
          %v3627 = vld [vmem:[%s3619 + $0x38] sm:$0xff]
          %v3628 = vld [vmem:[%s3619 + $0x40] sm:$0xff]
          %v3629 = vld [vmem:[%s3619 + $0x48] sm:$0xff]
          %v3630 = vld [vmem:[%s3619 + $0x50] sm:$0xff]
          %v3631 = vld [vmem:[%s3619 + $0x58] sm:$0xff]
          %v3632 = vld [vmem:[%s3619 + $0x60] sm:$0xff]
          %v3633 = vld [vmem:[%s3619 + $0x68] sm:$0xff]
          %v3634 = vld [vmem:[%s3619 + $0x70] sm:$0xff]
          %v3635 = vld [vmem:[%s3619 + $0x78] sm:$0xff]
          %s3636 = scalar_lea.vmem %s2, 2176
          %v3637 = vld [vmem:[%s3636] sm:$0xff]
          %v3638 = vld [vmem:[%s3636 + $0x8] sm:$0xff]
          %v3639 = vld [vmem:[%s3636 + $0x10] sm:$0xff]
          %v3640 = vld [vmem:[%s3636 + $0x18] sm:$0xff]
          %v3641 = vld [vmem:[%s3636 + $0x20] sm:$0xff]
          %v3642 = vld [vmem:[%s3636 + $0x28] sm:$0xff]
          %v3643 = vld [vmem:[%s3636 + $0x30] sm:$0xff]
          %v3644 = vld [vmem:[%s3636 + $0x38] sm:$0xff]
          %v3645 = vld [vmem:[%s3636 + $0x40] sm:$0xff]
          %v3646 = vld [vmem:[%s3636 + $0x48] sm:$0xff]
          %v3647 = vld [vmem:[%s3636 + $0x50] sm:$0xff]
          %v3648 = vld [vmem:[%s3636 + $0x58] sm:$0xff]
          %v3649 = vld [vmem:[%s3636 + $0x60] sm:$0xff]
          %v3650 = vld [vmem:[%s3636 + $0x68] sm:$0xff]
          %v3651 = vld [vmem:[%s3636 + $0x70] sm:$0xff]
          %v3652 = vld [vmem:[%s3636 + $0x78] sm:$0xff]
          %3653 = vmatprep.subr.mxu0 0.0
          %3654 = vmatpush1.msra.mxu0 %v3652
          %3655 = vmatprep.subr.mxu0 0.0
          %3656 = vmatpush1.msra.mxu0 %v3651
          %3657 = vmatprep.subr.mxu0 0.0
          %3658 = vmatpush1.msra.mxu0 %v3650
          %3659 = vmatprep.subr.mxu0 0.0
          %3660 = vmatpush1.msra.mxu0 %v3649
          %3661 = vmatprep.subr.mxu0 0.0
          %3662 = vmatpush1.msra.mxu0 %v3648
          %3663 = vmatprep.subr.mxu0 0.0
          %3664 = vmatpush1.msra.mxu0 %v3647
          %3665 = vmatprep.subr.mxu0 0.0
          %3666 = vmatpush1.msra.mxu0 %v3646
          %3667 = vmatprep.subr.mxu0 0.0
          %3668 = vmatpush1.msra.mxu0 %v3645
          %3669 = vmatprep.subr.mxu0 0.0
          %3670 = vmatpush1.msra.mxu0 %v3644
          %3671 = vmatprep.subr.mxu0 0.0
          %3672 = vmatpush1.msra.mxu0 %v3643
          %3673 = vmatprep.subr.mxu0 0.0
          %3674 = vmatpush1.msra.mxu0 %v3642
          %3675 = vmatprep.subr.mxu0 0.0
          %3676 = vmatpush1.msra.mxu0 %v3641
          %3677 = vmatprep.subr.mxu0 0.0
          %3678 = vmatpush1.msra.mxu0 %v3640
          %3679 = vmatprep.subr.mxu0 0.0
          %3680 = vmatpush1.msra.mxu0 %v3639
          %3681 = vmatprep.subr.mxu0 0.0
          %3682 = vmatpush1.msra.mxu0 %v3638
          %3683 = vmatprep.subr.mxu0 0.0
          %3684 = vmatpush1.msra.mxu0 %v3637
          %3685 = vmatprep.subr.mxu0 0.0
          %3686 = vmatpush2.msra.mxu0 0.0
          %3687 = vmatprep.subr.mxu0 0.0
          %3688 = vmatpush2.msra.mxu0 0.0
          %3689 = vmatprep.subr.mxu0 0.0
          %3690 = vmatpush2.msra.mxu0 0.0
          %3691 = vmatprep.subr.mxu0 0.0
          %3692 = vmatpush2.msra.mxu0 0.0
          %3693 = vmatprep.subr.mxu0 0.0
          %3694 = vmatpush2.msra.mxu0 0.0
          %3695 = vmatprep.subr.mxu0 0.0
          %3696 = vmatpush2.msra.mxu0 0.0
          %3697 = vmatprep.subr.mxu0 0.0
          %3698 = vmatpush2.msra.mxu0 0.0
          %3699 = vmatprep.subr.mxu0 0.0
          %3700 = vmatpush2.msra.mxu0 0.0
          %3701 = vmatprep.subr.mxu0 0.0
          %3702 = vmatpush2.msra.mxu0 0.0
          %3703 = vmatprep.subr.mxu0 0.0
          %3704 = vmatpush2.msra.mxu0 0.0
          %3705 = vmatprep.subr.mxu0 0.0
          %3706 = vmatpush2.msra.mxu0 0.0
          %3707 = vmatprep.subr.mxu0 0.0
          %3708 = vmatpush2.msra.mxu0 0.0
          %3709 = vmatprep.subr.mxu0 0.0
          %3710 = vmatpush2.msra.mxu0 0.0
          %3711 = vmatprep.subr.mxu0 0.0
          %3712 = vmatpush2.msra.mxu0 0.0
          %3713 = vmatprep.subr.mxu0 0.0
          %3714 = vmatpush2.msra.mxu0 0.0
          %3715 = vmatprep.subr.mxu0 0.0
          %3716 = vmatpush2.msra.mxu0 0.0
          %3717 = vmatprep.mubr.f32.mxu0 0.0
          %3718 = vmatmul.mubr.f32.gmra.mxu0 %v3617
          %v3719 = vpop.f32.mrf.mxu0
          %v3720 = vadd.f32 0.0, %v3719
          %v3721 = vpop.f32.mrf.mxu0
          %3722 = vmatprep.mubr.f32.mxu0 0.0
          %3723 = vmatmul.mubr.f32.gmra.mxu0 %v3618
          %v3724 = vpop.f32.mrf.mxu0
          %v3725 = vadd.f32 0.0, %v3724
          %v3726 = vpop.f32.mrf.mxu0
          %3727 = vdwg.mxu0
          %3728 = vmatprep.subr.mxu0 0.0
          %3729 = vmatpush1.msra.mxu0 %v3635
          %3730 = vmatprep.subr.mxu0 0.0
          %3731 = vmatpush1.msra.mxu0 %v3634
          %3732 = vmatprep.subr.mxu0 0.0
          %3733 = vmatpush1.msra.mxu0 %v3633
          %3734 = vmatprep.subr.mxu0 0.0
          %3735 = vmatpush1.msra.mxu0 %v3632
          %3736 = vmatprep.subr.mxu0 0.0
          %3737 = vmatpush1.msra.mxu0 %v3631
          %3738 = vmatprep.subr.mxu0 0.0
          %3739 = vmatpush1.msra.mxu0 %v3630
          %3740 = vmatprep.subr.mxu0 0.0
          %3741 = vmatpush1.msra.mxu0 %v3629
          %3742 = vmatprep.subr.mxu0 0.0
          %3743 = vmatpush1.msra.mxu0 %v3628
          %3744 = vmatprep.subr.mxu0 0.0
          %3745 = vmatpush1.msra.mxu0 %v3627
          %3746 = vmatprep.subr.mxu0 0.0
          %3747 = vmatpush1.msra.mxu0 %v3626
          %3748 = vmatprep.subr.mxu0 0.0
          %3749 = vmatpush1.msra.mxu0 %v3625
          %3750 = vmatprep.subr.mxu0 0.0
          %3751 = vmatpush1.msra.mxu0 %v3624
          %3752 = vmatprep.subr.mxu0 0.0
          %3753 = vmatpush1.msra.mxu0 %v3623
          %3754 = vmatprep.subr.mxu0 0.0
          %3755 = vmatpush1.msra.mxu0 %v3622
          %3756 = vmatprep.subr.mxu0 0.0
          %3757 = vmatpush1.msra.mxu0 %v3621
          %3758 = vmatprep.subr.mxu0 0.0
          %3759 = vmatpush1.msra.mxu0 %v3620
          %3760 = vmatprep.subr.mxu0 0.0
          %3761 = vmatpush2.msra.mxu0 0.0
          %3762 = vmatprep.subr.mxu0 0.0
          %3763 = vmatpush2.msra.mxu0 0.0
          %3764 = vmatprep.subr.mxu0 0.0
          %3765 = vmatpush2.msra.mxu0 0.0
          %3766 = vmatprep.subr.mxu0 0.0
          %3767 = vmatpush2.msra.mxu0 0.0
          %3768 = vmatprep.subr.mxu0 0.0
          %3769 = vmatpush2.msra.mxu0 0.0
          %3770 = vmatprep.subr.mxu0 0.0
          %3771 = vmatpush2.msra.mxu0 0.0
          %3772 = vmatprep.subr.mxu0 0.0
          %3773 = vmatpush2.msra.mxu0 0.0
          %3774 = vmatprep.subr.mxu0 0.0
          %3775 = vmatpush2.msra.mxu0 0.0
          %3776 = vmatprep.subr.mxu0 0.0
          %3777 = vmatpush2.msra.mxu0 0.0
          %3778 = vmatprep.subr.mxu0 0.0
          %3779 = vmatpush2.msra.mxu0 0.0
          %3780 = vmatprep.subr.mxu0 0.0
          %3781 = vmatpush2.msra.mxu0 0.0
          %3782 = vmatprep.subr.mxu0 0.0
          %3783 = vmatpush2.msra.mxu0 0.0
          %3784 = vmatprep.subr.mxu0 0.0
          %3785 = vmatpush2.msra.mxu0 0.0
          %3786 = vmatprep.subr.mxu0 0.0
          %3787 = vmatpush2.msra.mxu0 0.0
          %3788 = vmatprep.subr.mxu0 0.0
          %3789 = vmatpush2.msra.mxu0 0.0
          %3790 = vmatprep.subr.mxu0 0.0
          %3791 = vmatpush2.msra.mxu0 0.0
          %3792 = vmatprep.mubr.f32.mxu0 0.0
          %3793 = vmatmul.mubr.f32.gmra.mxu0 %v3613
          %v3794 = vpop.f32.mrf.mxu0
          %v3795 = vadd.f32 %v3720, %v3794
          %v3796 = vpop.f32.mrf.mxu0
          %3797 = vmatprep.mubr.f32.mxu0 0.0
          %3798 = vmatmul.mubr.f32.gmra.mxu0 %v3614
          %v3799 = vpop.f32.mrf.mxu0
          %v3800 = vadd.f32 %v3725, %v3799
          %v3801 = vpop.f32.mrf.mxu0
          %3802 = vdwg.mxu0
          %s3803 = sadd.s32 %s3608, 1
          %s3804 = smul.u32 %s3803, 24
          %s3805 = scalar_lea.vmem [#allocation4], %s3804
          %v3806 = vld [vmem:[%s3805] sm:$0xff]
          %v3807 = vld [vmem:[%s3805 + $0x8] sm:$0xff]
          %v3808 = vld [vmem:[%s3805 + $0x1] sm:$0xff]
          %v3809 = vld [vmem:[%s3805 + $0x9] sm:$0xff]
          %v3810 = vld [vmem:[%s3805 + $0x2] sm:$0xff]
          %v3811 = vld [vmem:[%s3805 + $0xa] sm:$0xff]
          %v3812 = vsel %vm1040, %v3810, %v3806
          %v3813 = vsel %vm1040, %v3811, %v3807
          %s3814 = scalar_lea.vmem %s2, 2304
          %v3815 = vld [vmem:[%s3814] sm:$0xff]
          %v3816 = vld [vmem:[%s3814 + $0x8] sm:$0xff]
          %v3817 = vld [vmem:[%s3814 + $0x10] sm:$0xff]
          %v3818 = vld [vmem:[%s3814 + $0x18] sm:$0xff]
          %v3819 = vld [vmem:[%s3814 + $0x20] sm:$0xff]
          %v3820 = vld [vmem:[%s3814 + $0x28] sm:$0xff]
          %v3821 = vld [vmem:[%s3814 + $0x30] sm:$0xff]
          %v3822 = vld [vmem:[%s3814 + $0x38] sm:$0xff]
          %v3823 = vld [vmem:[%s3814 + $0x40] sm:$0xff]
          %v3824 = vld [vmem:[%s3814 + $0x48] sm:$0xff]
          %v3825 = vld [vmem:[%s3814 + $0x50] sm:$0xff]
          %v3826 = vld [vmem:[%s3814 + $0x58] sm:$0xff]
          %v3827 = vld [vmem:[%s3814 + $0x60] sm:$0xff]
          %v3828 = vld [vmem:[%s3814 + $0x68] sm:$0xff]
          %v3829 = vld [vmem:[%s3814 + $0x70] sm:$0xff]
          %v3830 = vld [vmem:[%s3814 + $0x78] sm:$0xff]
          %3831 = vmatprep.subr.mxu0 0.0
          %3832 = vmatpush1.msra.mxu0 %v3830
          %3833 = vmatprep.subr.mxu0 0.0
          %3834 = vmatpush1.msra.mxu0 %v3829
          %3835 = vmatprep.subr.mxu0 0.0
          %3836 = vmatpush1.msra.mxu0 %v3828
          %3837 = vmatprep.subr.mxu0 0.0
          %3838 = vmatpush1.msra.mxu0 %v3827
          %3839 = vmatprep.subr.mxu0 0.0
          %3840 = vmatpush1.msra.mxu0 %v3826
          %3841 = vmatprep.subr.mxu0 0.0
          %3842 = vmatpush1.msra.mxu0 %v3825
          %3843 = vmatprep.subr.mxu0 0.0
          %3844 = vmatpush1.msra.mxu0 %v3824
          %3845 = vmatprep.subr.mxu0 0.0
          %3846 = vmatpush1.msra.mxu0 %v3823
          %3847 = vmatprep.subr.mxu0 0.0
          %3848 = vmatpush1.msra.mxu0 %v3822
          %3849 = vmatprep.subr.mxu0 0.0
          %3850 = vmatpush1.msra.mxu0 %v3821
          %3851 = vmatprep.subr.mxu0 0.0
          %3852 = vmatpush1.msra.mxu0 %v3820
          %3853 = vmatprep.subr.mxu0 0.0
          %3854 = vmatpush1.msra.mxu0 %v3819
          %3855 = vmatprep.subr.mxu0 0.0
          %3856 = vmatpush1.msra.mxu0 %v3818
          %3857 = vmatprep.subr.mxu0 0.0
          %3858 = vmatpush1.msra.mxu0 %v3817
          %3859 = vmatprep.subr.mxu0 0.0
          %3860 = vmatpush1.msra.mxu0 %v3816
          %3861 = vmatprep.subr.mxu0 0.0
          %3862 = vmatpush1.msra.mxu0 %v3815
          %3863 = vmatprep.subr.mxu0 0.0
          %3864 = vmatpush2.msra.mxu0 0.0
          %3865 = vmatprep.subr.mxu0 0.0
          %3866 = vmatpush2.msra.mxu0 0.0
          %3867 = vmatprep.subr.mxu0 0.0
          %3868 = vmatpush2.msra.mxu0 0.0
          %3869 = vmatprep.subr.mxu0 0.0
          %3870 = vmatpush2.msra.mxu0 0.0
          %3871 = vmatprep.subr.mxu0 0.0
          %3872 = vmatpush2.msra.mxu0 0.0
          %3873 = vmatprep.subr.mxu0 0.0
          %3874 = vmatpush2.msra.mxu0 0.0
          %3875 = vmatprep.subr.mxu0 0.0
          %3876 = vmatpush2.msra.mxu0 0.0
          %3877 = vmatprep.subr.mxu0 0.0
          %3878 = vmatpush2.msra.mxu0 0.0
          %3879 = vmatprep.subr.mxu0 0.0
          %3880 = vmatpush2.msra.mxu0 0.0
          %3881 = vmatprep.subr.mxu0 0.0
          %3882 = vmatpush2.msra.mxu0 0.0
          %3883 = vmatprep.subr.mxu0 0.0
          %3884 = vmatpush2.msra.mxu0 0.0
          %3885 = vmatprep.subr.mxu0 0.0
          %3886 = vmatpush2.msra.mxu0 0.0
          %3887 = vmatprep.subr.mxu0 0.0
          %3888 = vmatpush2.msra.mxu0 0.0
          %3889 = vmatprep.subr.mxu0 0.0
          %3890 = vmatpush2.msra.mxu0 0.0
          %3891 = vmatprep.subr.mxu0 0.0
          %3892 = vmatpush2.msra.mxu0 0.0
          %3893 = vmatprep.subr.mxu0 0.0
          %3894 = vmatpush2.msra.mxu0 0.0
          %3895 = vmatprep.mubr.f32.mxu0 0.0
          %3896 = vmatmul.mubr.f32.gmra.mxu0 %v3808
          %v3897 = vpop.f32.mrf.mxu0
          %v3898 = vadd.f32 0.0, %v3897
          %v3899 = vpop.f32.mrf.mxu0
          %3900 = vmatprep.mubr.f32.mxu0 0.0
          %3901 = vmatmul.mubr.f32.gmra.mxu0 %v3809
          %v3902 = vpop.f32.mrf.mxu0
          %v3903 = vadd.f32 0.0, %v3902
          %v3904 = vpop.f32.mrf.mxu0
          %3905 = vdwg.mxu0
          %v3906 = vadd.f32 %v3795, %v3898
          %v3907 = vadd.f32 %v3800, %v3903
          %s3908 = scalar_lea.vmem %s2, 2432
          %v3909 = vld [vmem:[%s3908] sm:$0xff]
          %v3910 = vld [vmem:[%s3908 + $0x8] sm:$0xff]
          %v3911 = vld [vmem:[%s3908 + $0x10] sm:$0xff]
          %v3912 = vld [vmem:[%s3908 + $0x18] sm:$0xff]
          %v3913 = vld [vmem:[%s3908 + $0x20] sm:$0xff]
          %v3914 = vld [vmem:[%s3908 + $0x28] sm:$0xff]
          %v3915 = vld [vmem:[%s3908 + $0x30] sm:$0xff]
          %v3916 = vld [vmem:[%s3908 + $0x38] sm:$0xff]
          %v3917 = vld [vmem:[%s3908 + $0x40] sm:$0xff]
          %v3918 = vld [vmem:[%s3908 + $0x48] sm:$0xff]
          %v3919 = vld [vmem:[%s3908 + $0x50] sm:$0xff]
          %v3920 = vld [vmem:[%s3908 + $0x58] sm:$0xff]
          %v3921 = vld [vmem:[%s3908 + $0x60] sm:$0xff]
          %v3922 = vld [vmem:[%s3908 + $0x68] sm:$0xff]
          %v3923 = vld [vmem:[%s3908 + $0x70] sm:$0xff]
          %v3924 = vld [vmem:[%s3908 + $0x78] sm:$0xff]
          %3925 = vmatprep.subr.mxu0 0.0
          %3926 = vmatpush1.msra.mxu0 %v3924
          %3927 = vmatprep.subr.mxu0 0.0
          %3928 = vmatpush1.msra.mxu0 %v3923
          %3929 = vmatprep.subr.mxu0 0.0
          %3930 = vmatpush1.msra.mxu0 %v3922
          %3931 = vmatprep.subr.mxu0 0.0
          %3932 = vmatpush1.msra.mxu0 %v3921
          %3933 = vmatprep.subr.mxu0 0.0
          %3934 = vmatpush1.msra.mxu0 %v3920
          %3935 = vmatprep.subr.mxu0 0.0
          %3936 = vmatpush1.msra.mxu0 %v3919
          %3937 = vmatprep.subr.mxu0 0.0
          %3938 = vmatpush1.msra.mxu0 %v3918
          %3939 = vmatprep.subr.mxu0 0.0
          %3940 = vmatpush1.msra.mxu0 %v3917
          %3941 = vmatprep.subr.mxu0 0.0
          %3942 = vmatpush1.msra.mxu0 %v3916
          %3943 = vmatprep.subr.mxu0 0.0
          %3944 = vmatpush1.msra.mxu0 %v3915
          %3945 = vmatprep.subr.mxu0 0.0
          %3946 = vmatpush1.msra.mxu0 %v3914
          %3947 = vmatprep.subr.mxu0 0.0
          %3948 = vmatpush1.msra.mxu0 %v3913
          %3949 = vmatprep.subr.mxu0 0.0
          %3950 = vmatpush1.msra.mxu0 %v3912
          %3951 = vmatprep.subr.mxu0 0.0
          %3952 = vmatpush1.msra.mxu0 %v3911
          %3953 = vmatprep.subr.mxu0 0.0
          %3954 = vmatpush1.msra.mxu0 %v3910
          %3955 = vmatprep.subr.mxu0 0.0
          %3956 = vmatpush1.msra.mxu0 %v3909
          %3957 = vmatprep.subr.mxu0 0.0
          %3958 = vmatpush2.msra.mxu0 0.0
          %3959 = vmatprep.subr.mxu0 0.0
          %3960 = vmatpush2.msra.mxu0 0.0
          %3961 = vmatprep.subr.mxu0 0.0
          %3962 = vmatpush2.msra.mxu0 0.0
          %3963 = vmatprep.subr.mxu0 0.0
          %3964 = vmatpush2.msra.mxu0 0.0
          %3965 = vmatprep.subr.mxu0 0.0
          %3966 = vmatpush2.msra.mxu0 0.0
          %3967 = vmatprep.subr.mxu0 0.0
          %3968 = vmatpush2.msra.mxu0 0.0
          %3969 = vmatprep.subr.mxu0 0.0
          %3970 = vmatpush2.msra.mxu0 0.0
          %3971 = vmatprep.subr.mxu0 0.0
          %3972 = vmatpush2.msra.mxu0 0.0
          %3973 = vmatprep.subr.mxu0 0.0
          %3974 = vmatpush2.msra.mxu0 0.0
          %3975 = vmatprep.subr.mxu0 0.0
          %3976 = vmatpush2.msra.mxu0 0.0
          %3977 = vmatprep.subr.mxu0 0.0
          %3978 = vmatpush2.msra.mxu0 0.0
          %3979 = vmatprep.subr.mxu0 0.0
          %3980 = vmatpush2.msra.mxu0 0.0
          %3981 = vmatprep.subr.mxu0 0.0
          %3982 = vmatpush2.msra.mxu0 0.0
          %3983 = vmatprep.subr.mxu0 0.0
          %3984 = vmatpush2.msra.mxu0 0.0
          %3985 = vmatprep.subr.mxu0 0.0
          %3986 = vmatpush2.msra.mxu0 0.0
          %3987 = vmatprep.subr.mxu0 0.0
          %3988 = vmatpush2.msra.mxu0 0.0
          %3989 = vmatprep.mubr.f32.mxu0 0.0
          %3990 = vmatmul.mubr.f32.gmra.mxu0 %v3812
          %v3991 = vpop.f32.mrf.mxu0
          %v3992 = vadd.f32 0.0, %v3991
          %v3993 = vpop.f32.mrf.mxu0
          %3994 = vmatprep.mubr.f32.mxu0 0.0
          %3995 = vmatmul.mubr.f32.gmra.mxu0 %v3813
          %v3996 = vpop.f32.mrf.mxu0
          %v3997 = vadd.f32 0.0, %v3996
          %v3998 = vpop.f32.mrf.mxu0
          %3999 = vdwg.mxu0
          %v4000 = vadd.f32 %v3906, %v3992
          %v4001 = vadd.f32 %v3907, %v3997
          %s4002 = sadd.s32 %s3608, 2
          %s4003 = smul.u32 %s4002, 24
          %s4004 = scalar_lea.vmem [#allocation4], %s4003
          %v4005 = vld [vmem:[%s4004] sm:$0xff]
          %v4006 = vld [vmem:[%s4004 + $0x8] sm:$0xff]
          %v4007 = vld [vmem:[%s4004 + $0x1] sm:$0xff]
          %v4008 = vld [vmem:[%s4004 + $0x9] sm:$0xff]
          %v4009 = vld [vmem:[%s4004 + $0x2] sm:$0xff]
          %v4010 = vld [vmem:[%s4004 + $0xa] sm:$0xff]
          %v4011 = vsel %vm1040, %v4009, %v4005
          %v4012 = vsel %vm1040, %v4010, %v4006
          %s4013 = scalar_lea.vmem %s2, 2560
          %v4014 = vld [vmem:[%s4013] sm:$0xff]
          %v4015 = vld [vmem:[%s4013 + $0x8] sm:$0xff]
          %v4016 = vld [vmem:[%s4013 + $0x10] sm:$0xff]
          %v4017 = vld [vmem:[%s4013 + $0x18] sm:$0xff]
          %v4018 = vld [vmem:[%s4013 + $0x20] sm:$0xff]
          %v4019 = vld [vmem:[%s4013 + $0x28] sm:$0xff]
          %v4020 = vld [vmem:[%s4013 + $0x30] sm:$0xff]
          %v4021 = vld [vmem:[%s4013 + $0x38] sm:$0xff]
          %v4022 = vld [vmem:[%s4013 + $0x40] sm:$0xff]
          %v4023 = vld [vmem:[%s4013 + $0x48] sm:$0xff]
          %v4024 = vld [vmem:[%s4013 + $0x50] sm:$0xff]
          %v4025 = vld [vmem:[%s4013 + $0x58] sm:$0xff]
          %v4026 = vld [vmem:[%s4013 + $0x60] sm:$0xff]
          %v4027 = vld [vmem:[%s4013 + $0x68] sm:$0xff]
          %v4028 = vld [vmem:[%s4013 + $0x70] sm:$0xff]
          %v4029 = vld [vmem:[%s4013 + $0x78] sm:$0xff]
          %4030 = vmatprep.subr.mxu0 0.0
          %4031 = vmatpush1.msra.mxu0 %v4029
          %4032 = vmatprep.subr.mxu0 0.0
          %4033 = vmatpush1.msra.mxu0 %v4028
          %4034 = vmatprep.subr.mxu0 0.0
          %4035 = vmatpush1.msra.mxu0 %v4027
          %4036 = vmatprep.subr.mxu0 0.0
          %4037 = vmatpush1.msra.mxu0 %v4026
          %4038 = vmatprep.subr.mxu0 0.0
          %4039 = vmatpush1.msra.mxu0 %v4025
          %4040 = vmatprep.subr.mxu0 0.0
          %4041 = vmatpush1.msra.mxu0 %v4024
          %4042 = vmatprep.subr.mxu0 0.0
          %4043 = vmatpush1.msra.mxu0 %v4023
          %4044 = vmatprep.subr.mxu0 0.0
          %4045 = vmatpush1.msra.mxu0 %v4022
          %4046 = vmatprep.subr.mxu0 0.0
          %4047 = vmatpush1.msra.mxu0 %v4021
          %4048 = vmatprep.subr.mxu0 0.0
          %4049 = vmatpush1.msra.mxu0 %v4020
          %4050 = vmatprep.subr.mxu0 0.0
          %4051 = vmatpush1.msra.mxu0 %v4019
          %4052 = vmatprep.subr.mxu0 0.0
          %4053 = vmatpush1.msra.mxu0 %v4018
          %4054 = vmatprep.subr.mxu0 0.0
          %4055 = vmatpush1.msra.mxu0 %v4017
          %4056 = vmatprep.subr.mxu0 0.0
          %4057 = vmatpush1.msra.mxu0 %v4016
          %4058 = vmatprep.subr.mxu0 0.0
          %4059 = vmatpush1.msra.mxu0 %v4015
          %4060 = vmatprep.subr.mxu0 0.0
          %4061 = vmatpush1.msra.mxu0 %v4014
          %4062 = vmatprep.subr.mxu0 0.0
          %4063 = vmatpush2.msra.mxu0 0.0
          %4064 = vmatprep.subr.mxu0 0.0
          %4065 = vmatpush2.msra.mxu0 0.0
          %4066 = vmatprep.subr.mxu0 0.0
          %4067 = vmatpush2.msra.mxu0 0.0
          %4068 = vmatprep.subr.mxu0 0.0
          %4069 = vmatpush2.msra.mxu0 0.0
          %4070 = vmatprep.subr.mxu0 0.0
          %4071 = vmatpush2.msra.mxu0 0.0
          %4072 = vmatprep.subr.mxu0 0.0
          %4073 = vmatpush2.msra.mxu0 0.0
          %4074 = vmatprep.subr.mxu0 0.0
          %4075 = vmatpush2.msra.mxu0 0.0
          %4076 = vmatprep.subr.mxu0 0.0
          %4077 = vmatpush2.msra.mxu0 0.0
          %4078 = vmatprep.subr.mxu0 0.0
          %4079 = vmatpush2.msra.mxu0 0.0
          %4080 = vmatprep.subr.mxu0 0.0
          %4081 = vmatpush2.msra.mxu0 0.0
          %4082 = vmatprep.subr.mxu0 0.0
          %4083 = vmatpush2.msra.mxu0 0.0
          %4084 = vmatprep.subr.mxu0 0.0
          %4085 = vmatpush2.msra.mxu0 0.0
          %4086 = vmatprep.subr.mxu0 0.0
          %4087 = vmatpush2.msra.mxu0 0.0
          %4088 = vmatprep.subr.mxu0 0.0
          %4089 = vmatpush2.msra.mxu0 0.0
          %4090 = vmatprep.subr.mxu0 0.0
          %4091 = vmatpush2.msra.mxu0 0.0
          %4092 = vmatprep.subr.mxu0 0.0
          %4093 = vmatpush2.msra.mxu0 0.0
          %4094 = vmatprep.mubr.f32.mxu0 0.0
          %4095 = vmatmul.mubr.f32.gmra.mxu0 %v4007
          %v4096 = vpop.f32.mrf.mxu0
          %v4097 = vadd.f32 0.0, %v4096
          %v4098 = vpop.f32.mrf.mxu0
          %4099 = vmatprep.mubr.f32.mxu0 0.0
          %4100 = vmatmul.mubr.f32.gmra.mxu0 %v4008
          %v4101 = vpop.f32.mrf.mxu0
          %v4102 = vadd.f32 0.0, %v4101
          %v4103 = vpop.f32.mrf.mxu0
          %4104 = vdwg.mxu0
          %v4105 = vadd.f32 %v4000, %v4097
          %v4106 = vadd.f32 %v4001, %v4102
          %s4107 = scalar_lea.vmem %s2, 2688
          %v4108 = vld [vmem:[%s4107] sm:$0xff]
          %v4109 = vld [vmem:[%s4107 + $0x8] sm:$0xff]
          %v4110 = vld [vmem:[%s4107 + $0x10] sm:$0xff]
          %v4111 = vld [vmem:[%s4107 + $0x18] sm:$0xff]
          %v4112 = vld [vmem:[%s4107 + $0x20] sm:$0xff]
          %v4113 = vld [vmem:[%s4107 + $0x28] sm:$0xff]
          %v4114 = vld [vmem:[%s4107 + $0x30] sm:$0xff]
          %v4115 = vld [vmem:[%s4107 + $0x38] sm:$0xff]
          %v4116 = vld [vmem:[%s4107 + $0x40] sm:$0xff]
          %v4117 = vld [vmem:[%s4107 + $0x48] sm:$0xff]
          %v4118 = vld [vmem:[%s4107 + $0x50] sm:$0xff]
          %v4119 = vld [vmem:[%s4107 + $0x58] sm:$0xff]
          %v4120 = vld [vmem:[%s4107 + $0x60] sm:$0xff]
          %v4121 = vld [vmem:[%s4107 + $0x68] sm:$0xff]
          %v4122 = vld [vmem:[%s4107 + $0x70] sm:$0xff]
          %v4123 = vld [vmem:[%s4107 + $0x78] sm:$0xff]
          %4124 = vmatprep.subr.mxu0 0.0
          %4125 = vmatpush1.msra.mxu0 %v4123
          %4126 = vmatprep.subr.mxu0 0.0
          %4127 = vmatpush1.msra.mxu0 %v4122
          %4128 = vmatprep.subr.mxu0 0.0
          %4129 = vmatpush1.msra.mxu0 %v4121
          %4130 = vmatprep.subr.mxu0 0.0
          %4131 = vmatpush1.msra.mxu0 %v4120
          %4132 = vmatprep.subr.mxu0 0.0
          %4133 = vmatpush1.msra.mxu0 %v4119
          %4134 = vmatprep.subr.mxu0 0.0
          %4135 = vmatpush1.msra.mxu0 %v4118
          %4136 = vmatprep.subr.mxu0 0.0
          %4137 = vmatpush1.msra.mxu0 %v4117
          %4138 = vmatprep.subr.mxu0 0.0
          %4139 = vmatpush1.msra.mxu0 %v4116
          %4140 = vmatprep.subr.mxu0 0.0
          %4141 = vmatpush1.msra.mxu0 %v4115
          %4142 = vmatprep.subr.mxu0 0.0
          %4143 = vmatpush1.msra.mxu0 %v4114
          %4144 = vmatprep.subr.mxu0 0.0
          %4145 = vmatpush1.msra.mxu0 %v4113
          %4146 = vmatprep.subr.mxu0 0.0
          %4147 = vmatpush1.msra.mxu0 %v4112
          %4148 = vmatprep.subr.mxu0 0.0
          %4149 = vmatpush1.msra.mxu0 %v4111
          %4150 = vmatprep.subr.mxu0 0.0
          %4151 = vmatpush1.msra.mxu0 %v4110
          %4152 = vmatprep.subr.mxu0 0.0
          %4153 = vmatpush1.msra.mxu0 %v4109
          %4154 = vmatprep.subr.mxu0 0.0
          %4155 = vmatpush1.msra.mxu0 %v4108
          %4156 = vmatprep.subr.mxu0 0.0
          %4157 = vmatpush2.msra.mxu0 0.0
          %4158 = vmatprep.subr.mxu0 0.0
          %4159 = vmatpush2.msra.mxu0 0.0
          %4160 = vmatprep.subr.mxu0 0.0
          %4161 = vmatpush2.msra.mxu0 0.0
          %4162 = vmatprep.subr.mxu0 0.0
          %4163 = vmatpush2.msra.mxu0 0.0
          %4164 = vmatprep.subr.mxu0 0.0
          %4165 = vmatpush2.msra.mxu0 0.0
          %4166 = vmatprep.subr.mxu0 0.0
          %4167 = vmatpush2.msra.mxu0 0.0
          %4168 = vmatprep.subr.mxu0 0.0
          %4169 = vmatpush2.msra.mxu0 0.0
          %4170 = vmatprep.subr.mxu0 0.0
          %4171 = vmatpush2.msra.mxu0 0.0
          %4172 = vmatprep.subr.mxu0 0.0
          %4173 = vmatpush2.msra.mxu0 0.0
          %4174 = vmatprep.subr.mxu0 0.0
          %4175 = vmatpush2.msra.mxu0 0.0
          %4176 = vmatprep.subr.mxu0 0.0
          %4177 = vmatpush2.msra.mxu0 0.0
          %4178 = vmatprep.subr.mxu0 0.0
          %4179 = vmatpush2.msra.mxu0 0.0
          %4180 = vmatprep.subr.mxu0 0.0
          %4181 = vmatpush2.msra.mxu0 0.0
          %4182 = vmatprep.subr.mxu0 0.0
          %4183 = vmatpush2.msra.mxu0 0.0
          %4184 = vmatprep.subr.mxu0 0.0
          %4185 = vmatpush2.msra.mxu0 0.0
          %4186 = vmatprep.subr.mxu0 0.0
          %4187 = vmatpush2.msra.mxu0 0.0
          %4188 = vmatprep.mubr.f32.mxu0 0.0
          %4189 = vmatmul.mubr.f32.gmra.mxu0 %v4011
          %v4190 = vpop.f32.mrf.mxu0
          %v4191 = vadd.f32 0.0, %v4190
          %v4192 = vpop.f32.mrf.mxu0
          %4193 = vmatprep.mubr.f32.mxu0 0.0
          %4194 = vmatmul.mubr.f32.gmra.mxu0 %v4012
          %v4195 = vpop.f32.mrf.mxu0
          %v4196 = vadd.f32 0.0, %v4195
          %v4197 = vpop.f32.mrf.mxu0
          %4198 = vdwg.mxu0
          %v4199 = vadd.f32 %v4105, %v4191
          %v4200 = vadd.f32 %v4106, %v4196
          %s4201 = sadd.s32 %s3608, 3
          %s4202 = smul.u32 %s4201, 24
          %s4203 = scalar_lea.vmem [#allocation4], %s4202
          %v4204 = vld [vmem:[%s4203] sm:$0xff]
          %v4205 = vld [vmem:[%s4203 + $0x8] sm:$0xff]
          %v4206 = vld [vmem:[%s4203 + $0x1] sm:$0xff]
          %v4207 = vld [vmem:[%s4203 + $0x9] sm:$0xff]
          %v4208 = vld [vmem:[%s4203 + $0x2] sm:$0xff]
          %v4209 = vld [vmem:[%s4203 + $0xa] sm:$0xff]
          %v4210 = vsel %vm1040, %v4208, %v4204
          %v4211 = vsel %vm1040, %v4209, %v4205
          %s4212 = scalar_lea.vmem %s2, 2816
          %v4213 = vld [vmem:[%s4212] sm:$0xff]
          %v4214 = vld [vmem:[%s4212 + $0x8] sm:$0xff]
          %v4215 = vld [vmem:[%s4212 + $0x10] sm:$0xff]
          %v4216 = vld [vmem:[%s4212 + $0x18] sm:$0xff]
          %v4217 = vld [vmem:[%s4212 + $0x20] sm:$0xff]
          %v4218 = vld [vmem:[%s4212 + $0x28] sm:$0xff]
          %v4219 = vld [vmem:[%s4212 + $0x30] sm:$0xff]
          %v4220 = vld [vmem:[%s4212 + $0x38] sm:$0xff]
          %v4221 = vld [vmem:[%s4212 + $0x40] sm:$0xff]
          %v4222 = vld [vmem:[%s4212 + $0x48] sm:$0xff]
          %v4223 = vld [vmem:[%s4212 + $0x50] sm:$0xff]
          %v4224 = vld [vmem:[%s4212 + $0x58] sm:$0xff]
          %v4225 = vld [vmem:[%s4212 + $0x60] sm:$0xff]
          %v4226 = vld [vmem:[%s4212 + $0x68] sm:$0xff]
          %v4227 = vld [vmem:[%s4212 + $0x70] sm:$0xff]
          %v4228 = vld [vmem:[%s4212 + $0x78] sm:$0xff]
          %4229 = vmatprep.subr.mxu0 0.0
          %4230 = vmatpush1.msra.mxu0 %v4228
          %4231 = vmatprep.subr.mxu0 0.0
          %4232 = vmatpush1.msra.mxu0 %v4227
          %4233 = vmatprep.subr.mxu0 0.0
          %4234 = vmatpush1.msra.mxu0 %v4226
          %4235 = vmatprep.subr.mxu0 0.0
          %4236 = vmatpush1.msra.mxu0 %v4225
          %4237 = vmatprep.subr.mxu0 0.0
          %4238 = vmatpush1.msra.mxu0 %v4224
          %4239 = vmatprep.subr.mxu0 0.0
          %4240 = vmatpush1.msra.mxu0 %v4223
          %4241 = vmatprep.subr.mxu0 0.0
          %4242 = vmatpush1.msra.mxu0 %v4222
          %4243 = vmatprep.subr.mxu0 0.0
          %4244 = vmatpush1.msra.mxu0 %v4221
          %4245 = vmatprep.subr.mxu0 0.0
          %4246 = vmatpush1.msra.mxu0 %v4220
          %4247 = vmatprep.subr.mxu0 0.0
          %4248 = vmatpush1.msra.mxu0 %v4219
          %4249 = vmatprep.subr.mxu0 0.0
          %4250 = vmatpush1.msra.mxu0 %v4218
          %4251 = vmatprep.subr.mxu0 0.0
          %4252 = vmatpush1.msra.mxu0 %v4217
          %4253 = vmatprep.subr.mxu0 0.0
          %4254 = vmatpush1.msra.mxu0 %v4216
          %4255 = vmatprep.subr.mxu0 0.0
          %4256 = vmatpush1.msra.mxu0 %v4215
          %4257 = vmatprep.subr.mxu0 0.0
          %4258 = vmatpush1.msra.mxu0 %v4214
          %4259 = vmatprep.subr.mxu0 0.0
          %4260 = vmatpush1.msra.mxu0 %v4213
          %4261 = vmatprep.subr.mxu0 0.0
          %4262 = vmatpush2.msra.mxu0 0.0
          %4263 = vmatprep.subr.mxu0 0.0
          %4264 = vmatpush2.msra.mxu0 0.0
          %4265 = vmatprep.subr.mxu0 0.0
          %4266 = vmatpush2.msra.mxu0 0.0
          %4267 = vmatprep.subr.mxu0 0.0
          %4268 = vmatpush2.msra.mxu0 0.0
          %4269 = vmatprep.subr.mxu0 0.0
          %4270 = vmatpush2.msra.mxu0 0.0
          %4271 = vmatprep.subr.mxu0 0.0
          %4272 = vmatpush2.msra.mxu0 0.0
          %4273 = vmatprep.subr.mxu0 0.0
          %4274 = vmatpush2.msra.mxu0 0.0
          %4275 = vmatprep.subr.mxu0 0.0
          %4276 = vmatpush2.msra.mxu0 0.0
          %4277 = vmatprep.subr.mxu0 0.0
          %4278 = vmatpush2.msra.mxu0 0.0
          %4279 = vmatprep.subr.mxu0 0.0
          %4280 = vmatpush2.msra.mxu0 0.0
          %4281 = vmatprep.subr.mxu0 0.0
          %4282 = vmatpush2.msra.mxu0 0.0
          %4283 = vmatprep.subr.mxu0 0.0
          %4284 = vmatpush2.msra.mxu0 0.0
          %4285 = vmatprep.subr.mxu0 0.0
          %4286 = vmatpush2.msra.mxu0 0.0
          %4287 = vmatprep.subr.mxu0 0.0
          %4288 = vmatpush2.msra.mxu0 0.0
          %4289 = vmatprep.subr.mxu0 0.0
          %4290 = vmatpush2.msra.mxu0 0.0
          %4291 = vmatprep.subr.mxu0 0.0
          %4292 = vmatpush2.msra.mxu0 0.0
          %4293 = vmatprep.mubr.f32.mxu0 0.0
          %4294 = vmatmul.mubr.f32.gmra.mxu0 %v4206
          %v4295 = vpop.f32.mrf.mxu0
          %v4296 = vadd.f32 0.0, %v4295
          %v4297 = vpop.f32.mrf.mxu0
          %4298 = vmatprep.mubr.f32.mxu0 0.0
          %4299 = vmatmul.mubr.f32.gmra.mxu0 %v4207
          %v4300 = vpop.f32.mrf.mxu0
          %v4301 = vadd.f32 0.0, %v4300
          %v4302 = vpop.f32.mrf.mxu0
          %4303 = vdwg.mxu0
          %v4304 = vadd.f32 %v4199, %v4296
          %v4305 = vadd.f32 %v4200, %v4301
          %s4306 = scalar_lea.vmem %s2, 2944
          %v4307 = vld [vmem:[%s4306] sm:$0xff]
          %v4308 = vld [vmem:[%s4306 + $0x8] sm:$0xff]
          %v4309 = vld [vmem:[%s4306 + $0x10] sm:$0xff]
          %v4310 = vld [vmem:[%s4306 + $0x18] sm:$0xff]
          %v4311 = vld [vmem:[%s4306 + $0x20] sm:$0xff]
          %v4312 = vld [vmem:[%s4306 + $0x28] sm:$0xff]
          %v4313 = vld [vmem:[%s4306 + $0x30] sm:$0xff]
          %v4314 = vld [vmem:[%s4306 + $0x38] sm:$0xff]
          %v4315 = vld [vmem:[%s4306 + $0x40] sm:$0xff]
          %v4316 = vld [vmem:[%s4306 + $0x48] sm:$0xff]
          %v4317 = vld [vmem:[%s4306 + $0x50] sm:$0xff]
          %v4318 = vld [vmem:[%s4306 + $0x58] sm:$0xff]
          %v4319 = vld [vmem:[%s4306 + $0x60] sm:$0xff]
          %v4320 = vld [vmem:[%s4306 + $0x68] sm:$0xff]
          %v4321 = vld [vmem:[%s4306 + $0x70] sm:$0xff]
          %v4322 = vld [vmem:[%s4306 + $0x78] sm:$0xff]
          %4323 = vmatprep.subr.mxu0 0.0
          %4324 = vmatpush1.msra.mxu0 %v4322
          %4325 = vmatprep.subr.mxu0 0.0
          %4326 = vmatpush1.msra.mxu0 %v4321
          %4327 = vmatprep.subr.mxu0 0.0
          %4328 = vmatpush1.msra.mxu0 %v4320
          %4329 = vmatprep.subr.mxu0 0.0
          %4330 = vmatpush1.msra.mxu0 %v4319
          %4331 = vmatprep.subr.mxu0 0.0
          %4332 = vmatpush1.msra.mxu0 %v4318
          %4333 = vmatprep.subr.mxu0 0.0
          %4334 = vmatpush1.msra.mxu0 %v4317
          %4335 = vmatprep.subr.mxu0 0.0
          %4336 = vmatpush1.msra.mxu0 %v4316
          %4337 = vmatprep.subr.mxu0 0.0
          %4338 = vmatpush1.msra.mxu0 %v4315
          %4339 = vmatprep.subr.mxu0 0.0
          %4340 = vmatpush1.msra.mxu0 %v4314
          %4341 = vmatprep.subr.mxu0 0.0
          %4342 = vmatpush1.msra.mxu0 %v4313
          %4343 = vmatprep.subr.mxu0 0.0
          %4344 = vmatpush1.msra.mxu0 %v4312
          %4345 = vmatprep.subr.mxu0 0.0
          %4346 = vmatpush1.msra.mxu0 %v4311
          %4347 = vmatprep.subr.mxu0 0.0
          %4348 = vmatpush1.msra.mxu0 %v4310
          %4349 = vmatprep.subr.mxu0 0.0
          %4350 = vmatpush1.msra.mxu0 %v4309
          %4351 = vmatprep.subr.mxu0 0.0
          %4352 = vmatpush1.msra.mxu0 %v4308
          %4353 = vmatprep.subr.mxu0 0.0
          %4354 = vmatpush1.msra.mxu0 %v4307
          %4355 = vmatprep.subr.mxu0 0.0
          %4356 = vmatpush2.msra.mxu0 0.0
          %4357 = vmatprep.subr.mxu0 0.0
          %4358 = vmatpush2.msra.mxu0 0.0
          %4359 = vmatprep.subr.mxu0 0.0
          %4360 = vmatpush2.msra.mxu0 0.0
          %4361 = vmatprep.subr.mxu0 0.0
          %4362 = vmatpush2.msra.mxu0 0.0
          %4363 = vmatprep.subr.mxu0 0.0
          %4364 = vmatpush2.msra.mxu0 0.0
          %4365 = vmatprep.subr.mxu0 0.0
          %4366 = vmatpush2.msra.mxu0 0.0
          %4367 = vmatprep.subr.mxu0 0.0
          %4368 = vmatpush2.msra.mxu0 0.0
          %4369 = vmatprep.subr.mxu0 0.0
          %4370 = vmatpush2.msra.mxu0 0.0
          %4371 = vmatprep.subr.mxu0 0.0
          %4372 = vmatpush2.msra.mxu0 0.0
          %4373 = vmatprep.subr.mxu0 0.0
          %4374 = vmatpush2.msra.mxu0 0.0
          %4375 = vmatprep.subr.mxu0 0.0
          %4376 = vmatpush2.msra.mxu0 0.0
          %4377 = vmatprep.subr.mxu0 0.0
          %4378 = vmatpush2.msra.mxu0 0.0
          %4379 = vmatprep.subr.mxu0 0.0
          %4380 = vmatpush2.msra.mxu0 0.0
          %4381 = vmatprep.subr.mxu0 0.0
          %4382 = vmatpush2.msra.mxu0 0.0
          %4383 = vmatprep.subr.mxu0 0.0
          %4384 = vmatpush2.msra.mxu0 0.0
          %4385 = vmatprep.subr.mxu0 0.0
          %4386 = vmatpush2.msra.mxu0 0.0
          %4387 = vmatprep.mubr.f32.mxu0 0.0
          %4388 = vmatmul.mubr.f32.gmra.mxu0 %v4210
          %v4389 = vpop.f32.mrf.mxu0
          %v4390 = vadd.f32 0.0, %v4389
          %v4391 = vpop.f32.mrf.mxu0
          %4392 = vmatprep.mubr.f32.mxu0 0.0
          %4393 = vmatmul.mubr.f32.gmra.mxu0 %v4211
          %v4394 = vpop.f32.mrf.mxu0
          %v4395 = vadd.f32 0.0, %v4394
          %v4396 = vpop.f32.mrf.mxu0
          %4397 = vdwg.mxu0
          %v4398 = vadd.f32 %v4304, %v4390
          %v4399 = vadd.f32 %v4305, %v4395
          %v4400 = vlaneseq
          %v4401 = vshrl.u32 %v4400, 7
          %v4402 = vsub.s32 0, %v4401
          %v4403 = vrot.slane %v3601, %v4402
          %v4404 = vadd.f32 %v4398, %v4403
          %v4405 = vadd.f32 %v4399, %v4403
          %v4406 = vmax.f32 %v4404, 0.0
          %v4407 = vmax.f32 %v4405, 0.0
          %vm4408 = vcmask 130048
          %v4410 = vsel %vm4408, %v1058, 0
          %4412 = vmatprep.subr.mxu0 0.0
          %4413 = vmatpush1.msra.mxu0 0.0
          %4414 = vmatprep.subr.mxu0 0.0
          %4415 = vmatpush1.msra.mxu0 0.0
          %4416 = vmatprep.subr.mxu0 0.0
          %4417 = vmatpush1.msra.mxu0 0.0
          %4418 = vmatprep.subr.mxu0 0.0
          %4419 = vmatpush1.msra.mxu0 0.0
          %4420 = vmatprep.subr.mxu0 0.0
          %4421 = vmatpush1.msra.mxu0 0.0
          %4422 = vmatprep.subr.mxu0 0.0
          %4423 = vmatpush1.msra.mxu0 0.0
          %4424 = vmatprep.subr.mxu0 0.0
          %4425 = vmatpush1.msra.mxu0 0.0
          %4426 = vmatprep.subr.mxu0 0.0
          %4427 = vmatpush1.msra.mxu0 0.0
          %4428 = vmatprep.subr.mxu0 0.0
          %4429 = vmatpush1.msra.mxu0 0.0
          %4430 = vmatprep.subr.mxu0 0.0
          %4431 = vmatpush1.msra.mxu0 0.0
          %4432 = vmatprep.subr.mxu0 0.0
          %4433 = vmatpush1.msra.mxu0 0.0
          %4434 = vmatprep.subr.mxu0 0.0
          %4435 = vmatpush1.msra.mxu0 0.0
          %4436 = vmatprep.subr.mxu0 0.0
          %4437 = vmatpush1.msra.mxu0 0.0
          %4438 = vmatprep.subr.mxu0 0.0
          %4439 = vmatpush1.msra.mxu0 0.0
          %4440 = vmatprep.subr.mxu0 0.0
          %4441 = vmatpush1.msra.mxu0 %v4407
          %4442 = vmatprep.subr.mxu0 0.0
          %4443 = vmatpush1.msra.mxu0 %v4406
          %4444 = vmatprep.subr.mxu0 0.0
          %4445 = vmatpush2.msra.mxu0 0.0
          %4446 = vmatprep.subr.mxu0 0.0
          %4447 = vmatpush2.msra.mxu0 0.0
          %4448 = vmatprep.subr.mxu0 0.0
          %4449 = vmatpush2.msra.mxu0 0.0
          %4450 = vmatprep.subr.mxu0 0.0
          %4451 = vmatpush2.msra.mxu0 0.0
          %4452 = vmatprep.subr.mxu0 0.0
          %4453 = vmatpush2.msra.mxu0 0.0
          %4454 = vmatprep.subr.mxu0 0.0
          %4455 = vmatpush2.msra.mxu0 0.0
          %4456 = vmatprep.subr.mxu0 0.0
          %4457 = vmatpush2.msra.mxu0 0.0
          %4458 = vmatprep.subr.mxu0 0.0
          %4459 = vmatpush2.msra.mxu0 0.0
          %4460 = vmatprep.subr.mxu0 0.0
          %4461 = vmatpush2.msra.mxu0 0.0
          %4462 = vmatprep.subr.mxu0 0.0
          %4463 = vmatpush2.msra.mxu0 0.0
          %4464 = vmatprep.subr.mxu0 0.0
          %4465 = vmatpush2.msra.mxu0 0.0
          %4466 = vmatprep.subr.mxu0 0.0
          %4467 = vmatpush2.msra.mxu0 0.0
          %4468 = vmatprep.subr.mxu0 0.0
          %4469 = vmatpush2.msra.mxu0 0.0
          %4470 = vmatprep.subr.mxu0 0.0
          %4471 = vmatpush2.msra.mxu0 0.0
          %4472 = vmatprep.subr.mxu0 0.0
          %4473 = vmatpush2.msra.mxu0 0.0
          %4474 = vmatprep.subr.mxu0 0.0
          %4475 = vmatpush2.msra.mxu0 0.0
          %4476 = vmatprep.mubr.f32.mxu0 0.0
          %4477 = vmatmul.mubr.f32.gmra.mxu0 %v4410
          %v4478 = vpop.f32.mrf.mxu0
          %v4479 = vadd.f32 0.0, %v4478
          %v4480 = vpop.f32.mrf.mxu0
          %4481 = vdwg.mxu0
          %v4483 = vsel %vm4408, %v1074, 0
          %4485 = vmatprep.subr.mxu0 0.0
          %4486 = vmatpush1.msra.mxu0 0.0
          %4487 = vmatprep.subr.mxu0 0.0
          %4488 = vmatpush1.msra.mxu0 0.0
          %4489 = vmatprep.subr.mxu0 0.0
          %4490 = vmatpush1.msra.mxu0 0.0
          %4491 = vmatprep.subr.mxu0 0.0
          %4492 = vmatpush1.msra.mxu0 0.0
          %4493 = vmatprep.subr.mxu0 0.0
          %4494 = vmatpush1.msra.mxu0 0.0
          %4495 = vmatprep.subr.mxu0 0.0
          %4496 = vmatpush1.msra.mxu0 0.0
          %4497 = vmatprep.subr.mxu0 0.0
          %4498 = vmatpush1.msra.mxu0 0.0
          %4499 = vmatprep.subr.mxu0 0.0
          %4500 = vmatpush1.msra.mxu0 0.0
          %4501 = vmatprep.subr.mxu0 0.0
          %4502 = vmatpush1.msra.mxu0 0.0
          %4503 = vmatprep.subr.mxu0 0.0
          %4504 = vmatpush1.msra.mxu0 0.0
          %4505 = vmatprep.subr.mxu0 0.0
          %4506 = vmatpush1.msra.mxu0 0.0
          %4507 = vmatprep.subr.mxu0 0.0
          %4508 = vmatpush1.msra.mxu0 0.0
          %4509 = vmatprep.subr.mxu0 0.0
          %4510 = vmatpush1.msra.mxu0 0.0
          %4511 = vmatprep.subr.mxu0 0.0
          %4512 = vmatpush1.msra.mxu0 0.0
          %4513 = vmatprep.subr.mxu0 0.0
          %4514 = vmatpush1.msra.mxu0 %v4407
          %4515 = vmatprep.subr.mxu0 0.0
          %4516 = vmatpush1.msra.mxu0 %v4406
          %4517 = vmatprep.subr.mxu0 0.0
          %4518 = vmatpush2.msra.mxu0 0.0
          %4519 = vmatprep.subr.mxu0 0.0
          %4520 = vmatpush2.msra.mxu0 0.0
          %4521 = vmatprep.subr.mxu0 0.0
          %4522 = vmatpush2.msra.mxu0 0.0
          %4523 = vmatprep.subr.mxu0 0.0
          %4524 = vmatpush2.msra.mxu0 0.0
          %4525 = vmatprep.subr.mxu0 0.0
          %4526 = vmatpush2.msra.mxu0 0.0
          %4527 = vmatprep.subr.mxu0 0.0
          %4528 = vmatpush2.msra.mxu0 0.0
          %4529 = vmatprep.subr.mxu0 0.0
          %4530 = vmatpush2.msra.mxu0 0.0
          %4531 = vmatprep.subr.mxu0 0.0
          %4532 = vmatpush2.msra.mxu0 0.0
          %4533 = vmatprep.subr.mxu0 0.0
          %4534 = vmatpush2.msra.mxu0 0.0
          %4535 = vmatprep.subr.mxu0 0.0
          %4536 = vmatpush2.msra.mxu0 0.0
          %4537 = vmatprep.subr.mxu0 0.0
          %4538 = vmatpush2.msra.mxu0 0.0
          %4539 = vmatprep.subr.mxu0 0.0
          %4540 = vmatpush2.msra.mxu0 0.0
          %4541 = vmatprep.subr.mxu0 0.0
          %4542 = vmatpush2.msra.mxu0 0.0
          %4543 = vmatprep.subr.mxu0 0.0
          %4544 = vmatpush2.msra.mxu0 0.0
          %4545 = vmatprep.subr.mxu0 0.0
          %4546 = vmatpush2.msra.mxu0 0.0
          %4547 = vmatprep.subr.mxu0 0.0
          %4548 = vmatpush2.msra.mxu0 0.0
          %4549 = vmatprep.mubr.f32.mxu0 0.0
          %4550 = vmatmul.mubr.f32.gmra.mxu0 %v4483
          %v4551 = vpop.f32.mrf.mxu0
          %v4552 = vadd.f32 0.0, %v4551
          %v4553 = vpop.f32.mrf.mxu0
          %4554 = vdwg.mxu0
          %4556 = vrot.lane.b32.xlu0 %v4552, 64
          %v4557 = vpop.permute.xlu0 %4556
          %v4559 = vsel %vm777, %v4479, %v4557
          %s4560 = sadd.s32 %s3603, 1
          %s4561 = smul.u32 %s4560, 16
          %s4562 = scalar_lea.vmem [#allocation5], %s4561
          %4563 = vst [vmem:[%s4562 + $0x1] sm:$0xff] %v4559
        $region66: #{enc_conv_forward.1} parent=39 // loop_footer
          %s3607 = sadd.s32 1, %s3603
        $region67: #{enc_conv_forward.1} parent=39 // loop_footer_branch
          %3602 = sbr.rel target = $region63
        $region68: #{enc_conv_forward.1} parent=39 // loop_exit
          _
        %v4564 = vld [vmem:[%s4 + $0x4] sm:$0x1]
        loop: start=0, step=1, limit=8
        $region69: #{enc_conv_forward.1} parent=39 // loop_pre_header
          _
        $region70: #{enc_conv_forward.1} parent=39 // loop_header
          %s4566 = sphi 0, %s4570
          %p4567 = scmp.ge.s32.totalorder %s4566, 8
        $region71: #{enc_conv_forward.1} parent=39 // loop_header_branch
          %4569 = sbr.rel (%p4567) target = $region75
        $region72: #{enc_conv_forward.1} parent=39 // loop_body
          %s4571 = smul.u32 %s4566, 2
          %s4572 = smul.u32 %s4571, 16
          %s4573 = scalar_lea.vmem [#allocation5], %s4572
          %v4574 = vld [vmem:[%s4573] sm:$0xff]
          %v4575 = vld [vmem:[%s4573 + $0x1] sm:$0xff]
          %v4576 = vld [vmem:[%s4573 + $0x2] sm:$0xff]
          %v4577 = vsel %vm1040, %v4576, %v4574
          %s4578 = scalar_lea.vmem %s2, 3072
          %v4579 = vld [vmem:[%s4578] sm:$0xff]
          %v4580 = vld [vmem:[%s4578 + $0x8] sm:$0xff]
          %v4581 = vld [vmem:[%s4578 + $0x10] sm:$0xff]
          %v4582 = vld [vmem:[%s4578 + $0x18] sm:$0xff]
          %v4583 = vld [vmem:[%s4578 + $0x20] sm:$0xff]
          %v4584 = vld [vmem:[%s4578 + $0x28] sm:$0xff]
          %v4585 = vld [vmem:[%s4578 + $0x30] sm:$0xff]
          %v4586 = vld [vmem:[%s4578 + $0x38] sm:$0xff]
          %v4587 = vld [vmem:[%s4578 + $0x40] sm:$0xff]
          %v4588 = vld [vmem:[%s4578 + $0x48] sm:$0xff]
          %v4589 = vld [vmem:[%s4578 + $0x50] sm:$0xff]
          %v4590 = vld [vmem:[%s4578 + $0x58] sm:$0xff]
          %v4591 = vld [vmem:[%s4578 + $0x60] sm:$0xff]
          %v4592 = vld [vmem:[%s4578 + $0x68] sm:$0xff]
          %v4593 = vld [vmem:[%s4578 + $0x70] sm:$0xff]
          %v4594 = vld [vmem:[%s4578 + $0x78] sm:$0xff]
          %s4595 = scalar_lea.vmem %s2, 3200
          %v4596 = vld [vmem:[%s4595] sm:$0xff]
          %v4597 = vld [vmem:[%s4595 + $0x8] sm:$0xff]
          %v4598 = vld [vmem:[%s4595 + $0x10] sm:$0xff]
          %v4599 = vld [vmem:[%s4595 + $0x18] sm:$0xff]
          %v4600 = vld [vmem:[%s4595 + $0x20] sm:$0xff]
          %v4601 = vld [vmem:[%s4595 + $0x28] sm:$0xff]
          %v4602 = vld [vmem:[%s4595 + $0x30] sm:$0xff]
          %v4603 = vld [vmem:[%s4595 + $0x38] sm:$0xff]
          %v4604 = vld [vmem:[%s4595 + $0x40] sm:$0xff]
          %v4605 = vld [vmem:[%s4595 + $0x48] sm:$0xff]
          %v4606 = vld [vmem:[%s4595 + $0x50] sm:$0xff]
          %v4607 = vld [vmem:[%s4595 + $0x58] sm:$0xff]
          %v4608 = vld [vmem:[%s4595 + $0x60] sm:$0xff]
          %v4609 = vld [vmem:[%s4595 + $0x68] sm:$0xff]
          %v4610 = vld [vmem:[%s4595 + $0x70] sm:$0xff]
          %v4611 = vld [vmem:[%s4595 + $0x78] sm:$0xff]
          %4612 = vmatprep.subr.mxu0 0.0
          %4613 = vmatpush1.msra.mxu0 %v4611
          %4614 = vmatprep.subr.mxu0 0.0
          %4615 = vmatpush1.msra.mxu0 %v4610
          %4616 = vmatprep.subr.mxu0 0.0
          %4617 = vmatpush1.msra.mxu0 %v4609
          %4618 = vmatprep.subr.mxu0 0.0
          %4619 = vmatpush1.msra.mxu0 %v4608
          %4620 = vmatprep.subr.mxu0 0.0
          %4621 = vmatpush1.msra.mxu0 %v4607
          %4622 = vmatprep.subr.mxu0 0.0
          %4623 = vmatpush1.msra.mxu0 %v4606
          %4624 = vmatprep.subr.mxu0 0.0
          %4625 = vmatpush1.msra.mxu0 %v4605
          %4626 = vmatprep.subr.mxu0 0.0
          %4627 = vmatpush1.msra.mxu0 %v4604
          %4628 = vmatprep.subr.mxu0 0.0
          %4629 = vmatpush1.msra.mxu0 %v4603
          %4630 = vmatprep.subr.mxu0 0.0
          %4631 = vmatpush1.msra.mxu0 %v4602
          %4632 = vmatprep.subr.mxu0 0.0
          %4633 = vmatpush1.msra.mxu0 %v4601
          %4634 = vmatprep.subr.mxu0 0.0
          %4635 = vmatpush1.msra.mxu0 %v4600
          %4636 = vmatprep.subr.mxu0 0.0
          %4637 = vmatpush1.msra.mxu0 %v4599
          %4638 = vmatprep.subr.mxu0 0.0
          %4639 = vmatpush1.msra.mxu0 %v4598
          %4640 = vmatprep.subr.mxu0 0.0
          %4641 = vmatpush1.msra.mxu0 %v4597
          %4642 = vmatprep.subr.mxu0 0.0
          %4643 = vmatpush1.msra.mxu0 %v4596
          %4644 = vmatprep.subr.mxu0 0.0
          %4645 = vmatpush2.msra.mxu0 0.0
          %4646 = vmatprep.subr.mxu0 0.0
          %4647 = vmatpush2.msra.mxu0 0.0
          %4648 = vmatprep.subr.mxu0 0.0
          %4649 = vmatpush2.msra.mxu0 0.0
          %4650 = vmatprep.subr.mxu0 0.0
          %4651 = vmatpush2.msra.mxu0 0.0
          %4652 = vmatprep.subr.mxu0 0.0
          %4653 = vmatpush2.msra.mxu0 0.0
          %4654 = vmatprep.subr.mxu0 0.0
          %4655 = vmatpush2.msra.mxu0 0.0
          %4656 = vmatprep.subr.mxu0 0.0
          %4657 = vmatpush2.msra.mxu0 0.0
          %4658 = vmatprep.subr.mxu0 0.0
          %4659 = vmatpush2.msra.mxu0 0.0
          %4660 = vmatprep.subr.mxu0 0.0
          %4661 = vmatpush2.msra.mxu0 0.0
          %4662 = vmatprep.subr.mxu0 0.0
          %4663 = vmatpush2.msra.mxu0 0.0
          %4664 = vmatprep.subr.mxu0 0.0
          %4665 = vmatpush2.msra.mxu0 0.0
          %4666 = vmatprep.subr.mxu0 0.0
          %4667 = vmatpush2.msra.mxu0 0.0
          %4668 = vmatprep.subr.mxu0 0.0
          %4669 = vmatpush2.msra.mxu0 0.0
          %4670 = vmatprep.subr.mxu0 0.0
          %4671 = vmatpush2.msra.mxu0 0.0
          %4672 = vmatprep.subr.mxu0 0.0
          %4673 = vmatpush2.msra.mxu0 0.0
          %4674 = vmatprep.subr.mxu0 0.0
          %4675 = vmatpush2.msra.mxu0 0.0
          %4676 = vmatprep.mubr.f32.mxu0 0.0
          %4677 = vmatmul.mubr.f32.gmra.mxu0 %v4577
          %v4678 = vpop.f32.mrf.mxu0
          %v4679 = vadd.f32 0.0, %v4678
          %v4680 = vpop.f32.mrf.mxu0
          %4681 = vdwg.mxu0
          %4682 = vmatprep.subr.mxu0 0.0
          %4683 = vmatpush1.msra.mxu0 %v4594
          %4684 = vmatprep.subr.mxu0 0.0
          %4685 = vmatpush1.msra.mxu0 %v4593
          %4686 = vmatprep.subr.mxu0 0.0
          %4687 = vmatpush1.msra.mxu0 %v4592
          %4688 = vmatprep.subr.mxu0 0.0
          %4689 = vmatpush1.msra.mxu0 %v4591
          %4690 = vmatprep.subr.mxu0 0.0
          %4691 = vmatpush1.msra.mxu0 %v4590
          %4692 = vmatprep.subr.mxu0 0.0
          %4693 = vmatpush1.msra.mxu0 %v4589
          %4694 = vmatprep.subr.mxu0 0.0
          %4695 = vmatpush1.msra.mxu0 %v4588
          %4696 = vmatprep.subr.mxu0 0.0
          %4697 = vmatpush1.msra.mxu0 %v4587
          %4698 = vmatprep.subr.mxu0 0.0
          %4699 = vmatpush1.msra.mxu0 %v4586
          %4700 = vmatprep.subr.mxu0 0.0
          %4701 = vmatpush1.msra.mxu0 %v4585
          %4702 = vmatprep.subr.mxu0 0.0
          %4703 = vmatpush1.msra.mxu0 %v4584
          %4704 = vmatprep.subr.mxu0 0.0
          %4705 = vmatpush1.msra.mxu0 %v4583
          %4706 = vmatprep.subr.mxu0 0.0
          %4707 = vmatpush1.msra.mxu0 %v4582
          %4708 = vmatprep.subr.mxu0 0.0
          %4709 = vmatpush1.msra.mxu0 %v4581
          %4710 = vmatprep.subr.mxu0 0.0
          %4711 = vmatpush1.msra.mxu0 %v4580
          %4712 = vmatprep.subr.mxu0 0.0
          %4713 = vmatpush1.msra.mxu0 %v4579
          %4714 = vmatprep.subr.mxu0 0.0
          %4715 = vmatpush2.msra.mxu0 0.0
          %4716 = vmatprep.subr.mxu0 0.0
          %4717 = vmatpush2.msra.mxu0 0.0
          %4718 = vmatprep.subr.mxu0 0.0
          %4719 = vmatpush2.msra.mxu0 0.0
          %4720 = vmatprep.subr.mxu0 0.0
          %4721 = vmatpush2.msra.mxu0 0.0
          %4722 = vmatprep.subr.mxu0 0.0
          %4723 = vmatpush2.msra.mxu0 0.0
          %4724 = vmatprep.subr.mxu0 0.0
          %4725 = vmatpush2.msra.mxu0 0.0
          %4726 = vmatprep.subr.mxu0 0.0
          %4727 = vmatpush2.msra.mxu0 0.0
          %4728 = vmatprep.subr.mxu0 0.0
          %4729 = vmatpush2.msra.mxu0 0.0
          %4730 = vmatprep.subr.mxu0 0.0
          %4731 = vmatpush2.msra.mxu0 0.0
          %4732 = vmatprep.subr.mxu0 0.0
          %4733 = vmatpush2.msra.mxu0 0.0
          %4734 = vmatprep.subr.mxu0 0.0
          %4735 = vmatpush2.msra.mxu0 0.0
          %4736 = vmatprep.subr.mxu0 0.0
          %4737 = vmatpush2.msra.mxu0 0.0
          %4738 = vmatprep.subr.mxu0 0.0
          %4739 = vmatpush2.msra.mxu0 0.0
          %4740 = vmatprep.subr.mxu0 0.0
          %4741 = vmatpush2.msra.mxu0 0.0
          %4742 = vmatprep.subr.mxu0 0.0
          %4743 = vmatpush2.msra.mxu0 0.0
          %4744 = vmatprep.subr.mxu0 0.0
          %4745 = vmatpush2.msra.mxu0 0.0
          %4746 = vmatprep.mubr.f32.mxu0 0.0
          %4747 = vmatmul.mubr.f32.gmra.mxu0 %v4575
          %v4748 = vpop.f32.mrf.mxu0
          %v4749 = vadd.f32 %v4679, %v4748
          %v4750 = vpop.f32.mrf.mxu0
          %4751 = vdwg.mxu0
          %s4752 = sadd.s32 %s4571, 1
          %s4753 = smul.u32 %s4752, 16
          %s4754 = scalar_lea.vmem [#allocation5], %s4753
          %v4755 = vld [vmem:[%s4754] sm:$0xff]
          %v4756 = vld [vmem:[%s4754 + $0x1] sm:$0xff]
          %v4757 = vld [vmem:[%s4754 + $0x2] sm:$0xff]
          %v4758 = vsel %vm1040, %v4757, %v4755
          %s4759 = scalar_lea.vmem %s2, 3328
          %v4760 = vld [vmem:[%s4759] sm:$0xff]
          %v4761 = vld [vmem:[%s4759 + $0x8] sm:$0xff]
          %v4762 = vld [vmem:[%s4759 + $0x10] sm:$0xff]
          %v4763 = vld [vmem:[%s4759 + $0x18] sm:$0xff]
          %v4764 = vld [vmem:[%s4759 + $0x20] sm:$0xff]
          %v4765 = vld [vmem:[%s4759 + $0x28] sm:$0xff]
          %v4766 = vld [vmem:[%s4759 + $0x30] sm:$0xff]
          %v4767 = vld [vmem:[%s4759 + $0x38] sm:$0xff]
          %v4768 = vld [vmem:[%s4759 + $0x40] sm:$0xff]
          %v4769 = vld [vmem:[%s4759 + $0x48] sm:$0xff]
          %v4770 = vld [vmem:[%s4759 + $0x50] sm:$0xff]
          %v4771 = vld [vmem:[%s4759 + $0x58] sm:$0xff]
          %v4772 = vld [vmem:[%s4759 + $0x60] sm:$0xff]
          %v4773 = vld [vmem:[%s4759 + $0x68] sm:$0xff]
          %v4774 = vld [vmem:[%s4759 + $0x70] sm:$0xff]
          %v4775 = vld [vmem:[%s4759 + $0x78] sm:$0xff]
          %4776 = vmatprep.subr.mxu0 0.0
          %4777 = vmatpush1.msra.mxu0 %v4775
          %4778 = vmatprep.subr.mxu0 0.0
          %4779 = vmatpush1.msra.mxu0 %v4774
          %4780 = vmatprep.subr.mxu0 0.0
          %4781 = vmatpush1.msra.mxu0 %v4773
          %4782 = vmatprep.subr.mxu0 0.0
          %4783 = vmatpush1.msra.mxu0 %v4772
          %4784 = vmatprep.subr.mxu0 0.0
          %4785 = vmatpush1.msra.mxu0 %v4771
          %4786 = vmatprep.subr.mxu0 0.0
          %4787 = vmatpush1.msra.mxu0 %v4770
          %4788 = vmatprep.subr.mxu0 0.0
          %4789 = vmatpush1.msra.mxu0 %v4769
          %4790 = vmatprep.subr.mxu0 0.0
          %4791 = vmatpush1.msra.mxu0 %v4768
          %4792 = vmatprep.subr.mxu0 0.0
          %4793 = vmatpush1.msra.mxu0 %v4767
          %4794 = vmatprep.subr.mxu0 0.0
          %4795 = vmatpush1.msra.mxu0 %v4766
          %4796 = vmatprep.subr.mxu0 0.0
          %4797 = vmatpush1.msra.mxu0 %v4765
          %4798 = vmatprep.subr.mxu0 0.0
          %4799 = vmatpush1.msra.mxu0 %v4764
          %4800 = vmatprep.subr.mxu0 0.0
          %4801 = vmatpush1.msra.mxu0 %v4763
          %4802 = vmatprep.subr.mxu0 0.0
          %4803 = vmatpush1.msra.mxu0 %v4762
          %4804 = vmatprep.subr.mxu0 0.0
          %4805 = vmatpush1.msra.mxu0 %v4761
          %4806 = vmatprep.subr.mxu0 0.0
          %4807 = vmatpush1.msra.mxu0 %v4760
          %4808 = vmatprep.subr.mxu0 0.0
          %4809 = vmatpush2.msra.mxu0 0.0
          %4810 = vmatprep.subr.mxu0 0.0
          %4811 = vmatpush2.msra.mxu0 0.0
          %4812 = vmatprep.subr.mxu0 0.0
          %4813 = vmatpush2.msra.mxu0 0.0
          %4814 = vmatprep.subr.mxu0 0.0
          %4815 = vmatpush2.msra.mxu0 0.0
          %4816 = vmatprep.subr.mxu0 0.0
          %4817 = vmatpush2.msra.mxu0 0.0
          %4818 = vmatprep.subr.mxu0 0.0
          %4819 = vmatpush2.msra.mxu0 0.0
          %4820 = vmatprep.subr.mxu0 0.0
          %4821 = vmatpush2.msra.mxu0 0.0
          %4822 = vmatprep.subr.mxu0 0.0
          %4823 = vmatpush2.msra.mxu0 0.0
          %4824 = vmatprep.subr.mxu0 0.0
          %4825 = vmatpush2.msra.mxu0 0.0
          %4826 = vmatprep.subr.mxu0 0.0
          %4827 = vmatpush2.msra.mxu0 0.0
          %4828 = vmatprep.subr.mxu0 0.0
          %4829 = vmatpush2.msra.mxu0 0.0
          %4830 = vmatprep.subr.mxu0 0.0
          %4831 = vmatpush2.msra.mxu0 0.0
          %4832 = vmatprep.subr.mxu0 0.0
          %4833 = vmatpush2.msra.mxu0 0.0
          %4834 = vmatprep.subr.mxu0 0.0
          %4835 = vmatpush2.msra.mxu0 0.0
          %4836 = vmatprep.subr.mxu0 0.0
          %4837 = vmatpush2.msra.mxu0 0.0
          %4838 = vmatprep.subr.mxu0 0.0
          %4839 = vmatpush2.msra.mxu0 0.0
          %4840 = vmatprep.mubr.f32.mxu0 0.0
          %4841 = vmatmul.mubr.f32.gmra.mxu0 %v4756
          %v4842 = vpop.f32.mrf.mxu0
          %v4843 = vadd.f32 0.0, %v4842
          %v4844 = vpop.f32.mrf.mxu0
          %4845 = vdwg.mxu0
          %v4846 = vadd.f32 %v4749, %v4843
          %s4847 = scalar_lea.vmem %s2, 3456
          %v4848 = vld [vmem:[%s4847] sm:$0xff]
          %v4849 = vld [vmem:[%s4847 + $0x8] sm:$0xff]
          %v4850 = vld [vmem:[%s4847 + $0x10] sm:$0xff]
          %v4851 = vld [vmem:[%s4847 + $0x18] sm:$0xff]
          %v4852 = vld [vmem:[%s4847 + $0x20] sm:$0xff]
          %v4853 = vld [vmem:[%s4847 + $0x28] sm:$0xff]
          %v4854 = vld [vmem:[%s4847 + $0x30] sm:$0xff]
          %v4855 = vld [vmem:[%s4847 + $0x38] sm:$0xff]
          %v4856 = vld [vmem:[%s4847 + $0x40] sm:$0xff]
          %v4857 = vld [vmem:[%s4847 + $0x48] sm:$0xff]
          %v4858 = vld [vmem:[%s4847 + $0x50] sm:$0xff]
          %v4859 = vld [vmem:[%s4847 + $0x58] sm:$0xff]
          %v4860 = vld [vmem:[%s4847 + $0x60] sm:$0xff]
          %v4861 = vld [vmem:[%s4847 + $0x68] sm:$0xff]
          %v4862 = vld [vmem:[%s4847 + $0x70] sm:$0xff]
          %v4863 = vld [vmem:[%s4847 + $0x78] sm:$0xff]
          %4864 = vmatprep.subr.mxu0 0.0
          %4865 = vmatpush1.msra.mxu0 %v4863
          %4866 = vmatprep.subr.mxu0 0.0
          %4867 = vmatpush1.msra.mxu0 %v4862
          %4868 = vmatprep.subr.mxu0 0.0
          %4869 = vmatpush1.msra.mxu0 %v4861
          %4870 = vmatprep.subr.mxu0 0.0
          %4871 = vmatpush1.msra.mxu0 %v4860
          %4872 = vmatprep.subr.mxu0 0.0
          %4873 = vmatpush1.msra.mxu0 %v4859
          %4874 = vmatprep.subr.mxu0 0.0
          %4875 = vmatpush1.msra.mxu0 %v4858
          %4876 = vmatprep.subr.mxu0 0.0
          %4877 = vmatpush1.msra.mxu0 %v4857
          %4878 = vmatprep.subr.mxu0 0.0
          %4879 = vmatpush1.msra.mxu0 %v4856
          %4880 = vmatprep.subr.mxu0 0.0
          %4881 = vmatpush1.msra.mxu0 %v4855
          %4882 = vmatprep.subr.mxu0 0.0
          %4883 = vmatpush1.msra.mxu0 %v4854
          %4884 = vmatprep.subr.mxu0 0.0
          %4885 = vmatpush1.msra.mxu0 %v4853
          %4886 = vmatprep.subr.mxu0 0.0
          %4887 = vmatpush1.msra.mxu0 %v4852
          %4888 = vmatprep.subr.mxu0 0.0
          %4889 = vmatpush1.msra.mxu0 %v4851
          %4890 = vmatprep.subr.mxu0 0.0
          %4891 = vmatpush1.msra.mxu0 %v4850
          %4892 = vmatprep.subr.mxu0 0.0
          %4893 = vmatpush1.msra.mxu0 %v4849
          %4894 = vmatprep.subr.mxu0 0.0
          %4895 = vmatpush1.msra.mxu0 %v4848
          %4896 = vmatprep.subr.mxu0 0.0
          %4897 = vmatpush2.msra.mxu0 0.0
          %4898 = vmatprep.subr.mxu0 0.0
          %4899 = vmatpush2.msra.mxu0 0.0
          %4900 = vmatprep.subr.mxu0 0.0
          %4901 = vmatpush2.msra.mxu0 0.0
          %4902 = vmatprep.subr.mxu0 0.0
          %4903 = vmatpush2.msra.mxu0 0.0
          %4904 = vmatprep.subr.mxu0 0.0
          %4905 = vmatpush2.msra.mxu0 0.0
          %4906 = vmatprep.subr.mxu0 0.0
          %4907 = vmatpush2.msra.mxu0 0.0
          %4908 = vmatprep.subr.mxu0 0.0
          %4909 = vmatpush2.msra.mxu0 0.0
          %4910 = vmatprep.subr.mxu0 0.0
          %4911 = vmatpush2.msra.mxu0 0.0
          %4912 = vmatprep.subr.mxu0 0.0
          %4913 = vmatpush2.msra.mxu0 0.0
          %4914 = vmatprep.subr.mxu0 0.0
          %4915 = vmatpush2.msra.mxu0 0.0
          %4916 = vmatprep.subr.mxu0 0.0
          %4917 = vmatpush2.msra.mxu0 0.0
          %4918 = vmatprep.subr.mxu0 0.0
          %4919 = vmatpush2.msra.mxu0 0.0
          %4920 = vmatprep.subr.mxu0 0.0
          %4921 = vmatpush2.msra.mxu0 0.0
          %4922 = vmatprep.subr.mxu0 0.0
          %4923 = vmatpush2.msra.mxu0 0.0
          %4924 = vmatprep.subr.mxu0 0.0
          %4925 = vmatpush2.msra.mxu0 0.0
          %4926 = vmatprep.subr.mxu0 0.0
          %4927 = vmatpush2.msra.mxu0 0.0
          %4928 = vmatprep.mubr.f32.mxu0 0.0
          %4929 = vmatmul.mubr.f32.gmra.mxu0 %v4758
          %v4930 = vpop.f32.mrf.mxu0
          %v4931 = vadd.f32 0.0, %v4930
          %v4932 = vpop.f32.mrf.mxu0
          %4933 = vdwg.mxu0
          %v4934 = vadd.f32 %v4846, %v4931
          %s4935 = sadd.s32 %s4571, 2
          %s4936 = smul.u32 %s4935, 16
          %s4937 = scalar_lea.vmem [#allocation5], %s4936
          %v4938 = vld [vmem:[%s4937] sm:$0xff]
          %v4939 = vld [vmem:[%s4937 + $0x1] sm:$0xff]
          %v4940 = vld [vmem:[%s4937 + $0x2] sm:$0xff]
          %v4941 = vsel %vm1040, %v4940, %v4938
          %s4942 = scalar_lea.vmem %s2, 3584
          %v4943 = vld [vmem:[%s4942] sm:$0xff]
          %v4944 = vld [vmem:[%s4942 + $0x8] sm:$0xff]
          %v4945 = vld [vmem:[%s4942 + $0x10] sm:$0xff]
          %v4946 = vld [vmem:[%s4942 + $0x18] sm:$0xff]
          %v4947 = vld [vmem:[%s4942 + $0x20] sm:$0xff]
          %v4948 = vld [vmem:[%s4942 + $0x28] sm:$0xff]
          %v4949 = vld [vmem:[%s4942 + $0x30] sm:$0xff]
          %v4950 = vld [vmem:[%s4942 + $0x38] sm:$0xff]
          %v4951 = vld [vmem:[%s4942 + $0x40] sm:$0xff]
          %v4952 = vld [vmem:[%s4942 + $0x48] sm:$0xff]
          %v4953 = vld [vmem:[%s4942 + $0x50] sm:$0xff]
          %v4954 = vld [vmem:[%s4942 + $0x58] sm:$0xff]
          %v4955 = vld [vmem:[%s4942 + $0x60] sm:$0xff]
          %v4956 = vld [vmem:[%s4942 + $0x68] sm:$0xff]
          %v4957 = vld [vmem:[%s4942 + $0x70] sm:$0xff]
          %v4958 = vld [vmem:[%s4942 + $0x78] sm:$0xff]
          %4959 = vmatprep.subr.mxu0 0.0
          %4960 = vmatpush1.msra.mxu0 %v4958
          %4961 = vmatprep.subr.mxu0 0.0
          %4962 = vmatpush1.msra.mxu0 %v4957
          %4963 = vmatprep.subr.mxu0 0.0
          %4964 = vmatpush1.msra.mxu0 %v4956
          %4965 = vmatprep.subr.mxu0 0.0
          %4966 = vmatpush1.msra.mxu0 %v4955
          %4967 = vmatprep.subr.mxu0 0.0
          %4968 = vmatpush1.msra.mxu0 %v4954
          %4969 = vmatprep.subr.mxu0 0.0
          %4970 = vmatpush1.msra.mxu0 %v4953
          %4971 = vmatprep.subr.mxu0 0.0
          %4972 = vmatpush1.msra.mxu0 %v4952
          %4973 = vmatprep.subr.mxu0 0.0
          %4974 = vmatpush1.msra.mxu0 %v4951
          %4975 = vmatprep.subr.mxu0 0.0
          %4976 = vmatpush1.msra.mxu0 %v4950
          %4977 = vmatprep.subr.mxu0 0.0
          %4978 = vmatpush1.msra.mxu0 %v4949
          %4979 = vmatprep.subr.mxu0 0.0
          %4980 = vmatpush1.msra.mxu0 %v4948
          %4981 = vmatprep.subr.mxu0 0.0
          %4982 = vmatpush1.msra.mxu0 %v4947
          %4983 = vmatprep.subr.mxu0 0.0
          %4984 = vmatpush1.msra.mxu0 %v4946
          %4985 = vmatprep.subr.mxu0 0.0
          %4986 = vmatpush1.msra.mxu0 %v4945
          %4987 = vmatprep.subr.mxu0 0.0
          %4988 = vmatpush1.msra.mxu0 %v4944
          %4989 = vmatprep.subr.mxu0 0.0
          %4990 = vmatpush1.msra.mxu0 %v4943
          %4991 = vmatprep.subr.mxu0 0.0
          %4992 = vmatpush2.msra.mxu0 0.0
          %4993 = vmatprep.subr.mxu0 0.0
          %4994 = vmatpush2.msra.mxu0 0.0
          %4995 = vmatprep.subr.mxu0 0.0
          %4996 = vmatpush2.msra.mxu0 0.0
          %4997 = vmatprep.subr.mxu0 0.0
          %4998 = vmatpush2.msra.mxu0 0.0
          %4999 = vmatprep.subr.mxu0 0.0
          %5000 = vmatpush2.msra.mxu0 0.0
          %5001 = vmatprep.subr.mxu0 0.0
          %5002 = vmatpush2.msra.mxu0 0.0
          %5003 = vmatprep.subr.mxu0 0.0
          %5004 = vmatpush2.msra.mxu0 0.0
          %5005 = vmatprep.subr.mxu0 0.0
          %5006 = vmatpush2.msra.mxu0 0.0
          %5007 = vmatprep.subr.mxu0 0.0
          %5008 = vmatpush2.msra.mxu0 0.0
          %5009 = vmatprep.subr.mxu0 0.0
          %5010 = vmatpush2.msra.mxu0 0.0
          %5011 = vmatprep.subr.mxu0 0.0
          %5012 = vmatpush2.msra.mxu0 0.0
          %5013 = vmatprep.subr.mxu0 0.0
          %5014 = vmatpush2.msra.mxu0 0.0
          %5015 = vmatprep.subr.mxu0 0.0
          %5016 = vmatpush2.msra.mxu0 0.0
          %5017 = vmatprep.subr.mxu0 0.0
          %5018 = vmatpush2.msra.mxu0 0.0
          %5019 = vmatprep.subr.mxu0 0.0
          %5020 = vmatpush2.msra.mxu0 0.0
          %5021 = vmatprep.subr.mxu0 0.0
          %5022 = vmatpush2.msra.mxu0 0.0
          %5023 = vmatprep.mubr.f32.mxu0 0.0
          %5024 = vmatmul.mubr.f32.gmra.mxu0 %v4939
          %v5025 = vpop.f32.mrf.mxu0
          %v5026 = vadd.f32 0.0, %v5025
          %v5027 = vpop.f32.mrf.mxu0
          %5028 = vdwg.mxu0
          %v5029 = vadd.f32 %v4934, %v5026
          %s5030 = scalar_lea.vmem %s2, 3712
          %v5031 = vld [vmem:[%s5030] sm:$0xff]
          %v5032 = vld [vmem:[%s5030 + $0x8] sm:$0xff]
          %v5033 = vld [vmem:[%s5030 + $0x10] sm:$0xff]
          %v5034 = vld [vmem:[%s5030 + $0x18] sm:$0xff]
          %v5035 = vld [vmem:[%s5030 + $0x20] sm:$0xff]
          %v5036 = vld [vmem:[%s5030 + $0x28] sm:$0xff]
          %v5037 = vld [vmem:[%s5030 + $0x30] sm:$0xff]
          %v5038 = vld [vmem:[%s5030 + $0x38] sm:$0xff]
          %v5039 = vld [vmem:[%s5030 + $0x40] sm:$0xff]
          %v5040 = vld [vmem:[%s5030 + $0x48] sm:$0xff]
          %v5041 = vld [vmem:[%s5030 + $0x50] sm:$0xff]
          %v5042 = vld [vmem:[%s5030 + $0x58] sm:$0xff]
          %v5043 = vld [vmem:[%s5030 + $0x60] sm:$0xff]
          %v5044 = vld [vmem:[%s5030 + $0x68] sm:$0xff]
          %v5045 = vld [vmem:[%s5030 + $0x70] sm:$0xff]
          %v5046 = vld [vmem:[%s5030 + $0x78] sm:$0xff]
          %5047 = vmatprep.subr.mxu0 0.0
          %5048 = vmatpush1.msra.mxu0 %v5046
          %5049 = vmatprep.subr.mxu0 0.0
          %5050 = vmatpush1.msra.mxu0 %v5045
          %5051 = vmatprep.subr.mxu0 0.0
          %5052 = vmatpush1.msra.mxu0 %v5044
          %5053 = vmatprep.subr.mxu0 0.0
          %5054 = vmatpush1.msra.mxu0 %v5043
          %5055 = vmatprep.subr.mxu0 0.0
          %5056 = vmatpush1.msra.mxu0 %v5042
          %5057 = vmatprep.subr.mxu0 0.0
          %5058 = vmatpush1.msra.mxu0 %v5041
          %5059 = vmatprep.subr.mxu0 0.0
          %5060 = vmatpush1.msra.mxu0 %v5040
          %5061 = vmatprep.subr.mxu0 0.0
          %5062 = vmatpush1.msra.mxu0 %v5039
          %5063 = vmatprep.subr.mxu0 0.0
          %5064 = vmatpush1.msra.mxu0 %v5038
          %5065 = vmatprep.subr.mxu0 0.0
          %5066 = vmatpush1.msra.mxu0 %v5037
          %5067 = vmatprep.subr.mxu0 0.0
          %5068 = vmatpush1.msra.mxu0 %v5036
          %5069 = vmatprep.subr.mxu0 0.0
          %5070 = vmatpush1.msra.mxu0 %v5035
          %5071 = vmatprep.subr.mxu0 0.0
          %5072 = vmatpush1.msra.mxu0 %v5034
          %5073 = vmatprep.subr.mxu0 0.0
          %5074 = vmatpush1.msra.mxu0 %v5033
          %5075 = vmatprep.subr.mxu0 0.0
          %5076 = vmatpush1.msra.mxu0 %v5032
          %5077 = vmatprep.subr.mxu0 0.0
          %5078 = vmatpush1.msra.mxu0 %v5031
          %5079 = vmatprep.subr.mxu0 0.0
          %5080 = vmatpush2.msra.mxu0 0.0
          %5081 = vmatprep.subr.mxu0 0.0
          %5082 = vmatpush2.msra.mxu0 0.0
          %5083 = vmatprep.subr.mxu0 0.0
          %5084 = vmatpush2.msra.mxu0 0.0
          %5085 = vmatprep.subr.mxu0 0.0
          %5086 = vmatpush2.msra.mxu0 0.0
          %5087 = vmatprep.subr.mxu0 0.0
          %5088 = vmatpush2.msra.mxu0 0.0
          %5089 = vmatprep.subr.mxu0 0.0
          %5090 = vmatpush2.msra.mxu0 0.0
          %5091 = vmatprep.subr.mxu0 0.0
          %5092 = vmatpush2.msra.mxu0 0.0
          %5093 = vmatprep.subr.mxu0 0.0
          %5094 = vmatpush2.msra.mxu0 0.0
          %5095 = vmatprep.subr.mxu0 0.0
          %5096 = vmatpush2.msra.mxu0 0.0
          %5097 = vmatprep.subr.mxu0 0.0
          %5098 = vmatpush2.msra.mxu0 0.0
          %5099 = vmatprep.subr.mxu0 0.0
          %5100 = vmatpush2.msra.mxu0 0.0
          %5101 = vmatprep.subr.mxu0 0.0
          %5102 = vmatpush2.msra.mxu0 0.0
          %5103 = vmatprep.subr.mxu0 0.0
          %5104 = vmatpush2.msra.mxu0 0.0
          %5105 = vmatprep.subr.mxu0 0.0
          %5106 = vmatpush2.msra.mxu0 0.0
          %5107 = vmatprep.subr.mxu0 0.0
          %5108 = vmatpush2.msra.mxu0 0.0
          %5109 = vmatprep.subr.mxu0 0.0
          %5110 = vmatpush2.msra.mxu0 0.0
          %5111 = vmatprep.mubr.f32.mxu0 0.0
          %5112 = vmatmul.mubr.f32.gmra.mxu0 %v4941
          %v5113 = vpop.f32.mrf.mxu0
          %v5114 = vadd.f32 0.0, %v5113
          %v5115 = vpop.f32.mrf.mxu0
          %5116 = vdwg.mxu0
          %v5117 = vadd.f32 %v5029, %v5114
          %s5118 = sadd.s32 %s4571, 3
          %s5119 = smul.u32 %s5118, 16
          %s5120 = scalar_lea.vmem [#allocation5], %s5119
          %v5121 = vld [vmem:[%s5120] sm:$0xff]
          %v5122 = vld [vmem:[%s5120 + $0x1] sm:$0xff]
          %v5123 = vld [vmem:[%s5120 + $0x2] sm:$0xff]
          %v5124 = vsel %vm1040, %v5123, %v5121
          %s5125 = scalar_lea.vmem %s2, 3840
          %v5126 = vld [vmem:[%s5125] sm:$0xff]
          %v5127 = vld [vmem:[%s5125 + $0x8] sm:$0xff]
          %v5128 = vld [vmem:[%s5125 + $0x10] sm:$0xff]
          %v5129 = vld [vmem:[%s5125 + $0x18] sm:$0xff]
          %v5130 = vld [vmem:[%s5125 + $0x20] sm:$0xff]
          %v5131 = vld [vmem:[%s5125 + $0x28] sm:$0xff]
          %v5132 = vld [vmem:[%s5125 + $0x30] sm:$0xff]
          %v5133 = vld [vmem:[%s5125 + $0x38] sm:$0xff]
          %v5134 = vld [vmem:[%s5125 + $0x40] sm:$0xff]
          %v5135 = vld [vmem:[%s5125 + $0x48] sm:$0xff]
          %v5136 = vld [vmem:[%s5125 + $0x50] sm:$0xff]
          %v5137 = vld [vmem:[%s5125 + $0x58] sm:$0xff]
          %v5138 = vld [vmem:[%s5125 + $0x60] sm:$0xff]
          %v5139 = vld [vmem:[%s5125 + $0x68] sm:$0xff]
          %v5140 = vld [vmem:[%s5125 + $0x70] sm:$0xff]
          %v5141 = vld [vmem:[%s5125 + $0x78] sm:$0xff]
          %5142 = vmatprep.subr.mxu0 0.0
          %5143 = vmatpush1.msra.mxu0 %v5141
          %5144 = vmatprep.subr.mxu0 0.0
          %5145 = vmatpush1.msra.mxu0 %v5140
          %5146 = vmatprep.subr.mxu0 0.0
          %5147 = vmatpush1.msra.mxu0 %v5139
          %5148 = vmatprep.subr.mxu0 0.0
          %5149 = vmatpush1.msra.mxu0 %v5138
          %5150 = vmatprep.subr.mxu0 0.0
          %5151 = vmatpush1.msra.mxu0 %v5137
          %5152 = vmatprep.subr.mxu0 0.0
          %5153 = vmatpush1.msra.mxu0 %v5136
          %5154 = vmatprep.subr.mxu0 0.0
          %5155 = vmatpush1.msra.mxu0 %v5135
          %5156 = vmatprep.subr.mxu0 0.0
          %5157 = vmatpush1.msra.mxu0 %v5134
          %5158 = vmatprep.subr.mxu0 0.0
          %5159 = vmatpush1.msra.mxu0 %v5133
          %5160 = vmatprep.subr.mxu0 0.0
          %5161 = vmatpush1.msra.mxu0 %v5132
          %5162 = vmatprep.subr.mxu0 0.0
          %5163 = vmatpush1.msra.mxu0 %v5131
          %5164 = vmatprep.subr.mxu0 0.0
          %5165 = vmatpush1.msra.mxu0 %v5130
          %5166 = vmatprep.subr.mxu0 0.0
          %5167 = vmatpush1.msra.mxu0 %v5129
          %5168 = vmatprep.subr.mxu0 0.0
          %5169 = vmatpush1.msra.mxu0 %v5128
          %5170 = vmatprep.subr.mxu0 0.0
          %5171 = vmatpush1.msra.mxu0 %v5127
          %5172 = vmatprep.subr.mxu0 0.0
          %5173 = vmatpush1.msra.mxu0 %v5126
          %5174 = vmatprep.subr.mxu0 0.0
          %5175 = vmatpush2.msra.mxu0 0.0
          %5176 = vmatprep.subr.mxu0 0.0
          %5177 = vmatpush2.msra.mxu0 0.0
          %5178 = vmatprep.subr.mxu0 0.0
          %5179 = vmatpush2.msra.mxu0 0.0
          %5180 = vmatprep.subr.mxu0 0.0
          %5181 = vmatpush2.msra.mxu0 0.0
          %5182 = vmatprep.subr.mxu0 0.0
          %5183 = vmatpush2.msra.mxu0 0.0
          %5184 = vmatprep.subr.mxu0 0.0
          %5185 = vmatpush2.msra.mxu0 0.0
          %5186 = vmatprep.subr.mxu0 0.0
          %5187 = vmatpush2.msra.mxu0 0.0
          %5188 = vmatprep.subr.mxu0 0.0
          %5189 = vmatpush2.msra.mxu0 0.0
          %5190 = vmatprep.subr.mxu0 0.0
          %5191 = vmatpush2.msra.mxu0 0.0
          %5192 = vmatprep.subr.mxu0 0.0
          %5193 = vmatpush2.msra.mxu0 0.0
          %5194 = vmatprep.subr.mxu0 0.0
          %5195 = vmatpush2.msra.mxu0 0.0
          %5196 = vmatprep.subr.mxu0 0.0
          %5197 = vmatpush2.msra.mxu0 0.0
          %5198 = vmatprep.subr.mxu0 0.0
          %5199 = vmatpush2.msra.mxu0 0.0
          %5200 = vmatprep.subr.mxu0 0.0
          %5201 = vmatpush2.msra.mxu0 0.0
          %5202 = vmatprep.subr.mxu0 0.0
          %5203 = vmatpush2.msra.mxu0 0.0
          %5204 = vmatprep.subr.mxu0 0.0
          %5205 = vmatpush2.msra.mxu0 0.0
          %5206 = vmatprep.mubr.f32.mxu0 0.0
          %5207 = vmatmul.mubr.f32.gmra.mxu0 %v5122
          %v5208 = vpop.f32.mrf.mxu0
          %v5209 = vadd.f32 0.0, %v5208
          %v5210 = vpop.f32.mrf.mxu0
          %5211 = vdwg.mxu0
          %v5212 = vadd.f32 %v5117, %v5209
          %s5213 = scalar_lea.vmem %s2, 3968
          %v5214 = vld [vmem:[%s5213] sm:$0xff]
          %v5215 = vld [vmem:[%s5213 + $0x8] sm:$0xff]
          %v5216 = vld [vmem:[%s5213 + $0x10] sm:$0xff]
          %v5217 = vld [vmem:[%s5213 + $0x18] sm:$0xff]
          %v5218 = vld [vmem:[%s5213 + $0x20] sm:$0xff]
          %v5219 = vld [vmem:[%s5213 + $0x28] sm:$0xff]
          %v5220 = vld [vmem:[%s5213 + $0x30] sm:$0xff]
          %v5221 = vld [vmem:[%s5213 + $0x38] sm:$0xff]
          %v5222 = vld [vmem:[%s5213 + $0x40] sm:$0xff]
          %v5223 = vld [vmem:[%s5213 + $0x48] sm:$0xff]
          %v5224 = vld [vmem:[%s5213 + $0x50] sm:$0xff]
          %v5225 = vld [vmem:[%s5213 + $0x58] sm:$0xff]
          %v5226 = vld [vmem:[%s5213 + $0x60] sm:$0xff]
          %v5227 = vld [vmem:[%s5213 + $0x68] sm:$0xff]
          %v5228 = vld [vmem:[%s5213 + $0x70] sm:$0xff]
          %v5229 = vld [vmem:[%s5213 + $0x78] sm:$0xff]
          %5230 = vmatprep.subr.mxu0 0.0
          %5231 = vmatpush1.msra.mxu0 %v5229
          %5232 = vmatprep.subr.mxu0 0.0
          %5233 = vmatpush1.msra.mxu0 %v5228
          %5234 = vmatprep.subr.mxu0 0.0
          %5235 = vmatpush1.msra.mxu0 %v5227
          %5236 = vmatprep.subr.mxu0 0.0
          %5237 = vmatpush1.msra.mxu0 %v5226
          %5238 = vmatprep.subr.mxu0 0.0
          %5239 = vmatpush1.msra.mxu0 %v5225
          %5240 = vmatprep.subr.mxu0 0.0
          %5241 = vmatpush1.msra.mxu0 %v5224
          %5242 = vmatprep.subr.mxu0 0.0
          %5243 = vmatpush1.msra.mxu0 %v5223
          %5244 = vmatprep.subr.mxu0 0.0
          %5245 = vmatpush1.msra.mxu0 %v5222
          %5246 = vmatprep.subr.mxu0 0.0
          %5247 = vmatpush1.msra.mxu0 %v5221
          %5248 = vmatprep.subr.mxu0 0.0
          %5249 = vmatpush1.msra.mxu0 %v5220
          %5250 = vmatprep.subr.mxu0 0.0
          %5251 = vmatpush1.msra.mxu0 %v5219
          %5252 = vmatprep.subr.mxu0 0.0
          %5253 = vmatpush1.msra.mxu0 %v5218
          %5254 = vmatprep.subr.mxu0 0.0
          %5255 = vmatpush1.msra.mxu0 %v5217
          %5256 = vmatprep.subr.mxu0 0.0
          %5257 = vmatpush1.msra.mxu0 %v5216
          %5258 = vmatprep.subr.mxu0 0.0
          %5259 = vmatpush1.msra.mxu0 %v5215
          %5260 = vmatprep.subr.mxu0 0.0
          %5261 = vmatpush1.msra.mxu0 %v5214
          %5262 = vmatprep.subr.mxu0 0.0
          %5263 = vmatpush2.msra.mxu0 0.0
          %5264 = vmatprep.subr.mxu0 0.0
          %5265 = vmatpush2.msra.mxu0 0.0
          %5266 = vmatprep.subr.mxu0 0.0
          %5267 = vmatpush2.msra.mxu0 0.0
          %5268 = vmatprep.subr.mxu0 0.0
          %5269 = vmatpush2.msra.mxu0 0.0
          %5270 = vmatprep.subr.mxu0 0.0
          %5271 = vmatpush2.msra.mxu0 0.0
          %5272 = vmatprep.subr.mxu0 0.0
          %5273 = vmatpush2.msra.mxu0 0.0
          %5274 = vmatprep.subr.mxu0 0.0
          %5275 = vmatpush2.msra.mxu0 0.0
          %5276 = vmatprep.subr.mxu0 0.0
          %5277 = vmatpush2.msra.mxu0 0.0
          %5278 = vmatprep.subr.mxu0 0.0
          %5279 = vmatpush2.msra.mxu0 0.0
          %5280 = vmatprep.subr.mxu0 0.0
          %5281 = vmatpush2.msra.mxu0 0.0
          %5282 = vmatprep.subr.mxu0 0.0
          %5283 = vmatpush2.msra.mxu0 0.0
          %5284 = vmatprep.subr.mxu0 0.0
          %5285 = vmatpush2.msra.mxu0 0.0
          %5286 = vmatprep.subr.mxu0 0.0
          %5287 = vmatpush2.msra.mxu0 0.0
          %5288 = vmatprep.subr.mxu0 0.0
          %5289 = vmatpush2.msra.mxu0 0.0
          %5290 = vmatprep.subr.mxu0 0.0
          %5291 = vmatpush2.msra.mxu0 0.0
          %5292 = vmatprep.subr.mxu0 0.0
          %5293 = vmatpush2.msra.mxu0 0.0
          %5294 = vmatprep.mubr.f32.mxu0 0.0
          %5295 = vmatmul.mubr.f32.gmra.mxu0 %v5124
          %v5296 = vpop.f32.mrf.mxu0
          %v5297 = vadd.f32 0.0, %v5296
          %v5298 = vpop.f32.mrf.mxu0
          %5299 = vdwg.mxu0
          %v5300 = vadd.f32 %v5212, %v5297
          %v5301 = vlaneseq
          %v5302 = vshrl.u32 %v5301, 7
          %v5303 = vsub.s32 0, %v5302
          %v5304 = vrot.slane %v4564, %v5303
          %v5305 = vadd.f32 %v5300, %v5304
          %v5306 = vmax.f32 %v5305, 0.0
          %vm5307 = vcmask 64512
          %v5309 = vsel %vm5307, %v1058, 0
          %5311 = vmatprep.subr.mxu0 0.0
          %5312 = vmatpush1.msra.mxu0 0.0
          %5313 = vmatprep.subr.mxu0 0.0
          %5314 = vmatpush1.msra.mxu0 0.0
          %5315 = vmatprep.subr.mxu0 0.0
          %5316 = vmatpush1.msra.mxu0 0.0
          %5317 = vmatprep.subr.mxu0 0.0
          %5318 = vmatpush1.msra.mxu0 0.0
          %5319 = vmatprep.subr.mxu0 0.0
          %5320 = vmatpush1.msra.mxu0 0.0
          %5321 = vmatprep.subr.mxu0 0.0
          %5322 = vmatpush1.msra.mxu0 0.0
          %5323 = vmatprep.subr.mxu0 0.0
          %5324 = vmatpush1.msra.mxu0 0.0
          %5325 = vmatprep.subr.mxu0 0.0
          %5326 = vmatpush1.msra.mxu0 0.0
          %5327 = vmatprep.subr.mxu0 0.0
          %5328 = vmatpush1.msra.mxu0 0.0
          %5329 = vmatprep.subr.mxu0 0.0
          %5330 = vmatpush1.msra.mxu0 0.0
          %5331 = vmatprep.subr.mxu0 0.0
          %5332 = vmatpush1.msra.mxu0 0.0
          %5333 = vmatprep.subr.mxu0 0.0
          %5334 = vmatpush1.msra.mxu0 0.0
          %5335 = vmatprep.subr.mxu0 0.0
          %5336 = vmatpush1.msra.mxu0 0.0
          %5337 = vmatprep.subr.mxu0 0.0
          %5338 = vmatpush1.msra.mxu0 0.0
          %5339 = vmatprep.subr.mxu0 0.0
          %5340 = vmatpush1.msra.mxu0 0.0
          %5341 = vmatprep.subr.mxu0 0.0
          %5342 = vmatpush1.msra.mxu0 %v5306
          %5343 = vmatprep.subr.mxu0 0.0
          %5344 = vmatpush2.msra.mxu0 0.0
          %5345 = vmatprep.subr.mxu0 0.0
          %5346 = vmatpush2.msra.mxu0 0.0
          %5347 = vmatprep.subr.mxu0 0.0
          %5348 = vmatpush2.msra.mxu0 0.0
          %5349 = vmatprep.subr.mxu0 0.0
          %5350 = vmatpush2.msra.mxu0 0.0
          %5351 = vmatprep.subr.mxu0 0.0
          %5352 = vmatpush2.msra.mxu0 0.0
          %5353 = vmatprep.subr.mxu0 0.0
          %5354 = vmatpush2.msra.mxu0 0.0
          %5355 = vmatprep.subr.mxu0 0.0
          %5356 = vmatpush2.msra.mxu0 0.0
          %5357 = vmatprep.subr.mxu0 0.0
          %5358 = vmatpush2.msra.mxu0 0.0
          %5359 = vmatprep.subr.mxu0 0.0
          %5360 = vmatpush2.msra.mxu0 0.0
          %5361 = vmatprep.subr.mxu0 0.0
          %5362 = vmatpush2.msra.mxu0 0.0
          %5363 = vmatprep.subr.mxu0 0.0
          %5364 = vmatpush2.msra.mxu0 0.0
          %5365 = vmatprep.subr.mxu0 0.0
          %5366 = vmatpush2.msra.mxu0 0.0
          %5367 = vmatprep.subr.mxu0 0.0
          %5368 = vmatpush2.msra.mxu0 0.0
          %5369 = vmatprep.subr.mxu0 0.0
          %5370 = vmatpush2.msra.mxu0 0.0
          %5371 = vmatprep.subr.mxu0 0.0
          %5372 = vmatpush2.msra.mxu0 0.0
          %5373 = vmatprep.subr.mxu0 0.0
          %5374 = vmatpush2.msra.mxu0 0.0
          %5375 = vmatprep.mubr.f32.mxu0 0.0
          %5376 = vmatmul.mubr.f32.gmra.mxu0 %v5309
          %v5377 = vpop.f32.mrf.mxu0
          %v5378 = vadd.f32 0.0, %v5377
          %v5379 = vpop.f32.mrf.mxu0
          %5380 = vdwg.mxu0
          %v5382 = vsel %vm5307, %v1074, 0
          %5384 = vmatprep.subr.mxu0 0.0
          %5385 = vmatpush1.msra.mxu0 0.0
          %5386 = vmatprep.subr.mxu0 0.0
          %5387 = vmatpush1.msra.mxu0 0.0
          %5388 = vmatprep.subr.mxu0 0.0
          %5389 = vmatpush1.msra.mxu0 0.0
          %5390 = vmatprep.subr.mxu0 0.0
          %5391 = vmatpush1.msra.mxu0 0.0
          %5392 = vmatprep.subr.mxu0 0.0
          %5393 = vmatpush1.msra.mxu0 0.0
          %5394 = vmatprep.subr.mxu0 0.0
          %5395 = vmatpush1.msra.mxu0 0.0
          %5396 = vmatprep.subr.mxu0 0.0
          %5397 = vmatpush1.msra.mxu0 0.0
          %5398 = vmatprep.subr.mxu0 0.0
          %5399 = vmatpush1.msra.mxu0 0.0
          %5400 = vmatprep.subr.mxu0 0.0
          %5401 = vmatpush1.msra.mxu0 0.0
          %5402 = vmatprep.subr.mxu0 0.0
          %5403 = vmatpush1.msra.mxu0 0.0
          %5404 = vmatprep.subr.mxu0 0.0
          %5405 = vmatpush1.msra.mxu0 0.0
          %5406 = vmatprep.subr.mxu0 0.0
          %5407 = vmatpush1.msra.mxu0 0.0
          %5408 = vmatprep.subr.mxu0 0.0
          %5409 = vmatpush1.msra.mxu0 0.0
          %5410 = vmatprep.subr.mxu0 0.0
          %5411 = vmatpush1.msra.mxu0 0.0
          %5412 = vmatprep.subr.mxu0 0.0
          %5413 = vmatpush1.msra.mxu0 0.0
          %5414 = vmatprep.subr.mxu0 0.0
          %5415 = vmatpush1.msra.mxu0 %v5306
          %5416 = vmatprep.subr.mxu0 0.0
          %5417 = vmatpush2.msra.mxu0 0.0
          %5418 = vmatprep.subr.mxu0 0.0
          %5419 = vmatpush2.msra.mxu0 0.0
          %5420 = vmatprep.subr.mxu0 0.0
          %5421 = vmatpush2.msra.mxu0 0.0
          %5422 = vmatprep.subr.mxu0 0.0
          %5423 = vmatpush2.msra.mxu0 0.0
          %5424 = vmatprep.subr.mxu0 0.0
          %5425 = vmatpush2.msra.mxu0 0.0
          %5426 = vmatprep.subr.mxu0 0.0
          %5427 = vmatpush2.msra.mxu0 0.0
          %5428 = vmatprep.subr.mxu0 0.0
          %5429 = vmatpush2.msra.mxu0 0.0
          %5430 = vmatprep.subr.mxu0 0.0
          %5431 = vmatpush2.msra.mxu0 0.0
          %5432 = vmatprep.subr.mxu0 0.0
          %5433 = vmatpush2.msra.mxu0 0.0
          %5434 = vmatprep.subr.mxu0 0.0
          %5435 = vmatpush2.msra.mxu0 0.0
          %5436 = vmatprep.subr.mxu0 0.0
          %5437 = vmatpush2.msra.mxu0 0.0
          %5438 = vmatprep.subr.mxu0 0.0
          %5439 = vmatpush2.msra.mxu0 0.0
          %5440 = vmatprep.subr.mxu0 0.0
          %5441 = vmatpush2.msra.mxu0 0.0
          %5442 = vmatprep.subr.mxu0 0.0
          %5443 = vmatpush2.msra.mxu0 0.0
          %5444 = vmatprep.subr.mxu0 0.0
          %5445 = vmatpush2.msra.mxu0 0.0
          %5446 = vmatprep.subr.mxu0 0.0
          %5447 = vmatpush2.msra.mxu0 0.0
          %5448 = vmatprep.mubr.f32.mxu0 0.0
          %5449 = vmatmul.mubr.f32.gmra.mxu0 %v5382
          %v5450 = vpop.f32.mrf.mxu0
          %v5451 = vadd.f32 0.0, %v5450
          %v5452 = vpop.f32.mrf.mxu0
          %5453 = vdwg.mxu0
          %5455 = vrot.lane.b32.xlu0 %v5451, 64
          %v5456 = vpop.permute.xlu0 %5455
          %v5458 = vsel %vm777, %v5378, %v5456
          %s5459 = sadd.s32 %s4566, 1
          %s5460 = smul.u32 %s5459, 8
          %s5461 = scalar_lea.vmem [#allocation6], %s5460
          %5462 = vst [vmem:[%s5461 + $0x1] sm:$0xf] %v5458
        $region73: #{enc_conv_forward.1} parent=39 // loop_footer
          %s4570 = sadd.s32 1, %s4566
        $region74: #{enc_conv_forward.1} parent=39 // loop_footer_branch
          %4565 = sbr.rel target = $region70
        $region75: #{enc_conv_forward.1} parent=39 // loop_exit
          _
        %s5463 = scalar_lea.vmem [#allocation6], 8
        %v5464 = vld [vmem:[%s5463 + $0x1] sm:$0x1]
        %v5465 = vld [vmem:[%s5463 + $0x2] sm:$0x1]
        %v5466 = vld [vmem:[%s5463 + $0x3] sm:$0x1]
        %v5467 = vld [vmem:[%s5463 + $0x4] sm:$0x1]
        %v5468 = vld [vmem:[%s3] sm:$0xff]
        %v5469 = vld [vmem:[%s3 + $0x8] sm:$0xff]
        %v5470 = vld [vmem:[%s3 + $0x10] sm:$0xff]
        %v5471 = vld [vmem:[%s3 + $0x18] sm:$0xff]
        %v5472 = vld [vmem:[%s3 + $0x20] sm:$0xff]
        %v5473 = vld [vmem:[%s3 + $0x28] sm:$0xff]
        %v5474 = vld [vmem:[%s3 + $0x30] sm:$0xff]
        %v5475 = vld [vmem:[%s3 + $0x38] sm:$0xff]
        %v5476 = vld [vmem:[%s3 + $0x40] sm:$0xff]
        %v5477 = vld [vmem:[%s3 + $0x48] sm:$0xff]
        %v5478 = vld [vmem:[%s3 + $0x50] sm:$0xff]
        %v5479 = vld [vmem:[%s3 + $0x58] sm:$0xff]
        %v5480 = vld [vmem:[%s3 + $0x60] sm:$0xff]
        %v5481 = vld [vmem:[%s3 + $0x68] sm:$0xff]
        %v5482 = vld [vmem:[%s3 + $0x70] sm:$0xff]
        %v5483 = vld [vmem:[%s3 + $0x78] sm:$0xff]
        %v5484 = vld [vmem:[%s3 + $0x80] sm:$0xff]
        %v5485 = vld [vmem:[%s3 + $0x88] sm:$0xff]
        %v5486 = vld [vmem:[%s3 + $0x90] sm:$0xff]
        %v5487 = vld [vmem:[%s3 + $0x98] sm:$0xff]
        %v5488 = vld [vmem:[%s3 + $0xa0] sm:$0xff]
        %v5489 = vld [vmem:[%s3 + $0xa8] sm:$0xff]
        %v5490 = vld [vmem:[%s3 + $0xb0] sm:$0xff]
        %v5491 = vld [vmem:[%s3 + $0xb8] sm:$0xff]
        %v5492 = vld [vmem:[%s3 + $0xc0] sm:$0xff]
        %v5493 = vld [vmem:[%s3 + $0xc8] sm:$0xff]
        %v5494 = vld [vmem:[%s3 + $0xd0] sm:$0xff]
        %v5495 = vld [vmem:[%s3 + $0xd8] sm:$0xff]
        %v5496 = vld [vmem:[%s3 + $0xe0] sm:$0xff]
        %v5497 = vld [vmem:[%s3 + $0xe8] sm:$0xff]
        %v5498 = vld [vmem:[%s3 + $0xf0] sm:$0xff]
        %v5499 = vld [vmem:[%s3 + $0xf8] sm:$0xff]
        %v5500 = vld [vmem:[%s3 + $0x100] sm:$0xff]
        %v5501 = vld [vmem:[%s3 + $0x108] sm:$0xff]
        %v5502 = vld [vmem:[%s3 + $0x110] sm:$0xff]
        %v5503 = vld [vmem:[%s3 + $0x118] sm:$0xff]
        %v5504 = vld [vmem:[%s3 + $0x120] sm:$0xff]
        %v5505 = vld [vmem:[%s3 + $0x128] sm:$0xff]
        %v5506 = vld [vmem:[%s3 + $0x130] sm:$0xff]
        %v5507 = vld [vmem:[%s3 + $0x138] sm:$0xff]
        %v5508 = vld [vmem:[%s3 + $0x140] sm:$0xff]
        %v5509 = vld [vmem:[%s3 + $0x148] sm:$0xff]
        %v5510 = vld [vmem:[%s3 + $0x150] sm:$0xff]
        %v5511 = vld [vmem:[%s3 + $0x158] sm:$0xff]
        %v5512 = vld [vmem:[%s3 + $0x160] sm:$0xff]
        %v5513 = vld [vmem:[%s3 + $0x168] sm:$0xff]
        %v5514 = vld [vmem:[%s3 + $0x170] sm:$0xff]
        %v5515 = vld [vmem:[%s3 + $0x178] sm:$0xff]
        %v5516 = vld [vmem:[%s3 + $0x180] sm:$0xff]
        %v5517 = vld [vmem:[%s3 + $0x188] sm:$0xff]
        %v5518 = vld [vmem:[%s3 + $0x190] sm:$0xff]
        %v5519 = vld [vmem:[%s3 + $0x198] sm:$0xff]
        %v5520 = vld [vmem:[%s3 + $0x1a0] sm:$0xff]
        %v5521 = vld [vmem:[%s3 + $0x1a8] sm:$0xff]
        %v5522 = vld [vmem:[%s3 + $0x1b0] sm:$0xff]
        %v5523 = vld [vmem:[%s3 + $0x1b8] sm:$0xff]
        %v5524 = vld [vmem:[%s3 + $0x1c0] sm:$0xff]
        %v5525 = vld [vmem:[%s3 + $0x1c8] sm:$0xff]
        %v5526 = vld [vmem:[%s3 + $0x1d0] sm:$0xff]
        %v5527 = vld [vmem:[%s3 + $0x1d8] sm:$0xff]
        %v5528 = vld [vmem:[%s3 + $0x1e0] sm:$0xff]
        %v5529 = vld [vmem:[%s3 + $0x1e8] sm:$0xff]
        %v5530 = vld [vmem:[%s3 + $0x1f0] sm:$0xff]
        %v5531 = vld [vmem:[%s3 + $0x1f8] sm:$0xff]
        %s5532 = scalar_lea.vmem [#allocation6], 16
        %v5533 = vld [vmem:[%s5532 + $0x1] sm:$0x1]
        %v5534 = vld [vmem:[%s5532 + $0x2] sm:$0x1]
        %v5535 = vld [vmem:[%s5532 + $0x3] sm:$0x1]
        %v5536 = vld [vmem:[%s5532 + $0x4] sm:$0x1]
        %s5537 = scalar_lea.vmem %s3, 512
        %v5538 = vld [vmem:[%s5537] sm:$0xff]
        %v5539 = vld [vmem:[%s5537 + $0x8] sm:$0xff]
        %v5540 = vld [vmem:[%s5537 + $0x10] sm:$0xff]
        %v5541 = vld [vmem:[%s5537 + $0x18] sm:$0xff]
        %v5542 = vld [vmem:[%s5537 + $0x20] sm:$0xff]
        %v5543 = vld [vmem:[%s5537 + $0x28] sm:$0xff]
        %v5544 = vld [vmem:[%s5537 + $0x30] sm:$0xff]
        %v5545 = vld [vmem:[%s5537 + $0x38] sm:$0xff]
        %v5546 = vld [vmem:[%s5537 + $0x40] sm:$0xff]
        %v5547 = vld [vmem:[%s5537 + $0x48] sm:$0xff]
        %v5548 = vld [vmem:[%s5537 + $0x50] sm:$0xff]
        %v5549 = vld [vmem:[%s5537 + $0x58] sm:$0xff]
        %v5550 = vld [vmem:[%s5537 + $0x60] sm:$0xff]
        %v5551 = vld [vmem:[%s5537 + $0x68] sm:$0xff]
        %v5552 = vld [vmem:[%s5537 + $0x70] sm:$0xff]
        %v5553 = vld [vmem:[%s5537 + $0x78] sm:$0xff]
        %v5554 = vld [vmem:[%s5537 + $0x80] sm:$0xff]
        %v5555 = vld [vmem:[%s5537 + $0x88] sm:$0xff]
        %v5556 = vld [vmem:[%s5537 + $0x90] sm:$0xff]
        %v5557 = vld [vmem:[%s5537 + $0x98] sm:$0xff]
        %v5558 = vld [vmem:[%s5537 + $0xa0] sm:$0xff]
        %v5559 = vld [vmem:[%s5537 + $0xa8] sm:$0xff]
        %v5560 = vld [vmem:[%s5537 + $0xb0] sm:$0xff]
        %v5561 = vld [vmem:[%s5537 + $0xb8] sm:$0xff]
        %v5562 = vld [vmem:[%s5537 + $0xc0] sm:$0xff]
        %v5563 = vld [vmem:[%s5537 + $0xc8] sm:$0xff]
        %v5564 = vld [vmem:[%s5537 + $0xd0] sm:$0xff]
        %v5565 = vld [vmem:[%s5537 + $0xd8] sm:$0xff]
        %v5566 = vld [vmem:[%s5537 + $0xe0] sm:$0xff]
        %v5567 = vld [vmem:[%s5537 + $0xe8] sm:$0xff]
        %v5568 = vld [vmem:[%s5537 + $0xf0] sm:$0xff]
        %v5569 = vld [vmem:[%s5537 + $0xf8] sm:$0xff]
        %v5570 = vld [vmem:[%s5537 + $0x100] sm:$0xff]
        %v5571 = vld [vmem:[%s5537 + $0x108] sm:$0xff]
        %v5572 = vld [vmem:[%s5537 + $0x110] sm:$0xff]
        %v5573 = vld [vmem:[%s5537 + $0x118] sm:$0xff]
        %v5574 = vld [vmem:[%s5537 + $0x120] sm:$0xff]
        %v5575 = vld [vmem:[%s5537 + $0x128] sm:$0xff]
        %v5576 = vld [vmem:[%s5537 + $0x130] sm:$0xff]
        %v5577 = vld [vmem:[%s5537 + $0x138] sm:$0xff]
        %v5578 = vld [vmem:[%s5537 + $0x140] sm:$0xff]
        %v5579 = vld [vmem:[%s5537 + $0x148] sm:$0xff]
        %v5580 = vld [vmem:[%s5537 + $0x150] sm:$0xff]
        %v5581 = vld [vmem:[%s5537 + $0x158] sm:$0xff]
        %v5582 = vld [vmem:[%s5537 + $0x160] sm:$0xff]
        %v5583 = vld [vmem:[%s5537 + $0x168] sm:$0xff]
        %v5584 = vld [vmem:[%s5537 + $0x170] sm:$0xff]
        %v5585 = vld [vmem:[%s5537 + $0x178] sm:$0xff]
        %v5586 = vld [vmem:[%s5537 + $0x180] sm:$0xff]
        %v5587 = vld [vmem:[%s5537 + $0x188] sm:$0xff]
        %v5588 = vld [vmem:[%s5537 + $0x190] sm:$0xff]
        %v5589 = vld [vmem:[%s5537 + $0x198] sm:$0xff]
        %v5590 = vld [vmem:[%s5537 + $0x1a0] sm:$0xff]
        %v5591 = vld [vmem:[%s5537 + $0x1a8] sm:$0xff]
        %v5592 = vld [vmem:[%s5537 + $0x1b0] sm:$0xff]
        %v5593 = vld [vmem:[%s5537 + $0x1b8] sm:$0xff]
        %v5594 = vld [vmem:[%s5537 + $0x1c0] sm:$0xff]
        %v5595 = vld [vmem:[%s5537 + $0x1c8] sm:$0xff]
        %v5596 = vld [vmem:[%s5537 + $0x1d0] sm:$0xff]
        %v5597 = vld [vmem:[%s5537 + $0x1d8] sm:$0xff]
        %v5598 = vld [vmem:[%s5537 + $0x1e0] sm:$0xff]
        %v5599 = vld [vmem:[%s5537 + $0x1e8] sm:$0xff]
        %v5600 = vld [vmem:[%s5537 + $0x1f0] sm:$0xff]
        %v5601 = vld [vmem:[%s5537 + $0x1f8] sm:$0xff]
        %5602 = vmatprep.subr.mxu0 0.0
        %5603 = vmatpush1.msra.mxu0 %v5553
        %5604 = vmatprep.subr.mxu0 0.0
        %5605 = vmatpush1.msra.mxu0 %v5552
        %5606 = vmatprep.subr.mxu0 0.0
        %5607 = vmatpush1.msra.mxu0 %v5551
        %5608 = vmatprep.subr.mxu0 0.0
        %5609 = vmatpush1.msra.mxu0 %v5550
        %5610 = vmatprep.subr.mxu0 0.0
        %5611 = vmatpush1.msra.mxu0 %v5549
        %5612 = vmatprep.subr.mxu0 0.0
        %5613 = vmatpush1.msra.mxu0 %v5548
        %5614 = vmatprep.subr.mxu0 0.0
        %5615 = vmatpush1.msra.mxu0 %v5547
        %5616 = vmatprep.subr.mxu0 0.0
        %5617 = vmatpush1.msra.mxu0 %v5546
        %5618 = vmatprep.subr.mxu0 0.0
        %5619 = vmatpush1.msra.mxu0 %v5545
        %5620 = vmatprep.subr.mxu0 0.0
        %5621 = vmatpush1.msra.mxu0 %v5544
        %5622 = vmatprep.subr.mxu0 0.0
        %5623 = vmatpush1.msra.mxu0 %v5543
        %5624 = vmatprep.subr.mxu0 0.0
        %5625 = vmatpush1.msra.mxu0 %v5542
        %5626 = vmatprep.subr.mxu0 0.0
        %5627 = vmatpush1.msra.mxu0 %v5541
        %5628 = vmatprep.subr.mxu0 0.0
        %5629 = vmatpush1.msra.mxu0 %v5540
        %5630 = vmatprep.subr.mxu0 0.0
        %5631 = vmatpush1.msra.mxu0 %v5539
        %5632 = vmatprep.subr.mxu0 0.0
        %5633 = vmatpush1.msra.mxu0 %v5538
        %5634 = vmatprep.subr.mxu0 0.0
        %5635 = vmatpush2.msra.mxu0 %v5569
        %5636 = vmatprep.subr.mxu0 0.0
        %5637 = vmatpush2.msra.mxu0 %v5568
        %5638 = vmatprep.subr.mxu0 0.0
        %5639 = vmatpush2.msra.mxu0 %v5567
        %5640 = vmatprep.subr.mxu0 0.0
        %5641 = vmatpush2.msra.mxu0 %v5566
        %5642 = vmatprep.subr.mxu0 0.0
        %5643 = vmatpush2.msra.mxu0 %v5565
        %5644 = vmatprep.subr.mxu0 0.0
        %5645 = vmatpush2.msra.mxu0 %v5564
        %5646 = vmatprep.subr.mxu0 0.0
        %5647 = vmatpush2.msra.mxu0 %v5563
        %5648 = vmatprep.subr.mxu0 0.0
        %5649 = vmatpush2.msra.mxu0 %v5562
        %5650 = vmatprep.subr.mxu0 0.0
        %5651 = vmatpush2.msra.mxu0 %v5561
        %5652 = vmatprep.subr.mxu0 0.0
        %5653 = vmatpush2.msra.mxu0 %v5560
        %5654 = vmatprep.subr.mxu0 0.0
        %5655 = vmatpush2.msra.mxu0 %v5559
        %5656 = vmatprep.subr.mxu0 0.0
        %5657 = vmatpush2.msra.mxu0 %v5558
        %5658 = vmatprep.subr.mxu0 0.0
        %5659 = vmatpush2.msra.mxu0 %v5557
        %5660 = vmatprep.subr.mxu0 0.0
        %5661 = vmatpush2.msra.mxu0 %v5556
        %5662 = vmatprep.subr.mxu0 0.0
        %5663 = vmatpush2.msra.mxu0 %v5555
        %5664 = vmatprep.subr.mxu0 0.0
        %5665 = vmatpush2.msra.mxu0 %v5554
        %5666 = vmatprep.mubr.f32.mxu0 %v5534
        %5667 = vmatmul.mubr.f32.gmra.mxu0 %v5533
        %v5668 = vpop.f32.mrf.mxu0
        %v5669 = vadd.f32 0.0, %v5668
        %v5670 = vpop.f32.mrf.mxu0
        %5671 = vdwg.mxu0
        %5672 = vmatprep.subr.mxu0 0.0
        %5673 = vmatpush1.msra.mxu0 %v5585
        %5674 = vmatprep.subr.mxu0 0.0
        %5675 = vmatpush1.msra.mxu0 %v5584
        %5676 = vmatprep.subr.mxu0 0.0
        %5677 = vmatpush1.msra.mxu0 %v5583
        %5678 = vmatprep.subr.mxu0 0.0
        %5679 = vmatpush1.msra.mxu0 %v5582
        %5680 = vmatprep.subr.mxu0 0.0
        %5681 = vmatpush1.msra.mxu0 %v5581
        %5682 = vmatprep.subr.mxu0 0.0
        %5683 = vmatpush1.msra.mxu0 %v5580
        %5684 = vmatprep.subr.mxu0 0.0
        %5685 = vmatpush1.msra.mxu0 %v5579
        %5686 = vmatprep.subr.mxu0 0.0
        %5687 = vmatpush1.msra.mxu0 %v5578
        %5688 = vmatprep.subr.mxu0 0.0
        %5689 = vmatpush1.msra.mxu0 %v5577
        %5690 = vmatprep.subr.mxu0 0.0
        %5691 = vmatpush1.msra.mxu0 %v5576
        %5692 = vmatprep.subr.mxu0 0.0
        %5693 = vmatpush1.msra.mxu0 %v5575
        %5694 = vmatprep.subr.mxu0 0.0
        %5695 = vmatpush1.msra.mxu0 %v5574
        %5696 = vmatprep.subr.mxu0 0.0
        %5697 = vmatpush1.msra.mxu0 %v5573
        %5698 = vmatprep.subr.mxu0 0.0
        %5699 = vmatpush1.msra.mxu0 %v5572
        %5700 = vmatprep.subr.mxu0 0.0
        %5701 = vmatpush1.msra.mxu0 %v5571
        %5702 = vmatprep.subr.mxu0 0.0
        %5703 = vmatpush1.msra.mxu0 %v5570
        %5704 = vmatprep.subr.mxu0 0.0
        %5705 = vmatpush2.msra.mxu0 %v5601
        %5706 = vmatprep.subr.mxu0 0.0
        %5707 = vmatpush2.msra.mxu0 %v5600
        %5708 = vmatprep.subr.mxu0 0.0
        %5709 = vmatpush2.msra.mxu0 %v5599
        %5710 = vmatprep.subr.mxu0 0.0
        %5711 = vmatpush2.msra.mxu0 %v5598
        %5712 = vmatprep.subr.mxu0 0.0
        %5713 = vmatpush2.msra.mxu0 %v5597
        %5714 = vmatprep.subr.mxu0 0.0
        %5715 = vmatpush2.msra.mxu0 %v5596
        %5716 = vmatprep.subr.mxu0 0.0
        %5717 = vmatpush2.msra.mxu0 %v5595
        %5718 = vmatprep.subr.mxu0 0.0
        %5719 = vmatpush2.msra.mxu0 %v5594
        %5720 = vmatprep.subr.mxu0 0.0
        %5721 = vmatpush2.msra.mxu0 %v5593
        %5722 = vmatprep.subr.mxu0 0.0
        %5723 = vmatpush2.msra.mxu0 %v5592
        %5724 = vmatprep.subr.mxu0 0.0
        %5725 = vmatpush2.msra.mxu0 %v5591
        %5726 = vmatprep.subr.mxu0 0.0
        %5727 = vmatpush2.msra.mxu0 %v5590
        %5728 = vmatprep.subr.mxu0 0.0
        %5729 = vmatpush2.msra.mxu0 %v5589
        %5730 = vmatprep.subr.mxu0 0.0
        %5731 = vmatpush2.msra.mxu0 %v5588
        %5732 = vmatprep.subr.mxu0 0.0
        %5733 = vmatpush2.msra.mxu0 %v5587
        %5734 = vmatprep.subr.mxu0 0.0
        %5735 = vmatpush2.msra.mxu0 %v5586
        %5736 = vmatprep.mubr.f32.mxu0 %v5536
        %5737 = vmatmul.mubr.f32.gmra.mxu0 %v5535
        %v5738 = vpop.f32.mrf.mxu0
        %v5739 = vadd.f32 %v5669, %v5738
        %v5740 = vpop.f32.mrf.mxu0
        %5741 = vdwg.mxu0
        %5742 = vmatprep.subr.mxu0 0.0
        %5743 = vmatpush1.msra.mxu0 %v5483
        %5744 = vmatprep.subr.mxu0 0.0
        %5745 = vmatpush1.msra.mxu0 %v5482
        %5746 = vmatprep.subr.mxu0 0.0
        %5747 = vmatpush1.msra.mxu0 %v5481
        %5748 = vmatprep.subr.mxu0 0.0
        %5749 = vmatpush1.msra.mxu0 %v5480
        %5750 = vmatprep.subr.mxu0 0.0
        %5751 = vmatpush1.msra.mxu0 %v5479
        %5752 = vmatprep.subr.mxu0 0.0
        %5753 = vmatpush1.msra.mxu0 %v5478
        %5754 = vmatprep.subr.mxu0 0.0
        %5755 = vmatpush1.msra.mxu0 %v5477
        %5756 = vmatprep.subr.mxu0 0.0
        %5757 = vmatpush1.msra.mxu0 %v5476
        %5758 = vmatprep.subr.mxu0 0.0
        %5759 = vmatpush1.msra.mxu0 %v5475
        %5760 = vmatprep.subr.mxu0 0.0
        %5761 = vmatpush1.msra.mxu0 %v5474
        %5762 = vmatprep.subr.mxu0 0.0
        %5763 = vmatpush1.msra.mxu0 %v5473
        %5764 = vmatprep.subr.mxu0 0.0
        %5765 = vmatpush1.msra.mxu0 %v5472
        %5766 = vmatprep.subr.mxu0 0.0
        %5767 = vmatpush1.msra.mxu0 %v5471
        %5768 = vmatprep.subr.mxu0 0.0
        %5769 = vmatpush1.msra.mxu0 %v5470
        %5770 = vmatprep.subr.mxu0 0.0
        %5771 = vmatpush1.msra.mxu0 %v5469
        %5772 = vmatprep.subr.mxu0 0.0
        %5773 = vmatpush1.msra.mxu0 %v5468
        %5774 = vmatprep.subr.mxu0 0.0
        %5775 = vmatpush2.msra.mxu0 %v5499
        %5776 = vmatprep.subr.mxu0 0.0
        %5777 = vmatpush2.msra.mxu0 %v5498
        %5778 = vmatprep.subr.mxu0 0.0
        %5779 = vmatpush2.msra.mxu0 %v5497
        %5780 = vmatprep.subr.mxu0 0.0
        %5781 = vmatpush2.msra.mxu0 %v5496
        %5782 = vmatprep.subr.mxu0 0.0
        %5783 = vmatpush2.msra.mxu0 %v5495
        %5784 = vmatprep.subr.mxu0 0.0
        %5785 = vmatpush2.msra.mxu0 %v5494
        %5786 = vmatprep.subr.mxu0 0.0
        %5787 = vmatpush2.msra.mxu0 %v5493
        %5788 = vmatprep.subr.mxu0 0.0
        %5789 = vmatpush2.msra.mxu0 %v5492
        %5790 = vmatprep.subr.mxu0 0.0
        %5791 = vmatpush2.msra.mxu0 %v5491
        %5792 = vmatprep.subr.mxu0 0.0
        %5793 = vmatpush2.msra.mxu0 %v5490
        %5794 = vmatprep.subr.mxu0 0.0
        %5795 = vmatpush2.msra.mxu0 %v5489
        %5796 = vmatprep.subr.mxu0 0.0
        %5797 = vmatpush2.msra.mxu0 %v5488
        %5798 = vmatprep.subr.mxu0 0.0
        %5799 = vmatpush2.msra.mxu0 %v5487
        %5800 = vmatprep.subr.mxu0 0.0
        %5801 = vmatpush2.msra.mxu0 %v5486
        %5802 = vmatprep.subr.mxu0 0.0
        %5803 = vmatpush2.msra.mxu0 %v5485
        %5804 = vmatprep.subr.mxu0 0.0
        %5805 = vmatpush2.msra.mxu0 %v5484
        %5806 = vmatprep.mubr.f32.mxu0 %v5465
        %5807 = vmatmul.mubr.f32.gmra.mxu0 %v5464
        %v5808 = vpop.f32.mrf.mxu0
        %v5809 = vadd.f32 %v5739, %v5808
        %v5810 = vpop.f32.mrf.mxu0
        %5811 = vdwg.mxu0
        %5812 = vmatprep.subr.mxu0 0.0
        %5813 = vmatpush1.msra.mxu0 %v5515
        %5814 = vmatprep.subr.mxu0 0.0
        %5815 = vmatpush1.msra.mxu0 %v5514
        %5816 = vmatprep.subr.mxu0 0.0
        %5817 = vmatpush1.msra.mxu0 %v5513
        %5818 = vmatprep.subr.mxu0 0.0
        %5819 = vmatpush1.msra.mxu0 %v5512
        %5820 = vmatprep.subr.mxu0 0.0
        %5821 = vmatpush1.msra.mxu0 %v5511
        %5822 = vmatprep.subr.mxu0 0.0
        %5823 = vmatpush1.msra.mxu0 %v5510
        %5824 = vmatprep.subr.mxu0 0.0
        %5825 = vmatpush1.msra.mxu0 %v5509
        %5826 = vmatprep.subr.mxu0 0.0
        %5827 = vmatpush1.msra.mxu0 %v5508
        %5828 = vmatprep.subr.mxu0 0.0
        %5829 = vmatpush1.msra.mxu0 %v5507
        %5830 = vmatprep.subr.mxu0 0.0
        %5831 = vmatpush1.msra.mxu0 %v5506
        %5832 = vmatprep.subr.mxu0 0.0
        %5833 = vmatpush1.msra.mxu0 %v5505
        %5834 = vmatprep.subr.mxu0 0.0
        %5835 = vmatpush1.msra.mxu0 %v5504
        %5836 = vmatprep.subr.mxu0 0.0
        %5837 = vmatpush1.msra.mxu0 %v5503
        %5838 = vmatprep.subr.mxu0 0.0
        %5839 = vmatpush1.msra.mxu0 %v5502
        %5840 = vmatprep.subr.mxu0 0.0
        %5841 = vmatpush1.msra.mxu0 %v5501
        %5842 = vmatprep.subr.mxu0 0.0
        %5843 = vmatpush1.msra.mxu0 %v5500
        %5844 = vmatprep.subr.mxu0 0.0
        %5845 = vmatpush2.msra.mxu0 %v5531
        %5846 = vmatprep.subr.mxu0 0.0
        %5847 = vmatpush2.msra.mxu0 %v5530
        %5848 = vmatprep.subr.mxu0 0.0
        %5849 = vmatpush2.msra.mxu0 %v5529
        %5850 = vmatprep.subr.mxu0 0.0
        %5851 = vmatpush2.msra.mxu0 %v5528
        %5852 = vmatprep.subr.mxu0 0.0
        %5853 = vmatpush2.msra.mxu0 %v5527
        %5854 = vmatprep.subr.mxu0 0.0
        %5855 = vmatpush2.msra.mxu0 %v5526
        %5856 = vmatprep.subr.mxu0 0.0
        %5857 = vmatpush2.msra.mxu0 %v5525
        %5858 = vmatprep.subr.mxu0 0.0
        %5859 = vmatpush2.msra.mxu0 %v5524
        %5860 = vmatprep.subr.mxu0 0.0
        %5861 = vmatpush2.msra.mxu0 %v5523
        %5862 = vmatprep.subr.mxu0 0.0
        %5863 = vmatpush2.msra.mxu0 %v5522
        %5864 = vmatprep.subr.mxu0 0.0
        %5865 = vmatpush2.msra.mxu0 %v5521
        %5866 = vmatprep.subr.mxu0 0.0
        %5867 = vmatpush2.msra.mxu0 %v5520
        %5868 = vmatprep.subr.mxu0 0.0
        %5869 = vmatpush2.msra.mxu0 %v5519
        %5870 = vmatprep.subr.mxu0 0.0
        %5871 = vmatpush2.msra.mxu0 %v5518
        %5872 = vmatprep.subr.mxu0 0.0
        %5873 = vmatpush2.msra.mxu0 %v5517
        %5874 = vmatprep.subr.mxu0 0.0
        %5875 = vmatpush2.msra.mxu0 %v5516
        %5876 = vmatprep.mubr.f32.mxu0 %v5467
        %5877 = vmatmul.mubr.f32.gmra.mxu0 %v5466
        %v5878 = vpop.f32.mrf.mxu0
        %v5879 = vadd.f32 %v5809, %v5878
        %v5880 = vpop.f32.mrf.mxu0
        %5881 = vdwg.mxu0
        %s5882 = scalar_lea.vmem [#allocation6], 24
        %v5883 = vld [vmem:[%s5882 + $0x1] sm:$0x1]
        %v5884 = vld [vmem:[%s5882 + $0x2] sm:$0x1]
        %v5885 = vld [vmem:[%s5882 + $0x3] sm:$0x1]
        %v5886 = vld [vmem:[%s5882 + $0x4] sm:$0x1]
        %s5887 = scalar_lea.vmem %s3, 1024
        %v5888 = vld [vmem:[%s5887] sm:$0xff]
        %v5889 = vld [vmem:[%s5887 + $0x8] sm:$0xff]
        %v5890 = vld [vmem:[%s5887 + $0x10] sm:$0xff]
        %v5891 = vld [vmem:[%s5887 + $0x18] sm:$0xff]
        %v5892 = vld [vmem:[%s5887 + $0x20] sm:$0xff]
        %v5893 = vld [vmem:[%s5887 + $0x28] sm:$0xff]
        %v5894 = vld [vmem:[%s5887 + $0x30] sm:$0xff]
        %v5895 = vld [vmem:[%s5887 + $0x38] sm:$0xff]
        %v5896 = vld [vmem:[%s5887 + $0x40] sm:$0xff]
        %v5897 = vld [vmem:[%s5887 + $0x48] sm:$0xff]
        %v5898 = vld [vmem:[%s5887 + $0x50] sm:$0xff]
        %v5899 = vld [vmem:[%s5887 + $0x58] sm:$0xff]
        %v5900 = vld [vmem:[%s5887 + $0x60] sm:$0xff]
        %v5901 = vld [vmem:[%s5887 + $0x68] sm:$0xff]
        %v5902 = vld [vmem:[%s5887 + $0x70] sm:$0xff]
        %v5903 = vld [vmem:[%s5887 + $0x78] sm:$0xff]
        %v5904 = vld [vmem:[%s5887 + $0x80] sm:$0xff]
        %v5905 = vld [vmem:[%s5887 + $0x88] sm:$0xff]
        %v5906 = vld [vmem:[%s5887 + $0x90] sm:$0xff]
        %v5907 = vld [vmem:[%s5887 + $0x98] sm:$0xff]
        %v5908 = vld [vmem:[%s5887 + $0xa0] sm:$0xff]
        %v5909 = vld [vmem:[%s5887 + $0xa8] sm:$0xff]
        %v5910 = vld [vmem:[%s5887 + $0xb0] sm:$0xff]
        %v5911 = vld [vmem:[%s5887 + $0xb8] sm:$0xff]
        %v5912 = vld [vmem:[%s5887 + $0xc0] sm:$0xff]
        %v5913 = vld [vmem:[%s5887 + $0xc8] sm:$0xff]
        %v5914 = vld [vmem:[%s5887 + $0xd0] sm:$0xff]
        %v5915 = vld [vmem:[%s5887 + $0xd8] sm:$0xff]
        %v5916 = vld [vmem:[%s5887 + $0xe0] sm:$0xff]
        %v5917 = vld [vmem:[%s5887 + $0xe8] sm:$0xff]
        %v5918 = vld [vmem:[%s5887 + $0xf0] sm:$0xff]
        %v5919 = vld [vmem:[%s5887 + $0xf8] sm:$0xff]
        %v5920 = vld [vmem:[%s5887 + $0x100] sm:$0xff]
        %v5921 = vld [vmem:[%s5887 + $0x108] sm:$0xff]
        %v5922 = vld [vmem:[%s5887 + $0x110] sm:$0xff]
        %v5923 = vld [vmem:[%s5887 + $0x118] sm:$0xff]
        %v5924 = vld [vmem:[%s5887 + $0x120] sm:$0xff]
        %v5925 = vld [vmem:[%s5887 + $0x128] sm:$0xff]
        %v5926 = vld [vmem:[%s5887 + $0x130] sm:$0xff]
        %v5927 = vld [vmem:[%s5887 + $0x138] sm:$0xff]
        %v5928 = vld [vmem:[%s5887 + $0x140] sm:$0xff]
        %v5929 = vld [vmem:[%s5887 + $0x148] sm:$0xff]
        %v5930 = vld [vmem:[%s5887 + $0x150] sm:$0xff]
        %v5931 = vld [vmem:[%s5887 + $0x158] sm:$0xff]
        %v5932 = vld [vmem:[%s5887 + $0x160] sm:$0xff]
        %v5933 = vld [vmem:[%s5887 + $0x168] sm:$0xff]
        %v5934 = vld [vmem:[%s5887 + $0x170] sm:$0xff]
        %v5935 = vld [vmem:[%s5887 + $0x178] sm:$0xff]
        %v5936 = vld [vmem:[%s5887 + $0x180] sm:$0xff]
        %v5937 = vld [vmem:[%s5887 + $0x188] sm:$0xff]
        %v5938 = vld [vmem:[%s5887 + $0x190] sm:$0xff]
        %v5939 = vld [vmem:[%s5887 + $0x198] sm:$0xff]
        %v5940 = vld [vmem:[%s5887 + $0x1a0] sm:$0xff]
        %v5941 = vld [vmem:[%s5887 + $0x1a8] sm:$0xff]
        %v5942 = vld [vmem:[%s5887 + $0x1b0] sm:$0xff]
        %v5943 = vld [vmem:[%s5887 + $0x1b8] sm:$0xff]
        %v5944 = vld [vmem:[%s5887 + $0x1c0] sm:$0xff]
        %v5945 = vld [vmem:[%s5887 + $0x1c8] sm:$0xff]
        %v5946 = vld [vmem:[%s5887 + $0x1d0] sm:$0xff]
        %v5947 = vld [vmem:[%s5887 + $0x1d8] sm:$0xff]
        %v5948 = vld [vmem:[%s5887 + $0x1e0] sm:$0xff]
        %v5949 = vld [vmem:[%s5887 + $0x1e8] sm:$0xff]
        %v5950 = vld [vmem:[%s5887 + $0x1f0] sm:$0xff]
        %v5951 = vld [vmem:[%s5887 + $0x1f8] sm:$0xff]
        %5952 = vmatprep.subr.mxu0 0.0
        %5953 = vmatpush1.msra.mxu0 %v5903
        %5954 = vmatprep.subr.mxu0 0.0
        %5955 = vmatpush1.msra.mxu0 %v5902
        %5956 = vmatprep.subr.mxu0 0.0
        %5957 = vmatpush1.msra.mxu0 %v5901
        %5958 = vmatprep.subr.mxu0 0.0
        %5959 = vmatpush1.msra.mxu0 %v5900
        %5960 = vmatprep.subr.mxu0 0.0
        %5961 = vmatpush1.msra.mxu0 %v5899
        %5962 = vmatprep.subr.mxu0 0.0
        %5963 = vmatpush1.msra.mxu0 %v5898
        %5964 = vmatprep.subr.mxu0 0.0
        %5965 = vmatpush1.msra.mxu0 %v5897
        %5966 = vmatprep.subr.mxu0 0.0
        %5967 = vmatpush1.msra.mxu0 %v5896
        %5968 = vmatprep.subr.mxu0 0.0
        %5969 = vmatpush1.msra.mxu0 %v5895
        %5970 = vmatprep.subr.mxu0 0.0
        %5971 = vmatpush1.msra.mxu0 %v5894
        %5972 = vmatprep.subr.mxu0 0.0
        %5973 = vmatpush1.msra.mxu0 %v5893
        %5974 = vmatprep.subr.mxu0 0.0
        %5975 = vmatpush1.msra.mxu0 %v5892
        %5976 = vmatprep.subr.mxu0 0.0
        %5977 = vmatpush1.msra.mxu0 %v5891
        %5978 = vmatprep.subr.mxu0 0.0
        %5979 = vmatpush1.msra.mxu0 %v5890
        %5980 = vmatprep.subr.mxu0 0.0
        %5981 = vmatpush1.msra.mxu0 %v5889
        %5982 = vmatprep.subr.mxu0 0.0
        %5983 = vmatpush1.msra.mxu0 %v5888
        %5984 = vmatprep.subr.mxu0 0.0
        %5985 = vmatpush2.msra.mxu0 %v5919
        %5986 = vmatprep.subr.mxu0 0.0
        %5987 = vmatpush2.msra.mxu0 %v5918
        %5988 = vmatprep.subr.mxu0 0.0
        %5989 = vmatpush2.msra.mxu0 %v5917
        %5990 = vmatprep.subr.mxu0 0.0
        %5991 = vmatpush2.msra.mxu0 %v5916
        %5992 = vmatprep.subr.mxu0 0.0
        %5993 = vmatpush2.msra.mxu0 %v5915
        %5994 = vmatprep.subr.mxu0 0.0
        %5995 = vmatpush2.msra.mxu0 %v5914
        %5996 = vmatprep.subr.mxu0 0.0
        %5997 = vmatpush2.msra.mxu0 %v5913
        %5998 = vmatprep.subr.mxu0 0.0
        %5999 = vmatpush2.msra.mxu0 %v5912
        %6000 = vmatprep.subr.mxu0 0.0
        %6001 = vmatpush2.msra.mxu0 %v5911
        %6002 = vmatprep.subr.mxu0 0.0
        %6003 = vmatpush2.msra.mxu0 %v5910
        %6004 = vmatprep.subr.mxu0 0.0
        %6005 = vmatpush2.msra.mxu0 %v5909
        %6006 = vmatprep.subr.mxu0 0.0
        %6007 = vmatpush2.msra.mxu0 %v5908
        %6008 = vmatprep.subr.mxu0 0.0
        %6009 = vmatpush2.msra.mxu0 %v5907
        %6010 = vmatprep.subr.mxu0 0.0
        %6011 = vmatpush2.msra.mxu0 %v5906
        %6012 = vmatprep.subr.mxu0 0.0
        %6013 = vmatpush2.msra.mxu0 %v5905
        %6014 = vmatprep.subr.mxu0 0.0
        %6015 = vmatpush2.msra.mxu0 %v5904
        %6016 = vmatprep.mubr.f32.mxu0 %v5884
        %6017 = vmatmul.mubr.f32.gmra.mxu0 %v5883
        %v6018 = vpop.f32.mrf.mxu0
        %v6019 = vadd.f32 0.0, %v6018
        %v6020 = vpop.f32.mrf.mxu0
        %6021 = vdwg.mxu0
        %6022 = vmatprep.subr.mxu0 0.0
        %6023 = vmatpush1.msra.mxu0 %v5935
        %6024 = vmatprep.subr.mxu0 0.0
        %6025 = vmatpush1.msra.mxu0 %v5934
        %6026 = vmatprep.subr.mxu0 0.0
        %6027 = vmatpush1.msra.mxu0 %v5933
        %6028 = vmatprep.subr.mxu0 0.0
        %6029 = vmatpush1.msra.mxu0 %v5932
        %6030 = vmatprep.subr.mxu0 0.0
        %6031 = vmatpush1.msra.mxu0 %v5931
        %6032 = vmatprep.subr.mxu0 0.0
        %6033 = vmatpush1.msra.mxu0 %v5930
        %6034 = vmatprep.subr.mxu0 0.0
        %6035 = vmatpush1.msra.mxu0 %v5929
        %6036 = vmatprep.subr.mxu0 0.0
        %6037 = vmatpush1.msra.mxu0 %v5928
        %6038 = vmatprep.subr.mxu0 0.0
        %6039 = vmatpush1.msra.mxu0 %v5927
        %6040 = vmatprep.subr.mxu0 0.0
        %6041 = vmatpush1.msra.mxu0 %v5926
        %6042 = vmatprep.subr.mxu0 0.0
        %6043 = vmatpush1.msra.mxu0 %v5925
        %6044 = vmatprep.subr.mxu0 0.0
        %6045 = vmatpush1.msra.mxu0 %v5924
        %6046 = vmatprep.subr.mxu0 0.0
        %6047 = vmatpush1.msra.mxu0 %v5923
        %6048 = vmatprep.subr.mxu0 0.0
        %6049 = vmatpush1.msra.mxu0 %v5922
        %6050 = vmatprep.subr.mxu0 0.0
        %6051 = vmatpush1.msra.mxu0 %v5921
        %6052 = vmatprep.subr.mxu0 0.0
        %6053 = vmatpush1.msra.mxu0 %v5920
        %6054 = vmatprep.subr.mxu0 0.0
        %6055 = vmatpush2.msra.mxu0 %v5951
        %6056 = vmatprep.subr.mxu0 0.0
        %6057 = vmatpush2.msra.mxu0 %v5950
        %6058 = vmatprep.subr.mxu0 0.0
        %6059 = vmatpush2.msra.mxu0 %v5949
        %6060 = vmatprep.subr.mxu0 0.0
        %6061 = vmatpush2.msra.mxu0 %v5948
        %6062 = vmatprep.subr.mxu0 0.0
        %6063 = vmatpush2.msra.mxu0 %v5947
        %6064 = vmatprep.subr.mxu0 0.0
        %6065 = vmatpush2.msra.mxu0 %v5946
        %6066 = vmatprep.subr.mxu0 0.0
        %6067 = vmatpush2.msra.mxu0 %v5945
        %6068 = vmatprep.subr.mxu0 0.0
        %6069 = vmatpush2.msra.mxu0 %v5944
        %6070 = vmatprep.subr.mxu0 0.0
        %6071 = vmatpush2.msra.mxu0 %v5943
        %6072 = vmatprep.subr.mxu0 0.0
        %6073 = vmatpush2.msra.mxu0 %v5942
        %6074 = vmatprep.subr.mxu0 0.0
        %6075 = vmatpush2.msra.mxu0 %v5941
        %6076 = vmatprep.subr.mxu0 0.0
        %6077 = vmatpush2.msra.mxu0 %v5940
        %6078 = vmatprep.subr.mxu0 0.0
        %6079 = vmatpush2.msra.mxu0 %v5939
        %6080 = vmatprep.subr.mxu0 0.0
        %6081 = vmatpush2.msra.mxu0 %v5938
        %6082 = vmatprep.subr.mxu0 0.0
        %6083 = vmatpush2.msra.mxu0 %v5937
        %6084 = vmatprep.subr.mxu0 0.0
        %6085 = vmatpush2.msra.mxu0 %v5936
        %6086 = vmatprep.mubr.f32.mxu0 %v5886
        %6087 = vmatmul.mubr.f32.gmra.mxu0 %v5885
        %v6088 = vpop.f32.mrf.mxu0
        %v6089 = vadd.f32 %v6019, %v6088
        %v6090 = vpop.f32.mrf.mxu0
        %6091 = vdwg.mxu0
        %v6092 = vadd.f32 %v5879, %v6089
        %s6093 = scalar_lea.vmem [#allocation6], 32
        %v6094 = vld [vmem:[%s6093 + $0x1] sm:$0x1]
        %v6095 = vld [vmem:[%s6093 + $0x2] sm:$0x1]
        %v6096 = vld [vmem:[%s6093 + $0x3] sm:$0x1]
        %v6097 = vld [vmem:[%s6093 + $0x4] sm:$0x1]
        %s6098 = scalar_lea.vmem %s3, 1536
        %v6099 = vld [vmem:[%s6098] sm:$0xff]
        %v6100 = vld [vmem:[%s6098 + $0x8] sm:$0xff]
        %v6101 = vld [vmem:[%s6098 + $0x10] sm:$0xff]
        %v6102 = vld [vmem:[%s6098 + $0x18] sm:$0xff]
        %v6103 = vld [vmem:[%s6098 + $0x20] sm:$0xff]
        %v6104 = vld [vmem:[%s6098 + $0x28] sm:$0xff]
        %v6105 = vld [vmem:[%s6098 + $0x30] sm:$0xff]
        %v6106 = vld [vmem:[%s6098 + $0x38] sm:$0xff]
        %v6107 = vld [vmem:[%s6098 + $0x40] sm:$0xff]
        %v6108 = vld [vmem:[%s6098 + $0x48] sm:$0xff]
        %v6109 = vld [vmem:[%s6098 + $0x50] sm:$0xff]
        %v6110 = vld [vmem:[%s6098 + $0x58] sm:$0xff]
        %v6111 = vld [vmem:[%s6098 + $0x60] sm:$0xff]
        %v6112 = vld [vmem:[%s6098 + $0x68] sm:$0xff]
        %v6113 = vld [vmem:[%s6098 + $0x70] sm:$0xff]
        %v6114 = vld [vmem:[%s6098 + $0x78] sm:$0xff]
        %v6115 = vld [vmem:[%s6098 + $0x80] sm:$0xff]
        %v6116 = vld [vmem:[%s6098 + $0x88] sm:$0xff]
        %v6117 = vld [vmem:[%s6098 + $0x90] sm:$0xff]
        %v6118 = vld [vmem:[%s6098 + $0x98] sm:$0xff]
        %v6119 = vld [vmem:[%s6098 + $0xa0] sm:$0xff]
        %v6120 = vld [vmem:[%s6098 + $0xa8] sm:$0xff]
        %v6121 = vld [vmem:[%s6098 + $0xb0] sm:$0xff]
        %v6122 = vld [vmem:[%s6098 + $0xb8] sm:$0xff]
        %v6123 = vld [vmem:[%s6098 + $0xc0] sm:$0xff]
        %v6124 = vld [vmem:[%s6098 + $0xc8] sm:$0xff]
        %v6125 = vld [vmem:[%s6098 + $0xd0] sm:$0xff]
        %v6126 = vld [vmem:[%s6098 + $0xd8] sm:$0xff]
        %v6127 = vld [vmem:[%s6098 + $0xe0] sm:$0xff]
        %v6128 = vld [vmem:[%s6098 + $0xe8] sm:$0xff]
        %v6129 = vld [vmem:[%s6098 + $0xf0] sm:$0xff]
        %v6130 = vld [vmem:[%s6098 + $0xf8] sm:$0xff]
        %v6131 = vld [vmem:[%s6098 + $0x100] sm:$0xff]
        %v6132 = vld [vmem:[%s6098 + $0x108] sm:$0xff]
        %v6133 = vld [vmem:[%s6098 + $0x110] sm:$0xff]
        %v6134 = vld [vmem:[%s6098 + $0x118] sm:$0xff]
        %v6135 = vld [vmem:[%s6098 + $0x120] sm:$0xff]
        %v6136 = vld [vmem:[%s6098 + $0x128] sm:$0xff]
        %v6137 = vld [vmem:[%s6098 + $0x130] sm:$0xff]
        %v6138 = vld [vmem:[%s6098 + $0x138] sm:$0xff]
        %v6139 = vld [vmem:[%s6098 + $0x140] sm:$0xff]
        %v6140 = vld [vmem:[%s6098 + $0x148] sm:$0xff]
        %v6141 = vld [vmem:[%s6098 + $0x150] sm:$0xff]
        %v6142 = vld [vmem:[%s6098 + $0x158] sm:$0xff]
        %v6143 = vld [vmem:[%s6098 + $0x160] sm:$0xff]
        %v6144 = vld [vmem:[%s6098 + $0x168] sm:$0xff]
        %v6145 = vld [vmem:[%s6098 + $0x170] sm:$0xff]
        %v6146 = vld [vmem:[%s6098 + $0x178] sm:$0xff]
        %v6147 = vld [vmem:[%s6098 + $0x180] sm:$0xff]
        %v6148 = vld [vmem:[%s6098 + $0x188] sm:$0xff]
        %v6149 = vld [vmem:[%s6098 + $0x190] sm:$0xff]
        %v6150 = vld [vmem:[%s6098 + $0x198] sm:$0xff]
        %v6151 = vld [vmem:[%s6098 + $0x1a0] sm:$0xff]
        %v6152 = vld [vmem:[%s6098 + $0x1a8] sm:$0xff]
        %v6153 = vld [vmem:[%s6098 + $0x1b0] sm:$0xff]
        %v6154 = vld [vmem:[%s6098 + $0x1b8] sm:$0xff]
        %v6155 = vld [vmem:[%s6098 + $0x1c0] sm:$0xff]
        %v6156 = vld [vmem:[%s6098 + $0x1c8] sm:$0xff]
        %v6157 = vld [vmem:[%s6098 + $0x1d0] sm:$0xff]
        %v6158 = vld [vmem:[%s6098 + $0x1d8] sm:$0xff]
        %v6159 = vld [vmem:[%s6098 + $0x1e0] sm:$0xff]
        %v6160 = vld [vmem:[%s6098 + $0x1e8] sm:$0xff]
        %v6161 = vld [vmem:[%s6098 + $0x1f0] sm:$0xff]
        %v6162 = vld [vmem:[%s6098 + $0x1f8] sm:$0xff]
        %6163 = vmatprep.subr.mxu0 0.0
        %6164 = vmatpush1.msra.mxu0 %v6114
        %6165 = vmatprep.subr.mxu0 0.0
        %6166 = vmatpush1.msra.mxu0 %v6113
        %6167 = vmatprep.subr.mxu0 0.0
        %6168 = vmatpush1.msra.mxu0 %v6112
        %6169 = vmatprep.subr.mxu0 0.0
        %6170 = vmatpush1.msra.mxu0 %v6111
        %6171 = vmatprep.subr.mxu0 0.0
        %6172 = vmatpush1.msra.mxu0 %v6110
        %6173 = vmatprep.subr.mxu0 0.0
        %6174 = vmatpush1.msra.mxu0 %v6109
        %6175 = vmatprep.subr.mxu0 0.0
        %6176 = vmatpush1.msra.mxu0 %v6108
        %6177 = vmatprep.subr.mxu0 0.0
        %6178 = vmatpush1.msra.mxu0 %v6107
        %6179 = vmatprep.subr.mxu0 0.0
        %6180 = vmatpush1.msra.mxu0 %v6106
        %6181 = vmatprep.subr.mxu0 0.0
        %6182 = vmatpush1.msra.mxu0 %v6105
        %6183 = vmatprep.subr.mxu0 0.0
        %6184 = vmatpush1.msra.mxu0 %v6104
        %6185 = vmatprep.subr.mxu0 0.0
        %6186 = vmatpush1.msra.mxu0 %v6103
        %6187 = vmatprep.subr.mxu0 0.0
        %6188 = vmatpush1.msra.mxu0 %v6102
        %6189 = vmatprep.subr.mxu0 0.0
        %6190 = vmatpush1.msra.mxu0 %v6101
        %6191 = vmatprep.subr.mxu0 0.0
        %6192 = vmatpush1.msra.mxu0 %v6100
        %6193 = vmatprep.subr.mxu0 0.0
        %6194 = vmatpush1.msra.mxu0 %v6099
        %6195 = vmatprep.subr.mxu0 0.0
        %6196 = vmatpush2.msra.mxu0 %v6130
        %6197 = vmatprep.subr.mxu0 0.0
        %6198 = vmatpush2.msra.mxu0 %v6129
        %6199 = vmatprep.subr.mxu0 0.0
        %6200 = vmatpush2.msra.mxu0 %v6128
        %6201 = vmatprep.subr.mxu0 0.0
        %6202 = vmatpush2.msra.mxu0 %v6127
        %6203 = vmatprep.subr.mxu0 0.0
        %6204 = vmatpush2.msra.mxu0 %v6126
        %6205 = vmatprep.subr.mxu0 0.0
        %6206 = vmatpush2.msra.mxu0 %v6125
        %6207 = vmatprep.subr.mxu0 0.0
        %6208 = vmatpush2.msra.mxu0 %v6124
        %6209 = vmatprep.subr.mxu0 0.0
        %6210 = vmatpush2.msra.mxu0 %v6123
        %6211 = vmatprep.subr.mxu0 0.0
        %6212 = vmatpush2.msra.mxu0 %v6122
        %6213 = vmatprep.subr.mxu0 0.0
        %6214 = vmatpush2.msra.mxu0 %v6121
        %6215 = vmatprep.subr.mxu0 0.0
        %6216 = vmatpush2.msra.mxu0 %v6120
        %6217 = vmatprep.subr.mxu0 0.0
        %6218 = vmatpush2.msra.mxu0 %v6119
        %6219 = vmatprep.subr.mxu0 0.0
        %6220 = vmatpush2.msra.mxu0 %v6118
        %6221 = vmatprep.subr.mxu0 0.0
        %6222 = vmatpush2.msra.mxu0 %v6117
        %6223 = vmatprep.subr.mxu0 0.0
        %6224 = vmatpush2.msra.mxu0 %v6116
        %6225 = vmatprep.subr.mxu0 0.0
        %6226 = vmatpush2.msra.mxu0 %v6115
        %6227 = vmatprep.mubr.f32.mxu0 %v6095
        %6228 = vmatmul.mubr.f32.gmra.mxu0 %v6094
        %v6229 = vpop.f32.mrf.mxu0
        %v6230 = vadd.f32 0.0, %v6229
        %v6231 = vpop.f32.mrf.mxu0
        %6232 = vdwg.mxu0
        %6233 = vmatprep.subr.mxu0 0.0
        %6234 = vmatpush1.msra.mxu0 %v6146
        %6235 = vmatprep.subr.mxu0 0.0
        %6236 = vmatpush1.msra.mxu0 %v6145
        %6237 = vmatprep.subr.mxu0 0.0
        %6238 = vmatpush1.msra.mxu0 %v6144
        %6239 = vmatprep.subr.mxu0 0.0
        %6240 = vmatpush1.msra.mxu0 %v6143
        %6241 = vmatprep.subr.mxu0 0.0
        %6242 = vmatpush1.msra.mxu0 %v6142
        %6243 = vmatprep.subr.mxu0 0.0
        %6244 = vmatpush1.msra.mxu0 %v6141
        %6245 = vmatprep.subr.mxu0 0.0
        %6246 = vmatpush1.msra.mxu0 %v6140
        %6247 = vmatprep.subr.mxu0 0.0
        %6248 = vmatpush1.msra.mxu0 %v6139
        %6249 = vmatprep.subr.mxu0 0.0
        %6250 = vmatpush1.msra.mxu0 %v6138
        %6251 = vmatprep.subr.mxu0 0.0
        %6252 = vmatpush1.msra.mxu0 %v6137
        %6253 = vmatprep.subr.mxu0 0.0
        %6254 = vmatpush1.msra.mxu0 %v6136
        %6255 = vmatprep.subr.mxu0 0.0
        %6256 = vmatpush1.msra.mxu0 %v6135
        %6257 = vmatprep.subr.mxu0 0.0
        %6258 = vmatpush1.msra.mxu0 %v6134
        %6259 = vmatprep.subr.mxu0 0.0
        %6260 = vmatpush1.msra.mxu0 %v6133
        %6261 = vmatprep.subr.mxu0 0.0
        %6262 = vmatpush1.msra.mxu0 %v6132
        %6263 = vmatprep.subr.mxu0 0.0
        %6264 = vmatpush1.msra.mxu0 %v6131
        %6265 = vmatprep.subr.mxu0 0.0
        %6266 = vmatpush2.msra.mxu0 %v6162
        %6267 = vmatprep.subr.mxu0 0.0
        %6268 = vmatpush2.msra.mxu0 %v6161
        %6269 = vmatprep.subr.mxu0 0.0
        %6270 = vmatpush2.msra.mxu0 %v6160
        %6271 = vmatprep.subr.mxu0 0.0
        %6272 = vmatpush2.msra.mxu0 %v6159
        %6273 = vmatprep.subr.mxu0 0.0
        %6274 = vmatpush2.msra.mxu0 %v6158
        %6275 = vmatprep.subr.mxu0 0.0
        %6276 = vmatpush2.msra.mxu0 %v6157
        %6277 = vmatprep.subr.mxu0 0.0
        %6278 = vmatpush2.msra.mxu0 %v6156
        %6279 = vmatprep.subr.mxu0 0.0
        %6280 = vmatpush2.msra.mxu0 %v6155
        %6281 = vmatprep.subr.mxu0 0.0
        %6282 = vmatpush2.msra.mxu0 %v6154
        %6283 = vmatprep.subr.mxu0 0.0
        %6284 = vmatpush2.msra.mxu0 %v6153
        %6285 = vmatprep.subr.mxu0 0.0
        %6286 = vmatpush2.msra.mxu0 %v6152
        %6287 = vmatprep.subr.mxu0 0.0
        %6288 = vmatpush2.msra.mxu0 %v6151
        %6289 = vmatprep.subr.mxu0 0.0
        %6290 = vmatpush2.msra.mxu0 %v6150
        %6291 = vmatprep.subr.mxu0 0.0
        %6292 = vmatpush2.msra.mxu0 %v6149
        %6293 = vmatprep.subr.mxu0 0.0
        %6294 = vmatpush2.msra.mxu0 %v6148
        %6295 = vmatprep.subr.mxu0 0.0
        %6296 = vmatpush2.msra.mxu0 %v6147
        %6297 = vmatprep.mubr.f32.mxu0 %v6097
        %6298 = vmatmul.mubr.f32.gmra.mxu0 %v6096
        %v6299 = vpop.f32.mrf.mxu0
        %v6300 = vadd.f32 %v6230, %v6299
        %v6301 = vpop.f32.mrf.mxu0
        %6302 = vdwg.mxu0
        %v6303 = vadd.f32 %v6092, %v6300
        %s6304 = scalar_lea.vmem [#allocation6], 40
        %v6305 = vld [vmem:[%s6304 + $0x1] sm:$0x1]
        %v6306 = vld [vmem:[%s6304 + $0x2] sm:$0x1]
        %v6307 = vld [vmem:[%s6304 + $0x3] sm:$0x1]
        %v6308 = vld [vmem:[%s6304 + $0x4] sm:$0x1]
        %s6309 = scalar_lea.vmem %s3, 2048
        %v6310 = vld [vmem:[%s6309] sm:$0xff]
        %v6311 = vld [vmem:[%s6309 + $0x8] sm:$0xff]
        %v6312 = vld [vmem:[%s6309 + $0x10] sm:$0xff]
        %v6313 = vld [vmem:[%s6309 + $0x18] sm:$0xff]
        %v6314 = vld [vmem:[%s6309 + $0x20] sm:$0xff]
        %v6315 = vld [vmem:[%s6309 + $0x28] sm:$0xff]
        %v6316 = vld [vmem:[%s6309 + $0x30] sm:$0xff]
        %v6317 = vld [vmem:[%s6309 + $0x38] sm:$0xff]
        %v6318 = vld [vmem:[%s6309 + $0x40] sm:$0xff]
        %v6319 = vld [vmem:[%s6309 + $0x48] sm:$0xff]
        %v6320 = vld [vmem:[%s6309 + $0x50] sm:$0xff]
        %v6321 = vld [vmem:[%s6309 + $0x58] sm:$0xff]
        %v6322 = vld [vmem:[%s6309 + $0x60] sm:$0xff]
        %v6323 = vld [vmem:[%s6309 + $0x68] sm:$0xff]
        %v6324 = vld [vmem:[%s6309 + $0x70] sm:$0xff]
        %v6325 = vld [vmem:[%s6309 + $0x78] sm:$0xff]
        %v6326 = vld [vmem:[%s6309 + $0x80] sm:$0xff]
        %v6327 = vld [vmem:[%s6309 + $0x88] sm:$0xff]
        %v6328 = vld [vmem:[%s6309 + $0x90] sm:$0xff]
        %v6329 = vld [vmem:[%s6309 + $0x98] sm:$0xff]
        %v6330 = vld [vmem:[%s6309 + $0xa0] sm:$0xff]
        %v6331 = vld [vmem:[%s6309 + $0xa8] sm:$0xff]
        %v6332 = vld [vmem:[%s6309 + $0xb0] sm:$0xff]
        %v6333 = vld [vmem:[%s6309 + $0xb8] sm:$0xff]
        %v6334 = vld [vmem:[%s6309 + $0xc0] sm:$0xff]
        %v6335 = vld [vmem:[%s6309 + $0xc8] sm:$0xff]
        %v6336 = vld [vmem:[%s6309 + $0xd0] sm:$0xff]
        %v6337 = vld [vmem:[%s6309 + $0xd8] sm:$0xff]
        %v6338 = vld [vmem:[%s6309 + $0xe0] sm:$0xff]
        %v6339 = vld [vmem:[%s6309 + $0xe8] sm:$0xff]
        %v6340 = vld [vmem:[%s6309 + $0xf0] sm:$0xff]
        %v6341 = vld [vmem:[%s6309 + $0xf8] sm:$0xff]
        %v6342 = vld [vmem:[%s6309 + $0x100] sm:$0xff]
        %v6343 = vld [vmem:[%s6309 + $0x108] sm:$0xff]
        %v6344 = vld [vmem:[%s6309 + $0x110] sm:$0xff]
        %v6345 = vld [vmem:[%s6309 + $0x118] sm:$0xff]
        %v6346 = vld [vmem:[%s6309 + $0x120] sm:$0xff]
        %v6347 = vld [vmem:[%s6309 + $0x128] sm:$0xff]
        %v6348 = vld [vmem:[%s6309 + $0x130] sm:$0xff]
        %v6349 = vld [vmem:[%s6309 + $0x138] sm:$0xff]
        %v6350 = vld [vmem:[%s6309 + $0x140] sm:$0xff]
        %v6351 = vld [vmem:[%s6309 + $0x148] sm:$0xff]
        %v6352 = vld [vmem:[%s6309 + $0x150] sm:$0xff]
        %v6353 = vld [vmem:[%s6309 + $0x158] sm:$0xff]
        %v6354 = vld [vmem:[%s6309 + $0x160] sm:$0xff]
        %v6355 = vld [vmem:[%s6309 + $0x168] sm:$0xff]
        %v6356 = vld [vmem:[%s6309 + $0x170] sm:$0xff]
        %v6357 = vld [vmem:[%s6309 + $0x178] sm:$0xff]
        %v6358 = vld [vmem:[%s6309 + $0x180] sm:$0xff]
        %v6359 = vld [vmem:[%s6309 + $0x188] sm:$0xff]
        %v6360 = vld [vmem:[%s6309 + $0x190] sm:$0xff]
        %v6361 = vld [vmem:[%s6309 + $0x198] sm:$0xff]
        %v6362 = vld [vmem:[%s6309 + $0x1a0] sm:$0xff]
        %v6363 = vld [vmem:[%s6309 + $0x1a8] sm:$0xff]
        %v6364 = vld [vmem:[%s6309 + $0x1b0] sm:$0xff]
        %v6365 = vld [vmem:[%s6309 + $0x1b8] sm:$0xff]
        %v6366 = vld [vmem:[%s6309 + $0x1c0] sm:$0xff]
        %v6367 = vld [vmem:[%s6309 + $0x1c8] sm:$0xff]
        %v6368 = vld [vmem:[%s6309 + $0x1d0] sm:$0xff]
        %v6369 = vld [vmem:[%s6309 + $0x1d8] sm:$0xff]
        %v6370 = vld [vmem:[%s6309 + $0x1e0] sm:$0xff]
        %v6371 = vld [vmem:[%s6309 + $0x1e8] sm:$0xff]
        %v6372 = vld [vmem:[%s6309 + $0x1f0] sm:$0xff]
        %v6373 = vld [vmem:[%s6309 + $0x1f8] sm:$0xff]
        %6374 = vmatprep.subr.mxu0 0.0
        %6375 = vmatpush1.msra.mxu0 %v6325
        %6376 = vmatprep.subr.mxu0 0.0
        %6377 = vmatpush1.msra.mxu0 %v6324
        %6378 = vmatprep.subr.mxu0 0.0
        %6379 = vmatpush1.msra.mxu0 %v6323
        %6380 = vmatprep.subr.mxu0 0.0
        %6381 = vmatpush1.msra.mxu0 %v6322
        %6382 = vmatprep.subr.mxu0 0.0
        %6383 = vmatpush1.msra.mxu0 %v6321
        %6384 = vmatprep.subr.mxu0 0.0
        %6385 = vmatpush1.msra.mxu0 %v6320
        %6386 = vmatprep.subr.mxu0 0.0
        %6387 = vmatpush1.msra.mxu0 %v6319
        %6388 = vmatprep.subr.mxu0 0.0
        %6389 = vmatpush1.msra.mxu0 %v6318
        %6390 = vmatprep.subr.mxu0 0.0
        %6391 = vmatpush1.msra.mxu0 %v6317
        %6392 = vmatprep.subr.mxu0 0.0
        %6393 = vmatpush1.msra.mxu0 %v6316
        %6394 = vmatprep.subr.mxu0 0.0
        %6395 = vmatpush1.msra.mxu0 %v6315
        %6396 = vmatprep.subr.mxu0 0.0
        %6397 = vmatpush1.msra.mxu0 %v6314
        %6398 = vmatprep.subr.mxu0 0.0
        %6399 = vmatpush1.msra.mxu0 %v6313
        %6400 = vmatprep.subr.mxu0 0.0
        %6401 = vmatpush1.msra.mxu0 %v6312
        %6402 = vmatprep.subr.mxu0 0.0
        %6403 = vmatpush1.msra.mxu0 %v6311
        %6404 = vmatprep.subr.mxu0 0.0
        %6405 = vmatpush1.msra.mxu0 %v6310
        %6406 = vmatprep.subr.mxu0 0.0
        %6407 = vmatpush2.msra.mxu0 %v6341
        %6408 = vmatprep.subr.mxu0 0.0
        %6409 = vmatpush2.msra.mxu0 %v6340
        %6410 = vmatprep.subr.mxu0 0.0
        %6411 = vmatpush2.msra.mxu0 %v6339
        %6412 = vmatprep.subr.mxu0 0.0
        %6413 = vmatpush2.msra.mxu0 %v6338
        %6414 = vmatprep.subr.mxu0 0.0
        %6415 = vmatpush2.msra.mxu0 %v6337
        %6416 = vmatprep.subr.mxu0 0.0
        %6417 = vmatpush2.msra.mxu0 %v6336
        %6418 = vmatprep.subr.mxu0 0.0
        %6419 = vmatpush2.msra.mxu0 %v6335
        %6420 = vmatprep.subr.mxu0 0.0
        %6421 = vmatpush2.msra.mxu0 %v6334
        %6422 = vmatprep.subr.mxu0 0.0
        %6423 = vmatpush2.msra.mxu0 %v6333
        %6424 = vmatprep.subr.mxu0 0.0
        %6425 = vmatpush2.msra.mxu0 %v6332
        %6426 = vmatprep.subr.mxu0 0.0
        %6427 = vmatpush2.msra.mxu0 %v6331
        %6428 = vmatprep.subr.mxu0 0.0
        %6429 = vmatpush2.msra.mxu0 %v6330
        %6430 = vmatprep.subr.mxu0 0.0
        %6431 = vmatpush2.msra.mxu0 %v6329
        %6432 = vmatprep.subr.mxu0 0.0
        %6433 = vmatpush2.msra.mxu0 %v6328
        %6434 = vmatprep.subr.mxu0 0.0
        %6435 = vmatpush2.msra.mxu0 %v6327
        %6436 = vmatprep.subr.mxu0 0.0
        %6437 = vmatpush2.msra.mxu0 %v6326
        %6438 = vmatprep.mubr.f32.mxu0 %v6306
        %6439 = vmatmul.mubr.f32.gmra.mxu0 %v6305
        %v6440 = vpop.f32.mrf.mxu0
        %v6441 = vadd.f32 0.0, %v6440
        %v6442 = vpop.f32.mrf.mxu0
        %6443 = vdwg.mxu0
        %6444 = vmatprep.subr.mxu0 0.0
        %6445 = vmatpush1.msra.mxu0 %v6357
        %6446 = vmatprep.subr.mxu0 0.0
        %6447 = vmatpush1.msra.mxu0 %v6356
        %6448 = vmatprep.subr.mxu0 0.0
        %6449 = vmatpush1.msra.mxu0 %v6355
        %6450 = vmatprep.subr.mxu0 0.0
        %6451 = vmatpush1.msra.mxu0 %v6354
        %6452 = vmatprep.subr.mxu0 0.0
        %6453 = vmatpush1.msra.mxu0 %v6353
        %6454 = vmatprep.subr.mxu0 0.0
        %6455 = vmatpush1.msra.mxu0 %v6352
        %6456 = vmatprep.subr.mxu0 0.0
        %6457 = vmatpush1.msra.mxu0 %v6351
        %6458 = vmatprep.subr.mxu0 0.0
        %6459 = vmatpush1.msra.mxu0 %v6350
        %6460 = vmatprep.subr.mxu0 0.0
        %6461 = vmatpush1.msra.mxu0 %v6349
        %6462 = vmatprep.subr.mxu0 0.0
        %6463 = vmatpush1.msra.mxu0 %v6348
        %6464 = vmatprep.subr.mxu0 0.0
        %6465 = vmatpush1.msra.mxu0 %v6347
        %6466 = vmatprep.subr.mxu0 0.0
        %6467 = vmatpush1.msra.mxu0 %v6346
        %6468 = vmatprep.subr.mxu0 0.0
        %6469 = vmatpush1.msra.mxu0 %v6345
        %6470 = vmatprep.subr.mxu0 0.0
        %6471 = vmatpush1.msra.mxu0 %v6344
        %6472 = vmatprep.subr.mxu0 0.0
        %6473 = vmatpush1.msra.mxu0 %v6343
        %6474 = vmatprep.subr.mxu0 0.0
        %6475 = vmatpush1.msra.mxu0 %v6342
        %6476 = vmatprep.subr.mxu0 0.0
        %6477 = vmatpush2.msra.mxu0 %v6373
        %6478 = vmatprep.subr.mxu0 0.0
        %6479 = vmatpush2.msra.mxu0 %v6372
        %6480 = vmatprep.subr.mxu0 0.0
        %6481 = vmatpush2.msra.mxu0 %v6371
        %6482 = vmatprep.subr.mxu0 0.0
        %6483 = vmatpush2.msra.mxu0 %v6370
        %6484 = vmatprep.subr.mxu0 0.0
        %6485 = vmatpush2.msra.mxu0 %v6369
        %6486 = vmatprep.subr.mxu0 0.0
        %6487 = vmatpush2.msra.mxu0 %v6368
        %6488 = vmatprep.subr.mxu0 0.0
        %6489 = vmatpush2.msra.mxu0 %v6367
        %6490 = vmatprep.subr.mxu0 0.0
        %6491 = vmatpush2.msra.mxu0 %v6366
        %6492 = vmatprep.subr.mxu0 0.0
        %6493 = vmatpush2.msra.mxu0 %v6365
        %6494 = vmatprep.subr.mxu0 0.0
        %6495 = vmatpush2.msra.mxu0 %v6364
        %6496 = vmatprep.subr.mxu0 0.0
        %6497 = vmatpush2.msra.mxu0 %v6363
        %6498 = vmatprep.subr.mxu0 0.0
        %6499 = vmatpush2.msra.mxu0 %v6362
        %6500 = vmatprep.subr.mxu0 0.0
        %6501 = vmatpush2.msra.mxu0 %v6361
        %6502 = vmatprep.subr.mxu0 0.0
        %6503 = vmatpush2.msra.mxu0 %v6360
        %6504 = vmatprep.subr.mxu0 0.0
        %6505 = vmatpush2.msra.mxu0 %v6359
        %6506 = vmatprep.subr.mxu0 0.0
        %6507 = vmatpush2.msra.mxu0 %v6358
        %6508 = vmatprep.mubr.f32.mxu0 %v6308
        %6509 = vmatmul.mubr.f32.gmra.mxu0 %v6307
        %v6510 = vpop.f32.mrf.mxu0
        %v6511 = vadd.f32 %v6441, %v6510
        %v6512 = vpop.f32.mrf.mxu0
        %6513 = vdwg.mxu0
        %v6514 = vadd.f32 %v6303, %v6511
        %s6515 = scalar_lea.vmem [#allocation6], 48
        %v6516 = vld [vmem:[%s6515 + $0x1] sm:$0x1]
        %v6517 = vld [vmem:[%s6515 + $0x2] sm:$0x1]
        %v6518 = vld [vmem:[%s6515 + $0x3] sm:$0x1]
        %v6519 = vld [vmem:[%s6515 + $0x4] sm:$0x1]
        %s6520 = scalar_lea.vmem %s3, 2560
        %v6521 = vld [vmem:[%s6520] sm:$0xff]
        %v6522 = vld [vmem:[%s6520 + $0x8] sm:$0xff]
        %v6523 = vld [vmem:[%s6520 + $0x10] sm:$0xff]
        %v6524 = vld [vmem:[%s6520 + $0x18] sm:$0xff]
        %v6525 = vld [vmem:[%s6520 + $0x20] sm:$0xff]
        %v6526 = vld [vmem:[%s6520 + $0x28] sm:$0xff]
        %v6527 = vld [vmem:[%s6520 + $0x30] sm:$0xff]
        %v6528 = vld [vmem:[%s6520 + $0x38] sm:$0xff]
        %v6529 = vld [vmem:[%s6520 + $0x40] sm:$0xff]
        %v6530 = vld [vmem:[%s6520 + $0x48] sm:$0xff]
        %v6531 = vld [vmem:[%s6520 + $0x50] sm:$0xff]
        %v6532 = vld [vmem:[%s6520 + $0x58] sm:$0xff]
        %v6533 = vld [vmem:[%s6520 + $0x60] sm:$0xff]
        %v6534 = vld [vmem:[%s6520 + $0x68] sm:$0xff]
        %v6535 = vld [vmem:[%s6520 + $0x70] sm:$0xff]
        %v6536 = vld [vmem:[%s6520 + $0x78] sm:$0xff]
        %v6537 = vld [vmem:[%s6520 + $0x80] sm:$0xff]
        %v6538 = vld [vmem:[%s6520 + $0x88] sm:$0xff]
        %v6539 = vld [vmem:[%s6520 + $0x90] sm:$0xff]
        %v6540 = vld [vmem:[%s6520 + $0x98] sm:$0xff]
        %v6541 = vld [vmem:[%s6520 + $0xa0] sm:$0xff]
        %v6542 = vld [vmem:[%s6520 + $0xa8] sm:$0xff]
        %v6543 = vld [vmem:[%s6520 + $0xb0] sm:$0xff]
        %v6544 = vld [vmem:[%s6520 + $0xb8] sm:$0xff]
        %v6545 = vld [vmem:[%s6520 + $0xc0] sm:$0xff]
        %v6546 = vld [vmem:[%s6520 + $0xc8] sm:$0xff]
        %v6547 = vld [vmem:[%s6520 + $0xd0] sm:$0xff]
        %v6548 = vld [vmem:[%s6520 + $0xd8] sm:$0xff]
        %v6549 = vld [vmem:[%s6520 + $0xe0] sm:$0xff]
        %v6550 = vld [vmem:[%s6520 + $0xe8] sm:$0xff]
        %v6551 = vld [vmem:[%s6520 + $0xf0] sm:$0xff]
        %v6552 = vld [vmem:[%s6520 + $0xf8] sm:$0xff]
        %v6553 = vld [vmem:[%s6520 + $0x100] sm:$0xff]
        %v6554 = vld [vmem:[%s6520 + $0x108] sm:$0xff]
        %v6555 = vld [vmem:[%s6520 + $0x110] sm:$0xff]
        %v6556 = vld [vmem:[%s6520 + $0x118] sm:$0xff]
        %v6557 = vld [vmem:[%s6520 + $0x120] sm:$0xff]
        %v6558 = vld [vmem:[%s6520 + $0x128] sm:$0xff]
        %v6559 = vld [vmem:[%s6520 + $0x130] sm:$0xff]
        %v6560 = vld [vmem:[%s6520 + $0x138] sm:$0xff]
        %v6561 = vld [vmem:[%s6520 + $0x140] sm:$0xff]
        %v6562 = vld [vmem:[%s6520 + $0x148] sm:$0xff]
        %v6563 = vld [vmem:[%s6520 + $0x150] sm:$0xff]
        %v6564 = vld [vmem:[%s6520 + $0x158] sm:$0xff]
        %v6565 = vld [vmem:[%s6520 + $0x160] sm:$0xff]
        %v6566 = vld [vmem:[%s6520 + $0x168] sm:$0xff]
        %v6567 = vld [vmem:[%s6520 + $0x170] sm:$0xff]
        %v6568 = vld [vmem:[%s6520 + $0x178] sm:$0xff]
        %v6569 = vld [vmem:[%s6520 + $0x180] sm:$0xff]
        %v6570 = vld [vmem:[%s6520 + $0x188] sm:$0xff]
        %v6571 = vld [vmem:[%s6520 + $0x190] sm:$0xff]
        %v6572 = vld [vmem:[%s6520 + $0x198] sm:$0xff]
        %v6573 = vld [vmem:[%s6520 + $0x1a0] sm:$0xff]
        %v6574 = vld [vmem:[%s6520 + $0x1a8] sm:$0xff]
        %v6575 = vld [vmem:[%s6520 + $0x1b0] sm:$0xff]
        %v6576 = vld [vmem:[%s6520 + $0x1b8] sm:$0xff]
        %v6577 = vld [vmem:[%s6520 + $0x1c0] sm:$0xff]
        %v6578 = vld [vmem:[%s6520 + $0x1c8] sm:$0xff]
        %v6579 = vld [vmem:[%s6520 + $0x1d0] sm:$0xff]
        %v6580 = vld [vmem:[%s6520 + $0x1d8] sm:$0xff]
        %v6581 = vld [vmem:[%s6520 + $0x1e0] sm:$0xff]
        %v6582 = vld [vmem:[%s6520 + $0x1e8] sm:$0xff]
        %v6583 = vld [vmem:[%s6520 + $0x1f0] sm:$0xff]
        %v6584 = vld [vmem:[%s6520 + $0x1f8] sm:$0xff]
        %6585 = vmatprep.subr.mxu0 0.0
        %6586 = vmatpush1.msra.mxu0 %v6536
        %6587 = vmatprep.subr.mxu0 0.0
        %6588 = vmatpush1.msra.mxu0 %v6535
        %6589 = vmatprep.subr.mxu0 0.0
        %6590 = vmatpush1.msra.mxu0 %v6534
        %6591 = vmatprep.subr.mxu0 0.0
        %6592 = vmatpush1.msra.mxu0 %v6533
        %6593 = vmatprep.subr.mxu0 0.0
        %6594 = vmatpush1.msra.mxu0 %v6532
        %6595 = vmatprep.subr.mxu0 0.0
        %6596 = vmatpush1.msra.mxu0 %v6531
        %6597 = vmatprep.subr.mxu0 0.0
        %6598 = vmatpush1.msra.mxu0 %v6530
        %6599 = vmatprep.subr.mxu0 0.0
        %6600 = vmatpush1.msra.mxu0 %v6529
        %6601 = vmatprep.subr.mxu0 0.0
        %6602 = vmatpush1.msra.mxu0 %v6528
        %6603 = vmatprep.subr.mxu0 0.0
        %6604 = vmatpush1.msra.mxu0 %v6527
        %6605 = vmatprep.subr.mxu0 0.0
        %6606 = vmatpush1.msra.mxu0 %v6526
        %6607 = vmatprep.subr.mxu0 0.0
        %6608 = vmatpush1.msra.mxu0 %v6525
        %6609 = vmatprep.subr.mxu0 0.0
        %6610 = vmatpush1.msra.mxu0 %v6524
        %6611 = vmatprep.subr.mxu0 0.0
        %6612 = vmatpush1.msra.mxu0 %v6523
        %6613 = vmatprep.subr.mxu0 0.0
        %6614 = vmatpush1.msra.mxu0 %v6522
        %6615 = vmatprep.subr.mxu0 0.0
        %6616 = vmatpush1.msra.mxu0 %v6521
        %6617 = vmatprep.subr.mxu0 0.0
        %6618 = vmatpush2.msra.mxu0 %v6552
        %6619 = vmatprep.subr.mxu0 0.0
        %6620 = vmatpush2.msra.mxu0 %v6551
        %6621 = vmatprep.subr.mxu0 0.0
        %6622 = vmatpush2.msra.mxu0 %v6550
        %6623 = vmatprep.subr.mxu0 0.0
        %6624 = vmatpush2.msra.mxu0 %v6549
        %6625 = vmatprep.subr.mxu0 0.0
        %6626 = vmatpush2.msra.mxu0 %v6548
        %6627 = vmatprep.subr.mxu0 0.0
        %6628 = vmatpush2.msra.mxu0 %v6547
        %6629 = vmatprep.subr.mxu0 0.0
        %6630 = vmatpush2.msra.mxu0 %v6546
        %6631 = vmatprep.subr.mxu0 0.0
        %6632 = vmatpush2.msra.mxu0 %v6545
        %6633 = vmatprep.subr.mxu0 0.0
        %6634 = vmatpush2.msra.mxu0 %v6544
        %6635 = vmatprep.subr.mxu0 0.0
        %6636 = vmatpush2.msra.mxu0 %v6543
        %6637 = vmatprep.subr.mxu0 0.0
        %6638 = vmatpush2.msra.mxu0 %v6542
        %6639 = vmatprep.subr.mxu0 0.0
        %6640 = vmatpush2.msra.mxu0 %v6541
        %6641 = vmatprep.subr.mxu0 0.0
        %6642 = vmatpush2.msra.mxu0 %v6540
        %6643 = vmatprep.subr.mxu0 0.0
        %6644 = vmatpush2.msra.mxu0 %v6539
        %6645 = vmatprep.subr.mxu0 0.0
        %6646 = vmatpush2.msra.mxu0 %v6538
        %6647 = vmatprep.subr.mxu0 0.0
        %6648 = vmatpush2.msra.mxu0 %v6537
        %6649 = vmatprep.mubr.f32.mxu0 %v6517
        %6650 = vmatmul.mubr.f32.gmra.mxu0 %v6516
        %v6651 = vpop.f32.mrf.mxu0
        %v6652 = vadd.f32 0.0, %v6651
        %v6653 = vpop.f32.mrf.mxu0
        %6654 = vdwg.mxu0
        %6655 = vmatprep.subr.mxu0 0.0
        %6656 = vmatpush1.msra.mxu0 %v6568
        %6657 = vmatprep.subr.mxu0 0.0
        %6658 = vmatpush1.msra.mxu0 %v6567
        %6659 = vmatprep.subr.mxu0 0.0
        %6660 = vmatpush1.msra.mxu0 %v6566
        %6661 = vmatprep.subr.mxu0 0.0
        %6662 = vmatpush1.msra.mxu0 %v6565
        %6663 = vmatprep.subr.mxu0 0.0
        %6664 = vmatpush1.msra.mxu0 %v6564
        %6665 = vmatprep.subr.mxu0 0.0
        %6666 = vmatpush1.msra.mxu0 %v6563
        %6667 = vmatprep.subr.mxu0 0.0
        %6668 = vmatpush1.msra.mxu0 %v6562
        %6669 = vmatprep.subr.mxu0 0.0
        %6670 = vmatpush1.msra.mxu0 %v6561
        %6671 = vmatprep.subr.mxu0 0.0
        %6672 = vmatpush1.msra.mxu0 %v6560
        %6673 = vmatprep.subr.mxu0 0.0
        %6674 = vmatpush1.msra.mxu0 %v6559
        %6675 = vmatprep.subr.mxu0 0.0
        %6676 = vmatpush1.msra.mxu0 %v6558
        %6677 = vmatprep.subr.mxu0 0.0
        %6678 = vmatpush1.msra.mxu0 %v6557
        %6679 = vmatprep.subr.mxu0 0.0
        %6680 = vmatpush1.msra.mxu0 %v6556
        %6681 = vmatprep.subr.mxu0 0.0
        %6682 = vmatpush1.msra.mxu0 %v6555
        %6683 = vmatprep.subr.mxu0 0.0
        %6684 = vmatpush1.msra.mxu0 %v6554
        %6685 = vmatprep.subr.mxu0 0.0
        %6686 = vmatpush1.msra.mxu0 %v6553
        %6687 = vmatprep.subr.mxu0 0.0
        %6688 = vmatpush2.msra.mxu0 %v6584
        %6689 = vmatprep.subr.mxu0 0.0
        %6690 = vmatpush2.msra.mxu0 %v6583
        %6691 = vmatprep.subr.mxu0 0.0
        %6692 = vmatpush2.msra.mxu0 %v6582
        %6693 = vmatprep.subr.mxu0 0.0
        %6694 = vmatpush2.msra.mxu0 %v6581
        %6695 = vmatprep.subr.mxu0 0.0
        %6696 = vmatpush2.msra.mxu0 %v6580
        %6697 = vmatprep.subr.mxu0 0.0
        %6698 = vmatpush2.msra.mxu0 %v6579
        %6699 = vmatprep.subr.mxu0 0.0
        %6700 = vmatpush2.msra.mxu0 %v6578
        %6701 = vmatprep.subr.mxu0 0.0
        %6702 = vmatpush2.msra.mxu0 %v6577
        %6703 = vmatprep.subr.mxu0 0.0
        %6704 = vmatpush2.msra.mxu0 %v6576
        %6705 = vmatprep.subr.mxu0 0.0
        %6706 = vmatpush2.msra.mxu0 %v6575
        %6707 = vmatprep.subr.mxu0 0.0
        %6708 = vmatpush2.msra.mxu0 %v6574
        %6709 = vmatprep.subr.mxu0 0.0
        %6710 = vmatpush2.msra.mxu0 %v6573
        %6711 = vmatprep.subr.mxu0 0.0
        %6712 = vmatpush2.msra.mxu0 %v6572
        %6713 = vmatprep.subr.mxu0 0.0
        %6714 = vmatpush2.msra.mxu0 %v6571
        %6715 = vmatprep.subr.mxu0 0.0
        %6716 = vmatpush2.msra.mxu0 %v6570
        %6717 = vmatprep.subr.mxu0 0.0
        %6718 = vmatpush2.msra.mxu0 %v6569
        %6719 = vmatprep.mubr.f32.mxu0 %v6519
        %6720 = vmatmul.mubr.f32.gmra.mxu0 %v6518
        %v6721 = vpop.f32.mrf.mxu0
        %v6722 = vadd.f32 %v6652, %v6721
        %v6723 = vpop.f32.mrf.mxu0
        %6724 = vdwg.mxu0
        %v6725 = vadd.f32 %v6514, %v6722
        %s6726 = scalar_lea.vmem [#allocation6], 56
        %v6727 = vld [vmem:[%s6726 + $0x1] sm:$0x1]
        %v6728 = vld [vmem:[%s6726 + $0x2] sm:$0x1]
        %v6729 = vld [vmem:[%s6726 + $0x3] sm:$0x1]
        %v6730 = vld [vmem:[%s6726 + $0x4] sm:$0x1]
        %s6731 = scalar_lea.vmem %s3, 3072
        %v6732 = vld [vmem:[%s6731] sm:$0xff]
        %v6733 = vld [vmem:[%s6731 + $0x8] sm:$0xff]
        %v6734 = vld [vmem:[%s6731 + $0x10] sm:$0xff]
        %v6735 = vld [vmem:[%s6731 + $0x18] sm:$0xff]
        %v6736 = vld [vmem:[%s6731 + $0x20] sm:$0xff]
        %v6737 = vld [vmem:[%s6731 + $0x28] sm:$0xff]
        %v6738 = vld [vmem:[%s6731 + $0x30] sm:$0xff]
        %v6739 = vld [vmem:[%s6731 + $0x38] sm:$0xff]
        %v6740 = vld [vmem:[%s6731 + $0x40] sm:$0xff]
        %v6741 = vld [vmem:[%s6731 + $0x48] sm:$0xff]
        %v6742 = vld [vmem:[%s6731 + $0x50] sm:$0xff]
        %v6743 = vld [vmem:[%s6731 + $0x58] sm:$0xff]
        %v6744 = vld [vmem:[%s6731 + $0x60] sm:$0xff]
        %v6745 = vld [vmem:[%s6731 + $0x68] sm:$0xff]
        %v6746 = vld [vmem:[%s6731 + $0x70] sm:$0xff]
        %v6747 = vld [vmem:[%s6731 + $0x78] sm:$0xff]
        %v6748 = vld [vmem:[%s6731 + $0x80] sm:$0xff]
        %v6749 = vld [vmem:[%s6731 + $0x88] sm:$0xff]
        %v6750 = vld [vmem:[%s6731 + $0x90] sm:$0xff]
        %v6751 = vld [vmem:[%s6731 + $0x98] sm:$0xff]
        %v6752 = vld [vmem:[%s6731 + $0xa0] sm:$0xff]
        %v6753 = vld [vmem:[%s6731 + $0xa8] sm:$0xff]
        %v6754 = vld [vmem:[%s6731 + $0xb0] sm:$0xff]
        %v6755 = vld [vmem:[%s6731 + $0xb8] sm:$0xff]
        %v6756 = vld [vmem:[%s6731 + $0xc0] sm:$0xff]
        %v6757 = vld [vmem:[%s6731 + $0xc8] sm:$0xff]
        %v6758 = vld [vmem:[%s6731 + $0xd0] sm:$0xff]
        %v6759 = vld [vmem:[%s6731 + $0xd8] sm:$0xff]
        %v6760 = vld [vmem:[%s6731 + $0xe0] sm:$0xff]
        %v6761 = vld [vmem:[%s6731 + $0xe8] sm:$0xff]
        %v6762 = vld [vmem:[%s6731 + $0xf0] sm:$0xff]
        %v6763 = vld [vmem:[%s6731 + $0xf8] sm:$0xff]
        %v6764 = vld [vmem:[%s6731 + $0x100] sm:$0xff]
        %v6765 = vld [vmem:[%s6731 + $0x108] sm:$0xff]
        %v6766 = vld [vmem:[%s6731 + $0x110] sm:$0xff]
        %v6767 = vld [vmem:[%s6731 + $0x118] sm:$0xff]
        %v6768 = vld [vmem:[%s6731 + $0x120] sm:$0xff]
        %v6769 = vld [vmem:[%s6731 + $0x128] sm:$0xff]
        %v6770 = vld [vmem:[%s6731 + $0x130] sm:$0xff]
        %v6771 = vld [vmem:[%s6731 + $0x138] sm:$0xff]
        %v6772 = vld [vmem:[%s6731 + $0x140] sm:$0xff]
        %v6773 = vld [vmem:[%s6731 + $0x148] sm:$0xff]
        %v6774 = vld [vmem:[%s6731 + $0x150] sm:$0xff]
        %v6775 = vld [vmem:[%s6731 + $0x158] sm:$0xff]
        %v6776 = vld [vmem:[%s6731 + $0x160] sm:$0xff]
        %v6777 = vld [vmem:[%s6731 + $0x168] sm:$0xff]
        %v6778 = vld [vmem:[%s6731 + $0x170] sm:$0xff]
        %v6779 = vld [vmem:[%s6731 + $0x178] sm:$0xff]
        %v6780 = vld [vmem:[%s6731 + $0x180] sm:$0xff]
        %v6781 = vld [vmem:[%s6731 + $0x188] sm:$0xff]
        %v6782 = vld [vmem:[%s6731 + $0x190] sm:$0xff]
        %v6783 = vld [vmem:[%s6731 + $0x198] sm:$0xff]
        %v6784 = vld [vmem:[%s6731 + $0x1a0] sm:$0xff]
        %v6785 = vld [vmem:[%s6731 + $0x1a8] sm:$0xff]
        %v6786 = vld [vmem:[%s6731 + $0x1b0] sm:$0xff]
        %v6787 = vld [vmem:[%s6731 + $0x1b8] sm:$0xff]
        %v6788 = vld [vmem:[%s6731 + $0x1c0] sm:$0xff]
        %v6789 = vld [vmem:[%s6731 + $0x1c8] sm:$0xff]
        %v6790 = vld [vmem:[%s6731 + $0x1d0] sm:$0xff]
        %v6791 = vld [vmem:[%s6731 + $0x1d8] sm:$0xff]
        %v6792 = vld [vmem:[%s6731 + $0x1e0] sm:$0xff]
        %v6793 = vld [vmem:[%s6731 + $0x1e8] sm:$0xff]
        %v6794 = vld [vmem:[%s6731 + $0x1f0] sm:$0xff]
        %v6795 = vld [vmem:[%s6731 + $0x1f8] sm:$0xff]
        %6796 = vmatprep.subr.mxu0 0.0
        %6797 = vmatpush1.msra.mxu0 %v6747
        %6798 = vmatprep.subr.mxu0 0.0
        %6799 = vmatpush1.msra.mxu0 %v6746
        %6800 = vmatprep.subr.mxu0 0.0
        %6801 = vmatpush1.msra.mxu0 %v6745
        %6802 = vmatprep.subr.mxu0 0.0
        %6803 = vmatpush1.msra.mxu0 %v6744
        %6804 = vmatprep.subr.mxu0 0.0
        %6805 = vmatpush1.msra.mxu0 %v6743
        %6806 = vmatprep.subr.mxu0 0.0
        %6807 = vmatpush1.msra.mxu0 %v6742
        %6808 = vmatprep.subr.mxu0 0.0
        %6809 = vmatpush1.msra.mxu0 %v6741
        %6810 = vmatprep.subr.mxu0 0.0
        %6811 = vmatpush1.msra.mxu0 %v6740
        %6812 = vmatprep.subr.mxu0 0.0
        %6813 = vmatpush1.msra.mxu0 %v6739
        %6814 = vmatprep.subr.mxu0 0.0
        %6815 = vmatpush1.msra.mxu0 %v6738
        %6816 = vmatprep.subr.mxu0 0.0
        %6817 = vmatpush1.msra.mxu0 %v6737
        %6818 = vmatprep.subr.mxu0 0.0
        %6819 = vmatpush1.msra.mxu0 %v6736
        %6820 = vmatprep.subr.mxu0 0.0
        %6821 = vmatpush1.msra.mxu0 %v6735
        %6822 = vmatprep.subr.mxu0 0.0
        %6823 = vmatpush1.msra.mxu0 %v6734
        %6824 = vmatprep.subr.mxu0 0.0
        %6825 = vmatpush1.msra.mxu0 %v6733
        %6826 = vmatprep.subr.mxu0 0.0
        %6827 = vmatpush1.msra.mxu0 %v6732
        %6828 = vmatprep.subr.mxu0 0.0
        %6829 = vmatpush2.msra.mxu0 %v6763
        %6830 = vmatprep.subr.mxu0 0.0
        %6831 = vmatpush2.msra.mxu0 %v6762
        %6832 = vmatprep.subr.mxu0 0.0
        %6833 = vmatpush2.msra.mxu0 %v6761
        %6834 = vmatprep.subr.mxu0 0.0
        %6835 = vmatpush2.msra.mxu0 %v6760
        %6836 = vmatprep.subr.mxu0 0.0
        %6837 = vmatpush2.msra.mxu0 %v6759
        %6838 = vmatprep.subr.mxu0 0.0
        %6839 = vmatpush2.msra.mxu0 %v6758
        %6840 = vmatprep.subr.mxu0 0.0
        %6841 = vmatpush2.msra.mxu0 %v6757
        %6842 = vmatprep.subr.mxu0 0.0
        %6843 = vmatpush2.msra.mxu0 %v6756
        %6844 = vmatprep.subr.mxu0 0.0
        %6845 = vmatpush2.msra.mxu0 %v6755
        %6846 = vmatprep.subr.mxu0 0.0
        %6847 = vmatpush2.msra.mxu0 %v6754
        %6848 = vmatprep.subr.mxu0 0.0
        %6849 = vmatpush2.msra.mxu0 %v6753
        %6850 = vmatprep.subr.mxu0 0.0
        %6851 = vmatpush2.msra.mxu0 %v6752
        %6852 = vmatprep.subr.mxu0 0.0
        %6853 = vmatpush2.msra.mxu0 %v6751
        %6854 = vmatprep.subr.mxu0 0.0
        %6855 = vmatpush2.msra.mxu0 %v6750
        %6856 = vmatprep.subr.mxu0 0.0
        %6857 = vmatpush2.msra.mxu0 %v6749
        %6858 = vmatprep.subr.mxu0 0.0
        %6859 = vmatpush2.msra.mxu0 %v6748
        %6860 = vmatprep.mubr.f32.mxu0 %v6728
        %6861 = vmatmul.mubr.f32.gmra.mxu0 %v6727
        %v6862 = vpop.f32.mrf.mxu0
        %v6863 = vadd.f32 0.0, %v6862
        %v6864 = vpop.f32.mrf.mxu0
        %6865 = vdwg.mxu0
        %6866 = vmatprep.subr.mxu0 0.0
        %6867 = vmatpush1.msra.mxu0 %v6779
        %6868 = vmatprep.subr.mxu0 0.0
        %6869 = vmatpush1.msra.mxu0 %v6778
        %6870 = vmatprep.subr.mxu0 0.0
        %6871 = vmatpush1.msra.mxu0 %v6777
        %6872 = vmatprep.subr.mxu0 0.0
        %6873 = vmatpush1.msra.mxu0 %v6776
        %6874 = vmatprep.subr.mxu0 0.0
        %6875 = vmatpush1.msra.mxu0 %v6775
        %6876 = vmatprep.subr.mxu0 0.0
        %6877 = vmatpush1.msra.mxu0 %v6774
        %6878 = vmatprep.subr.mxu0 0.0
        %6879 = vmatpush1.msra.mxu0 %v6773
        %6880 = vmatprep.subr.mxu0 0.0
        %6881 = vmatpush1.msra.mxu0 %v6772
        %6882 = vmatprep.subr.mxu0 0.0
        %6883 = vmatpush1.msra.mxu0 %v6771
        %6884 = vmatprep.subr.mxu0 0.0
        %6885 = vmatpush1.msra.mxu0 %v6770
        %6886 = vmatprep.subr.mxu0 0.0
        %6887 = vmatpush1.msra.mxu0 %v6769
        %6888 = vmatprep.subr.mxu0 0.0
        %6889 = vmatpush1.msra.mxu0 %v6768
        %6890 = vmatprep.subr.mxu0 0.0
        %6891 = vmatpush1.msra.mxu0 %v6767
        %6892 = vmatprep.subr.mxu0 0.0
        %6893 = vmatpush1.msra.mxu0 %v6766
        %6894 = vmatprep.subr.mxu0 0.0
        %6895 = vmatpush1.msra.mxu0 %v6765
        %6896 = vmatprep.subr.mxu0 0.0
        %6897 = vmatpush1.msra.mxu0 %v6764
        %6898 = vmatprep.subr.mxu0 0.0
        %6899 = vmatpush2.msra.mxu0 %v6795
        %6900 = vmatprep.subr.mxu0 0.0
        %6901 = vmatpush2.msra.mxu0 %v6794
        %6902 = vmatprep.subr.mxu0 0.0
        %6903 = vmatpush2.msra.mxu0 %v6793
        %6904 = vmatprep.subr.mxu0 0.0
        %6905 = vmatpush2.msra.mxu0 %v6792
        %6906 = vmatprep.subr.mxu0 0.0
        %6907 = vmatpush2.msra.mxu0 %v6791
        %6908 = vmatprep.subr.mxu0 0.0
        %6909 = vmatpush2.msra.mxu0 %v6790
        %6910 = vmatprep.subr.mxu0 0.0
        %6911 = vmatpush2.msra.mxu0 %v6789
        %6912 = vmatprep.subr.mxu0 0.0
        %6913 = vmatpush2.msra.mxu0 %v6788
        %6914 = vmatprep.subr.mxu0 0.0
        %6915 = vmatpush2.msra.mxu0 %v6787
        %6916 = vmatprep.subr.mxu0 0.0
        %6917 = vmatpush2.msra.mxu0 %v6786
        %6918 = vmatprep.subr.mxu0 0.0
        %6919 = vmatpush2.msra.mxu0 %v6785
        %6920 = vmatprep.subr.mxu0 0.0
        %6921 = vmatpush2.msra.mxu0 %v6784
        %6922 = vmatprep.subr.mxu0 0.0
        %6923 = vmatpush2.msra.mxu0 %v6783
        %6924 = vmatprep.subr.mxu0 0.0
        %6925 = vmatpush2.msra.mxu0 %v6782
        %6926 = vmatprep.subr.mxu0 0.0
        %6927 = vmatpush2.msra.mxu0 %v6781
        %6928 = vmatprep.subr.mxu0 0.0
        %6929 = vmatpush2.msra.mxu0 %v6780
        %6930 = vmatprep.mubr.f32.mxu0 %v6730
        %6931 = vmatmul.mubr.f32.gmra.mxu0 %v6729
        %v6932 = vpop.f32.mrf.mxu0
        %v6933 = vadd.f32 %v6863, %v6932
        %v6934 = vpop.f32.mrf.mxu0
        %6935 = vdwg.mxu0
        %v6936 = vadd.f32 %v6725, %v6933
        %s6937 = scalar_lea.vmem [#allocation6], 64
        %v6938 = vld [vmem:[%s6937 + $0x1] sm:$0x1]
        %v6939 = vld [vmem:[%s6937 + $0x2] sm:$0x1]
        %v6940 = vld [vmem:[%s6937 + $0x3] sm:$0x1]
        %v6941 = vld [vmem:[%s6937 + $0x4] sm:$0x1]
        %s6942 = scalar_lea.vmem %s3, 3584
        %v6943 = vld [vmem:[%s6942] sm:$0xff]
        %v6944 = vld [vmem:[%s6942 + $0x8] sm:$0xff]
        %v6945 = vld [vmem:[%s6942 + $0x10] sm:$0xff]
        %v6946 = vld [vmem:[%s6942 + $0x18] sm:$0xff]
        %v6947 = vld [vmem:[%s6942 + $0x20] sm:$0xff]
        %v6948 = vld [vmem:[%s6942 + $0x28] sm:$0xff]
        %v6949 = vld [vmem:[%s6942 + $0x30] sm:$0xff]
        %v6950 = vld [vmem:[%s6942 + $0x38] sm:$0xff]
        %v6951 = vld [vmem:[%s6942 + $0x40] sm:$0xff]
        %v6952 = vld [vmem:[%s6942 + $0x48] sm:$0xff]
        %v6953 = vld [vmem:[%s6942 + $0x50] sm:$0xff]
        %v6954 = vld [vmem:[%s6942 + $0x58] sm:$0xff]
        %v6955 = vld [vmem:[%s6942 + $0x60] sm:$0xff]
        %v6956 = vld [vmem:[%s6942 + $0x68] sm:$0xff]
        %v6957 = vld [vmem:[%s6942 + $0x70] sm:$0xff]
        %v6958 = vld [vmem:[%s6942 + $0x78] sm:$0xff]
        %v6959 = vld [vmem:[%s6942 + $0x80] sm:$0xff]
        %v6960 = vld [vmem:[%s6942 + $0x88] sm:$0xff]
        %v6961 = vld [vmem:[%s6942 + $0x90] sm:$0xff]
        %v6962 = vld [vmem:[%s6942 + $0x98] sm:$0xff]
        %v6963 = vld [vmem:[%s6942 + $0xa0] sm:$0xff]
        %v6964 = vld [vmem:[%s6942 + $0xa8] sm:$0xff]
        %v6965 = vld [vmem:[%s6942 + $0xb0] sm:$0xff]
        %v6966 = vld [vmem:[%s6942 + $0xb8] sm:$0xff]
        %v6967 = vld [vmem:[%s6942 + $0xc0] sm:$0xff]
        %v6968 = vld [vmem:[%s6942 + $0xc8] sm:$0xff]
        %v6969 = vld [vmem:[%s6942 + $0xd0] sm:$0xff]
        %v6970 = vld [vmem:[%s6942 + $0xd8] sm:$0xff]
        %v6971 = vld [vmem:[%s6942 + $0xe0] sm:$0xff]
        %v6972 = vld [vmem:[%s6942 + $0xe8] sm:$0xff]
        %v6973 = vld [vmem:[%s6942 + $0xf0] sm:$0xff]
        %v6974 = vld [vmem:[%s6942 + $0xf8] sm:$0xff]
        %v6975 = vld [vmem:[%s6942 + $0x100] sm:$0xff]
        %v6976 = vld [vmem:[%s6942 + $0x108] sm:$0xff]
        %v6977 = vld [vmem:[%s6942 + $0x110] sm:$0xff]
        %v6978 = vld [vmem:[%s6942 + $0x118] sm:$0xff]
        %v6979 = vld [vmem:[%s6942 + $0x120] sm:$0xff]
        %v6980 = vld [vmem:[%s6942 + $0x128] sm:$0xff]
        %v6981 = vld [vmem:[%s6942 + $0x130] sm:$0xff]
        %v6982 = vld [vmem:[%s6942 + $0x138] sm:$0xff]
        %v6983 = vld [vmem:[%s6942 + $0x140] sm:$0xff]
        %v6984 = vld [vmem:[%s6942 + $0x148] sm:$0xff]
        %v6985 = vld [vmem:[%s6942 + $0x150] sm:$0xff]
        %v6986 = vld [vmem:[%s6942 + $0x158] sm:$0xff]
        %v6987 = vld [vmem:[%s6942 + $0x160] sm:$0xff]
        %v6988 = vld [vmem:[%s6942 + $0x168] sm:$0xff]
        %v6989 = vld [vmem:[%s6942 + $0x170] sm:$0xff]
        %v6990 = vld [vmem:[%s6942 + $0x178] sm:$0xff]
        %v6991 = vld [vmem:[%s6942 + $0x180] sm:$0xff]
        %v6992 = vld [vmem:[%s6942 + $0x188] sm:$0xff]
        %v6993 = vld [vmem:[%s6942 + $0x190] sm:$0xff]
        %v6994 = vld [vmem:[%s6942 + $0x198] sm:$0xff]
        %v6995 = vld [vmem:[%s6942 + $0x1a0] sm:$0xff]
        %v6996 = vld [vmem:[%s6942 + $0x1a8] sm:$0xff]
        %v6997 = vld [vmem:[%s6942 + $0x1b0] sm:$0xff]
        %v6998 = vld [vmem:[%s6942 + $0x1b8] sm:$0xff]
        %v6999 = vld [vmem:[%s6942 + $0x1c0] sm:$0xff]
        %v7000 = vld [vmem:[%s6942 + $0x1c8] sm:$0xff]
        %v7001 = vld [vmem:[%s6942 + $0x1d0] sm:$0xff]
        %v7002 = vld [vmem:[%s6942 + $0x1d8] sm:$0xff]
        %v7003 = vld [vmem:[%s6942 + $0x1e0] sm:$0xff]
        %v7004 = vld [vmem:[%s6942 + $0x1e8] sm:$0xff]
        %v7005 = vld [vmem:[%s6942 + $0x1f0] sm:$0xff]
        %v7006 = vld [vmem:[%s6942 + $0x1f8] sm:$0xff]
        %7007 = vmatprep.subr.mxu0 0.0
        %7008 = vmatpush1.msra.mxu0 %v6958
        %7009 = vmatprep.subr.mxu0 0.0
        %7010 = vmatpush1.msra.mxu0 %v6957
        %7011 = vmatprep.subr.mxu0 0.0
        %7012 = vmatpush1.msra.mxu0 %v6956
        %7013 = vmatprep.subr.mxu0 0.0
        %7014 = vmatpush1.msra.mxu0 %v6955
        %7015 = vmatprep.subr.mxu0 0.0
        %7016 = vmatpush1.msra.mxu0 %v6954
        %7017 = vmatprep.subr.mxu0 0.0
        %7018 = vmatpush1.msra.mxu0 %v6953
        %7019 = vmatprep.subr.mxu0 0.0
        %7020 = vmatpush1.msra.mxu0 %v6952
        %7021 = vmatprep.subr.mxu0 0.0
        %7022 = vmatpush1.msra.mxu0 %v6951
        %7023 = vmatprep.subr.mxu0 0.0
        %7024 = vmatpush1.msra.mxu0 %v6950
        %7025 = vmatprep.subr.mxu0 0.0
        %7026 = vmatpush1.msra.mxu0 %v6949
        %7027 = vmatprep.subr.mxu0 0.0
        %7028 = vmatpush1.msra.mxu0 %v6948
        %7029 = vmatprep.subr.mxu0 0.0
        %7030 = vmatpush1.msra.mxu0 %v6947
        %7031 = vmatprep.subr.mxu0 0.0
        %7032 = vmatpush1.msra.mxu0 %v6946
        %7033 = vmatprep.subr.mxu0 0.0
        %7034 = vmatpush1.msra.mxu0 %v6945
        %7035 = vmatprep.subr.mxu0 0.0
        %7036 = vmatpush1.msra.mxu0 %v6944
        %7037 = vmatprep.subr.mxu0 0.0
        %7038 = vmatpush1.msra.mxu0 %v6943
        %7039 = vmatprep.subr.mxu0 0.0
        %7040 = vmatpush2.msra.mxu0 %v6974
        %7041 = vmatprep.subr.mxu0 0.0
        %7042 = vmatpush2.msra.mxu0 %v6973
        %7043 = vmatprep.subr.mxu0 0.0
        %7044 = vmatpush2.msra.mxu0 %v6972
        %7045 = vmatprep.subr.mxu0 0.0
        %7046 = vmatpush2.msra.mxu0 %v6971
        %7047 = vmatprep.subr.mxu0 0.0
        %7048 = vmatpush2.msra.mxu0 %v6970
        %7049 = vmatprep.subr.mxu0 0.0
        %7050 = vmatpush2.msra.mxu0 %v6969
        %7051 = vmatprep.subr.mxu0 0.0
        %7052 = vmatpush2.msra.mxu0 %v6968
        %7053 = vmatprep.subr.mxu0 0.0
        %7054 = vmatpush2.msra.mxu0 %v6967
        %7055 = vmatprep.subr.mxu0 0.0
        %7056 = vmatpush2.msra.mxu0 %v6966
        %7057 = vmatprep.subr.mxu0 0.0
        %7058 = vmatpush2.msra.mxu0 %v6965
        %7059 = vmatprep.subr.mxu0 0.0
        %7060 = vmatpush2.msra.mxu0 %v6964
        %7061 = vmatprep.subr.mxu0 0.0
        %7062 = vmatpush2.msra.mxu0 %v6963
        %7063 = vmatprep.subr.mxu0 0.0
        %7064 = vmatpush2.msra.mxu0 %v6962
        %7065 = vmatprep.subr.mxu0 0.0
        %7066 = vmatpush2.msra.mxu0 %v6961
        %7067 = vmatprep.subr.mxu0 0.0
        %7068 = vmatpush2.msra.mxu0 %v6960
        %7069 = vmatprep.subr.mxu0 0.0
        %7070 = vmatpush2.msra.mxu0 %v6959
        %7071 = vmatprep.mubr.f32.mxu0 %v6939
        %7072 = vmatmul.mubr.f32.gmra.mxu0 %v6938
        %v7073 = vpop.f32.mrf.mxu0
        %v7074 = vadd.f32 0.0, %v7073
        %v7075 = vpop.f32.mrf.mxu0
        %7076 = vdwg.mxu0
        %7077 = vmatprep.subr.mxu0 0.0
        %7078 = vmatpush1.msra.mxu0 %v6990
        %7079 = vmatprep.subr.mxu0 0.0
        %7080 = vmatpush1.msra.mxu0 %v6989
        %7081 = vmatprep.subr.mxu0 0.0
        %7082 = vmatpush1.msra.mxu0 %v6988
        %7083 = vmatprep.subr.mxu0 0.0
        %7084 = vmatpush1.msra.mxu0 %v6987
        %7085 = vmatprep.subr.mxu0 0.0
        %7086 = vmatpush1.msra.mxu0 %v6986
        %7087 = vmatprep.subr.mxu0 0.0
        %7088 = vmatpush1.msra.mxu0 %v6985
        %7089 = vmatprep.subr.mxu0 0.0
        %7090 = vmatpush1.msra.mxu0 %v6984
        %7091 = vmatprep.subr.mxu0 0.0
        %7092 = vmatpush1.msra.mxu0 %v6983
        %7093 = vmatprep.subr.mxu0 0.0
        %7094 = vmatpush1.msra.mxu0 %v6982
        %7095 = vmatprep.subr.mxu0 0.0
        %7096 = vmatpush1.msra.mxu0 %v6981
        %7097 = vmatprep.subr.mxu0 0.0
        %7098 = vmatpush1.msra.mxu0 %v6980
        %7099 = vmatprep.subr.mxu0 0.0
        %7100 = vmatpush1.msra.mxu0 %v6979
        %7101 = vmatprep.subr.mxu0 0.0
        %7102 = vmatpush1.msra.mxu0 %v6978
        %7103 = vmatprep.subr.mxu0 0.0
        %7104 = vmatpush1.msra.mxu0 %v6977
        %7105 = vmatprep.subr.mxu0 0.0
        %7106 = vmatpush1.msra.mxu0 %v6976
        %7107 = vmatprep.subr.mxu0 0.0
        %7108 = vmatpush1.msra.mxu0 %v6975
        %7109 = vmatprep.subr.mxu0 0.0
        %7110 = vmatpush2.msra.mxu0 %v7006
        %7111 = vmatprep.subr.mxu0 0.0
        %7112 = vmatpush2.msra.mxu0 %v7005
        %7113 = vmatprep.subr.mxu0 0.0
        %7114 = vmatpush2.msra.mxu0 %v7004
        %7115 = vmatprep.subr.mxu0 0.0
        %7116 = vmatpush2.msra.mxu0 %v7003
        %7117 = vmatprep.subr.mxu0 0.0
        %7118 = vmatpush2.msra.mxu0 %v7002
        %7119 = vmatprep.subr.mxu0 0.0
        %7120 = vmatpush2.msra.mxu0 %v7001
        %7121 = vmatprep.subr.mxu0 0.0
        %7122 = vmatpush2.msra.mxu0 %v7000
        %7123 = vmatprep.subr.mxu0 0.0
        %7124 = vmatpush2.msra.mxu0 %v6999
        %7125 = vmatprep.subr.mxu0 0.0
        %7126 = vmatpush2.msra.mxu0 %v6998
        %7127 = vmatprep.subr.mxu0 0.0
        %7128 = vmatpush2.msra.mxu0 %v6997
        %7129 = vmatprep.subr.mxu0 0.0
        %7130 = vmatpush2.msra.mxu0 %v6996
        %7131 = vmatprep.subr.mxu0 0.0
        %7132 = vmatpush2.msra.mxu0 %v6995
        %7133 = vmatprep.subr.mxu0 0.0
        %7134 = vmatpush2.msra.mxu0 %v6994
        %7135 = vmatprep.subr.mxu0 0.0
        %7136 = vmatpush2.msra.mxu0 %v6993
        %7137 = vmatprep.subr.mxu0 0.0
        %7138 = vmatpush2.msra.mxu0 %v6992
        %7139 = vmatprep.subr.mxu0 0.0
        %7140 = vmatpush2.msra.mxu0 %v6991
        %7141 = vmatprep.mubr.f32.mxu0 %v6941
        %7142 = vmatmul.mubr.f32.gmra.mxu0 %v6940
        %v7143 = vpop.f32.mrf.mxu0
        %v7144 = vadd.f32 %v7074, %v7143
        %v7145 = vpop.f32.mrf.mxu0
        %7146 = vdwg.mxu0
        %v7147 = vadd.f32 %v6936, %v7144
        %v7148 = vld [vmem:[%s4 + $0x5] sm:$0x1]
        %v7149 = vadd.f32 %v7147, %v7148
        %vm7150 = vcmask 516096
        %7151 = vst.msk [vmem:[%s216] sm:$0x1] %vm7150, %v7149
        %s7152 = sand.u32 %s137, 1
        %s7153 = scalar_lea.sflag [#allocation8], %s7152
        %s7154 = sand.u32 %s137, 1
        %s7155 = scalar_lea.vmem [#allocation7], %s7154
        // Predicated region
        $region76: #{enc_conv_forward.1} parent=39 // pred_check
          %p7156 = pneg %p147
        $region77: #{enc_conv_forward.1} parent=39 // pred_check_branch
          %7158 = sbr.rel (%p7156) target = $region79
        $region78: #{enc_conv_forward.1} parent=39 // pred_region
          %s7160 = ssub.s32 16, 16
          %7161 = vsyncadd %s7153, %s7160
          %s7162 = smul.addr %s19, 16
          %s7163 = scalar_lea.hbm %s5, %s7162
          %s7165 = sshll.u32 %s7155, 4
          %s7166 = int_to_ptr.vmem [resolvable:$true] %s7165
          %7168 = dma.vmem_to_hbm [thread:$0]  %s7166, 16, %s7163, %s7153
        $region79: #{enc_conv_forward.1} parent=39 // pred_fallthru
          _
      $region40: #{enc_conv_forward.1} parent=5 // pred_fallthru
        _
      %p7169 = scmp.le.s32.totalorder 2, %s14
      // Predicated region
      $region80: #{enc_conv_forward.1} parent=5 // pred_check
        %p7170 = pneg %p7169
      $region81: #{enc_conv_forward.1} parent=5 // pred_check_branch
        %7172 = sbr.rel (%p7170) target = $region83
      $region82: #{enc_conv_forward.1} parent=5 // pred_region
        %s7173 = ssub.s32 %s14, 2
        // Predicated region
        $region84: #{enc_conv_forward.1} parent=82 // pred_check
          %p7174 = pneg %p153
        $region85: #{enc_conv_forward.1} parent=82 // pred_check_branch
          %7176 = sbr.rel (%p7174) target = $region87
        $region86: #{enc_conv_forward.1} parent=82 // pred_region
          %s7177 = sand.u32 %s138, 1
          %s7178 = scalar_lea.sflag [#allocation8], %s7177
          %s7179 = sand.u32 %s138, 1
          %s7180 = scalar_lea.vmem [#allocation7], %s7179
          %7181 = dma.done %s7178, 16
        $region87: #{enc_conv_forward.1} parent=82 // pred_fallthru
          _
      $region83: #{enc_conv_forward.1} parent=5 // pred_fallthru
        _
    $region6: #{enc_conv_forward.1} parent=1 // loop_footer
      %s18 = sadd.s32 1, %s14
    $region7: #{enc_conv_forward.1} parent=1 // loop_footer_branch
      %13 = sbr.rel target = $region3
    $region8: #{enc_conv_forward.1} parent=1 // loop_exit
      _
    %7182 = vsyncpa [#allocation8], 1
    %s7183 = scalar_lea.sflag [#allocation8], 1
    %7184 = vsyncpa %s7183, 1

</llo_original>
